<compile_context>
chip_gen: v7x
topology: tpu7x:2x2x1
jax: 0.10.0
libtpu: 0.0.40
codegen_flags: <defaults>
</compile_context>

<pallas_src>
import functools

import jax
import jax.numpy as jnp
from jax.experimental import pallas as pl
from jax.experimental.pallas import tpu as pltpu

IN_DIM = 1024
HID_DIM = 1024
OUT_DIM = 1


def _domain_classifier_kernel(x_ref, w1_ref, b1_ref, w2_ref, b2_ref, o_ref):
    # x_ref : (tb, 1024)   bf16     w1_ref : (1024, 1024) bf16
    # b1_ref: (1, 1024)    f32      w2_ref : (1, 1024)    f32  (fc2.weight row)
    # b2_ref: (1, 1)       f32      o_ref  : (tb, 1)      f32
    #
    # grad_reverse: identity in forward.  Dropout2d(0.25): eval-mode identity.

    # fc1 on the MXU: bf16 x bf16 operands, f32 accumulation.
    h = jnp.dot(x_ref[...], w1_ref[...], preferred_element_type=jnp.float32)
    h = jnp.maximum(h + b1_ref[...], 0.0)

    # fc2 (1024 -> 1) on VPU (mul) + XLU (lane reduce): avoids a lane-sparse
    # (1024, 1) MXU operand and its padded VMEM load.
    logit = jnp.sum(h * w2_ref[...], axis=-1, keepdims=True) + b2_ref[...]

    o_ref[...] = jax.nn.sigmoid(logit).astype(o_ref.dtype)


@functools.partial(jax.jit, static_argnames=("tb",))
def domain_classifier_forward(x, w1, b1, w2, b2, *, lambd=0.5, tb=256):
    """Forward pass of DomainClassifier.

    x : (B, 1024) float.  Returns (B, 1) f32 = sigmoid(fc2(relu(fc1(x)))).
    w1: (1024, 1024) = fc1.weight.T, b1: (1024,) or (1, 1024)
    w2: fc2.weight as (1, 1024) or (1024, 1), b2: (1,) or (1, 1)
    lambd only affects the (unimplemented) backward of grad_reverse.
    """
    del lambd  # forward-pass identity
    B, D = x.shape
    assert D == IN_DIM

    # Pad the batch to a multiple of the tile so any B works at full tile size.
    n_blocks = pl.cdiv(B, tb)
    Bp = n_blocks * tb

    xb = x.astype(jnp.bfloat16)
    if Bp != B:
        xb = jnp.pad(xb, ((0, Bp - B), (0, 0)))

    w1b = w1.astype(jnp.bfloat16)
    b1r = jnp.asarray(b1, jnp.float32).reshape(1, HID_DIM)
    w2r = jnp.asarray(w2, jnp.float32).reshape(1, HID_DIM)   # lane-dense row
    b2r = jnp.asarray(b2, jnp.float32).reshape(1, OUT_DIM)

    out = pl.pallas_call(
        _domain_classifier_kernel,
        out_shape=jax.ShapeDtypeStruct((Bp, OUT_DIM), jnp.float32),
        grid_spec=pltpu.PrefetchScalarGridSpec(
            num_scalar_prefetch=0,
            grid=(n_blocks,),
            in_specs=[
                pl.BlockSpec((tb, IN_DIM), lambda i: (i, 0)),        # x tile (bf16)
                pl.BlockSpec((IN_DIM, HID_DIM), lambda i: (0, 0)),   # w1 resident (bf16)
                pl.BlockSpec((1, HID_DIM), lambda i: (0, 0)),        # b1
                pl.BlockSpec((1, HID_DIM), lambda i: (0, 0)),        # w2 row
                pl.BlockSpec((1, OUT_DIM), lambda i: (0, 0)),        # b2
            ],
            out_specs=pl.BlockSpec((tb, OUT_DIM), lambda i: (i, 0)),
        ),
        compiler_params=pltpu.CompilerParams(
            dimension_semantics=("parallel",),          # batch axis shards across TCs
            vmem_limit_bytes=32 * 1024 * 1024,          # explicit headroom (v5e default is 16 MiB)
        ),
    )(xb, w1b, b1r, w2r, b2r)

    return out[:B]


def _reference_forward(x, w1, b1, w2, b2):
    # Matches the kernel's numerics: bf16-cast operands, f32 accumulation.
    xb = x.astype(jnp.bfloat16).astype(jnp.float32)
    w1b = w1.astype(jnp.bfloat16).astype(jnp.float32)
    h = jnp.maximum(
        jnp.dot(xb, w1b, precision=jax.lax.Precision.HIGHEST)
        + jnp.asarray(b1, jnp.float32).reshape(1, HID_DIM),
        0.0,
    )
    logit = (
        jnp.sum(h * jnp.asarray(w2, jnp.float32).reshape(1, HID_DIM), axis=-1, keepdims=True)
        + jnp.asarray(b2, jnp.float32).reshape(1, OUT_DIM)
    )
    return jax.nn.sigmoid(logit)


if __name__ == "__main__":
    key = jax.random.PRNGKey(0)
    k_x, k_w1, k_b1, k_w2, k_b2 = jax.random.split(key, 5)

    # Deterministic PyTorch-like init: U(-1/sqrt(fan_in), 1/sqrt(fan_in)).
    bound1 = 1.0 / jnp.sqrt(float(IN_DIM))
    w1 = jax.random.uniform(k_w1, (IN_DIM, HID_DIM), jnp.float32, -bound1, bound1)
    b1 = jax.random.uniform(k_b1, (HID_DIM,), jnp.float32, -bound1, bound1)

    bound2 = 1.0 / jnp.sqrt(float(HID_DIM))
    w2 = jax.random.uniform(k_w2, (OUT_DIM, HID_DIM), jnp.float32, -bound2, bound2)  # fc2.weight
    b2 = jax.random.uniform(k_b2, (OUT_DIM,), jnp.float32, -bound2, bound2)

    # Small batch (padded internally to one 256-row tile).
    B = 8
    x = jax.random.normal(k_x, (B, IN_DIM), dtype=jnp.float32)
    out = jax.block_until_ready(domain_classifier_forward(x, w1, b1, w2, b2))
    ref = _reference_forward(x, w1, b1, w2, b2)
    assert out.shape == (B, OUT_DIM), out.shape
    assert jnp.allclose(out, ref, atol=1e-3, rtol=1e-3), (out, ref)

    # Ragged, multi-tile batch (exercises padding + multiple grid steps).
    B2 = 300
    x2 = jax.random.normal(jax.random.PRNGKey(1), (B2, IN_DIM), dtype=jnp.float32)
    out2 = jax.block_until_ready(domain_classifier_forward(x2, w1, b1, w2, b2))
    ref2 = _reference_forward(x2, w1, b1, w2, b2)
    assert out2.shape == (B2, OUT_DIM), out2.shape
    assert jnp.allclose(out2, ref2, atol=1e-3, rtol=1e-3)

    print("KERNEL_OK")
</pallas_src>

<mosaic_0001>
module attributes {stable_mosaic.version = 11 : i64} {
  func.func @_domain_classifier_kernel(%arg0: i32, %arg1: memref<256x1024xbf16, #tpu.memory_space<vmem>>, %arg2: memref<1024x1024xbf16, #tpu.memory_space<vmem>>, %arg3: memref<1x1024xf32, #tpu.memory_space<vmem>>, %arg4: memref<1x1024xf32, #tpu.memory_space<vmem>>, %arg5: memref<1x1xf32, #tpu.memory_space<vmem>>, %arg6: memref<256x1xf32, #tpu.memory_space<vmem>>) attributes {dimension_semantics = [#tpu.dimension_semantics<parallel>], iteration_bounds = array<i64: 1>, scalar_prefetch = 0 : i64, scratch_operands = 0 : i64, tpu.core_type = #tpu.core_type<tc>, window_params = [{transform_indices = @transform_0, window_bounds = array<i64: 256, 1024>}, {pipeline_mode = #tpu.pipeline_mode<synchronous>, transform_indices = @transform_1, window_bounds = array<i64: 1024, 1024>}, {pipeline_mode = #tpu.pipeline_mode<synchronous>, transform_indices = @transform_2, window_bounds = array<i64: 1, 1024>}, {pipeline_mode = #tpu.pipeline_mode<synchronous>, transform_indices = @transform_3, window_bounds = array<i64: 1, 1024>}, {pipeline_mode = #tpu.pipeline_mode<synchronous>, transform_indices = @transform_4, window_bounds = array<i64: 1, 1>}, {transform_indices = @transform_5, window_bounds = array<i64: 256, 1>}]} {
    %c0 = arith.constant 0 : index
    %c0_0 = arith.constant 0 : index
    %0 = vector.load %arg1[%c0, %c0_0] : memref<256x1024xbf16, #tpu.memory_space<vmem>>, vector<256x1024xbf16>
    %c0_1 = arith.constant 0 : index
    %c0_2 = arith.constant 0 : index
    %1 = vector.load %arg2[%c0_1, %c0_2] : memref<1024x1024xbf16, #tpu.memory_space<vmem>>, vector<1024x1024xbf16>
    %cst = arith.constant dense<0.000000e+00> : vector<256x1024xf32>
    %2 = tpu.matmul %0, %1, %cst {dimension_numbers = #tpu.dot_dimension_numbers<[1], [0], [0], [1], [0, 0, 1, 1], [], []>} : vector<256x1024xbf16>, vector<1024x1024xbf16>, vector<256x1024xf32> -> vector<256x1024xf32>
    %c0_3 = arith.constant 0 : index
    %c0_4 = arith.constant 0 : index
    %3 = vector.load %arg3[%c0_3, %c0_4] : memref<1x1024xf32, #tpu.memory_space<vmem>>, vector<1x1024xf32>
    %4 = vector.broadcast %3 : vector<1x1024xf32> to vector<256x1024xf32>
    %5 = arith.addf %2, %4 : vector<256x1024xf32>
    %cst_5 = arith.constant 0.000000e+00 : f32
    %6 = vector.broadcast %cst_5 : f32 to vector<256x1024xf32>
    %7 = arith.maximumf %5, %6 : vector<256x1024xf32>
    %c0_6 = arith.constant 0 : index
    %c0_7 = arith.constant 0 : index
    %8 = vector.load %arg4[%c0_6, %c0_7] : memref<1x1024xf32, #tpu.memory_space<vmem>>, vector<1x1024xf32>
    %9 = vector.broadcast %8 : vector<1x1024xf32> to vector<256x1024xf32>
    %10 = arith.mulf %7, %9 : vector<256x1024xf32>
    %cst_8 = arith.constant dense<0.000000e+00> : vector<256xf32>
    %11 = vector.multi_reduction <add>, %10, %cst_8 [1] : vector<256x1024xf32> to vector<256xf32>
    %12 = vector.shape_cast %11 : vector<256xf32> to vector<256x1xf32>
    %c0_9 = arith.constant 0 : index
    %c0_10 = arith.constant 0 : index
    %13 = vector.load %arg5[%c0_9, %c0_10] : memref<1x1xf32, #tpu.memory_space<vmem>>, vector<1x1xf32>
    %14 = vector.broadcast %13 : vector<1x1xf32> to vector<256x1xf32>
    %15 = arith.addf %12, %14 : vector<256x1xf32>
    %16 = arith.negf %15 : vector<256x1xf32>
    %17 = math.exp %16 : vector<256x1xf32>
    %cst_11 = arith.constant 1.000000e+00 : f32
    %18 = vector.broadcast %cst_11 : f32 to vector<256x1xf32>
    %19 = arith.addf %18, %17 : vector<256x1xf32>
    %20 = arith.divf %18, %19 : vector<256x1xf32>
    %c0_12 = arith.constant 0 : index
    %c0_13 = arith.constant 0 : index
    %21 = vector.load %arg6[%c0_12, %c0_13] : memref<256x1xf32, #tpu.memory_space<vmem>>, vector<256x1xf32>
    tpu.vector_store %arg6[%c0_12, %c0_13], %20 {strides = array<i32>} : memref<256x1xf32, #tpu.memory_space<vmem>>, vector<256x1xf32>,
    return
  }
  func.func @transform_0(%arg0: i32) -> (i32, i32) {
    %c0_i32 = arith.constant 0 : i32
    %c0_i32_0 = arith.constant 0 : i32
    return %arg0, %c0_i32 : i32, i32
  }
  func.func @transform_1(%arg0: i32) -> (i32, i32) {
    %c0_i32 = arith.constant 0 : i32
    %c0_i32_0 = arith.constant 0 : i32
    %c0_i32_1 = arith.constant 0 : i32
    return %c0_i32, %c0_i32_0 : i32, i32
  }
  func.func @transform_2(%arg0: i32) -> (i32, i32) {
    %c0_i32 = arith.constant 0 : i32
    %c0_i32_0 = arith.constant 0 : i32
    %c0_i32_1 = arith.constant 0 : i32
    return %c0_i32, %c0_i32_0 : i32, i32
  }
  func.func @transform_3(%arg0: i32) -> (i32, i32) {
    %c0_i32 = arith.constant 0 : i32
    %c0_i32_0 = arith.constant 0 : i32
    %c0_i32_1 = arith.constant 0 : i32
    return %c0_i32, %c0_i32_0 : i32, i32
  }
  func.func @transform_4(%arg0: i32) -> (i32, i32) {
    %c0_i32 = arith.constant 0 : i32
    %c0_i32_0 = arith.constant 0 : i32
    %c0_i32_1 = arith.constant 0 : i32
    return %c0_i32, %c0_i32_0 : i32, i32
  }
  func.func @transform_5(%arg0: i32) -> (i32, i32) {
    %c0_i32 = arith.constant 0 : i32
    %c0_i32_0 = arith.constant 0 : i32
    return %arg0, %c0_i32 : i32, i32
  }
}

</mosaic_0001>

<llo_original>
// kernel: domain_classifier_forward.1
$region0: #{domain_classifier_forward.1}
  #allocation0 [shape = 'u32[]', space=smem, size = 0x4, offset = 0x4, fixed_abs, tag = 'smem constant byte address 0x4 - core index']
  #allocation1 [shape = 'u32[144,128]{1,0:T(1,128)}', space=vmem, size = 0x12000, scoped, tag = 'internal scratch']
  #allocation2 [shape = 'f32[1,1]{1,0:T(1,128)S(1)}', space=vmem, size = 0x200, scoped, tag = 'scoped memory for domain_classifier_forward.1']
  %s0 = inlined_call_operand.vmem [shape: bf16[256,1024], index: 0, kind: input, shape index: {}]
  %s1 = inlined_call_operand.vmem [shape: bf16[1024,1024], index: 1, kind: input, shape index: {}]
  %s2 = inlined_call_operand.vmem [shape: f32[1,1024], index: 2, kind: input, shape index: {}]
  %s3 = inlined_call_operand.vmem [shape: f32[1,1024], index: 3, kind: input, shape index: {}]
  %s4 = inlined_call_operand.<no memory space> [shape: f32[1,1], index: 4, kind: input, shape index: {}]
  %s5 = inlined_call_operand.vmem [shape: f32[256,1], index: 5, kind: output, shape index: {}]
  %s6 = sld [smem:[#allocation0]]
  $region30: #{domain_classifier_forward.1} parent=0
    _
  %s8 = ssub.s32 1, %s6
  %s9 = scalar_select 0, %s8, %s6
  %v10 = vstv %s4
  %11 = vst [vmem:[#allocation2] sm:$0x1] %v10
  // Predicated region
  $region2: #{domain_classifier_forward.1} parent=0 // pred_check
    _
  $region3: #{domain_classifier_forward.1} parent=0 // pred_check_branch
    %13 = sbr.rel (0) target = $region5
  $region4: #{domain_classifier_forward.1} parent=0 // pred_region
    _
  $region5: #{domain_classifier_forward.1} parent=0 // pred_fallthru
    _
  // Predicated region
  $region6: #{domain_classifier_forward.1} parent=0 // pred_check
    _
  $region7: #{domain_classifier_forward.1} parent=0 // pred_check_branch
    %15 = sbr.rel (0) target = $region9
  $region8: #{domain_classifier_forward.1} parent=0 // pred_region
    _
  $region9: #{domain_classifier_forward.1} parent=0 // pred_fallthru
    _
  // Predicated region
  $region10: #{domain_classifier_forward.1} parent=0 // pred_check
    _
  $region11: #{domain_classifier_forward.1} parent=0 // pred_check_branch
    %17 = sbr.rel (0) target = $region13
  $region12: #{domain_classifier_forward.1} parent=0 // pred_region
    _
  $region13: #{domain_classifier_forward.1} parent=0 // pred_fallthru
    _
  // Predicated region
  $region14: #{domain_classifier_forward.1} parent=0 // pred_check
    _
  $region15: #{domain_classifier_forward.1} parent=0 // pred_check_branch
    %19 = sbr.rel (0) target = $region17
  $region16: #{domain_classifier_forward.1} parent=0 // pred_region
    _
  $region17: #{domain_classifier_forward.1} parent=0 // pred_fallthru
    _
  // Predicated region
  $region18: #{domain_classifier_forward.1} parent=0 // pred_check
    _
  $region19: #{domain_classifier_forward.1} parent=0 // pred_check_branch
    %21 = sbr.rel (0) target = $region21
  $region20: #{domain_classifier_forward.1} parent=0 // pred_region
    _
  $region21: #{domain_classifier_forward.1} parent=0 // pred_fallthru
    _
  %v22 = vld [vmem:[%s0] sm:$0xff]
  %v23 = vld [vmem:[%s0 + $0x8] sm:$0xff]
  %v24 = vld [vmem:[%s0 + $0x10] sm:$0xff]
  %v25 = vld [vmem:[%s0 + $0x18] sm:$0xff]
  %v26 = vld [vmem:[%s0 + $0x20] sm:$0xff]
  %v27 = vld [vmem:[%s0 + $0x28] sm:$0xff]
  %v28 = vld [vmem:[%s0 + $0x30] sm:$0xff]
  %v29 = vld [vmem:[%s0 + $0x38] sm:$0xff]
  %v30 = vld [vmem:[%s0 + $0x40] sm:$0xff]
  %v31 = vld [vmem:[%s0 + $0x48] sm:$0xff]
  %v32 = vld [vmem:[%s0 + $0x50] sm:$0xff]
  %v33 = vld [vmem:[%s0 + $0x58] sm:$0xff]
  %v34 = vld [vmem:[%s0 + $0x60] sm:$0xff]
  %v35 = vld [vmem:[%s0 + $0x68] sm:$0xff]
  %v36 = vld [vmem:[%s0 + $0x70] sm:$0xff]
  %v37 = vld [vmem:[%s0 + $0x78] sm:$0xff]
  %v38 = vld [vmem:[%s0 + $0x80] sm:$0xff]
  %v39 = vld [vmem:[%s0 + $0x88] sm:$0xff]
  %v40 = vld [vmem:[%s0 + $0x90] sm:$0xff]
  %v41 = vld [vmem:[%s0 + $0x98] sm:$0xff]
  %v42 = vld [vmem:[%s0 + $0xa0] sm:$0xff]
  %v43 = vld [vmem:[%s0 + $0xa8] sm:$0xff]
  %v44 = vld [vmem:[%s0 + $0xb0] sm:$0xff]
  %v45 = vld [vmem:[%s0 + $0xb8] sm:$0xff]
  %v46 = vld [vmem:[%s0 + $0xc0] sm:$0xff]
  %v47 = vld [vmem:[%s0 + $0xc8] sm:$0xff]
  %v48 = vld [vmem:[%s0 + $0xd0] sm:$0xff]
  %v49 = vld [vmem:[%s0 + $0xd8] sm:$0xff]
  %v50 = vld [vmem:[%s0 + $0xe0] sm:$0xff]
  %v51 = vld [vmem:[%s0 + $0xe8] sm:$0xff]
  %v52 = vld [vmem:[%s0 + $0xf0] sm:$0xff]
  %v53 = vld [vmem:[%s0 + $0xf8] sm:$0xff]
  %v54 = vld [vmem:[%s0 + $0x100] sm:$0xff]
  %v55 = vld [vmem:[%s0 + $0x108] sm:$0xff]
  %v56 = vld [vmem:[%s0 + $0x110] sm:$0xff]
  %v57 = vld [vmem:[%s0 + $0x118] sm:$0xff]
  %v58 = vld [vmem:[%s0 + $0x120] sm:$0xff]
  %v59 = vld [vmem:[%s0 + $0x128] sm:$0xff]
  %v60 = vld [vmem:[%s0 + $0x130] sm:$0xff]
  %v61 = vld [vmem:[%s0 + $0x138] sm:$0xff]
  %v62 = vld [vmem:[%s0 + $0x140] sm:$0xff]
  %v63 = vld [vmem:[%s0 + $0x148] sm:$0xff]
  %v64 = vld [vmem:[%s0 + $0x150] sm:$0xff]
  %v65 = vld [vmem:[%s0 + $0x158] sm:$0xff]
  %v66 = vld [vmem:[%s0 + $0x160] sm:$0xff]
  %v67 = vld [vmem:[%s0 + $0x168] sm:$0xff]
  %v68 = vld [vmem:[%s0 + $0x170] sm:$0xff]
  %v69 = vld [vmem:[%s0 + $0x178] sm:$0xff]
  %v70 = vld [vmem:[%s0 + $0x180] sm:$0xff]
  %v71 = vld [vmem:[%s0 + $0x188] sm:$0xff]
  %v72 = vld [vmem:[%s0 + $0x190] sm:$0xff]
  %v73 = vld [vmem:[%s0 + $0x198] sm:$0xff]
  %v74 = vld [vmem:[%s0 + $0x1a0] sm:$0xff]
  %v75 = vld [vmem:[%s0 + $0x1a8] sm:$0xff]
  %v76 = vld [vmem:[%s0 + $0x1b0] sm:$0xff]
  %v77 = vld [vmem:[%s0 + $0x1b8] sm:$0xff]
  %v78 = vld [vmem:[%s0 + $0x1c0] sm:$0xff]
  %v79 = vld [vmem:[%s0 + $0x1c8] sm:$0xff]
  %v80 = vld [vmem:[%s0 + $0x1d0] sm:$0xff]
  %v81 = vld [vmem:[%s0 + $0x1d8] sm:$0xff]
  %v82 = vld [vmem:[%s0 + $0x1e0] sm:$0xff]
  %v83 = vld [vmem:[%s0 + $0x1e8] sm:$0xff]
  %v84 = vld [vmem:[%s0 + $0x1f0] sm:$0xff]
  %v85 = vld [vmem:[%s0 + $0x1f8] sm:$0xff]
  %v86 = vld [vmem:[%s0 + $0x200] sm:$0xff]
  %v87 = vld [vmem:[%s0 + $0x208] sm:$0xff]
  %v88 = vld [vmem:[%s0 + $0x210] sm:$0xff]
  %v89 = vld [vmem:[%s0 + $0x218] sm:$0xff]
  %v90 = vld [vmem:[%s0 + $0x220] sm:$0xff]
  %v91 = vld [vmem:[%s0 + $0x228] sm:$0xff]
  %v92 = vld [vmem:[%s0 + $0x230] sm:$0xff]
  %v93 = vld [vmem:[%s0 + $0x238] sm:$0xff]
  %v94 = vld [vmem:[%s0 + $0x240] sm:$0xff]
  %v95 = vld [vmem:[%s0 + $0x248] sm:$0xff]
  %v96 = vld [vmem:[%s0 + $0x250] sm:$0xff]
  %v97 = vld [vmem:[%s0 + $0x258] sm:$0xff]
  %v98 = vld [vmem:[%s0 + $0x260] sm:$0xff]
  %v99 = vld [vmem:[%s0 + $0x268] sm:$0xff]
  %v100 = vld [vmem:[%s0 + $0x270] sm:$0xff]
  %v101 = vld [vmem:[%s0 + $0x278] sm:$0xff]
  %v102 = vld [vmem:[%s0 + $0x280] sm:$0xff]
  %v103 = vld [vmem:[%s0 + $0x288] sm:$0xff]
  %v104 = vld [vmem:[%s0 + $0x290] sm:$0xff]
  %v105 = vld [vmem:[%s0 + $0x298] sm:$0xff]
  %v106 = vld [vmem:[%s0 + $0x2a0] sm:$0xff]
  %v107 = vld [vmem:[%s0 + $0x2a8] sm:$0xff]
  %v108 = vld [vmem:[%s0 + $0x2b0] sm:$0xff]
  %v109 = vld [vmem:[%s0 + $0x2b8] sm:$0xff]
  %v110 = vld [vmem:[%s0 + $0x2c0] sm:$0xff]
  %v111 = vld [vmem:[%s0 + $0x2c8] sm:$0xff]
  %v112 = vld [vmem:[%s0 + $0x2d0] sm:$0xff]
  %v113 = vld [vmem:[%s0 + $0x2d8] sm:$0xff]
  %v114 = vld [vmem:[%s0 + $0x2e0] sm:$0xff]
  %v115 = vld [vmem:[%s0 + $0x2e8] sm:$0xff]
  %v116 = vld [vmem:[%s0 + $0x2f0] sm:$0xff]
  %v117 = vld [vmem:[%s0 + $0x2f8] sm:$0xff]
  %v118 = vld [vmem:[%s0 + $0x300] sm:$0xff]
  %v119 = vld [vmem:[%s0 + $0x308] sm:$0xff]
  %v120 = vld [vmem:[%s0 + $0x310] sm:$0xff]
  %v121 = vld [vmem:[%s0 + $0x318] sm:$0xff]
  %v122 = vld [vmem:[%s0 + $0x320] sm:$0xff]
  %v123 = vld [vmem:[%s0 + $0x328] sm:$0xff]
  %v124 = vld [vmem:[%s0 + $0x330] sm:$0xff]
  %v125 = vld [vmem:[%s0 + $0x338] sm:$0xff]
  %v126 = vld [vmem:[%s0 + $0x340] sm:$0xff]
  %v127 = vld [vmem:[%s0 + $0x348] sm:$0xff]
  %v128 = vld [vmem:[%s0 + $0x350] sm:$0xff]
  %v129 = vld [vmem:[%s0 + $0x358] sm:$0xff]
  %v130 = vld [vmem:[%s0 + $0x360] sm:$0xff]
  %v131 = vld [vmem:[%s0 + $0x368] sm:$0xff]
  %v132 = vld [vmem:[%s0 + $0x370] sm:$0xff]
  %v133 = vld [vmem:[%s0 + $0x378] sm:$0xff]
  %v134 = vld [vmem:[%s0 + $0x380] sm:$0xff]
  %v135 = vld [vmem:[%s0 + $0x388] sm:$0xff]
  %v136 = vld [vmem:[%s0 + $0x390] sm:$0xff]
  %v137 = vld [vmem:[%s0 + $0x398] sm:$0xff]
  %v138 = vld [vmem:[%s0 + $0x3a0] sm:$0xff]
  %v139 = vld [vmem:[%s0 + $0x3a8] sm:$0xff]
  %v140 = vld [vmem:[%s0 + $0x3b0] sm:$0xff]
  %v141 = vld [vmem:[%s0 + $0x3b8] sm:$0xff]
  %v142 = vld [vmem:[%s0 + $0x3c0] sm:$0xff]
  %v143 = vld [vmem:[%s0 + $0x3c8] sm:$0xff]
  %v144 = vld [vmem:[%s0 + $0x3d0] sm:$0xff]
  %v145 = vld [vmem:[%s0 + $0x3d8] sm:$0xff]
  %v146 = vld [vmem:[%s0 + $0x3e0] sm:$0xff]
  %v147 = vld [vmem:[%s0 + $0x3e8] sm:$0xff]
  %v148 = vld [vmem:[%s0 + $0x3f0] sm:$0xff]
  %v149 = vld [vmem:[%s0 + $0x3f8] sm:$0xff]
  %v150 = vld [vmem:[%s1] sm:$0xff]
  %v151 = vld [vmem:[%s1 + $0x8] sm:$0xff]
  %v152 = vld [vmem:[%s1 + $0x10] sm:$0xff]
  %v153 = vld [vmem:[%s1 + $0x18] sm:$0xff]
  %v154 = vld [vmem:[%s1 + $0x20] sm:$0xff]
  %v155 = vld [vmem:[%s1 + $0x28] sm:$0xff]
  %v156 = vld [vmem:[%s1 + $0x30] sm:$0xff]
  %v157 = vld [vmem:[%s1 + $0x38] sm:$0xff]
  %v158 = vld [vmem:[%s1 + $0x40] sm:$0xff]
  %v159 = vld [vmem:[%s1 + $0x48] sm:$0xff]
  %v160 = vld [vmem:[%s1 + $0x50] sm:$0xff]
  %v161 = vld [vmem:[%s1 + $0x58] sm:$0xff]
  %v162 = vld [vmem:[%s1 + $0x60] sm:$0xff]
  %v163 = vld [vmem:[%s1 + $0x68] sm:$0xff]
  %v164 = vld [vmem:[%s1 + $0x70] sm:$0xff]
  %v165 = vld [vmem:[%s1 + $0x78] sm:$0xff]
  %v166 = vld [vmem:[%s1 + $0x80] sm:$0xff]
  %v167 = vld [vmem:[%s1 + $0x88] sm:$0xff]
  %v168 = vld [vmem:[%s1 + $0x90] sm:$0xff]
  %v169 = vld [vmem:[%s1 + $0x98] sm:$0xff]
  %v170 = vld [vmem:[%s1 + $0xa0] sm:$0xff]
  %v171 = vld [vmem:[%s1 + $0xa8] sm:$0xff]
  %v172 = vld [vmem:[%s1 + $0xb0] sm:$0xff]
  %v173 = vld [vmem:[%s1 + $0xb8] sm:$0xff]
  %v174 = vld [vmem:[%s1 + $0xc0] sm:$0xff]
  %v175 = vld [vmem:[%s1 + $0xc8] sm:$0xff]
  %v176 = vld [vmem:[%s1 + $0xd0] sm:$0xff]
  %v177 = vld [vmem:[%s1 + $0xd8] sm:$0xff]
  %v178 = vld [vmem:[%s1 + $0xe0] sm:$0xff]
  %v179 = vld [vmem:[%s1 + $0xe8] sm:$0xff]
  %v180 = vld [vmem:[%s1 + $0xf0] sm:$0xff]
  %v181 = vld [vmem:[%s1 + $0xf8] sm:$0xff]
  %v182 = vld [vmem:[%s1 + $0x100] sm:$0xff]
  %v183 = vld [vmem:[%s1 + $0x108] sm:$0xff]
  %v184 = vld [vmem:[%s1 + $0x110] sm:$0xff]
  %v185 = vld [vmem:[%s1 + $0x118] sm:$0xff]
  %v186 = vld [vmem:[%s1 + $0x120] sm:$0xff]
  %v187 = vld [vmem:[%s1 + $0x128] sm:$0xff]
  %v188 = vld [vmem:[%s1 + $0x130] sm:$0xff]
  %v189 = vld [vmem:[%s1 + $0x138] sm:$0xff]
  %v190 = vld [vmem:[%s1 + $0x140] sm:$0xff]
  %v191 = vld [vmem:[%s1 + $0x148] sm:$0xff]
  %v192 = vld [vmem:[%s1 + $0x150] sm:$0xff]
  %v193 = vld [vmem:[%s1 + $0x158] sm:$0xff]
  %v194 = vld [vmem:[%s1 + $0x160] sm:$0xff]
  %v195 = vld [vmem:[%s1 + $0x168] sm:$0xff]
  %v196 = vld [vmem:[%s1 + $0x170] sm:$0xff]
  %v197 = vld [vmem:[%s1 + $0x178] sm:$0xff]
  %v198 = vld [vmem:[%s1 + $0x180] sm:$0xff]
  %v199 = vld [vmem:[%s1 + $0x188] sm:$0xff]
  %v200 = vld [vmem:[%s1 + $0x190] sm:$0xff]
  %v201 = vld [vmem:[%s1 + $0x198] sm:$0xff]
  %v202 = vld [vmem:[%s1 + $0x1a0] sm:$0xff]
  %v203 = vld [vmem:[%s1 + $0x1a8] sm:$0xff]
  %v204 = vld [vmem:[%s1 + $0x1b0] sm:$0xff]
  %v205 = vld [vmem:[%s1 + $0x1b8] sm:$0xff]
  %v206 = vld [vmem:[%s1 + $0x1c0] sm:$0xff]
  %v207 = vld [vmem:[%s1 + $0x1c8] sm:$0xff]
  %v208 = vld [vmem:[%s1 + $0x1d0] sm:$0xff]
  %v209 = vld [vmem:[%s1 + $0x1d8] sm:$0xff]
  %v210 = vld [vmem:[%s1 + $0x1e0] sm:$0xff]
  %v211 = vld [vmem:[%s1 + $0x1e8] sm:$0xff]
  %v212 = vld [vmem:[%s1 + $0x1f0] sm:$0xff]
  %v213 = vld [vmem:[%s1 + $0x1f8] sm:$0xff]
  %v214 = vld [vmem:[%s1 + $0x200] sm:$0xff]
  %v215 = vld [vmem:[%s1 + $0x208] sm:$0xff]
  %v216 = vld [vmem:[%s1 + $0x210] sm:$0xff]
  %v217 = vld [vmem:[%s1 + $0x218] sm:$0xff]
  %v218 = vld [vmem:[%s1 + $0x220] sm:$0xff]
  %v219 = vld [vmem:[%s1 + $0x228] sm:$0xff]
  %v220 = vld [vmem:[%s1 + $0x230] sm:$0xff]
  %v221 = vld [vmem:[%s1 + $0x238] sm:$0xff]
  %v222 = vld [vmem:[%s1 + $0x240] sm:$0xff]
  %v223 = vld [vmem:[%s1 + $0x248] sm:$0xff]
  %v224 = vld [vmem:[%s1 + $0x250] sm:$0xff]
  %v225 = vld [vmem:[%s1 + $0x258] sm:$0xff]
  %v226 = vld [vmem:[%s1 + $0x260] sm:$0xff]
  %v227 = vld [vmem:[%s1 + $0x268] sm:$0xff]
  %v228 = vld [vmem:[%s1 + $0x270] sm:$0xff]
  %v229 = vld [vmem:[%s1 + $0x278] sm:$0xff]
  %v230 = vld [vmem:[%s1 + $0x280] sm:$0xff]
  %v231 = vld [vmem:[%s1 + $0x288] sm:$0xff]
  %v232 = vld [vmem:[%s1 + $0x290] sm:$0xff]
  %v233 = vld [vmem:[%s1 + $0x298] sm:$0xff]
  %v234 = vld [vmem:[%s1 + $0x2a0] sm:$0xff]
  %v235 = vld [vmem:[%s1 + $0x2a8] sm:$0xff]
  %v236 = vld [vmem:[%s1 + $0x2b0] sm:$0xff]
  %v237 = vld [vmem:[%s1 + $0x2b8] sm:$0xff]
  %v238 = vld [vmem:[%s1 + $0x2c0] sm:$0xff]
  %v239 = vld [vmem:[%s1 + $0x2c8] sm:$0xff]
  %v240 = vld [vmem:[%s1 + $0x2d0] sm:$0xff]
  %v241 = vld [vmem:[%s1 + $0x2d8] sm:$0xff]
  %v242 = vld [vmem:[%s1 + $0x2e0] sm:$0xff]
  %v243 = vld [vmem:[%s1 + $0x2e8] sm:$0xff]
  %v244 = vld [vmem:[%s1 + $0x2f0] sm:$0xff]
  %v245 = vld [vmem:[%s1 + $0x2f8] sm:$0xff]
  %v246 = vld [vmem:[%s1 + $0x300] sm:$0xff]
  %v247 = vld [vmem:[%s1 + $0x308] sm:$0xff]
  %v248 = vld [vmem:[%s1 + $0x310] sm:$0xff]
  %v249 = vld [vmem:[%s1 + $0x318] sm:$0xff]
  %v250 = vld [vmem:[%s1 + $0x320] sm:$0xff]
  %v251 = vld [vmem:[%s1 + $0x328] sm:$0xff]
  %v252 = vld [vmem:[%s1 + $0x330] sm:$0xff]
  %v253 = vld [vmem:[%s1 + $0x338] sm:$0xff]
  %v254 = vld [vmem:[%s1 + $0x340] sm:$0xff]
  %v255 = vld [vmem:[%s1 + $0x348] sm:$0xff]
  %v256 = vld [vmem:[%s1 + $0x350] sm:$0xff]
  %v257 = vld [vmem:[%s1 + $0x358] sm:$0xff]
  %v258 = vld [vmem:[%s1 + $0x360] sm:$0xff]
  %v259 = vld [vmem:[%s1 + $0x368] sm:$0xff]
  %v260 = vld [vmem:[%s1 + $0x370] sm:$0xff]
  %v261 = vld [vmem:[%s1 + $0x378] sm:$0xff]
  %v262 = vld [vmem:[%s1 + $0x380] sm:$0xff]
  %v263 = vld [vmem:[%s1 + $0x388] sm:$0xff]
  %v264 = vld [vmem:[%s1 + $0x390] sm:$0xff]
  %v265 = vld [vmem:[%s1 + $0x398] sm:$0xff]
  %v266 = vld [vmem:[%s1 + $0x3a0] sm:$0xff]
  %v267 = vld [vmem:[%s1 + $0x3a8] sm:$0xff]
  %v268 = vld [vmem:[%s1 + $0x3b0] sm:$0xff]
  %v269 = vld [vmem:[%s1 + $0x3b8] sm:$0xff]
  %v270 = vld [vmem:[%s1 + $0x3c0] sm:$0xff]
  %v271 = vld [vmem:[%s1 + $0x3c8] sm:$0xff]
  %v272 = vld [vmem:[%s1 + $0x3d0] sm:$0xff]
  %v273 = vld [vmem:[%s1 + $0x3d8] sm:$0xff]
  %v274 = vld [vmem:[%s1 + $0x3e0] sm:$0xff]
  %v275 = vld [vmem:[%s1 + $0x3e8] sm:$0xff]
  %v276 = vld [vmem:[%s1 + $0x3f0] sm:$0xff]
  %v277 = vld [vmem:[%s1 + $0x3f8] sm:$0xff]
  %v278 = vld [vmem:[%s1 + $0x400] sm:$0xff]
  %v279 = vld [vmem:[%s1 + $0x408] sm:$0xff]
  %v280 = vld [vmem:[%s1 + $0x410] sm:$0xff]
  %v281 = vld [vmem:[%s1 + $0x418] sm:$0xff]
  %v282 = vld [vmem:[%s1 + $0x420] sm:$0xff]
  %v283 = vld [vmem:[%s1 + $0x428] sm:$0xff]
  %v284 = vld [vmem:[%s1 + $0x430] sm:$0xff]
  %v285 = vld [vmem:[%s1 + $0x438] sm:$0xff]
  %v286 = vld [vmem:[%s1 + $0x440] sm:$0xff]
  %v287 = vld [vmem:[%s1 + $0x448] sm:$0xff]
  %v288 = vld [vmem:[%s1 + $0x450] sm:$0xff]
  %v289 = vld [vmem:[%s1 + $0x458] sm:$0xff]
  %v290 = vld [vmem:[%s1 + $0x460] sm:$0xff]
  %v291 = vld [vmem:[%s1 + $0x468] sm:$0xff]
  %v292 = vld [vmem:[%s1 + $0x470] sm:$0xff]
  %v293 = vld [vmem:[%s1 + $0x478] sm:$0xff]
  %v294 = vld [vmem:[%s1 + $0x480] sm:$0xff]
  %v295 = vld [vmem:[%s1 + $0x488] sm:$0xff]
  %v296 = vld [vmem:[%s1 + $0x490] sm:$0xff]
  %v297 = vld [vmem:[%s1 + $0x498] sm:$0xff]
  %v298 = vld [vmem:[%s1 + $0x4a0] sm:$0xff]
  %v299 = vld [vmem:[%s1 + $0x4a8] sm:$0xff]
  %v300 = vld [vmem:[%s1 + $0x4b0] sm:$0xff]
  %v301 = vld [vmem:[%s1 + $0x4b8] sm:$0xff]
  %v302 = vld [vmem:[%s1 + $0x4c0] sm:$0xff]
  %v303 = vld [vmem:[%s1 + $0x4c8] sm:$0xff]
  %v304 = vld [vmem:[%s1 + $0x4d0] sm:$0xff]
  %v305 = vld [vmem:[%s1 + $0x4d8] sm:$0xff]
  %v306 = vld [vmem:[%s1 + $0x4e0] sm:$0xff]
  %v307 = vld [vmem:[%s1 + $0x4e8] sm:$0xff]
  %v308 = vld [vmem:[%s1 + $0x4f0] sm:$0xff]
  %v309 = vld [vmem:[%s1 + $0x4f8] sm:$0xff]
  %v310 = vld [vmem:[%s1 + $0x500] sm:$0xff]
  %v311 = vld [vmem:[%s1 + $0x508] sm:$0xff]
  %v312 = vld [vmem:[%s1 + $0x510] sm:$0xff]
  %v313 = vld [vmem:[%s1 + $0x518] sm:$0xff]
  %v314 = vld [vmem:[%s1 + $0x520] sm:$0xff]
  %v315 = vld [vmem:[%s1 + $0x528] sm:$0xff]
  %v316 = vld [vmem:[%s1 + $0x530] sm:$0xff]
  %v317 = vld [vmem:[%s1 + $0x538] sm:$0xff]
  %v318 = vld [vmem:[%s1 + $0x540] sm:$0xff]
  %v319 = vld [vmem:[%s1 + $0x548] sm:$0xff]
  %v320 = vld [vmem:[%s1 + $0x550] sm:$0xff]
  %v321 = vld [vmem:[%s1 + $0x558] sm:$0xff]
  %v322 = vld [vmem:[%s1 + $0x560] sm:$0xff]
  %v323 = vld [vmem:[%s1 + $0x568] sm:$0xff]
  %v324 = vld [vmem:[%s1 + $0x570] sm:$0xff]
  %v325 = vld [vmem:[%s1 + $0x578] sm:$0xff]
  %v326 = vld [vmem:[%s1 + $0x580] sm:$0xff]
  %v327 = vld [vmem:[%s1 + $0x588] sm:$0xff]
  %v328 = vld [vmem:[%s1 + $0x590] sm:$0xff]
  %v329 = vld [vmem:[%s1 + $0x598] sm:$0xff]
  %v330 = vld [vmem:[%s1 + $0x5a0] sm:$0xff]
  %v331 = vld [vmem:[%s1 + $0x5a8] sm:$0xff]
  %v332 = vld [vmem:[%s1 + $0x5b0] sm:$0xff]
  %v333 = vld [vmem:[%s1 + $0x5b8] sm:$0xff]
  %v334 = vld [vmem:[%s1 + $0x5c0] sm:$0xff]
  %v335 = vld [vmem:[%s1 + $0x5c8] sm:$0xff]
  %v336 = vld [vmem:[%s1 + $0x5d0] sm:$0xff]
  %v337 = vld [vmem:[%s1 + $0x5d8] sm:$0xff]
  %v338 = vld [vmem:[%s1 + $0x5e0] sm:$0xff]
  %v339 = vld [vmem:[%s1 + $0x5e8] sm:$0xff]
  %v340 = vld [vmem:[%s1 + $0x5f0] sm:$0xff]
  %v341 = vld [vmem:[%s1 + $0x5f8] sm:$0xff]
  %v342 = vld [vmem:[%s1 + $0x600] sm:$0xff]
  %v343 = vld [vmem:[%s1 + $0x608] sm:$0xff]
  %v344 = vld [vmem:[%s1 + $0x610] sm:$0xff]
  %v345 = vld [vmem:[%s1 + $0x618] sm:$0xff]
  %v346 = vld [vmem:[%s1 + $0x620] sm:$0xff]
  %v347 = vld [vmem:[%s1 + $0x628] sm:$0xff]
  %v348 = vld [vmem:[%s1 + $0x630] sm:$0xff]
  %v349 = vld [vmem:[%s1 + $0x638] sm:$0xff]
  %v350 = vld [vmem:[%s1 + $0x640] sm:$0xff]
  %v351 = vld [vmem:[%s1 + $0x648] sm:$0xff]
  %v352 = vld [vmem:[%s1 + $0x650] sm:$0xff]
  %v353 = vld [vmem:[%s1 + $0x658] sm:$0xff]
  %v354 = vld [vmem:[%s1 + $0x660] sm:$0xff]
  %v355 = vld [vmem:[%s1 + $0x668] sm:$0xff]
  %v356 = vld [vmem:[%s1 + $0x670] sm:$0xff]
  %v357 = vld [vmem:[%s1 + $0x678] sm:$0xff]
  %v358 = vld [vmem:[%s1 + $0x680] sm:$0xff]
  %v359 = vld [vmem:[%s1 + $0x688] sm:$0xff]
  %v360 = vld [vmem:[%s1 + $0x690] sm:$0xff]
  %v361 = vld [vmem:[%s1 + $0x698] sm:$0xff]
  %v362 = vld [vmem:[%s1 + $0x6a0] sm:$0xff]
  %v363 = vld [vmem:[%s1 + $0x6a8] sm:$0xff]
  %v364 = vld [vmem:[%s1 + $0x6b0] sm:$0xff]
  %v365 = vld [vmem:[%s1 + $0x6b8] sm:$0xff]
  %v366 = vld [vmem:[%s1 + $0x6c0] sm:$0xff]
  %v367 = vld [vmem:[%s1 + $0x6c8] sm:$0xff]
  %v368 = vld [vmem:[%s1 + $0x6d0] sm:$0xff]
  %v369 = vld [vmem:[%s1 + $0x6d8] sm:$0xff]
  %v370 = vld [vmem:[%s1 + $0x6e0] sm:$0xff]
  %v371 = vld [vmem:[%s1 + $0x6e8] sm:$0xff]
  %v372 = vld [vmem:[%s1 + $0x6f0] sm:$0xff]
  %v373 = vld [vmem:[%s1 + $0x6f8] sm:$0xff]
  %v374 = vld [vmem:[%s1 + $0x700] sm:$0xff]
  %v375 = vld [vmem:[%s1 + $0x708] sm:$0xff]
  %v376 = vld [vmem:[%s1 + $0x710] sm:$0xff]
  %v377 = vld [vmem:[%s1 + $0x718] sm:$0xff]
  %v378 = vld [vmem:[%s1 + $0x720] sm:$0xff]
  %v379 = vld [vmem:[%s1 + $0x728] sm:$0xff]
  %v380 = vld [vmem:[%s1 + $0x730] sm:$0xff]
  %v381 = vld [vmem:[%s1 + $0x738] sm:$0xff]
  %v382 = vld [vmem:[%s1 + $0x740] sm:$0xff]
  %v383 = vld [vmem:[%s1 + $0x748] sm:$0xff]
  %v384 = vld [vmem:[%s1 + $0x750] sm:$0xff]
  %v385 = vld [vmem:[%s1 + $0x758] sm:$0xff]
  %v386 = vld [vmem:[%s1 + $0x760] sm:$0xff]
  %v387 = vld [vmem:[%s1 + $0x768] sm:$0xff]
  %v388 = vld [vmem:[%s1 + $0x770] sm:$0xff]
  %v389 = vld [vmem:[%s1 + $0x778] sm:$0xff]
  %v390 = vld [vmem:[%s1 + $0x780] sm:$0xff]
  %v391 = vld [vmem:[%s1 + $0x788] sm:$0xff]
  %v392 = vld [vmem:[%s1 + $0x790] sm:$0xff]
  %v393 = vld [vmem:[%s1 + $0x798] sm:$0xff]
  %v394 = vld [vmem:[%s1 + $0x7a0] sm:$0xff]
  %v395 = vld [vmem:[%s1 + $0x7a8] sm:$0xff]
  %v396 = vld [vmem:[%s1 + $0x7b0] sm:$0xff]
  %v397 = vld [vmem:[%s1 + $0x7b8] sm:$0xff]
  %v398 = vld [vmem:[%s1 + $0x7c0] sm:$0xff]
  %v399 = vld [vmem:[%s1 + $0x7c8] sm:$0xff]
  %v400 = vld [vmem:[%s1 + $0x7d0] sm:$0xff]
  %v401 = vld [vmem:[%s1 + $0x7d8] sm:$0xff]
  %v402 = vld [vmem:[%s1 + $0x7e0] sm:$0xff]
  %v403 = vld [vmem:[%s1 + $0x7e8] sm:$0xff]
  %v404 = vld [vmem:[%s1 + $0x7f0] sm:$0xff]
  %v405 = vld [vmem:[%s1 + $0x7f8] sm:$0xff]
  %v406 = vld [vmem:[%s1 + $0x800] sm:$0xff]
  %v407 = vld [vmem:[%s1 + $0x808] sm:$0xff]
  %v408 = vld [vmem:[%s1 + $0x810] sm:$0xff]
  %v409 = vld [vmem:[%s1 + $0x818] sm:$0xff]
  %v410 = vld [vmem:[%s1 + $0x820] sm:$0xff]
  %v411 = vld [vmem:[%s1 + $0x828] sm:$0xff]
  %v412 = vld [vmem:[%s1 + $0x830] sm:$0xff]
  %v413 = vld [vmem:[%s1 + $0x838] sm:$0xff]
  %v414 = vld [vmem:[%s1 + $0x840] sm:$0xff]
  %v415 = vld [vmem:[%s1 + $0x848] sm:$0xff]
  %v416 = vld [vmem:[%s1 + $0x850] sm:$0xff]
  %v417 = vld [vmem:[%s1 + $0x858] sm:$0xff]
  %v418 = vld [vmem:[%s1 + $0x860] sm:$0xff]
  %v419 = vld [vmem:[%s1 + $0x868] sm:$0xff]
  %v420 = vld [vmem:[%s1 + $0x870] sm:$0xff]
  %v421 = vld [vmem:[%s1 + $0x878] sm:$0xff]
  %v422 = vld [vmem:[%s1 + $0x880] sm:$0xff]
  %v423 = vld [vmem:[%s1 + $0x888] sm:$0xff]
  %v424 = vld [vmem:[%s1 + $0x890] sm:$0xff]
  %v425 = vld [vmem:[%s1 + $0x898] sm:$0xff]
  %v426 = vld [vmem:[%s1 + $0x8a0] sm:$0xff]
  %v427 = vld [vmem:[%s1 + $0x8a8] sm:$0xff]
  %v428 = vld [vmem:[%s1 + $0x8b0] sm:$0xff]
  %v429 = vld [vmem:[%s1 + $0x8b8] sm:$0xff]
  %v430 = vld [vmem:[%s1 + $0x8c0] sm:$0xff]
  %v431 = vld [vmem:[%s1 + $0x8c8] sm:$0xff]
  %v432 = vld [vmem:[%s1 + $0x8d0] sm:$0xff]
  %v433 = vld [vmem:[%s1 + $0x8d8] sm:$0xff]
  %v434 = vld [vmem:[%s1 + $0x8e0] sm:$0xff]
  %v435 = vld [vmem:[%s1 + $0x8e8] sm:$0xff]
  %v436 = vld [vmem:[%s1 + $0x8f0] sm:$0xff]
  %v437 = vld [vmem:[%s1 + $0x8f8] sm:$0xff]
  %v438 = vld [vmem:[%s1 + $0x900] sm:$0xff]
  %v439 = vld [vmem:[%s1 + $0x908] sm:$0xff]
  %v440 = vld [vmem:[%s1 + $0x910] sm:$0xff]
  %v441 = vld [vmem:[%s1 + $0x918] sm:$0xff]
  %v442 = vld [vmem:[%s1 + $0x920] sm:$0xff]
  %v443 = vld [vmem:[%s1 + $0x928] sm:$0xff]
  %v444 = vld [vmem:[%s1 + $0x930] sm:$0xff]
  %v445 = vld [vmem:[%s1 + $0x938] sm:$0xff]
  %v446 = vld [vmem:[%s1 + $0x940] sm:$0xff]
  %v447 = vld [vmem:[%s1 + $0x948] sm:$0xff]
  %v448 = vld [vmem:[%s1 + $0x950] sm:$0xff]
  %v449 = vld [vmem:[%s1 + $0x958] sm:$0xff]
  %v450 = vld [vmem:[%s1 + $0x960] sm:$0xff]
  %v451 = vld [vmem:[%s1 + $0x968] sm:$0xff]
  %v452 = vld [vmem:[%s1 + $0x970] sm:$0xff]
  %v453 = vld [vmem:[%s1 + $0x978] sm:$0xff]
  %v454 = vld [vmem:[%s1 + $0x980] sm:$0xff]
  %v455 = vld [vmem:[%s1 + $0x988] sm:$0xff]
  %v456 = vld [vmem:[%s1 + $0x990] sm:$0xff]
  %v457 = vld [vmem:[%s1 + $0x998] sm:$0xff]
  %v458 = vld [vmem:[%s1 + $0x9a0] sm:$0xff]
  %v459 = vld [vmem:[%s1 + $0x9a8] sm:$0xff]
  %v460 = vld [vmem:[%s1 + $0x9b0] sm:$0xff]
  %v461 = vld [vmem:[%s1 + $0x9b8] sm:$0xff]
  %v462 = vld [vmem:[%s1 + $0x9c0] sm:$0xff]
  %v463 = vld [vmem:[%s1 + $0x9c8] sm:$0xff]
  %v464 = vld [vmem:[%s1 + $0x9d0] sm:$0xff]
  %v465 = vld [vmem:[%s1 + $0x9d8] sm:$0xff]
  %v466 = vld [vmem:[%s1 + $0x9e0] sm:$0xff]
  %v467 = vld [vmem:[%s1 + $0x9e8] sm:$0xff]
  %v468 = vld [vmem:[%s1 + $0x9f0] sm:$0xff]
  %v469 = vld [vmem:[%s1 + $0x9f8] sm:$0xff]
  %v470 = vld [vmem:[%s1 + $0xa00] sm:$0xff]
  %v471 = vld [vmem:[%s1 + $0xa08] sm:$0xff]
  %v472 = vld [vmem:[%s1 + $0xa10] sm:$0xff]
  %v473 = vld [vmem:[%s1 + $0xa18] sm:$0xff]
  %v474 = vld [vmem:[%s1 + $0xa20] sm:$0xff]
  %v475 = vld [vmem:[%s1 + $0xa28] sm:$0xff]
  %v476 = vld [vmem:[%s1 + $0xa30] sm:$0xff]
  %v477 = vld [vmem:[%s1 + $0xa38] sm:$0xff]
  %v478 = vld [vmem:[%s1 + $0xa40] sm:$0xff]
  %v479 = vld [vmem:[%s1 + $0xa48] sm:$0xff]
  %v480 = vld [vmem:[%s1 + $0xa50] sm:$0xff]
  %v481 = vld [vmem:[%s1 + $0xa58] sm:$0xff]
  %v482 = vld [vmem:[%s1 + $0xa60] sm:$0xff]
  %v483 = vld [vmem:[%s1 + $0xa68] sm:$0xff]
  %v484 = vld [vmem:[%s1 + $0xa70] sm:$0xff]
  %v485 = vld [vmem:[%s1 + $0xa78] sm:$0xff]
  %v486 = vld [vmem:[%s1 + $0xa80] sm:$0xff]
  %v487 = vld [vmem:[%s1 + $0xa88] sm:$0xff]
  %v488 = vld [vmem:[%s1 + $0xa90] sm:$0xff]
  %v489 = vld [vmem:[%s1 + $0xa98] sm:$0xff]
  %v490 = vld [vmem:[%s1 + $0xaa0] sm:$0xff]
  %v491 = vld [vmem:[%s1 + $0xaa8] sm:$0xff]
  %v492 = vld [vmem:[%s1 + $0xab0] sm:$0xff]
  %v493 = vld [vmem:[%s1 + $0xab8] sm:$0xff]
  %v494 = vld [vmem:[%s1 + $0xac0] sm:$0xff]
  %v495 = vld [vmem:[%s1 + $0xac8] sm:$0xff]
  %v496 = vld [vmem:[%s1 + $0xad0] sm:$0xff]
  %v497 = vld [vmem:[%s1 + $0xad8] sm:$0xff]
  %v498 = vld [vmem:[%s1 + $0xae0] sm:$0xff]
  %v499 = vld [vmem:[%s1 + $0xae8] sm:$0xff]
  %v500 = vld [vmem:[%s1 + $0xaf0] sm:$0xff]
  %v501 = vld [vmem:[%s1 + $0xaf8] sm:$0xff]
  %v502 = vld [vmem:[%s1 + $0xb00] sm:$0xff]
  %v503 = vld [vmem:[%s1 + $0xb08] sm:$0xff]
  %v504 = vld [vmem:[%s1 + $0xb10] sm:$0xff]
  %v505 = vld [vmem:[%s1 + $0xb18] sm:$0xff]
  %v506 = vld [vmem:[%s1 + $0xb20] sm:$0xff]
  %v507 = vld [vmem:[%s1 + $0xb28] sm:$0xff]
  %v508 = vld [vmem:[%s1 + $0xb30] sm:$0xff]
  %v509 = vld [vmem:[%s1 + $0xb38] sm:$0xff]
  %v510 = vld [vmem:[%s1 + $0xb40] sm:$0xff]
  %v511 = vld [vmem:[%s1 + $0xb48] sm:$0xff]
  %v512 = vld [vmem:[%s1 + $0xb50] sm:$0xff]
  %v513 = vld [vmem:[%s1 + $0xb58] sm:$0xff]
  %v514 = vld [vmem:[%s1 + $0xb60] sm:$0xff]
  %v515 = vld [vmem:[%s1 + $0xb68] sm:$0xff]
  %v516 = vld [vmem:[%s1 + $0xb70] sm:$0xff]
  %v517 = vld [vmem:[%s1 + $0xb78] sm:$0xff]
  %v518 = vld [vmem:[%s1 + $0xb80] sm:$0xff]
  %v519 = vld [vmem:[%s1 + $0xb88] sm:$0xff]
  %v520 = vld [vmem:[%s1 + $0xb90] sm:$0xff]
  %v521 = vld [vmem:[%s1 + $0xb98] sm:$0xff]
  %v522 = vld [vmem:[%s1 + $0xba0] sm:$0xff]
  %v523 = vld [vmem:[%s1 + $0xba8] sm:$0xff]
  %v524 = vld [vmem:[%s1 + $0xbb0] sm:$0xff]
  %v525 = vld [vmem:[%s1 + $0xbb8] sm:$0xff]
  %v526 = vld [vmem:[%s1 + $0xbc0] sm:$0xff]
  %v527 = vld [vmem:[%s1 + $0xbc8] sm:$0xff]
  %v528 = vld [vmem:[%s1 + $0xbd0] sm:$0xff]
  %v529 = vld [vmem:[%s1 + $0xbd8] sm:$0xff]
  %v530 = vld [vmem:[%s1 + $0xbe0] sm:$0xff]
  %v531 = vld [vmem:[%s1 + $0xbe8] sm:$0xff]
  %v532 = vld [vmem:[%s1 + $0xbf0] sm:$0xff]
  %v533 = vld [vmem:[%s1 + $0xbf8] sm:$0xff]
  %v534 = vld [vmem:[%s1 + $0xc00] sm:$0xff]
  %v535 = vld [vmem:[%s1 + $0xc08] sm:$0xff]
  %v536 = vld [vmem:[%s1 + $0xc10] sm:$0xff]
  %v537 = vld [vmem:[%s1 + $0xc18] sm:$0xff]
  %v538 = vld [vmem:[%s1 + $0xc20] sm:$0xff]
  %v539 = vld [vmem:[%s1 + $0xc28] sm:$0xff]
  %v540 = vld [vmem:[%s1 + $0xc30] sm:$0xff]
  %v541 = vld [vmem:[%s1 + $0xc38] sm:$0xff]
  %v542 = vld [vmem:[%s1 + $0xc40] sm:$0xff]
  %v543 = vld [vmem:[%s1 + $0xc48] sm:$0xff]
  %v544 = vld [vmem:[%s1 + $0xc50] sm:$0xff]
  %v545 = vld [vmem:[%s1 + $0xc58] sm:$0xff]
  %v546 = vld [vmem:[%s1 + $0xc60] sm:$0xff]
  %v547 = vld [vmem:[%s1 + $0xc68] sm:$0xff]
  %v548 = vld [vmem:[%s1 + $0xc70] sm:$0xff]
  %v549 = vld [vmem:[%s1 + $0xc78] sm:$0xff]
  %v550 = vld [vmem:[%s1 + $0xc80] sm:$0xff]
  %v551 = vld [vmem:[%s1 + $0xc88] sm:$0xff]
  %v552 = vld [vmem:[%s1 + $0xc90] sm:$0xff]
  %v553 = vld [vmem:[%s1 + $0xc98] sm:$0xff]
  %v554 = vld [vmem:[%s1 + $0xca0] sm:$0xff]
  %v555 = vld [vmem:[%s1 + $0xca8] sm:$0xff]
  %v556 = vld [vmem:[%s1 + $0xcb0] sm:$0xff]
  %v557 = vld [vmem:[%s1 + $0xcb8] sm:$0xff]
  %v558 = vld [vmem:[%s1 + $0xcc0] sm:$0xff]
  %v559 = vld [vmem:[%s1 + $0xcc8] sm:$0xff]
  %v560 = vld [vmem:[%s1 + $0xcd0] sm:$0xff]
  %v561 = vld [vmem:[%s1 + $0xcd8] sm:$0xff]
  %v562 = vld [vmem:[%s1 + $0xce0] sm:$0xff]
  %v563 = vld [vmem:[%s1 + $0xce8] sm:$0xff]
  %v564 = vld [vmem:[%s1 + $0xcf0] sm:$0xff]
  %v565 = vld [vmem:[%s1 + $0xcf8] sm:$0xff]
  %v566 = vld [vmem:[%s1 + $0xd00] sm:$0xff]
  %v567 = vld [vmem:[%s1 + $0xd08] sm:$0xff]
  %v568 = vld [vmem:[%s1 + $0xd10] sm:$0xff]
  %v569 = vld [vmem:[%s1 + $0xd18] sm:$0xff]
  %v570 = vld [vmem:[%s1 + $0xd20] sm:$0xff]
  %v571 = vld [vmem:[%s1 + $0xd28] sm:$0xff]
  %v572 = vld [vmem:[%s1 + $0xd30] sm:$0xff]
  %v573 = vld [vmem:[%s1 + $0xd38] sm:$0xff]
  %v574 = vld [vmem:[%s1 + $0xd40] sm:$0xff]
  %v575 = vld [vmem:[%s1 + $0xd48] sm:$0xff]
  %v576 = vld [vmem:[%s1 + $0xd50] sm:$0xff]
  %v577 = vld [vmem:[%s1 + $0xd58] sm:$0xff]
  %v578 = vld [vmem:[%s1 + $0xd60] sm:$0xff]
  %v579 = vld [vmem:[%s1 + $0xd68] sm:$0xff]
  %v580 = vld [vmem:[%s1 + $0xd70] sm:$0xff]
  %v581 = vld [vmem:[%s1 + $0xd78] sm:$0xff]
  %v582 = vld [vmem:[%s1 + $0xd80] sm:$0xff]
  %v583 = vld [vmem:[%s1 + $0xd88] sm:$0xff]
  %v584 = vld [vmem:[%s1 + $0xd90] sm:$0xff]
  %v585 = vld [vmem:[%s1 + $0xd98] sm:$0xff]
  %v586 = vld [vmem:[%s1 + $0xda0] sm:$0xff]
  %v587 = vld [vmem:[%s1 + $0xda8] sm:$0xff]
  %v588 = vld [vmem:[%s1 + $0xdb0] sm:$0xff]
  %v589 = vld [vmem:[%s1 + $0xdb8] sm:$0xff]
  %v590 = vld [vmem:[%s1 + $0xdc0] sm:$0xff]
  %v591 = vld [vmem:[%s1 + $0xdc8] sm:$0xff]
  %v592 = vld [vmem:[%s1 + $0xdd0] sm:$0xff]
  %v593 = vld [vmem:[%s1 + $0xdd8] sm:$0xff]
  %v594 = vld [vmem:[%s1 + $0xde0] sm:$0xff]
  %v595 = vld [vmem:[%s1 + $0xde8] sm:$0xff]
  %v596 = vld [vmem:[%s1 + $0xdf0] sm:$0xff]
  %v597 = vld [vmem:[%s1 + $0xdf8] sm:$0xff]
  %v598 = vld [vmem:[%s1 + $0xe00] sm:$0xff]
  %v599 = vld [vmem:[%s1 + $0xe08] sm:$0xff]
  %v600 = vld [vmem:[%s1 + $0xe10] sm:$0xff]
  %v601 = vld [vmem:[%s1 + $0xe18] sm:$0xff]
  %v602 = vld [vmem:[%s1 + $0xe20] sm:$0xff]
  %v603 = vld [vmem:[%s1 + $0xe28] sm:$0xff]
  %v604 = vld [vmem:[%s1 + $0xe30] sm:$0xff]
  %v605 = vld [vmem:[%s1 + $0xe38] sm:$0xff]
  %v606 = vld [vmem:[%s1 + $0xe40] sm:$0xff]
  %v607 = vld [vmem:[%s1 + $0xe48] sm:$0xff]
  %v608 = vld [vmem:[%s1 + $0xe50] sm:$0xff]
  %v609 = vld [vmem:[%s1 + $0xe58] sm:$0xff]
  %v610 = vld [vmem:[%s1 + $0xe60] sm:$0xff]
  %v611 = vld [vmem:[%s1 + $0xe68] sm:$0xff]
  %v612 = vld [vmem:[%s1 + $0xe70] sm:$0xff]
  %v613 = vld [vmem:[%s1 + $0xe78] sm:$0xff]
  %v614 = vld [vmem:[%s1 + $0xe80] sm:$0xff]
  %v615 = vld [vmem:[%s1 + $0xe88] sm:$0xff]
  %v616 = vld [vmem:[%s1 + $0xe90] sm:$0xff]
  %v617 = vld [vmem:[%s1 + $0xe98] sm:$0xff]
  %v618 = vld [vmem:[%s1 + $0xea0] sm:$0xff]
  %v619 = vld [vmem:[%s1 + $0xea8] sm:$0xff]
  %v620 = vld [vmem:[%s1 + $0xeb0] sm:$0xff]
  %v621 = vld [vmem:[%s1 + $0xeb8] sm:$0xff]
  %v622 = vld [vmem:[%s1 + $0xec0] sm:$0xff]
  %v623 = vld [vmem:[%s1 + $0xec8] sm:$0xff]
  %v624 = vld [vmem:[%s1 + $0xed0] sm:$0xff]
  %v625 = vld [vmem:[%s1 + $0xed8] sm:$0xff]
  %v626 = vld [vmem:[%s1 + $0xee0] sm:$0xff]
  %v627 = vld [vmem:[%s1 + $0xee8] sm:$0xff]
  %v628 = vld [vmem:[%s1 + $0xef0] sm:$0xff]
  %v629 = vld [vmem:[%s1 + $0xef8] sm:$0xff]
  %v630 = vld [vmem:[%s1 + $0xf00] sm:$0xff]
  %v631 = vld [vmem:[%s1 + $0xf08] sm:$0xff]
  %v632 = vld [vmem:[%s1 + $0xf10] sm:$0xff]
  %v633 = vld [vmem:[%s1 + $0xf18] sm:$0xff]
  %v634 = vld [vmem:[%s1 + $0xf20] sm:$0xff]
  %v635 = vld [vmem:[%s1 + $0xf28] sm:$0xff]
  %v636 = vld [vmem:[%s1 + $0xf30] sm:$0xff]
  %v637 = vld [vmem:[%s1 + $0xf38] sm:$0xff]
  %v638 = vld [vmem:[%s1 + $0xf40] sm:$0xff]
  %v639 = vld [vmem:[%s1 + $0xf48] sm:$0xff]
  %v640 = vld [vmem:[%s1 + $0xf50] sm:$0xff]
  %v641 = vld [vmem:[%s1 + $0xf58] sm:$0xff]
  %v642 = vld [vmem:[%s1 + $0xf60] sm:$0xff]
  %v643 = vld [vmem:[%s1 + $0xf68] sm:$0xff]
  %v644 = vld [vmem:[%s1 + $0xf70] sm:$0xff]
  %v645 = vld [vmem:[%s1 + $0xf78] sm:$0xff]
  %v646 = vld [vmem:[%s1 + $0xf80] sm:$0xff]
  %v647 = vld [vmem:[%s1 + $0xf88] sm:$0xff]
  %v648 = vld [vmem:[%s1 + $0xf90] sm:$0xff]
  %v649 = vld [vmem:[%s1 + $0xf98] sm:$0xff]
  %v650 = vld [vmem:[%s1 + $0xfa0] sm:$0xff]
  %v651 = vld [vmem:[%s1 + $0xfa8] sm:$0xff]
  %v652 = vld [vmem:[%s1 + $0xfb0] sm:$0xff]
  %v653 = vld [vmem:[%s1 + $0xfb8] sm:$0xff]
  %v654 = vld [vmem:[%s1 + $0xfc0] sm:$0xff]
  %v655 = vld [vmem:[%s1 + $0xfc8] sm:$0xff]
  %v656 = vld [vmem:[%s1 + $0xfd0] sm:$0xff]
  %v657 = vld [vmem:[%s1 + $0xfd8] sm:$0xff]
  %v658 = vld [vmem:[%s1 + $0xfe0] sm:$0xff]
  %v659 = vld [vmem:[%s1 + $0xfe8] sm:$0xff]
  %v660 = vld [vmem:[%s1 + $0xff0] sm:$0xff]
  %v661 = vld [vmem:[%s1 + $0xff8] sm:$0xff]
  %v662 = vld [vmem:[%s2] sm:$0xff]
  %v664 = vlaneseq
  %v665 = vshrl.u32 %v664, 7
  %v666 = vsub.s32 0, %v665
  %v667 = vrot.slane %v662, %v666
  %v668 = vlaneseq
  %v669 = vshrl.u32 %v668, 7
  %v670 = vsub.s32 1, %v669
  %v671 = vrot.slane %v662, %v670
  %v672 = vlaneseq
  %v673 = vshrl.u32 %v672, 7
  %v674 = vsub.s32 2, %v673
  %v675 = vrot.slane %v662, %v674
  %v676 = vlaneseq
  %v677 = vshrl.u32 %v676, 7
  %v678 = vsub.s32 3, %v677
  %v679 = vrot.slane %v662, %v678
  %v680 = vlaneseq
  %v681 = vshrl.u32 %v680, 7
  %v682 = vsub.s32 4, %v681
  %v683 = vrot.slane %v662, %v682
  %v684 = vlaneseq
  %v685 = vshrl.u32 %v684, 7
  %v686 = vsub.s32 5, %v685
  %v687 = vrot.slane %v662, %v686
  %v688 = vlaneseq
  %v689 = vshrl.u32 %v688, 7
  %v690 = vsub.s32 6, %v689
  %v691 = vrot.slane %v662, %v690
  %v692 = vlaneseq
  %v693 = vshrl.u32 %v692, 7
  %v694 = vsub.s32 7, %v693
  %v695 = vrot.slane %v662, %v694
  %v832 = vunpack.c.l.b16 %v22
  %v833 = vunpack.c.h.b16 %v22
  %v834 = vunpack.c.l.b16 %v23
  %v835 = vunpack.c.h.b16 %v23
  %v836 = vunpack.c.l.b16 %v24
  %v837 = vunpack.c.h.b16 %v24
  %v838 = vunpack.c.l.b16 %v25
  %v839 = vunpack.c.h.b16 %v25
  %v840 = vunpack.c.l.b16 %v26
  %v841 = vunpack.c.h.b16 %v26
  %v842 = vunpack.c.l.b16 %v27
  %v843 = vunpack.c.h.b16 %v27
  %v844 = vunpack.c.l.b16 %v28
  %v845 = vunpack.c.h.b16 %v28
  %v846 = vunpack.c.l.b16 %v29
  %v847 = vunpack.c.h.b16 %v29
  %v848 = vunpack.c.l.b16 %v30
  %v849 = vunpack.c.h.b16 %v30
  %v850 = vunpack.c.l.b16 %v31
  %v851 = vunpack.c.h.b16 %v31
  %v852 = vunpack.c.l.b16 %v32
  %v853 = vunpack.c.h.b16 %v32
  %v854 = vunpack.c.l.b16 %v33
  %v855 = vunpack.c.h.b16 %v33
  %v856 = vunpack.c.l.b16 %v34
  %v857 = vunpack.c.h.b16 %v34
  %v858 = vunpack.c.l.b16 %v35
  %v859 = vunpack.c.h.b16 %v35
  %v860 = vunpack.c.l.b16 %v36
  %v861 = vunpack.c.h.b16 %v36
  %v862 = vunpack.c.l.b16 %v37
  %v863 = vunpack.c.h.b16 %v37
  %v864 = vunpack.c.l.b16 %v38
  %v865 = vunpack.c.h.b16 %v38
  %v866 = vunpack.c.l.b16 %v39
  %v867 = vunpack.c.h.b16 %v39
  %v868 = vunpack.c.l.b16 %v40
  %v869 = vunpack.c.h.b16 %v40
  %v870 = vunpack.c.l.b16 %v41
  %v871 = vunpack.c.h.b16 %v41
  %v872 = vunpack.c.l.b16 %v42
  %v873 = vunpack.c.h.b16 %v42
  %v874 = vunpack.c.l.b16 %v43
  %v875 = vunpack.c.h.b16 %v43
  %v876 = vunpack.c.l.b16 %v44
  %v877 = vunpack.c.h.b16 %v44
  %v878 = vunpack.c.l.b16 %v45
  %v879 = vunpack.c.h.b16 %v45
  %v880 = vunpack.c.l.b16 %v46
  %v881 = vunpack.c.h.b16 %v46
  %v882 = vunpack.c.l.b16 %v47
  %v883 = vunpack.c.h.b16 %v47
  %v884 = vunpack.c.l.b16 %v48
  %v885 = vunpack.c.h.b16 %v48
  %v886 = vunpack.c.l.b16 %v49
  %v887 = vunpack.c.h.b16 %v49
  %v888 = vunpack.c.l.b16 %v50
  %v889 = vunpack.c.h.b16 %v50
  %v890 = vunpack.c.l.b16 %v51
  %v891 = vunpack.c.h.b16 %v51
  %v892 = vunpack.c.l.b16 %v52
  %v893 = vunpack.c.h.b16 %v52
  %v894 = vunpack.c.l.b16 %v53
  %v895 = vunpack.c.h.b16 %v53
  %v896 = vunpack.c.l.b16 %v54
  %v897 = vunpack.c.h.b16 %v54
  %v898 = vunpack.c.l.b16 %v55
  %v899 = vunpack.c.h.b16 %v55
  %v900 = vunpack.c.l.b16 %v56
  %v901 = vunpack.c.h.b16 %v56
  %v902 = vunpack.c.l.b16 %v57
  %v903 = vunpack.c.h.b16 %v57
  %v904 = vunpack.c.l.b16 %v58
  %v905 = vunpack.c.h.b16 %v58
  %v906 = vunpack.c.l.b16 %v59
  %v907 = vunpack.c.h.b16 %v59
  %v908 = vunpack.c.l.b16 %v60
  %v909 = vunpack.c.h.b16 %v60
  %v910 = vunpack.c.l.b16 %v61
  %v911 = vunpack.c.h.b16 %v61
  %v912 = vunpack.c.l.b16 %v62
  %v913 = vunpack.c.h.b16 %v62
  %v914 = vunpack.c.l.b16 %v63
  %v915 = vunpack.c.h.b16 %v63
  %v916 = vunpack.c.l.b16 %v64
  %v917 = vunpack.c.h.b16 %v64
  %v918 = vunpack.c.l.b16 %v65
  %v919 = vunpack.c.h.b16 %v65
  %v920 = vunpack.c.l.b16 %v66
  %v921 = vunpack.c.h.b16 %v66
  %v922 = vunpack.c.l.b16 %v67
  %v923 = vunpack.c.h.b16 %v67
  %v924 = vunpack.c.l.b16 %v68
  %v925 = vunpack.c.h.b16 %v68
  %v926 = vunpack.c.l.b16 %v69
  %v927 = vunpack.c.h.b16 %v69
  %v928 = vunpack.c.l.b16 %v70
  %v929 = vunpack.c.h.b16 %v70
  %v930 = vunpack.c.l.b16 %v71
  %v931 = vunpack.c.h.b16 %v71
  %v932 = vunpack.c.l.b16 %v72
  %v933 = vunpack.c.h.b16 %v72
  %v934 = vunpack.c.l.b16 %v73
  %v935 = vunpack.c.h.b16 %v73
  %v936 = vunpack.c.l.b16 %v74
  %v937 = vunpack.c.h.b16 %v74
  %v938 = vunpack.c.l.b16 %v75
  %v939 = vunpack.c.h.b16 %v75
  %v940 = vunpack.c.l.b16 %v76
  %v941 = vunpack.c.h.b16 %v76
  %v942 = vunpack.c.l.b16 %v77
  %v943 = vunpack.c.h.b16 %v77
  %v944 = vunpack.c.l.b16 %v78
  %v945 = vunpack.c.h.b16 %v78
  %v946 = vunpack.c.l.b16 %v79
  %v947 = vunpack.c.h.b16 %v79
  %v948 = vunpack.c.l.b16 %v80
  %v949 = vunpack.c.h.b16 %v80
  %v950 = vunpack.c.l.b16 %v81
  %v951 = vunpack.c.h.b16 %v81
  %v952 = vunpack.c.l.b16 %v82
  %v953 = vunpack.c.h.b16 %v82
  %v954 = vunpack.c.l.b16 %v83
  %v955 = vunpack.c.h.b16 %v83
  %v956 = vunpack.c.l.b16 %v84
  %v957 = vunpack.c.h.b16 %v84
  %v958 = vunpack.c.l.b16 %v85
  %v959 = vunpack.c.h.b16 %v85
  %v960 = vunpack.c.l.b16 %v86
  %v961 = vunpack.c.h.b16 %v86
  %v962 = vunpack.c.l.b16 %v87
  %v963 = vunpack.c.h.b16 %v87
  %v964 = vunpack.c.l.b16 %v88
  %v965 = vunpack.c.h.b16 %v88
  %v966 = vunpack.c.l.b16 %v89
  %v967 = vunpack.c.h.b16 %v89
  %v968 = vunpack.c.l.b16 %v90
  %v969 = vunpack.c.h.b16 %v90
  %v970 = vunpack.c.l.b16 %v91
  %v971 = vunpack.c.h.b16 %v91
  %v972 = vunpack.c.l.b16 %v92
  %v973 = vunpack.c.h.b16 %v92
  %v974 = vunpack.c.l.b16 %v93
  %v975 = vunpack.c.h.b16 %v93
  %v976 = vunpack.c.l.b16 %v94
  %v977 = vunpack.c.h.b16 %v94
  %v978 = vunpack.c.l.b16 %v95
  %v979 = vunpack.c.h.b16 %v95
  %v980 = vunpack.c.l.b16 %v96
  %v981 = vunpack.c.h.b16 %v96
  %v982 = vunpack.c.l.b16 %v97
  %v983 = vunpack.c.h.b16 %v97
  %v984 = vunpack.c.l.b16 %v98
  %v985 = vunpack.c.h.b16 %v98
  %v986 = vunpack.c.l.b16 %v99
  %v987 = vunpack.c.h.b16 %v99
  %v988 = vunpack.c.l.b16 %v100
  %v989 = vunpack.c.h.b16 %v100
  %v990 = vunpack.c.l.b16 %v101
  %v991 = vunpack.c.h.b16 %v101
  %v992 = vunpack.c.l.b16 %v102
  %v993 = vunpack.c.h.b16 %v102
  %v994 = vunpack.c.l.b16 %v103
  %v995 = vunpack.c.h.b16 %v103
  %v996 = vunpack.c.l.b16 %v104
  %v997 = vunpack.c.h.b16 %v104
  %v998 = vunpack.c.l.b16 %v105
  %v999 = vunpack.c.h.b16 %v105
  %v1000 = vunpack.c.l.b16 %v106
  %v1001 = vunpack.c.h.b16 %v106
  %v1002 = vunpack.c.l.b16 %v107
  %v1003 = vunpack.c.h.b16 %v107
  %v1004 = vunpack.c.l.b16 %v108
  %v1005 = vunpack.c.h.b16 %v108
  %v1006 = vunpack.c.l.b16 %v109
  %v1007 = vunpack.c.h.b16 %v109
  %v1008 = vunpack.c.l.b16 %v110
  %v1009 = vunpack.c.h.b16 %v110
  %v1010 = vunpack.c.l.b16 %v111
  %v1011 = vunpack.c.h.b16 %v111
  %v1012 = vunpack.c.l.b16 %v112
  %v1013 = vunpack.c.h.b16 %v112
  %v1014 = vunpack.c.l.b16 %v113
  %v1015 = vunpack.c.h.b16 %v113
  %v1016 = vunpack.c.l.b16 %v114
  %v1017 = vunpack.c.h.b16 %v114
  %v1018 = vunpack.c.l.b16 %v115
  %v1019 = vunpack.c.h.b16 %v115
  %v1020 = vunpack.c.l.b16 %v116
  %v1021 = vunpack.c.h.b16 %v116
  %v1022 = vunpack.c.l.b16 %v117
  %v1023 = vunpack.c.h.b16 %v117
  %v1024 = vunpack.c.l.b16 %v118
  %v1025 = vunpack.c.h.b16 %v118
  %v1026 = vunpack.c.l.b16 %v119
  %v1027 = vunpack.c.h.b16 %v119
  %v1028 = vunpack.c.l.b16 %v120
  %v1029 = vunpack.c.h.b16 %v120
  %v1030 = vunpack.c.l.b16 %v121
  %v1031 = vunpack.c.h.b16 %v121
  %v1032 = vunpack.c.l.b16 %v122
  %v1033 = vunpack.c.h.b16 %v122
  %v1034 = vunpack.c.l.b16 %v123
  %v1035 = vunpack.c.h.b16 %v123
  %v1036 = vunpack.c.l.b16 %v124
  %v1037 = vunpack.c.h.b16 %v124
  %v1038 = vunpack.c.l.b16 %v125
  %v1039 = vunpack.c.h.b16 %v125
  %v1040 = vunpack.c.l.b16 %v126
  %v1041 = vunpack.c.h.b16 %v126
  %v1042 = vunpack.c.l.b16 %v127
  %v1043 = vunpack.c.h.b16 %v127
  %v1044 = vunpack.c.l.b16 %v128
  %v1045 = vunpack.c.h.b16 %v128
  %v1046 = vunpack.c.l.b16 %v129
  %v1047 = vunpack.c.h.b16 %v129
  %v1048 = vunpack.c.l.b16 %v130
  %v1049 = vunpack.c.h.b16 %v130
  %v1050 = vunpack.c.l.b16 %v131
  %v1051 = vunpack.c.h.b16 %v131
  %v1052 = vunpack.c.l.b16 %v132
  %v1053 = vunpack.c.h.b16 %v132
  %v1054 = vunpack.c.l.b16 %v133
  %v1055 = vunpack.c.h.b16 %v133
  %v1056 = vunpack.c.l.b16 %v134
  %v1057 = vunpack.c.h.b16 %v134
  %v1058 = vunpack.c.l.b16 %v135
  %v1059 = vunpack.c.h.b16 %v135
  %v1060 = vunpack.c.l.b16 %v136
  %v1061 = vunpack.c.h.b16 %v136
  %v1062 = vunpack.c.l.b16 %v137
  %v1063 = vunpack.c.h.b16 %v137
  %v1064 = vunpack.c.l.b16 %v138
  %v1065 = vunpack.c.h.b16 %v138
  %v1066 = vunpack.c.l.b16 %v139
  %v1067 = vunpack.c.h.b16 %v139
  %v1068 = vunpack.c.l.b16 %v140
  %v1069 = vunpack.c.h.b16 %v140
  %v1070 = vunpack.c.l.b16 %v141
  %v1071 = vunpack.c.h.b16 %v141
  %v1072 = vunpack.c.l.b16 %v142
  %v1073 = vunpack.c.h.b16 %v142
  %v1074 = vunpack.c.l.b16 %v143
  %v1075 = vunpack.c.h.b16 %v143
  %v1076 = vunpack.c.l.b16 %v144
  %v1077 = vunpack.c.h.b16 %v144
  %v1078 = vunpack.c.l.b16 %v145
  %v1079 = vunpack.c.h.b16 %v145
  %v1080 = vunpack.c.l.b16 %v146
  %v1081 = vunpack.c.h.b16 %v146
  %v1082 = vunpack.c.l.b16 %v147
  %v1083 = vunpack.c.h.b16 %v147
  %v1084 = vunpack.c.l.b16 %v148
  %v1085 = vunpack.c.h.b16 %v148
  %v1086 = vunpack.c.l.b16 %v149
  %v1087 = vunpack.c.h.b16 %v149
  %v1088 = vpack.c.b16 %v840, %v832
  %v1089 = vpack.c.b16 %v841, %v833
  %v1090 = vpack.c.b16 %v842, %v834
  %v1091 = vpack.c.b16 %v843, %v835
  %v1092 = vpack.c.b16 %v844, %v836
  %v1093 = vpack.c.b16 %v845, %v837
  %v1094 = vpack.c.b16 %v846, %v838
  %v1095 = vpack.c.b16 %v847, %v839
  %v1096 = vpack.c.b16 %v856, %v848
  %v1097 = vpack.c.b16 %v857, %v849
  %v1098 = vpack.c.b16 %v858, %v850
  %v1099 = vpack.c.b16 %v859, %v851
  %v1100 = vpack.c.b16 %v860, %v852
  %v1101 = vpack.c.b16 %v861, %v853
  %v1102 = vpack.c.b16 %v862, %v854
  %v1103 = vpack.c.b16 %v863, %v855
  %v1104 = vpack.c.b16 %v872, %v864
  %v1105 = vpack.c.b16 %v873, %v865
  %v1106 = vpack.c.b16 %v874, %v866
  %v1107 = vpack.c.b16 %v875, %v867
  %v1108 = vpack.c.b16 %v876, %v868
  %v1109 = vpack.c.b16 %v877, %v869
  %v1110 = vpack.c.b16 %v878, %v870
  %v1111 = vpack.c.b16 %v879, %v871
  %v1112 = vpack.c.b16 %v888, %v880
  %v1113 = vpack.c.b16 %v889, %v881
  %v1114 = vpack.c.b16 %v890, %v882
  %v1115 = vpack.c.b16 %v891, %v883
  %v1116 = vpack.c.b16 %v892, %v884
  %v1117 = vpack.c.b16 %v893, %v885
  %v1118 = vpack.c.b16 %v894, %v886
  %v1119 = vpack.c.b16 %v895, %v887
  %v1120 = vpack.c.b16 %v904, %v896
  %v1121 = vpack.c.b16 %v905, %v897
  %v1122 = vpack.c.b16 %v906, %v898
  %v1123 = vpack.c.b16 %v907, %v899
  %v1124 = vpack.c.b16 %v908, %v900
  %v1125 = vpack.c.b16 %v909, %v901
  %v1126 = vpack.c.b16 %v910, %v902
  %v1127 = vpack.c.b16 %v911, %v903
  %v1128 = vpack.c.b16 %v920, %v912
  %v1129 = vpack.c.b16 %v921, %v913
  %v1130 = vpack.c.b16 %v922, %v914
  %v1131 = vpack.c.b16 %v923, %v915
  %v1132 = vpack.c.b16 %v924, %v916
  %v1133 = vpack.c.b16 %v925, %v917
  %v1134 = vpack.c.b16 %v926, %v918
  %v1135 = vpack.c.b16 %v927, %v919
  %v1136 = vpack.c.b16 %v936, %v928
  %v1137 = vpack.c.b16 %v937, %v929
  %v1138 = vpack.c.b16 %v938, %v930
  %v1139 = vpack.c.b16 %v939, %v931
  %v1140 = vpack.c.b16 %v940, %v932
  %v1141 = vpack.c.b16 %v941, %v933
  %v1142 = vpack.c.b16 %v942, %v934
  %v1143 = vpack.c.b16 %v943, %v935
  %v1144 = vpack.c.b16 %v952, %v944
  %v1145 = vpack.c.b16 %v953, %v945
  %v1146 = vpack.c.b16 %v954, %v946
  %v1147 = vpack.c.b16 %v955, %v947
  %v1148 = vpack.c.b16 %v956, %v948
  %v1149 = vpack.c.b16 %v957, %v949
  %v1150 = vpack.c.b16 %v958, %v950
  %v1151 = vpack.c.b16 %v959, %v951
  %v1152 = vpack.c.b16 %v968, %v960
  %v1153 = vpack.c.b16 %v969, %v961
  %v1154 = vpack.c.b16 %v970, %v962
  %v1155 = vpack.c.b16 %v971, %v963
  %v1156 = vpack.c.b16 %v972, %v964
  %v1157 = vpack.c.b16 %v973, %v965
  %v1158 = vpack.c.b16 %v974, %v966
  %v1159 = vpack.c.b16 %v975, %v967
  %v1160 = vpack.c.b16 %v984, %v976
  %v1161 = vpack.c.b16 %v985, %v977
  %v1162 = vpack.c.b16 %v986, %v978
  %v1163 = vpack.c.b16 %v987, %v979
  %v1164 = vpack.c.b16 %v988, %v980
  %v1165 = vpack.c.b16 %v989, %v981
  %v1166 = vpack.c.b16 %v990, %v982
  %v1167 = vpack.c.b16 %v991, %v983
  %v1168 = vpack.c.b16 %v1000, %v992
  %v1169 = vpack.c.b16 %v1001, %v993
  %v1170 = vpack.c.b16 %v1002, %v994
  %v1171 = vpack.c.b16 %v1003, %v995
  %v1172 = vpack.c.b16 %v1004, %v996
  %v1173 = vpack.c.b16 %v1005, %v997
  %v1174 = vpack.c.b16 %v1006, %v998
  %v1175 = vpack.c.b16 %v1007, %v999
  %v1176 = vpack.c.b16 %v1016, %v1008
  %v1177 = vpack.c.b16 %v1017, %v1009
  %v1178 = vpack.c.b16 %v1018, %v1010
  %v1179 = vpack.c.b16 %v1019, %v1011
  %v1180 = vpack.c.b16 %v1020, %v1012
  %v1181 = vpack.c.b16 %v1021, %v1013
  %v1182 = vpack.c.b16 %v1022, %v1014
  %v1183 = vpack.c.b16 %v1023, %v1015
  %v1184 = vpack.c.b16 %v1032, %v1024
  %v1185 = vpack.c.b16 %v1033, %v1025
  %v1186 = vpack.c.b16 %v1034, %v1026
  %v1187 = vpack.c.b16 %v1035, %v1027
  %v1188 = vpack.c.b16 %v1036, %v1028
  %v1189 = vpack.c.b16 %v1037, %v1029
  %v1190 = vpack.c.b16 %v1038, %v1030
  %v1191 = vpack.c.b16 %v1039, %v1031
  %v1192 = vpack.c.b16 %v1048, %v1040
  %v1193 = vpack.c.b16 %v1049, %v1041
  %v1194 = vpack.c.b16 %v1050, %v1042
  %v1195 = vpack.c.b16 %v1051, %v1043
  %v1196 = vpack.c.b16 %v1052, %v1044
  %v1197 = vpack.c.b16 %v1053, %v1045
  %v1198 = vpack.c.b16 %v1054, %v1046
  %v1199 = vpack.c.b16 %v1055, %v1047
  %v1200 = vpack.c.b16 %v1064, %v1056
  %v1201 = vpack.c.b16 %v1065, %v1057
  %v1202 = vpack.c.b16 %v1066, %v1058
  %v1203 = vpack.c.b16 %v1067, %v1059
  %v1204 = vpack.c.b16 %v1068, %v1060
  %v1205 = vpack.c.b16 %v1069, %v1061
  %v1206 = vpack.c.b16 %v1070, %v1062
  %v1207 = vpack.c.b16 %v1071, %v1063
  %v1208 = vpack.c.b16 %v1080, %v1072
  %v1209 = vpack.c.b16 %v1081, %v1073
  %v1210 = vpack.c.b16 %v1082, %v1074
  %v1211 = vpack.c.b16 %v1083, %v1075
  %v1212 = vpack.c.b16 %v1084, %v1076
  %v1213 = vpack.c.b16 %v1085, %v1077
  %v1214 = vpack.c.b16 %v1086, %v1078
  %v1215 = vpack.c.b16 %v1087, %v1079
  %v1856 = vunpack.c.l.b16 %v150
  %v1857 = vunpack.c.h.b16 %v150
  %v1858 = vunpack.c.l.b16 %v151
  %v1859 = vunpack.c.h.b16 %v151
  %v1860 = vunpack.c.l.b16 %v152
  %v1861 = vunpack.c.h.b16 %v152
  %v1862 = vunpack.c.l.b16 %v153
  %v1863 = vunpack.c.h.b16 %v153
  %v1864 = vunpack.c.l.b16 %v154
  %v1865 = vunpack.c.h.b16 %v154
  %v1866 = vunpack.c.l.b16 %v155
  %v1867 = vunpack.c.h.b16 %v155
  %v1868 = vunpack.c.l.b16 %v156
  %v1869 = vunpack.c.h.b16 %v156
  %v1870 = vunpack.c.l.b16 %v157
  %v1871 = vunpack.c.h.b16 %v157
  %v1872 = vunpack.c.l.b16 %v158
  %v1873 = vunpack.c.h.b16 %v158
  %v1874 = vunpack.c.l.b16 %v159
  %v1875 = vunpack.c.h.b16 %v159
  %v1876 = vunpack.c.l.b16 %v160
  %v1877 = vunpack.c.h.b16 %v160
  %v1878 = vunpack.c.l.b16 %v161
  %v1879 = vunpack.c.h.b16 %v161
  %v1880 = vunpack.c.l.b16 %v162
  %v1881 = vunpack.c.h.b16 %v162
  %v1882 = vunpack.c.l.b16 %v163
  %v1883 = vunpack.c.h.b16 %v163
  %v1884 = vunpack.c.l.b16 %v164
  %v1885 = vunpack.c.h.b16 %v164
  %v1886 = vunpack.c.l.b16 %v165
  %v1887 = vunpack.c.h.b16 %v165
  %v1888 = vunpack.c.l.b16 %v166
  %v1889 = vunpack.c.h.b16 %v166
  %v1890 = vunpack.c.l.b16 %v167
  %v1891 = vunpack.c.h.b16 %v167
  %v1892 = vunpack.c.l.b16 %v168
  %v1893 = vunpack.c.h.b16 %v168
  %v1894 = vunpack.c.l.b16 %v169
  %v1895 = vunpack.c.h.b16 %v169
  %v1896 = vunpack.c.l.b16 %v170
  %v1897 = vunpack.c.h.b16 %v170
  %v1898 = vunpack.c.l.b16 %v171
  %v1899 = vunpack.c.h.b16 %v171
  %v1900 = vunpack.c.l.b16 %v172
  %v1901 = vunpack.c.h.b16 %v172
  %v1902 = vunpack.c.l.b16 %v173
  %v1903 = vunpack.c.h.b16 %v173
  %v1904 = vunpack.c.l.b16 %v174
  %v1905 = vunpack.c.h.b16 %v174
  %v1906 = vunpack.c.l.b16 %v175
  %v1907 = vunpack.c.h.b16 %v175
  %v1908 = vunpack.c.l.b16 %v176
  %v1909 = vunpack.c.h.b16 %v176
  %v1910 = vunpack.c.l.b16 %v177
  %v1911 = vunpack.c.h.b16 %v177
  %v1912 = vunpack.c.l.b16 %v178
  %v1913 = vunpack.c.h.b16 %v178
  %v1914 = vunpack.c.l.b16 %v179
  %v1915 = vunpack.c.h.b16 %v179
  %v1916 = vunpack.c.l.b16 %v180
  %v1917 = vunpack.c.h.b16 %v180
  %v1918 = vunpack.c.l.b16 %v181
  %v1919 = vunpack.c.h.b16 %v181
  %v1920 = vunpack.c.l.b16 %v182
  %v1921 = vunpack.c.h.b16 %v182
  %v1922 = vunpack.c.l.b16 %v183
  %v1923 = vunpack.c.h.b16 %v183
  %v1924 = vunpack.c.l.b16 %v184
  %v1925 = vunpack.c.h.b16 %v184
  %v1926 = vunpack.c.l.b16 %v185
  %v1927 = vunpack.c.h.b16 %v185
  %v1928 = vunpack.c.l.b16 %v186
  %v1929 = vunpack.c.h.b16 %v186
  %v1930 = vunpack.c.l.b16 %v187
  %v1931 = vunpack.c.h.b16 %v187
  %v1932 = vunpack.c.l.b16 %v188
  %v1933 = vunpack.c.h.b16 %v188
  %v1934 = vunpack.c.l.b16 %v189
  %v1935 = vunpack.c.h.b16 %v189
  %v1936 = vunpack.c.l.b16 %v190
  %v1937 = vunpack.c.h.b16 %v190
  %v1938 = vunpack.c.l.b16 %v191
  %v1939 = vunpack.c.h.b16 %v191
  %v1940 = vunpack.c.l.b16 %v192
  %v1941 = vunpack.c.h.b16 %v192
  %v1942 = vunpack.c.l.b16 %v193
  %v1943 = vunpack.c.h.b16 %v193
  %v1944 = vunpack.c.l.b16 %v194
  %v1945 = vunpack.c.h.b16 %v194
  %v1946 = vunpack.c.l.b16 %v195
  %v1947 = vunpack.c.h.b16 %v195
  %v1948 = vunpack.c.l.b16 %v196
  %v1949 = vunpack.c.h.b16 %v196
  %v1950 = vunpack.c.l.b16 %v197
  %v1951 = vunpack.c.h.b16 %v197
  %v1952 = vunpack.c.l.b16 %v198
  %v1953 = vunpack.c.h.b16 %v198
  %v1954 = vunpack.c.l.b16 %v199
  %v1955 = vunpack.c.h.b16 %v199
  %v1956 = vunpack.c.l.b16 %v200
  %v1957 = vunpack.c.h.b16 %v200
  %v1958 = vunpack.c.l.b16 %v201
  %v1959 = vunpack.c.h.b16 %v201
  %v1960 = vunpack.c.l.b16 %v202
  %v1961 = vunpack.c.h.b16 %v202
  %v1962 = vunpack.c.l.b16 %v203
  %v1963 = vunpack.c.h.b16 %v203
  %v1964 = vunpack.c.l.b16 %v204
  %v1965 = vunpack.c.h.b16 %v204
  %v1966 = vunpack.c.l.b16 %v205
  %v1967 = vunpack.c.h.b16 %v205
  %v1968 = vunpack.c.l.b16 %v206
  %v1969 = vunpack.c.h.b16 %v206
  %v1970 = vunpack.c.l.b16 %v207
  %v1971 = vunpack.c.h.b16 %v207
  %v1972 = vunpack.c.l.b16 %v208
  %v1973 = vunpack.c.h.b16 %v208
  %v1974 = vunpack.c.l.b16 %v209
  %v1975 = vunpack.c.h.b16 %v209
  %v1976 = vunpack.c.l.b16 %v210
  %v1977 = vunpack.c.h.b16 %v210
  %v1978 = vunpack.c.l.b16 %v211
  %v1979 = vunpack.c.h.b16 %v211
  %v1980 = vunpack.c.l.b16 %v212
  %v1981 = vunpack.c.h.b16 %v212
  %v1982 = vunpack.c.l.b16 %v213
  %v1983 = vunpack.c.h.b16 %v213
  %v1984 = vunpack.c.l.b16 %v214
  %v1985 = vunpack.c.h.b16 %v214
  %v1986 = vunpack.c.l.b16 %v215
  %v1987 = vunpack.c.h.b16 %v215
  %v1988 = vunpack.c.l.b16 %v216
  %v1989 = vunpack.c.h.b16 %v216
  %v1990 = vunpack.c.l.b16 %v217
  %v1991 = vunpack.c.h.b16 %v217
  %v1992 = vunpack.c.l.b16 %v218
  %v1993 = vunpack.c.h.b16 %v218
  %v1994 = vunpack.c.l.b16 %v219
  %v1995 = vunpack.c.h.b16 %v219
  %v1996 = vunpack.c.l.b16 %v220
  %v1997 = vunpack.c.h.b16 %v220
  %v1998 = vunpack.c.l.b16 %v221
  %v1999 = vunpack.c.h.b16 %v221
  %v2000 = vunpack.c.l.b16 %v222
  %v2001 = vunpack.c.h.b16 %v222
  %v2002 = vunpack.c.l.b16 %v223
  %v2003 = vunpack.c.h.b16 %v223
  %v2004 = vunpack.c.l.b16 %v224
  %v2005 = vunpack.c.h.b16 %v224
  %v2006 = vunpack.c.l.b16 %v225
  %v2007 = vunpack.c.h.b16 %v225
  %v2008 = vunpack.c.l.b16 %v226
  %v2009 = vunpack.c.h.b16 %v226
  %v2010 = vunpack.c.l.b16 %v227
  %v2011 = vunpack.c.h.b16 %v227
  %v2012 = vunpack.c.l.b16 %v228
  %v2013 = vunpack.c.h.b16 %v228
  %v2014 = vunpack.c.l.b16 %v229
  %v2015 = vunpack.c.h.b16 %v229
  %v2016 = vunpack.c.l.b16 %v230
  %v2017 = vunpack.c.h.b16 %v230
  %v2018 = vunpack.c.l.b16 %v231
  %v2019 = vunpack.c.h.b16 %v231
  %v2020 = vunpack.c.l.b16 %v232
  %v2021 = vunpack.c.h.b16 %v232
  %v2022 = vunpack.c.l.b16 %v233
  %v2023 = vunpack.c.h.b16 %v233
  %v2024 = vunpack.c.l.b16 %v234
  %v2025 = vunpack.c.h.b16 %v234
  %v2026 = vunpack.c.l.b16 %v235
  %v2027 = vunpack.c.h.b16 %v235
  %v2028 = vunpack.c.l.b16 %v236
  %v2029 = vunpack.c.h.b16 %v236
  %v2030 = vunpack.c.l.b16 %v237
  %v2031 = vunpack.c.h.b16 %v237
  %v2032 = vunpack.c.l.b16 %v238
  %v2033 = vunpack.c.h.b16 %v238
  %v2034 = vunpack.c.l.b16 %v239
  %v2035 = vunpack.c.h.b16 %v239
  %v2036 = vunpack.c.l.b16 %v240
  %v2037 = vunpack.c.h.b16 %v240
  %v2038 = vunpack.c.l.b16 %v241
  %v2039 = vunpack.c.h.b16 %v241
  %v2040 = vunpack.c.l.b16 %v242
  %v2041 = vunpack.c.h.b16 %v242
  %v2042 = vunpack.c.l.b16 %v243
  %v2043 = vunpack.c.h.b16 %v243
  %v2044 = vunpack.c.l.b16 %v244
  %v2045 = vunpack.c.h.b16 %v244
  %v2046 = vunpack.c.l.b16 %v245
  %v2047 = vunpack.c.h.b16 %v245
  %v2048 = vunpack.c.l.b16 %v246
  %v2049 = vunpack.c.h.b16 %v246
  %v2050 = vunpack.c.l.b16 %v247
  %v2051 = vunpack.c.h.b16 %v247
  %v2052 = vunpack.c.l.b16 %v248
  %v2053 = vunpack.c.h.b16 %v248
  %v2054 = vunpack.c.l.b16 %v249
  %v2055 = vunpack.c.h.b16 %v249
  %v2056 = vunpack.c.l.b16 %v250
  %v2057 = vunpack.c.h.b16 %v250
  %v2058 = vunpack.c.l.b16 %v251
  %v2059 = vunpack.c.h.b16 %v251
  %v2060 = vunpack.c.l.b16 %v252
  %v2061 = vunpack.c.h.b16 %v252
  %v2062 = vunpack.c.l.b16 %v253
  %v2063 = vunpack.c.h.b16 %v253
  %v2064 = vunpack.c.l.b16 %v254
  %v2065 = vunpack.c.h.b16 %v254
  %v2066 = vunpack.c.l.b16 %v255
  %v2067 = vunpack.c.h.b16 %v255
  %v2068 = vunpack.c.l.b16 %v256
  %v2069 = vunpack.c.h.b16 %v256
  %v2070 = vunpack.c.l.b16 %v257
  %v2071 = vunpack.c.h.b16 %v257
  %v2072 = vunpack.c.l.b16 %v258
  %v2073 = vunpack.c.h.b16 %v258
  %v2074 = vunpack.c.l.b16 %v259
  %v2075 = vunpack.c.h.b16 %v259
  %v2076 = vunpack.c.l.b16 %v260
  %v2077 = vunpack.c.h.b16 %v260
  %v2078 = vunpack.c.l.b16 %v261
  %v2079 = vunpack.c.h.b16 %v261
  %v2080 = vunpack.c.l.b16 %v262
  %v2081 = vunpack.c.h.b16 %v262
  %v2082 = vunpack.c.l.b16 %v263
  %v2083 = vunpack.c.h.b16 %v263
  %v2084 = vunpack.c.l.b16 %v264
  %v2085 = vunpack.c.h.b16 %v264
  %v2086 = vunpack.c.l.b16 %v265
  %v2087 = vunpack.c.h.b16 %v265
  %v2088 = vunpack.c.l.b16 %v266
  %v2089 = vunpack.c.h.b16 %v266
  %v2090 = vunpack.c.l.b16 %v267
  %v2091 = vunpack.c.h.b16 %v267
  %v2092 = vunpack.c.l.b16 %v268
  %v2093 = vunpack.c.h.b16 %v268
  %v2094 = vunpack.c.l.b16 %v269
  %v2095 = vunpack.c.h.b16 %v269
  %v2096 = vunpack.c.l.b16 %v270
  %v2097 = vunpack.c.h.b16 %v270
  %v2098 = vunpack.c.l.b16 %v271
  %v2099 = vunpack.c.h.b16 %v271
  %v2100 = vunpack.c.l.b16 %v272
  %v2101 = vunpack.c.h.b16 %v272
  %v2102 = vunpack.c.l.b16 %v273
  %v2103 = vunpack.c.h.b16 %v273
  %v2104 = vunpack.c.l.b16 %v274
  %v2105 = vunpack.c.h.b16 %v274
  %v2106 = vunpack.c.l.b16 %v275
  %v2107 = vunpack.c.h.b16 %v275
  %v2108 = vunpack.c.l.b16 %v276
  %v2109 = vunpack.c.h.b16 %v276
  %v2110 = vunpack.c.l.b16 %v277
  %v2111 = vunpack.c.h.b16 %v277
  %v2112 = vunpack.c.l.b16 %v278
  %v2113 = vunpack.c.h.b16 %v278
  %v2114 = vunpack.c.l.b16 %v279
  %v2115 = vunpack.c.h.b16 %v279
  %v2116 = vunpack.c.l.b16 %v280
  %v2117 = vunpack.c.h.b16 %v280
  %v2118 = vunpack.c.l.b16 %v281
  %v2119 = vunpack.c.h.b16 %v281
  %v2120 = vunpack.c.l.b16 %v282
  %v2121 = vunpack.c.h.b16 %v282
  %v2122 = vunpack.c.l.b16 %v283
  %v2123 = vunpack.c.h.b16 %v283
  %v2124 = vunpack.c.l.b16 %v284
  %v2125 = vunpack.c.h.b16 %v284
  %v2126 = vunpack.c.l.b16 %v285
  %v2127 = vunpack.c.h.b16 %v285
  %v2128 = vunpack.c.l.b16 %v286
  %v2129 = vunpack.c.h.b16 %v286
  %v2130 = vunpack.c.l.b16 %v287
  %v2131 = vunpack.c.h.b16 %v287
  %v2132 = vunpack.c.l.b16 %v288
  %v2133 = vunpack.c.h.b16 %v288
  %v2134 = vunpack.c.l.b16 %v289
  %v2135 = vunpack.c.h.b16 %v289
  %v2136 = vunpack.c.l.b16 %v290
  %v2137 = vunpack.c.h.b16 %v290
  %v2138 = vunpack.c.l.b16 %v291
  %v2139 = vunpack.c.h.b16 %v291
  %v2140 = vunpack.c.l.b16 %v292
  %v2141 = vunpack.c.h.b16 %v292
  %v2142 = vunpack.c.l.b16 %v293
  %v2143 = vunpack.c.h.b16 %v293
  %v2144 = vunpack.c.l.b16 %v294
  %v2145 = vunpack.c.h.b16 %v294
  %v2146 = vunpack.c.l.b16 %v295
  %v2147 = vunpack.c.h.b16 %v295
  %v2148 = vunpack.c.l.b16 %v296
  %v2149 = vunpack.c.h.b16 %v296
  %v2150 = vunpack.c.l.b16 %v297
  %v2151 = vunpack.c.h.b16 %v297
  %v2152 = vunpack.c.l.b16 %v298
  %v2153 = vunpack.c.h.b16 %v298
  %v2154 = vunpack.c.l.b16 %v299
  %v2155 = vunpack.c.h.b16 %v299
  %v2156 = vunpack.c.l.b16 %v300
  %v2157 = vunpack.c.h.b16 %v300
  %v2158 = vunpack.c.l.b16 %v301
  %v2159 = vunpack.c.h.b16 %v301
  %v2160 = vunpack.c.l.b16 %v302
  %v2161 = vunpack.c.h.b16 %v302
  %v2162 = vunpack.c.l.b16 %v303
  %v2163 = vunpack.c.h.b16 %v303
  %v2164 = vunpack.c.l.b16 %v304
  %v2165 = vunpack.c.h.b16 %v304
  %v2166 = vunpack.c.l.b16 %v305
  %v2167 = vunpack.c.h.b16 %v305
  %v2168 = vunpack.c.l.b16 %v306
  %v2169 = vunpack.c.h.b16 %v306
  %v2170 = vunpack.c.l.b16 %v307
  %v2171 = vunpack.c.h.b16 %v307
  %v2172 = vunpack.c.l.b16 %v308
  %v2173 = vunpack.c.h.b16 %v308
  %v2174 = vunpack.c.l.b16 %v309
  %v2175 = vunpack.c.h.b16 %v309
  %v2176 = vunpack.c.l.b16 %v310
  %v2177 = vunpack.c.h.b16 %v310
  %v2178 = vunpack.c.l.b16 %v311
  %v2179 = vunpack.c.h.b16 %v311
  %v2180 = vunpack.c.l.b16 %v312
  %v2181 = vunpack.c.h.b16 %v312
  %v2182 = vunpack.c.l.b16 %v313
  %v2183 = vunpack.c.h.b16 %v313
  %v2184 = vunpack.c.l.b16 %v314
  %v2185 = vunpack.c.h.b16 %v314
  %v2186 = vunpack.c.l.b16 %v315
  %v2187 = vunpack.c.h.b16 %v315
  %v2188 = vunpack.c.l.b16 %v316
  %v2189 = vunpack.c.h.b16 %v316
  %v2190 = vunpack.c.l.b16 %v317
  %v2191 = vunpack.c.h.b16 %v317
  %v2192 = vunpack.c.l.b16 %v318
  %v2193 = vunpack.c.h.b16 %v318
  %v2194 = vunpack.c.l.b16 %v319
  %v2195 = vunpack.c.h.b16 %v319
  %v2196 = vunpack.c.l.b16 %v320
  %v2197 = vunpack.c.h.b16 %v320
  %v2198 = vunpack.c.l.b16 %v321
  %v2199 = vunpack.c.h.b16 %v321
  %v2200 = vunpack.c.l.b16 %v322
  %v2201 = vunpack.c.h.b16 %v322
  %v2202 = vunpack.c.l.b16 %v323
  %v2203 = vunpack.c.h.b16 %v323
  %v2204 = vunpack.c.l.b16 %v324
  %v2205 = vunpack.c.h.b16 %v324
  %v2206 = vunpack.c.l.b16 %v325
  %v2207 = vunpack.c.h.b16 %v325
  %v2208 = vunpack.c.l.b16 %v326
  %v2209 = vunpack.c.h.b16 %v326
  %v2210 = vunpack.c.l.b16 %v327
  %v2211 = vunpack.c.h.b16 %v327
  %v2212 = vunpack.c.l.b16 %v328
  %v2213 = vunpack.c.h.b16 %v328
  %v2214 = vunpack.c.l.b16 %v329
  %v2215 = vunpack.c.h.b16 %v329
  %v2216 = vunpack.c.l.b16 %v330
  %v2217 = vunpack.c.h.b16 %v330
  %v2218 = vunpack.c.l.b16 %v331
  %v2219 = vunpack.c.h.b16 %v331
  %v2220 = vunpack.c.l.b16 %v332
  %v2221 = vunpack.c.h.b16 %v332
  %v2222 = vunpack.c.l.b16 %v333
  %v2223 = vunpack.c.h.b16 %v333
  %v2224 = vunpack.c.l.b16 %v334
  %v2225 = vunpack.c.h.b16 %v334
  %v2226 = vunpack.c.l.b16 %v335
  %v2227 = vunpack.c.h.b16 %v335
  %v2228 = vunpack.c.l.b16 %v336
  %v2229 = vunpack.c.h.b16 %v336
  %v2230 = vunpack.c.l.b16 %v337
  %v2231 = vunpack.c.h.b16 %v337
  %v2232 = vunpack.c.l.b16 %v338
  %v2233 = vunpack.c.h.b16 %v338
  %v2234 = vunpack.c.l.b16 %v339
  %v2235 = vunpack.c.h.b16 %v339
  %v2236 = vunpack.c.l.b16 %v340
  %v2237 = vunpack.c.h.b16 %v340
  %v2238 = vunpack.c.l.b16 %v341
  %v2239 = vunpack.c.h.b16 %v341
  %v2240 = vunpack.c.l.b16 %v342
  %v2241 = vunpack.c.h.b16 %v342
  %v2242 = vunpack.c.l.b16 %v343
  %v2243 = vunpack.c.h.b16 %v343
  %v2244 = vunpack.c.l.b16 %v344
  %v2245 = vunpack.c.h.b16 %v344
  %v2246 = vunpack.c.l.b16 %v345
  %v2247 = vunpack.c.h.b16 %v345
  %v2248 = vunpack.c.l.b16 %v346
  %v2249 = vunpack.c.h.b16 %v346
  %v2250 = vunpack.c.l.b16 %v347
  %v2251 = vunpack.c.h.b16 %v347
  %v2252 = vunpack.c.l.b16 %v348
  %v2253 = vunpack.c.h.b16 %v348
  %v2254 = vunpack.c.l.b16 %v349
  %v2255 = vunpack.c.h.b16 %v349
  %v2256 = vunpack.c.l.b16 %v350
  %v2257 = vunpack.c.h.b16 %v350
  %v2258 = vunpack.c.l.b16 %v351
  %v2259 = vunpack.c.h.b16 %v351
  %v2260 = vunpack.c.l.b16 %v352
  %v2261 = vunpack.c.h.b16 %v352
  %v2262 = vunpack.c.l.b16 %v353
  %v2263 = vunpack.c.h.b16 %v353
  %v2264 = vunpack.c.l.b16 %v354
  %v2265 = vunpack.c.h.b16 %v354
  %v2266 = vunpack.c.l.b16 %v355
  %v2267 = vunpack.c.h.b16 %v355
  %v2268 = vunpack.c.l.b16 %v356
  %v2269 = vunpack.c.h.b16 %v356
  %v2270 = vunpack.c.l.b16 %v357
  %v2271 = vunpack.c.h.b16 %v357
  %v2272 = vunpack.c.l.b16 %v358
  %v2273 = vunpack.c.h.b16 %v358
  %v2274 = vunpack.c.l.b16 %v359
  %v2275 = vunpack.c.h.b16 %v359
  %v2276 = vunpack.c.l.b16 %v360
  %v2277 = vunpack.c.h.b16 %v360
  %v2278 = vunpack.c.l.b16 %v361
  %v2279 = vunpack.c.h.b16 %v361
  %v2280 = vunpack.c.l.b16 %v362
  %v2281 = vunpack.c.h.b16 %v362
  %v2282 = vunpack.c.l.b16 %v363
  %v2283 = vunpack.c.h.b16 %v363
  %v2284 = vunpack.c.l.b16 %v364
  %v2285 = vunpack.c.h.b16 %v364
  %v2286 = vunpack.c.l.b16 %v365
  %v2287 = vunpack.c.h.b16 %v365
  %v2288 = vunpack.c.l.b16 %v366
  %v2289 = vunpack.c.h.b16 %v366
  %v2290 = vunpack.c.l.b16 %v367
  %v2291 = vunpack.c.h.b16 %v367
  %v2292 = vunpack.c.l.b16 %v368
  %v2293 = vunpack.c.h.b16 %v368
  %v2294 = vunpack.c.l.b16 %v369
  %v2295 = vunpack.c.h.b16 %v369
  %v2296 = vunpack.c.l.b16 %v370
  %v2297 = vunpack.c.h.b16 %v370
  %v2298 = vunpack.c.l.b16 %v371
  %v2299 = vunpack.c.h.b16 %v371
  %v2300 = vunpack.c.l.b16 %v372
  %v2301 = vunpack.c.h.b16 %v372
  %v2302 = vunpack.c.l.b16 %v373
  %v2303 = vunpack.c.h.b16 %v373
  %v2304 = vunpack.c.l.b16 %v374
  %v2305 = vunpack.c.h.b16 %v374
  %v2306 = vunpack.c.l.b16 %v375
  %v2307 = vunpack.c.h.b16 %v375
  %v2308 = vunpack.c.l.b16 %v376
  %v2309 = vunpack.c.h.b16 %v376
  %v2310 = vunpack.c.l.b16 %v377
  %v2311 = vunpack.c.h.b16 %v377
  %v2312 = vunpack.c.l.b16 %v378
  %v2313 = vunpack.c.h.b16 %v378
  %v2314 = vunpack.c.l.b16 %v379
  %v2315 = vunpack.c.h.b16 %v379
  %v2316 = vunpack.c.l.b16 %v380
  %v2317 = vunpack.c.h.b16 %v380
  %v2318 = vunpack.c.l.b16 %v381
  %v2319 = vunpack.c.h.b16 %v381
  %v2320 = vunpack.c.l.b16 %v382
  %v2321 = vunpack.c.h.b16 %v382
  %v2322 = vunpack.c.l.b16 %v383
  %v2323 = vunpack.c.h.b16 %v383
  %v2324 = vunpack.c.l.b16 %v384
  %v2325 = vunpack.c.h.b16 %v384
  %v2326 = vunpack.c.l.b16 %v385
  %v2327 = vunpack.c.h.b16 %v385
  %v2328 = vunpack.c.l.b16 %v386
  %v2329 = vunpack.c.h.b16 %v386
  %v2330 = vunpack.c.l.b16 %v387
  %v2331 = vunpack.c.h.b16 %v387
  %v2332 = vunpack.c.l.b16 %v388
  %v2333 = vunpack.c.h.b16 %v388
  %v2334 = vunpack.c.l.b16 %v389
  %v2335 = vunpack.c.h.b16 %v389
  %v2336 = vunpack.c.l.b16 %v390
  %v2337 = vunpack.c.h.b16 %v390
  %v2338 = vunpack.c.l.b16 %v391
  %v2339 = vunpack.c.h.b16 %v391
  %v2340 = vunpack.c.l.b16 %v392
  %v2341 = vunpack.c.h.b16 %v392
  %v2342 = vunpack.c.l.b16 %v393
  %v2343 = vunpack.c.h.b16 %v393
  %v2344 = vunpack.c.l.b16 %v394
  %v2345 = vunpack.c.h.b16 %v394
  %v2346 = vunpack.c.l.b16 %v395
  %v2347 = vunpack.c.h.b16 %v395
  %v2348 = vunpack.c.l.b16 %v396
  %v2349 = vunpack.c.h.b16 %v396
  %v2350 = vunpack.c.l.b16 %v397
  %v2351 = vunpack.c.h.b16 %v397
  %v2352 = vunpack.c.l.b16 %v398
  %v2353 = vunpack.c.h.b16 %v398
  %v2354 = vunpack.c.l.b16 %v399
  %v2355 = vunpack.c.h.b16 %v399
  %v2356 = vunpack.c.l.b16 %v400
  %v2357 = vunpack.c.h.b16 %v400
  %v2358 = vunpack.c.l.b16 %v401
  %v2359 = vunpack.c.h.b16 %v401
  %v2360 = vunpack.c.l.b16 %v402
  %v2361 = vunpack.c.h.b16 %v402
  %v2362 = vunpack.c.l.b16 %v403
  %v2363 = vunpack.c.h.b16 %v403
  %v2364 = vunpack.c.l.b16 %v404
  %v2365 = vunpack.c.h.b16 %v404
  %v2366 = vunpack.c.l.b16 %v405
  %v2367 = vunpack.c.h.b16 %v405
  %v2368 = vunpack.c.l.b16 %v406
  %v2369 = vunpack.c.h.b16 %v406
  %v2370 = vunpack.c.l.b16 %v407
  %v2371 = vunpack.c.h.b16 %v407
  %v2372 = vunpack.c.l.b16 %v408
  %v2373 = vunpack.c.h.b16 %v408
  %v2374 = vunpack.c.l.b16 %v409
  %v2375 = vunpack.c.h.b16 %v409
  %v2376 = vunpack.c.l.b16 %v410
  %v2377 = vunpack.c.h.b16 %v410
  %v2378 = vunpack.c.l.b16 %v411
  %v2379 = vunpack.c.h.b16 %v411
  %v2380 = vunpack.c.l.b16 %v412
  %v2381 = vunpack.c.h.b16 %v412
  %v2382 = vunpack.c.l.b16 %v413
  %v2383 = vunpack.c.h.b16 %v413
  %v2384 = vunpack.c.l.b16 %v414
  %v2385 = vunpack.c.h.b16 %v414
  %v2386 = vunpack.c.l.b16 %v415
  %v2387 = vunpack.c.h.b16 %v415
  %v2388 = vunpack.c.l.b16 %v416
  %v2389 = vunpack.c.h.b16 %v416
  %v2390 = vunpack.c.l.b16 %v417
  %v2391 = vunpack.c.h.b16 %v417
  %v2392 = vunpack.c.l.b16 %v418
  %v2393 = vunpack.c.h.b16 %v418
  %v2394 = vunpack.c.l.b16 %v419
  %v2395 = vunpack.c.h.b16 %v419
  %v2396 = vunpack.c.l.b16 %v420
  %v2397 = vunpack.c.h.b16 %v420
  %v2398 = vunpack.c.l.b16 %v421
  %v2399 = vunpack.c.h.b16 %v421
  %v2400 = vunpack.c.l.b16 %v422
  %v2401 = vunpack.c.h.b16 %v422
  %v2402 = vunpack.c.l.b16 %v423
  %v2403 = vunpack.c.h.b16 %v423
  %v2404 = vunpack.c.l.b16 %v424
  %v2405 = vunpack.c.h.b16 %v424
  %v2406 = vunpack.c.l.b16 %v425
  %v2407 = vunpack.c.h.b16 %v425
  %v2408 = vunpack.c.l.b16 %v426
  %v2409 = vunpack.c.h.b16 %v426
  %v2410 = vunpack.c.l.b16 %v427
  %v2411 = vunpack.c.h.b16 %v427
  %v2412 = vunpack.c.l.b16 %v428
  %v2413 = vunpack.c.h.b16 %v428
  %v2414 = vunpack.c.l.b16 %v429
  %v2415 = vunpack.c.h.b16 %v429
  %v2416 = vunpack.c.l.b16 %v430
  %v2417 = vunpack.c.h.b16 %v430
  %v2418 = vunpack.c.l.b16 %v431
  %v2419 = vunpack.c.h.b16 %v431
  %v2420 = vunpack.c.l.b16 %v432
  %v2421 = vunpack.c.h.b16 %v432
  %v2422 = vunpack.c.l.b16 %v433
  %v2423 = vunpack.c.h.b16 %v433
  %v2424 = vunpack.c.l.b16 %v434
  %v2425 = vunpack.c.h.b16 %v434
  %v2426 = vunpack.c.l.b16 %v435
  %v2427 = vunpack.c.h.b16 %v435
  %v2428 = vunpack.c.l.b16 %v436
  %v2429 = vunpack.c.h.b16 %v436
  %v2430 = vunpack.c.l.b16 %v437
  %v2431 = vunpack.c.h.b16 %v437
  %v2432 = vunpack.c.l.b16 %v438
  %v2433 = vunpack.c.h.b16 %v438
  %v2434 = vunpack.c.l.b16 %v439
  %v2435 = vunpack.c.h.b16 %v439
  %v2436 = vunpack.c.l.b16 %v440
  %v2437 = vunpack.c.h.b16 %v440
  %v2438 = vunpack.c.l.b16 %v441
  %v2439 = vunpack.c.h.b16 %v441
  %v2440 = vunpack.c.l.b16 %v442
  %v2441 = vunpack.c.h.b16 %v442
  %v2442 = vunpack.c.l.b16 %v443
  %v2443 = vunpack.c.h.b16 %v443
  %v2444 = vunpack.c.l.b16 %v444
  %v2445 = vunpack.c.h.b16 %v444
  %v2446 = vunpack.c.l.b16 %v445
  %v2447 = vunpack.c.h.b16 %v445
  %v2448 = vunpack.c.l.b16 %v446
  %v2449 = vunpack.c.h.b16 %v446
  %v2450 = vunpack.c.l.b16 %v447
  %v2451 = vunpack.c.h.b16 %v447
  %v2452 = vunpack.c.l.b16 %v448
  %v2453 = vunpack.c.h.b16 %v448
  %v2454 = vunpack.c.l.b16 %v449
  %v2455 = vunpack.c.h.b16 %v449
  %v2456 = vunpack.c.l.b16 %v450
  %v2457 = vunpack.c.h.b16 %v450
  %v2458 = vunpack.c.l.b16 %v451
  %v2459 = vunpack.c.h.b16 %v451
  %v2460 = vunpack.c.l.b16 %v452
  %v2461 = vunpack.c.h.b16 %v452
  %v2462 = vunpack.c.l.b16 %v453
  %v2463 = vunpack.c.h.b16 %v453
  %v2464 = vunpack.c.l.b16 %v454
  %v2465 = vunpack.c.h.b16 %v454
  %v2466 = vunpack.c.l.b16 %v455
  %v2467 = vunpack.c.h.b16 %v455
  %v2468 = vunpack.c.l.b16 %v456
  %v2469 = vunpack.c.h.b16 %v456
  %v2470 = vunpack.c.l.b16 %v457
  %v2471 = vunpack.c.h.b16 %v457
  %v2472 = vunpack.c.l.b16 %v458
  %v2473 = vunpack.c.h.b16 %v458
  %v2474 = vunpack.c.l.b16 %v459
  %v2475 = vunpack.c.h.b16 %v459
  %v2476 = vunpack.c.l.b16 %v460
  %v2477 = vunpack.c.h.b16 %v460
  %v2478 = vunpack.c.l.b16 %v461
  %v2479 = vunpack.c.h.b16 %v461
  %v2480 = vunpack.c.l.b16 %v462
  %v2481 = vunpack.c.h.b16 %v462
  %v2482 = vunpack.c.l.b16 %v463
  %v2483 = vunpack.c.h.b16 %v463
  %v2484 = vunpack.c.l.b16 %v464
  %v2485 = vunpack.c.h.b16 %v464
  %v2486 = vunpack.c.l.b16 %v465
  %v2487 = vunpack.c.h.b16 %v465
  %v2488 = vunpack.c.l.b16 %v466
  %v2489 = vunpack.c.h.b16 %v466
  %v2490 = vunpack.c.l.b16 %v467
  %v2491 = vunpack.c.h.b16 %v467
  %v2492 = vunpack.c.l.b16 %v468
  %v2493 = vunpack.c.h.b16 %v468
  %v2494 = vunpack.c.l.b16 %v469
  %v2495 = vunpack.c.h.b16 %v469
  %v2496 = vunpack.c.l.b16 %v470
  %v2497 = vunpack.c.h.b16 %v470
  %v2498 = vunpack.c.l.b16 %v471
  %v2499 = vunpack.c.h.b16 %v471
  %v2500 = vunpack.c.l.b16 %v472
  %v2501 = vunpack.c.h.b16 %v472
  %v2502 = vunpack.c.l.b16 %v473
  %v2503 = vunpack.c.h.b16 %v473
  %v2504 = vunpack.c.l.b16 %v474
  %v2505 = vunpack.c.h.b16 %v474
  %v2506 = vunpack.c.l.b16 %v475
  %v2507 = vunpack.c.h.b16 %v475
  %v2508 = vunpack.c.l.b16 %v476
  %v2509 = vunpack.c.h.b16 %v476
  %v2510 = vunpack.c.l.b16 %v477
  %v2511 = vunpack.c.h.b16 %v477
  %v2512 = vunpack.c.l.b16 %v478
  %v2513 = vunpack.c.h.b16 %v478
  %v2514 = vunpack.c.l.b16 %v479
  %v2515 = vunpack.c.h.b16 %v479
  %v2516 = vunpack.c.l.b16 %v480
  %v2517 = vunpack.c.h.b16 %v480
  %v2518 = vunpack.c.l.b16 %v481
  %v2519 = vunpack.c.h.b16 %v481
  %v2520 = vunpack.c.l.b16 %v482
  %v2521 = vunpack.c.h.b16 %v482
  %v2522 = vunpack.c.l.b16 %v483
  %v2523 = vunpack.c.h.b16 %v483
  %v2524 = vunpack.c.l.b16 %v484
  %v2525 = vunpack.c.h.b16 %v484
  %v2526 = vunpack.c.l.b16 %v485
  %v2527 = vunpack.c.h.b16 %v485
  %v2528 = vunpack.c.l.b16 %v486
  %v2529 = vunpack.c.h.b16 %v486
  %v2530 = vunpack.c.l.b16 %v487
  %v2531 = vunpack.c.h.b16 %v487
  %v2532 = vunpack.c.l.b16 %v488
  %v2533 = vunpack.c.h.b16 %v488
  %v2534 = vunpack.c.l.b16 %v489
  %v2535 = vunpack.c.h.b16 %v489
  %v2536 = vunpack.c.l.b16 %v490
  %v2537 = vunpack.c.h.b16 %v490
  %v2538 = vunpack.c.l.b16 %v491
  %v2539 = vunpack.c.h.b16 %v491
  %v2540 = vunpack.c.l.b16 %v492
  %v2541 = vunpack.c.h.b16 %v492
  %v2542 = vunpack.c.l.b16 %v493
  %v2543 = vunpack.c.h.b16 %v493
  %v2544 = vunpack.c.l.b16 %v494
  %v2545 = vunpack.c.h.b16 %v494
  %v2546 = vunpack.c.l.b16 %v495
  %v2547 = vunpack.c.h.b16 %v495
  %v2548 = vunpack.c.l.b16 %v496
  %v2549 = vunpack.c.h.b16 %v496
  %v2550 = vunpack.c.l.b16 %v497
  %v2551 = vunpack.c.h.b16 %v497
  %v2552 = vunpack.c.l.b16 %v498
  %v2553 = vunpack.c.h.b16 %v498
  %v2554 = vunpack.c.l.b16 %v499
  %v2555 = vunpack.c.h.b16 %v499
  %v2556 = vunpack.c.l.b16 %v500
  %v2557 = vunpack.c.h.b16 %v500
  %v2558 = vunpack.c.l.b16 %v501
  %v2559 = vunpack.c.h.b16 %v501
  %v2560 = vunpack.c.l.b16 %v502
  %v2561 = vunpack.c.h.b16 %v502
  %v2562 = vunpack.c.l.b16 %v503
  %v2563 = vunpack.c.h.b16 %v503
  %v2564 = vunpack.c.l.b16 %v504
  %v2565 = vunpack.c.h.b16 %v504
  %v2566 = vunpack.c.l.b16 %v505
  %v2567 = vunpack.c.h.b16 %v505
  %v2568 = vunpack.c.l.b16 %v506
  %v2569 = vunpack.c.h.b16 %v506
  %v2570 = vunpack.c.l.b16 %v507
  %v2571 = vunpack.c.h.b16 %v507
  %v2572 = vunpack.c.l.b16 %v508
  %v2573 = vunpack.c.h.b16 %v508
  %v2574 = vunpack.c.l.b16 %v509
  %v2575 = vunpack.c.h.b16 %v509
  %v2576 = vunpack.c.l.b16 %v510
  %v2577 = vunpack.c.h.b16 %v510
  %v2578 = vunpack.c.l.b16 %v511
  %v2579 = vunpack.c.h.b16 %v511
  %v2580 = vunpack.c.l.b16 %v512
  %v2581 = vunpack.c.h.b16 %v512
  %v2582 = vunpack.c.l.b16 %v513
  %v2583 = vunpack.c.h.b16 %v513
  %v2584 = vunpack.c.l.b16 %v514
  %v2585 = vunpack.c.h.b16 %v514
  %v2586 = vunpack.c.l.b16 %v515
  %v2587 = vunpack.c.h.b16 %v515
  %v2588 = vunpack.c.l.b16 %v516
  %v2589 = vunpack.c.h.b16 %v516
  %v2590 = vunpack.c.l.b16 %v517
  %v2591 = vunpack.c.h.b16 %v517
  %v2592 = vunpack.c.l.b16 %v518
  %v2593 = vunpack.c.h.b16 %v518
  %v2594 = vunpack.c.l.b16 %v519
  %v2595 = vunpack.c.h.b16 %v519
  %v2596 = vunpack.c.l.b16 %v520
  %v2597 = vunpack.c.h.b16 %v520
  %v2598 = vunpack.c.l.b16 %v521
  %v2599 = vunpack.c.h.b16 %v521
  %v2600 = vunpack.c.l.b16 %v522
  %v2601 = vunpack.c.h.b16 %v522
  %v2602 = vunpack.c.l.b16 %v523
  %v2603 = vunpack.c.h.b16 %v523
  %v2604 = vunpack.c.l.b16 %v524
  %v2605 = vunpack.c.h.b16 %v524
  %v2606 = vunpack.c.l.b16 %v525
  %v2607 = vunpack.c.h.b16 %v525
  %v2608 = vunpack.c.l.b16 %v526
  %v2609 = vunpack.c.h.b16 %v526
  %v2610 = vunpack.c.l.b16 %v527
  %v2611 = vunpack.c.h.b16 %v527
  %v2612 = vunpack.c.l.b16 %v528
  %v2613 = vunpack.c.h.b16 %v528
  %v2614 = vunpack.c.l.b16 %v529
  %v2615 = vunpack.c.h.b16 %v529
  %v2616 = vunpack.c.l.b16 %v530
  %v2617 = vunpack.c.h.b16 %v530
  %v2618 = vunpack.c.l.b16 %v531
  %v2619 = vunpack.c.h.b16 %v531
  %v2620 = vunpack.c.l.b16 %v532
  %v2621 = vunpack.c.h.b16 %v532
  %v2622 = vunpack.c.l.b16 %v533
  %v2623 = vunpack.c.h.b16 %v533
  %v2624 = vunpack.c.l.b16 %v534
  %v2625 = vunpack.c.h.b16 %v534
  %v2626 = vunpack.c.l.b16 %v535
  %v2627 = vunpack.c.h.b16 %v535
  %v2628 = vunpack.c.l.b16 %v536
  %v2629 = vunpack.c.h.b16 %v536
  %v2630 = vunpack.c.l.b16 %v537
  %v2631 = vunpack.c.h.b16 %v537
  %v2632 = vunpack.c.l.b16 %v538
  %v2633 = vunpack.c.h.b16 %v538
  %v2634 = vunpack.c.l.b16 %v539
  %v2635 = vunpack.c.h.b16 %v539
  %v2636 = vunpack.c.l.b16 %v540
  %v2637 = vunpack.c.h.b16 %v540
  %v2638 = vunpack.c.l.b16 %v541
  %v2639 = vunpack.c.h.b16 %v541
  %v2640 = vunpack.c.l.b16 %v542
  %v2641 = vunpack.c.h.b16 %v542
  %v2642 = vunpack.c.l.b16 %v543
  %v2643 = vunpack.c.h.b16 %v543
  %v2644 = vunpack.c.l.b16 %v544
  %v2645 = vunpack.c.h.b16 %v544
  %v2646 = vunpack.c.l.b16 %v545
  %v2647 = vunpack.c.h.b16 %v545
  %v2648 = vunpack.c.l.b16 %v546
  %v2649 = vunpack.c.h.b16 %v546
  %v2650 = vunpack.c.l.b16 %v547
  %v2651 = vunpack.c.h.b16 %v547
  %v2652 = vunpack.c.l.b16 %v548
  %v2653 = vunpack.c.h.b16 %v548
  %v2654 = vunpack.c.l.b16 %v549
  %v2655 = vunpack.c.h.b16 %v549
  %v2656 = vunpack.c.l.b16 %v550
  %v2657 = vunpack.c.h.b16 %v550
  %v2658 = vunpack.c.l.b16 %v551
  %v2659 = vunpack.c.h.b16 %v551
  %v2660 = vunpack.c.l.b16 %v552
  %v2661 = vunpack.c.h.b16 %v552
  %v2662 = vunpack.c.l.b16 %v553
  %v2663 = vunpack.c.h.b16 %v553
  %v2664 = vunpack.c.l.b16 %v554
  %v2665 = vunpack.c.h.b16 %v554
  %v2666 = vunpack.c.l.b16 %v555
  %v2667 = vunpack.c.h.b16 %v555
  %v2668 = vunpack.c.l.b16 %v556
  %v2669 = vunpack.c.h.b16 %v556
  %v2670 = vunpack.c.l.b16 %v557
  %v2671 = vunpack.c.h.b16 %v557
  %v2672 = vunpack.c.l.b16 %v558
  %v2673 = vunpack.c.h.b16 %v558
  %v2674 = vunpack.c.l.b16 %v559
  %v2675 = vunpack.c.h.b16 %v559
  %v2676 = vunpack.c.l.b16 %v560
  %v2677 = vunpack.c.h.b16 %v560
  %v2678 = vunpack.c.l.b16 %v561
  %v2679 = vunpack.c.h.b16 %v561
  %v2680 = vunpack.c.l.b16 %v562
  %v2681 = vunpack.c.h.b16 %v562
  %v2682 = vunpack.c.l.b16 %v563
  %v2683 = vunpack.c.h.b16 %v563
  %v2684 = vunpack.c.l.b16 %v564
  %v2685 = vunpack.c.h.b16 %v564
  %v2686 = vunpack.c.l.b16 %v565
  %v2687 = vunpack.c.h.b16 %v565
  %v2688 = vunpack.c.l.b16 %v566
  %v2689 = vunpack.c.h.b16 %v566
  %v2690 = vunpack.c.l.b16 %v567
  %v2691 = vunpack.c.h.b16 %v567
  %v2692 = vunpack.c.l.b16 %v568
  %v2693 = vunpack.c.h.b16 %v568
  %v2694 = vunpack.c.l.b16 %v569
  %v2695 = vunpack.c.h.b16 %v569
  %v2696 = vunpack.c.l.b16 %v570
  %v2697 = vunpack.c.h.b16 %v570
  %v2698 = vunpack.c.l.b16 %v571
  %v2699 = vunpack.c.h.b16 %v571
  %v2700 = vunpack.c.l.b16 %v572
  %v2701 = vunpack.c.h.b16 %v572
  %v2702 = vunpack.c.l.b16 %v573
  %v2703 = vunpack.c.h.b16 %v573
  %v2704 = vunpack.c.l.b16 %v574
  %v2705 = vunpack.c.h.b16 %v574
  %v2706 = vunpack.c.l.b16 %v575
  %v2707 = vunpack.c.h.b16 %v575
  %v2708 = vunpack.c.l.b16 %v576
  %v2709 = vunpack.c.h.b16 %v576
  %v2710 = vunpack.c.l.b16 %v577
  %v2711 = vunpack.c.h.b16 %v577
  %v2712 = vunpack.c.l.b16 %v578
  %v2713 = vunpack.c.h.b16 %v578
  %v2714 = vunpack.c.l.b16 %v579
  %v2715 = vunpack.c.h.b16 %v579
  %v2716 = vunpack.c.l.b16 %v580
  %v2717 = vunpack.c.h.b16 %v580
  %v2718 = vunpack.c.l.b16 %v581
  %v2719 = vunpack.c.h.b16 %v581
  %v2720 = vunpack.c.l.b16 %v582
  %v2721 = vunpack.c.h.b16 %v582
  %v2722 = vunpack.c.l.b16 %v583
  %v2723 = vunpack.c.h.b16 %v583
  %v2724 = vunpack.c.l.b16 %v584
  %v2725 = vunpack.c.h.b16 %v584
  %v2726 = vunpack.c.l.b16 %v585
  %v2727 = vunpack.c.h.b16 %v585
  %v2728 = vunpack.c.l.b16 %v586
  %v2729 = vunpack.c.h.b16 %v586
  %v2730 = vunpack.c.l.b16 %v587
  %v2731 = vunpack.c.h.b16 %v587
  %v2732 = vunpack.c.l.b16 %v588
  %v2733 = vunpack.c.h.b16 %v588
  %v2734 = vunpack.c.l.b16 %v589
  %v2735 = vunpack.c.h.b16 %v589
  %v2736 = vunpack.c.l.b16 %v590
  %v2737 = vunpack.c.h.b16 %v590
  %v2738 = vunpack.c.l.b16 %v591
  %v2739 = vunpack.c.h.b16 %v591
  %v2740 = vunpack.c.l.b16 %v592
  %v2741 = vunpack.c.h.b16 %v592
  %v2742 = vunpack.c.l.b16 %v593
  %v2743 = vunpack.c.h.b16 %v593
  %v2744 = vunpack.c.l.b16 %v594
  %v2745 = vunpack.c.h.b16 %v594
  %v2746 = vunpack.c.l.b16 %v595
  %v2747 = vunpack.c.h.b16 %v595
  %v2748 = vunpack.c.l.b16 %v596
  %v2749 = vunpack.c.h.b16 %v596
  %v2750 = vunpack.c.l.b16 %v597
  %v2751 = vunpack.c.h.b16 %v597
  %v2752 = vunpack.c.l.b16 %v598
  %v2753 = vunpack.c.h.b16 %v598
  %v2754 = vunpack.c.l.b16 %v599
  %v2755 = vunpack.c.h.b16 %v599
  %v2756 = vunpack.c.l.b16 %v600
  %v2757 = vunpack.c.h.b16 %v600
  %v2758 = vunpack.c.l.b16 %v601
  %v2759 = vunpack.c.h.b16 %v601
  %v2760 = vunpack.c.l.b16 %v602
  %v2761 = vunpack.c.h.b16 %v602
  %v2762 = vunpack.c.l.b16 %v603
  %v2763 = vunpack.c.h.b16 %v603
  %v2764 = vunpack.c.l.b16 %v604
  %v2765 = vunpack.c.h.b16 %v604
  %v2766 = vunpack.c.l.b16 %v605
  %v2767 = vunpack.c.h.b16 %v605
  %v2768 = vunpack.c.l.b16 %v606
  %v2769 = vunpack.c.h.b16 %v606
  %v2770 = vunpack.c.l.b16 %v607
  %v2771 = vunpack.c.h.b16 %v607
  %v2772 = vunpack.c.l.b16 %v608
  %v2773 = vunpack.c.h.b16 %v608
  %v2774 = vunpack.c.l.b16 %v609
  %v2775 = vunpack.c.h.b16 %v609
  %v2776 = vunpack.c.l.b16 %v610
  %v2777 = vunpack.c.h.b16 %v610
  %v2778 = vunpack.c.l.b16 %v611
  %v2779 = vunpack.c.h.b16 %v611
  %v2780 = vunpack.c.l.b16 %v612
  %v2781 = vunpack.c.h.b16 %v612
  %v2782 = vunpack.c.l.b16 %v613
  %v2783 = vunpack.c.h.b16 %v613
  %v2784 = vunpack.c.l.b16 %v614
  %v2785 = vunpack.c.h.b16 %v614
  %v2786 = vunpack.c.l.b16 %v615
  %v2787 = vunpack.c.h.b16 %v615
  %v2788 = vunpack.c.l.b16 %v616
  %v2789 = vunpack.c.h.b16 %v616
  %v2790 = vunpack.c.l.b16 %v617
  %v2791 = vunpack.c.h.b16 %v617
  %v2792 = vunpack.c.l.b16 %v618
  %v2793 = vunpack.c.h.b16 %v618
  %v2794 = vunpack.c.l.b16 %v619
  %v2795 = vunpack.c.h.b16 %v619
  %v2796 = vunpack.c.l.b16 %v620
  %v2797 = vunpack.c.h.b16 %v620
  %v2798 = vunpack.c.l.b16 %v621
  %v2799 = vunpack.c.h.b16 %v621
  %v2800 = vunpack.c.l.b16 %v622
  %v2801 = vunpack.c.h.b16 %v622
  %v2802 = vunpack.c.l.b16 %v623
  %v2803 = vunpack.c.h.b16 %v623
  %v2804 = vunpack.c.l.b16 %v624
  %v2805 = vunpack.c.h.b16 %v624
  %v2806 = vunpack.c.l.b16 %v625
  %v2807 = vunpack.c.h.b16 %v625
  %v2808 = vunpack.c.l.b16 %v626
  %v2809 = vunpack.c.h.b16 %v626
  %v2810 = vunpack.c.l.b16 %v627
  %v2811 = vunpack.c.h.b16 %v627
  %v2812 = vunpack.c.l.b16 %v628
  %v2813 = vunpack.c.h.b16 %v628
  %v2814 = vunpack.c.l.b16 %v629
  %v2815 = vunpack.c.h.b16 %v629
  %v2816 = vunpack.c.l.b16 %v630
  %v2817 = vunpack.c.h.b16 %v630
  %v2818 = vunpack.c.l.b16 %v631
  %v2819 = vunpack.c.h.b16 %v631
  %v2820 = vunpack.c.l.b16 %v632
  %v2821 = vunpack.c.h.b16 %v632
  %v2822 = vunpack.c.l.b16 %v633
  %v2823 = vunpack.c.h.b16 %v633
  %v2824 = vunpack.c.l.b16 %v634
  %v2825 = vunpack.c.h.b16 %v634
  %v2826 = vunpack.c.l.b16 %v635
  %v2827 = vunpack.c.h.b16 %v635
  %v2828 = vunpack.c.l.b16 %v636
  %v2829 = vunpack.c.h.b16 %v636
  %v2830 = vunpack.c.l.b16 %v637
  %v2831 = vunpack.c.h.b16 %v637
  %v2832 = vunpack.c.l.b16 %v638
  %v2833 = vunpack.c.h.b16 %v638
  %v2834 = vunpack.c.l.b16 %v639
  %v2835 = vunpack.c.h.b16 %v639
  %v2836 = vunpack.c.l.b16 %v640
  %v2837 = vunpack.c.h.b16 %v640
  %v2838 = vunpack.c.l.b16 %v641
  %v2839 = vunpack.c.h.b16 %v641
  %v2840 = vunpack.c.l.b16 %v642
  %v2841 = vunpack.c.h.b16 %v642
  %v2842 = vunpack.c.l.b16 %v643
  %v2843 = vunpack.c.h.b16 %v643
  %v2844 = vunpack.c.l.b16 %v644
  %v2845 = vunpack.c.h.b16 %v644
  %v2846 = vunpack.c.l.b16 %v645
  %v2847 = vunpack.c.h.b16 %v645
  %v2848 = vunpack.c.l.b16 %v646
  %v2849 = vunpack.c.h.b16 %v646
  %v2850 = vunpack.c.l.b16 %v647
  %v2851 = vunpack.c.h.b16 %v647
  %v2852 = vunpack.c.l.b16 %v648
  %v2853 = vunpack.c.h.b16 %v648
  %v2854 = vunpack.c.l.b16 %v649
  %v2855 = vunpack.c.h.b16 %v649
  %v2856 = vunpack.c.l.b16 %v650
  %v2857 = vunpack.c.h.b16 %v650
  %v2858 = vunpack.c.l.b16 %v651
  %v2859 = vunpack.c.h.b16 %v651
  %v2860 = vunpack.c.l.b16 %v652
  %v2861 = vunpack.c.h.b16 %v652
  %v2862 = vunpack.c.l.b16 %v653
  %v2863 = vunpack.c.h.b16 %v653
  %v2864 = vunpack.c.l.b16 %v654
  %v2865 = vunpack.c.h.b16 %v654
  %v2866 = vunpack.c.l.b16 %v655
  %v2867 = vunpack.c.h.b16 %v655
  %v2868 = vunpack.c.l.b16 %v656
  %v2869 = vunpack.c.h.b16 %v656
  %v2870 = vunpack.c.l.b16 %v657
  %v2871 = vunpack.c.h.b16 %v657
  %v2872 = vunpack.c.l.b16 %v658
  %v2873 = vunpack.c.h.b16 %v658
  %v2874 = vunpack.c.l.b16 %v659
  %v2875 = vunpack.c.h.b16 %v659
  %v2876 = vunpack.c.l.b16 %v660
  %v2877 = vunpack.c.h.b16 %v660
  %v2878 = vunpack.c.l.b16 %v661
  %v2879 = vunpack.c.h.b16 %v661
  %v2880 = vpack.c.b16 %v1864, %v1856
  %v2881 = vpack.c.b16 %v1865, %v1857
  %v2882 = vpack.c.b16 %v1866, %v1858
  %v2883 = vpack.c.b16 %v1867, %v1859
  %v2884 = vpack.c.b16 %v1868, %v1860
  %v2885 = vpack.c.b16 %v1869, %v1861
  %v2886 = vpack.c.b16 %v1870, %v1862
  %v2887 = vpack.c.b16 %v1871, %v1863
  %v2888 = vpack.c.b16 %v1880, %v1872
  %v2889 = vpack.c.b16 %v1881, %v1873
  %v2890 = vpack.c.b16 %v1882, %v1874
  %v2891 = vpack.c.b16 %v1883, %v1875
  %v2892 = vpack.c.b16 %v1884, %v1876
  %v2893 = vpack.c.b16 %v1885, %v1877
  %v2894 = vpack.c.b16 %v1886, %v1878
  %v2895 = vpack.c.b16 %v1887, %v1879
  %v2896 = vpack.c.b16 %v1896, %v1888
  %v2897 = vpack.c.b16 %v1897, %v1889
  %v2898 = vpack.c.b16 %v1898, %v1890
  %v2899 = vpack.c.b16 %v1899, %v1891
  %v2900 = vpack.c.b16 %v1900, %v1892
  %v2901 = vpack.c.b16 %v1901, %v1893
  %v2902 = vpack.c.b16 %v1902, %v1894
  %v2903 = vpack.c.b16 %v1903, %v1895
  %v2904 = vpack.c.b16 %v1912, %v1904
  %v2905 = vpack.c.b16 %v1913, %v1905
  %v2906 = vpack.c.b16 %v1914, %v1906
  %v2907 = vpack.c.b16 %v1915, %v1907
  %v2908 = vpack.c.b16 %v1916, %v1908
  %v2909 = vpack.c.b16 %v1917, %v1909
  %v2910 = vpack.c.b16 %v1918, %v1910
  %v2911 = vpack.c.b16 %v1919, %v1911
  %v2912 = vpack.c.b16 %v1928, %v1920
  %v2913 = vpack.c.b16 %v1929, %v1921
  %v2914 = vpack.c.b16 %v1930, %v1922
  %v2915 = vpack.c.b16 %v1931, %v1923
  %v2916 = vpack.c.b16 %v1932, %v1924
  %v2917 = vpack.c.b16 %v1933, %v1925
  %v2918 = vpack.c.b16 %v1934, %v1926
  %v2919 = vpack.c.b16 %v1935, %v1927
  %v2920 = vpack.c.b16 %v1944, %v1936
  %v2921 = vpack.c.b16 %v1945, %v1937
  %v2922 = vpack.c.b16 %v1946, %v1938
  %v2923 = vpack.c.b16 %v1947, %v1939
  %v2924 = vpack.c.b16 %v1948, %v1940
  %v2925 = vpack.c.b16 %v1949, %v1941
  %v2926 = vpack.c.b16 %v1950, %v1942
  %v2927 = vpack.c.b16 %v1951, %v1943
  %v2928 = vpack.c.b16 %v1960, %v1952
  %v2929 = vpack.c.b16 %v1961, %v1953
  %v2930 = vpack.c.b16 %v1962, %v1954
  %v2931 = vpack.c.b16 %v1963, %v1955
  %v2932 = vpack.c.b16 %v1964, %v1956
  %v2933 = vpack.c.b16 %v1965, %v1957
  %v2934 = vpack.c.b16 %v1966, %v1958
  %v2935 = vpack.c.b16 %v1967, %v1959
  %v2936 = vpack.c.b16 %v1976, %v1968
  %v2937 = vpack.c.b16 %v1977, %v1969
  %v2938 = vpack.c.b16 %v1978, %v1970
  %v2939 = vpack.c.b16 %v1979, %v1971
  %v2940 = vpack.c.b16 %v1980, %v1972
  %v2941 = vpack.c.b16 %v1981, %v1973
  %v2942 = vpack.c.b16 %v1982, %v1974
  %v2943 = vpack.c.b16 %v1983, %v1975
  %v2944 = vpack.c.b16 %v1992, %v1984
  %v2945 = vpack.c.b16 %v1993, %v1985
  %v2946 = vpack.c.b16 %v1994, %v1986
  %v2947 = vpack.c.b16 %v1995, %v1987
  %v2948 = vpack.c.b16 %v1996, %v1988
  %v2949 = vpack.c.b16 %v1997, %v1989
  %v2950 = vpack.c.b16 %v1998, %v1990
  %v2951 = vpack.c.b16 %v1999, %v1991
  %v2952 = vpack.c.b16 %v2008, %v2000
  %v2953 = vpack.c.b16 %v2009, %v2001
  %v2954 = vpack.c.b16 %v2010, %v2002
  %v2955 = vpack.c.b16 %v2011, %v2003
  %v2956 = vpack.c.b16 %v2012, %v2004
  %v2957 = vpack.c.b16 %v2013, %v2005
  %v2958 = vpack.c.b16 %v2014, %v2006
  %v2959 = vpack.c.b16 %v2015, %v2007
  %v2960 = vpack.c.b16 %v2024, %v2016
  %v2961 = vpack.c.b16 %v2025, %v2017
  %v2962 = vpack.c.b16 %v2026, %v2018
  %v2963 = vpack.c.b16 %v2027, %v2019
  %v2964 = vpack.c.b16 %v2028, %v2020
  %v2965 = vpack.c.b16 %v2029, %v2021
  %v2966 = vpack.c.b16 %v2030, %v2022
  %v2967 = vpack.c.b16 %v2031, %v2023
  %v2968 = vpack.c.b16 %v2040, %v2032
  %v2969 = vpack.c.b16 %v2041, %v2033
  %v2970 = vpack.c.b16 %v2042, %v2034
  %v2971 = vpack.c.b16 %v2043, %v2035
  %v2972 = vpack.c.b16 %v2044, %v2036
  %v2973 = vpack.c.b16 %v2045, %v2037
  %v2974 = vpack.c.b16 %v2046, %v2038
  %v2975 = vpack.c.b16 %v2047, %v2039
  %v2976 = vpack.c.b16 %v2056, %v2048
  %v2977 = vpack.c.b16 %v2057, %v2049
  %v2978 = vpack.c.b16 %v2058, %v2050
  %v2979 = vpack.c.b16 %v2059, %v2051
  %v2980 = vpack.c.b16 %v2060, %v2052
  %v2981 = vpack.c.b16 %v2061, %v2053
  %v2982 = vpack.c.b16 %v2062, %v2054
  %v2983 = vpack.c.b16 %v2063, %v2055
  %v2984 = vpack.c.b16 %v2072, %v2064
  %v2985 = vpack.c.b16 %v2073, %v2065
  %v2986 = vpack.c.b16 %v2074, %v2066
  %v2987 = vpack.c.b16 %v2075, %v2067
  %v2988 = vpack.c.b16 %v2076, %v2068
  %v2989 = vpack.c.b16 %v2077, %v2069
  %v2990 = vpack.c.b16 %v2078, %v2070
  %v2991 = vpack.c.b16 %v2079, %v2071
  %v2992 = vpack.c.b16 %v2088, %v2080
  %v2993 = vpack.c.b16 %v2089, %v2081
  %v2994 = vpack.c.b16 %v2090, %v2082
  %v2995 = vpack.c.b16 %v2091, %v2083
  %v2996 = vpack.c.b16 %v2092, %v2084
  %v2997 = vpack.c.b16 %v2093, %v2085
  %v2998 = vpack.c.b16 %v2094, %v2086
  %v2999 = vpack.c.b16 %v2095, %v2087
  %v3000 = vpack.c.b16 %v2104, %v2096
  %v3001 = vpack.c.b16 %v2105, %v2097
  %v3002 = vpack.c.b16 %v2106, %v2098
  %v3003 = vpack.c.b16 %v2107, %v2099
  %v3004 = vpack.c.b16 %v2108, %v2100
  %v3005 = vpack.c.b16 %v2109, %v2101
  %v3006 = vpack.c.b16 %v2110, %v2102
  %v3007 = vpack.c.b16 %v2111, %v2103
  %v3008 = vpack.c.b16 %v2120, %v2112
  %v3009 = vpack.c.b16 %v2121, %v2113
  %v3010 = vpack.c.b16 %v2122, %v2114
  %v3011 = vpack.c.b16 %v2123, %v2115
  %v3012 = vpack.c.b16 %v2124, %v2116
  %v3013 = vpack.c.b16 %v2125, %v2117
  %v3014 = vpack.c.b16 %v2126, %v2118
  %v3015 = vpack.c.b16 %v2127, %v2119
  %v3016 = vpack.c.b16 %v2136, %v2128
  %v3017 = vpack.c.b16 %v2137, %v2129
  %v3018 = vpack.c.b16 %v2138, %v2130
  %v3019 = vpack.c.b16 %v2139, %v2131
  %v3020 = vpack.c.b16 %v2140, %v2132
  %v3021 = vpack.c.b16 %v2141, %v2133
  %v3022 = vpack.c.b16 %v2142, %v2134
  %v3023 = vpack.c.b16 %v2143, %v2135
  %v3024 = vpack.c.b16 %v2152, %v2144
  %v3025 = vpack.c.b16 %v2153, %v2145
  %v3026 = vpack.c.b16 %v2154, %v2146
  %v3027 = vpack.c.b16 %v2155, %v2147
  %v3028 = vpack.c.b16 %v2156, %v2148
  %v3029 = vpack.c.b16 %v2157, %v2149
  %v3030 = vpack.c.b16 %v2158, %v2150
  %v3031 = vpack.c.b16 %v2159, %v2151
  %v3032 = vpack.c.b16 %v2168, %v2160
  %v3033 = vpack.c.b16 %v2169, %v2161
  %v3034 = vpack.c.b16 %v2170, %v2162
  %v3035 = vpack.c.b16 %v2171, %v2163
  %v3036 = vpack.c.b16 %v2172, %v2164
  %v3037 = vpack.c.b16 %v2173, %v2165
  %v3038 = vpack.c.b16 %v2174, %v2166
  %v3039 = vpack.c.b16 %v2175, %v2167
  %v3040 = vpack.c.b16 %v2184, %v2176
  %v3041 = vpack.c.b16 %v2185, %v2177
  %v3042 = vpack.c.b16 %v2186, %v2178
  %v3043 = vpack.c.b16 %v2187, %v2179
  %v3044 = vpack.c.b16 %v2188, %v2180
  %v3045 = vpack.c.b16 %v2189, %v2181
  %v3046 = vpack.c.b16 %v2190, %v2182
  %v3047 = vpack.c.b16 %v2191, %v2183
  %v3048 = vpack.c.b16 %v2200, %v2192
  %v3049 = vpack.c.b16 %v2201, %v2193
  %v3050 = vpack.c.b16 %v2202, %v2194
  %v3051 = vpack.c.b16 %v2203, %v2195
  %v3052 = vpack.c.b16 %v2204, %v2196
  %v3053 = vpack.c.b16 %v2205, %v2197
  %v3054 = vpack.c.b16 %v2206, %v2198
  %v3055 = vpack.c.b16 %v2207, %v2199
  %v3056 = vpack.c.b16 %v2216, %v2208
  %v3057 = vpack.c.b16 %v2217, %v2209
  %v3058 = vpack.c.b16 %v2218, %v2210
  %v3059 = vpack.c.b16 %v2219, %v2211
  %v3060 = vpack.c.b16 %v2220, %v2212
  %v3061 = vpack.c.b16 %v2221, %v2213
  %v3062 = vpack.c.b16 %v2222, %v2214
  %v3063 = vpack.c.b16 %v2223, %v2215
  %v3064 = vpack.c.b16 %v2232, %v2224
  %v3065 = vpack.c.b16 %v2233, %v2225
  %v3066 = vpack.c.b16 %v2234, %v2226
  %v3067 = vpack.c.b16 %v2235, %v2227
  %v3068 = vpack.c.b16 %v2236, %v2228
  %v3069 = vpack.c.b16 %v2237, %v2229
  %v3070 = vpack.c.b16 %v2238, %v2230
  %v3071 = vpack.c.b16 %v2239, %v2231
  %v3072 = vpack.c.b16 %v2248, %v2240
  %v3073 = vpack.c.b16 %v2249, %v2241
  %v3074 = vpack.c.b16 %v2250, %v2242
  %v3075 = vpack.c.b16 %v2251, %v2243
  %v3076 = vpack.c.b16 %v2252, %v2244
  %v3077 = vpack.c.b16 %v2253, %v2245
  %v3078 = vpack.c.b16 %v2254, %v2246
  %v3079 = vpack.c.b16 %v2255, %v2247
  %v3080 = vpack.c.b16 %v2264, %v2256
  %v3081 = vpack.c.b16 %v2265, %v2257
  %v3082 = vpack.c.b16 %v2266, %v2258
  %v3083 = vpack.c.b16 %v2267, %v2259
  %v3084 = vpack.c.b16 %v2268, %v2260
  %v3085 = vpack.c.b16 %v2269, %v2261
  %v3086 = vpack.c.b16 %v2270, %v2262
  %v3087 = vpack.c.b16 %v2271, %v2263
  %v3088 = vpack.c.b16 %v2280, %v2272
  %v3089 = vpack.c.b16 %v2281, %v2273
  %v3090 = vpack.c.b16 %v2282, %v2274
  %v3091 = vpack.c.b16 %v2283, %v2275
  %v3092 = vpack.c.b16 %v2284, %v2276
  %v3093 = vpack.c.b16 %v2285, %v2277
  %v3094 = vpack.c.b16 %v2286, %v2278
  %v3095 = vpack.c.b16 %v2287, %v2279
  %v3096 = vpack.c.b16 %v2296, %v2288
  %v3097 = vpack.c.b16 %v2297, %v2289
  %v3098 = vpack.c.b16 %v2298, %v2290
  %v3099 = vpack.c.b16 %v2299, %v2291
  %v3100 = vpack.c.b16 %v2300, %v2292
  %v3101 = vpack.c.b16 %v2301, %v2293
  %v3102 = vpack.c.b16 %v2302, %v2294
  %v3103 = vpack.c.b16 %v2303, %v2295
  %v3104 = vpack.c.b16 %v2312, %v2304
  %v3105 = vpack.c.b16 %v2313, %v2305
  %v3106 = vpack.c.b16 %v2314, %v2306
  %v3107 = vpack.c.b16 %v2315, %v2307
  %v3108 = vpack.c.b16 %v2316, %v2308
  %v3109 = vpack.c.b16 %v2317, %v2309
  %v3110 = vpack.c.b16 %v2318, %v2310
  %v3111 = vpack.c.b16 %v2319, %v2311
  %v3112 = vpack.c.b16 %v2328, %v2320
  %v3113 = vpack.c.b16 %v2329, %v2321
  %v3114 = vpack.c.b16 %v2330, %v2322
  %v3115 = vpack.c.b16 %v2331, %v2323
  %v3116 = vpack.c.b16 %v2332, %v2324
  %v3117 = vpack.c.b16 %v2333, %v2325
  %v3118 = vpack.c.b16 %v2334, %v2326
  %v3119 = vpack.c.b16 %v2335, %v2327
  %v3120 = vpack.c.b16 %v2344, %v2336
  %v3121 = vpack.c.b16 %v2345, %v2337
  %v3122 = vpack.c.b16 %v2346, %v2338
  %v3123 = vpack.c.b16 %v2347, %v2339
  %v3124 = vpack.c.b16 %v2348, %v2340
  %v3125 = vpack.c.b16 %v2349, %v2341
  %v3126 = vpack.c.b16 %v2350, %v2342
  %v3127 = vpack.c.b16 %v2351, %v2343
  %v3128 = vpack.c.b16 %v2360, %v2352
  %v3129 = vpack.c.b16 %v2361, %v2353
  %v3130 = vpack.c.b16 %v2362, %v2354
  %v3131 = vpack.c.b16 %v2363, %v2355
  %v3132 = vpack.c.b16 %v2364, %v2356
  %v3133 = vpack.c.b16 %v2365, %v2357
  %v3134 = vpack.c.b16 %v2366, %v2358
  %v3135 = vpack.c.b16 %v2367, %v2359
  %v3136 = vpack.c.b16 %v2376, %v2368
  %v3137 = vpack.c.b16 %v2377, %v2369
  %v3138 = vpack.c.b16 %v2378, %v2370
  %v3139 = vpack.c.b16 %v2379, %v2371
  %v3140 = vpack.c.b16 %v2380, %v2372
  %v3141 = vpack.c.b16 %v2381, %v2373
  %v3142 = vpack.c.b16 %v2382, %v2374
  %v3143 = vpack.c.b16 %v2383, %v2375
  %v3144 = vpack.c.b16 %v2392, %v2384
  %v3145 = vpack.c.b16 %v2393, %v2385
  %v3146 = vpack.c.b16 %v2394, %v2386
  %v3147 = vpack.c.b16 %v2395, %v2387
  %v3148 = vpack.c.b16 %v2396, %v2388
  %v3149 = vpack.c.b16 %v2397, %v2389
  %v3150 = vpack.c.b16 %v2398, %v2390
  %v3151 = vpack.c.b16 %v2399, %v2391
  %v3152 = vpack.c.b16 %v2408, %v2400
  %v3153 = vpack.c.b16 %v2409, %v2401
  %v3154 = vpack.c.b16 %v2410, %v2402
  %v3155 = vpack.c.b16 %v2411, %v2403
  %v3156 = vpack.c.b16 %v2412, %v2404
  %v3157 = vpack.c.b16 %v2413, %v2405
  %v3158 = vpack.c.b16 %v2414, %v2406
  %v3159 = vpack.c.b16 %v2415, %v2407
  %v3160 = vpack.c.b16 %v2424, %v2416
  %v3161 = vpack.c.b16 %v2425, %v2417
  %v3162 = vpack.c.b16 %v2426, %v2418
  %v3163 = vpack.c.b16 %v2427, %v2419
  %v3164 = vpack.c.b16 %v2428, %v2420
  %v3165 = vpack.c.b16 %v2429, %v2421
  %v3166 = vpack.c.b16 %v2430, %v2422
  %v3167 = vpack.c.b16 %v2431, %v2423
  %v3168 = vpack.c.b16 %v2440, %v2432
  %v3169 = vpack.c.b16 %v2441, %v2433
  %v3170 = vpack.c.b16 %v2442, %v2434
  %v3171 = vpack.c.b16 %v2443, %v2435
  %v3172 = vpack.c.b16 %v2444, %v2436
  %v3173 = vpack.c.b16 %v2445, %v2437
  %v3174 = vpack.c.b16 %v2446, %v2438
  %v3175 = vpack.c.b16 %v2447, %v2439
  %v3176 = vpack.c.b16 %v2456, %v2448
  %v3177 = vpack.c.b16 %v2457, %v2449
  %v3178 = vpack.c.b16 %v2458, %v2450
  %v3179 = vpack.c.b16 %v2459, %v2451
  %v3180 = vpack.c.b16 %v2460, %v2452
  %v3181 = vpack.c.b16 %v2461, %v2453
  %v3182 = vpack.c.b16 %v2462, %v2454
  %v3183 = vpack.c.b16 %v2463, %v2455
  %v3184 = vpack.c.b16 %v2472, %v2464
  %v3185 = vpack.c.b16 %v2473, %v2465
  %v3186 = vpack.c.b16 %v2474, %v2466
  %v3187 = vpack.c.b16 %v2475, %v2467
  %v3188 = vpack.c.b16 %v2476, %v2468
  %v3189 = vpack.c.b16 %v2477, %v2469
  %v3190 = vpack.c.b16 %v2478, %v2470
  %v3191 = vpack.c.b16 %v2479, %v2471
  %v3192 = vpack.c.b16 %v2488, %v2480
  %v3193 = vpack.c.b16 %v2489, %v2481
  %v3194 = vpack.c.b16 %v2490, %v2482
  %v3195 = vpack.c.b16 %v2491, %v2483
  %v3196 = vpack.c.b16 %v2492, %v2484
  %v3197 = vpack.c.b16 %v2493, %v2485
  %v3198 = vpack.c.b16 %v2494, %v2486
  %v3199 = vpack.c.b16 %v2495, %v2487
  %v3200 = vpack.c.b16 %v2504, %v2496
  %v3201 = vpack.c.b16 %v2505, %v2497
  %v3202 = vpack.c.b16 %v2506, %v2498
  %v3203 = vpack.c.b16 %v2507, %v2499
  %v3204 = vpack.c.b16 %v2508, %v2500
  %v3205 = vpack.c.b16 %v2509, %v2501
  %v3206 = vpack.c.b16 %v2510, %v2502
  %v3207 = vpack.c.b16 %v2511, %v2503
  %v3208 = vpack.c.b16 %v2520, %v2512
  %v3209 = vpack.c.b16 %v2521, %v2513
  %v3210 = vpack.c.b16 %v2522, %v2514
  %v3211 = vpack.c.b16 %v2523, %v2515
  %v3212 = vpack.c.b16 %v2524, %v2516
  %v3213 = vpack.c.b16 %v2525, %v2517
  %v3214 = vpack.c.b16 %v2526, %v2518
  %v3215 = vpack.c.b16 %v2527, %v2519
  %v3216 = vpack.c.b16 %v2536, %v2528
  %v3217 = vpack.c.b16 %v2537, %v2529
  %v3218 = vpack.c.b16 %v2538, %v2530
  %v3219 = vpack.c.b16 %v2539, %v2531
  %v3220 = vpack.c.b16 %v2540, %v2532
  %v3221 = vpack.c.b16 %v2541, %v2533
  %v3222 = vpack.c.b16 %v2542, %v2534
  %v3223 = vpack.c.b16 %v2543, %v2535
  %v3224 = vpack.c.b16 %v2552, %v2544
  %v3225 = vpack.c.b16 %v2553, %v2545
  %v3226 = vpack.c.b16 %v2554, %v2546
  %v3227 = vpack.c.b16 %v2555, %v2547
  %v3228 = vpack.c.b16 %v2556, %v2548
  %v3229 = vpack.c.b16 %v2557, %v2549
  %v3230 = vpack.c.b16 %v2558, %v2550
  %v3231 = vpack.c.b16 %v2559, %v2551
  %v3232 = vpack.c.b16 %v2568, %v2560
  %v3233 = vpack.c.b16 %v2569, %v2561
  %v3234 = vpack.c.b16 %v2570, %v2562
  %v3235 = vpack.c.b16 %v2571, %v2563
  %v3236 = vpack.c.b16 %v2572, %v2564
  %v3237 = vpack.c.b16 %v2573, %v2565
  %v3238 = vpack.c.b16 %v2574, %v2566
  %v3239 = vpack.c.b16 %v2575, %v2567
  %v3240 = vpack.c.b16 %v2584, %v2576
  %v3241 = vpack.c.b16 %v2585, %v2577
  %v3242 = vpack.c.b16 %v2586, %v2578
  %v3243 = vpack.c.b16 %v2587, %v2579
  %v3244 = vpack.c.b16 %v2588, %v2580
  %v3245 = vpack.c.b16 %v2589, %v2581
  %v3246 = vpack.c.b16 %v2590, %v2582
  %v3247 = vpack.c.b16 %v2591, %v2583
  %v3248 = vpack.c.b16 %v2600, %v2592
  %v3249 = vpack.c.b16 %v2601, %v2593
  %v3250 = vpack.c.b16 %v2602, %v2594
  %v3251 = vpack.c.b16 %v2603, %v2595
  %v3252 = vpack.c.b16 %v2604, %v2596
  %v3253 = vpack.c.b16 %v2605, %v2597
  %v3254 = vpack.c.b16 %v2606, %v2598
  %v3255 = vpack.c.b16 %v2607, %v2599
  %v3256 = vpack.c.b16 %v2616, %v2608
  %v3257 = vpack.c.b16 %v2617, %v2609
  %v3258 = vpack.c.b16 %v2618, %v2610
  %v3259 = vpack.c.b16 %v2619, %v2611
  %v3260 = vpack.c.b16 %v2620, %v2612
  %v3261 = vpack.c.b16 %v2621, %v2613
  %v3262 = vpack.c.b16 %v2622, %v2614
  %v3263 = vpack.c.b16 %v2623, %v2615
  %v3264 = vpack.c.b16 %v2632, %v2624
  %v3265 = vpack.c.b16 %v2633, %v2625
  %v3266 = vpack.c.b16 %v2634, %v2626
  %v3267 = vpack.c.b16 %v2635, %v2627
  %v3268 = vpack.c.b16 %v2636, %v2628
  %v3269 = vpack.c.b16 %v2637, %v2629
  %v3270 = vpack.c.b16 %v2638, %v2630
  %v3271 = vpack.c.b16 %v2639, %v2631
  %v3272 = vpack.c.b16 %v2648, %v2640
  %v3273 = vpack.c.b16 %v2649, %v2641
  %v3274 = vpack.c.b16 %v2650, %v2642
  %v3275 = vpack.c.b16 %v2651, %v2643
  %v3276 = vpack.c.b16 %v2652, %v2644
  %v3277 = vpack.c.b16 %v2653, %v2645
  %v3278 = vpack.c.b16 %v2654, %v2646
  %v3279 = vpack.c.b16 %v2655, %v2647
  %v3280 = vpack.c.b16 %v2664, %v2656
  %v3281 = vpack.c.b16 %v2665, %v2657
  %v3282 = vpack.c.b16 %v2666, %v2658
  %v3283 = vpack.c.b16 %v2667, %v2659
  %v3284 = vpack.c.b16 %v2668, %v2660
  %v3285 = vpack.c.b16 %v2669, %v2661
  %v3286 = vpack.c.b16 %v2670, %v2662
  %v3287 = vpack.c.b16 %v2671, %v2663
  %v3288 = vpack.c.b16 %v2680, %v2672
  %v3289 = vpack.c.b16 %v2681, %v2673
  %v3290 = vpack.c.b16 %v2682, %v2674
  %v3291 = vpack.c.b16 %v2683, %v2675
  %v3292 = vpack.c.b16 %v2684, %v2676
  %v3293 = vpack.c.b16 %v2685, %v2677
  %v3294 = vpack.c.b16 %v2686, %v2678
  %v3295 = vpack.c.b16 %v2687, %v2679
  %v3296 = vpack.c.b16 %v2696, %v2688
  %v3297 = vpack.c.b16 %v2697, %v2689
  %v3298 = vpack.c.b16 %v2698, %v2690
  %v3299 = vpack.c.b16 %v2699, %v2691
  %v3300 = vpack.c.b16 %v2700, %v2692
  %v3301 = vpack.c.b16 %v2701, %v2693
  %v3302 = vpack.c.b16 %v2702, %v2694
  %v3303 = vpack.c.b16 %v2703, %v2695
  %v3304 = vpack.c.b16 %v2712, %v2704
  %v3305 = vpack.c.b16 %v2713, %v2705
  %v3306 = vpack.c.b16 %v2714, %v2706
  %v3307 = vpack.c.b16 %v2715, %v2707
  %v3308 = vpack.c.b16 %v2716, %v2708
  %v3309 = vpack.c.b16 %v2717, %v2709
  %v3310 = vpack.c.b16 %v2718, %v2710
  %v3311 = vpack.c.b16 %v2719, %v2711
  %v3312 = vpack.c.b16 %v2728, %v2720
  %v3313 = vpack.c.b16 %v2729, %v2721
  %v3314 = vpack.c.b16 %v2730, %v2722
  %v3315 = vpack.c.b16 %v2731, %v2723
  %v3316 = vpack.c.b16 %v2732, %v2724
  %v3317 = vpack.c.b16 %v2733, %v2725
  %v3318 = vpack.c.b16 %v2734, %v2726
  %v3319 = vpack.c.b16 %v2735, %v2727
  %v3320 = vpack.c.b16 %v2744, %v2736
  %v3321 = vpack.c.b16 %v2745, %v2737
  %v3322 = vpack.c.b16 %v2746, %v2738
  %v3323 = vpack.c.b16 %v2747, %v2739
  %v3324 = vpack.c.b16 %v2748, %v2740
  %v3325 = vpack.c.b16 %v2749, %v2741
  %v3326 = vpack.c.b16 %v2750, %v2742
  %v3327 = vpack.c.b16 %v2751, %v2743
  %v3328 = vpack.c.b16 %v2760, %v2752
  %v3329 = vpack.c.b16 %v2761, %v2753
  %v3330 = vpack.c.b16 %v2762, %v2754
  %v3331 = vpack.c.b16 %v2763, %v2755
  %v3332 = vpack.c.b16 %v2764, %v2756
  %v3333 = vpack.c.b16 %v2765, %v2757
  %v3334 = vpack.c.b16 %v2766, %v2758
  %v3335 = vpack.c.b16 %v2767, %v2759
  %v3336 = vpack.c.b16 %v2776, %v2768
  %v3337 = vpack.c.b16 %v2777, %v2769
  %v3338 = vpack.c.b16 %v2778, %v2770
  %v3339 = vpack.c.b16 %v2779, %v2771
  %v3340 = vpack.c.b16 %v2780, %v2772
  %v3341 = vpack.c.b16 %v2781, %v2773
  %v3342 = vpack.c.b16 %v2782, %v2774
  %v3343 = vpack.c.b16 %v2783, %v2775
  %v3344 = vpack.c.b16 %v2792, %v2784
  %v3345 = vpack.c.b16 %v2793, %v2785
  %v3346 = vpack.c.b16 %v2794, %v2786
  %v3347 = vpack.c.b16 %v2795, %v2787
  %v3348 = vpack.c.b16 %v2796, %v2788
  %v3349 = vpack.c.b16 %v2797, %v2789
  %v3350 = vpack.c.b16 %v2798, %v2790
  %v3351 = vpack.c.b16 %v2799, %v2791
  %v3352 = vpack.c.b16 %v2808, %v2800
  %v3353 = vpack.c.b16 %v2809, %v2801
  %v3354 = vpack.c.b16 %v2810, %v2802
  %v3355 = vpack.c.b16 %v2811, %v2803
  %v3356 = vpack.c.b16 %v2812, %v2804
  %v3357 = vpack.c.b16 %v2813, %v2805
  %v3358 = vpack.c.b16 %v2814, %v2806
  %v3359 = vpack.c.b16 %v2815, %v2807
  %v3360 = vpack.c.b16 %v2824, %v2816
  %v3361 = vpack.c.b16 %v2825, %v2817
  %v3362 = vpack.c.b16 %v2826, %v2818
  %v3363 = vpack.c.b16 %v2827, %v2819
  %v3364 = vpack.c.b16 %v2828, %v2820
  %v3365 = vpack.c.b16 %v2829, %v2821
  %v3366 = vpack.c.b16 %v2830, %v2822
  %v3367 = vpack.c.b16 %v2831, %v2823
  %v3368 = vpack.c.b16 %v2840, %v2832
  %v3369 = vpack.c.b16 %v2841, %v2833
  %v3370 = vpack.c.b16 %v2842, %v2834
  %v3371 = vpack.c.b16 %v2843, %v2835
  %v3372 = vpack.c.b16 %v2844, %v2836
  %v3373 = vpack.c.b16 %v2845, %v2837
  %v3374 = vpack.c.b16 %v2846, %v2838
  %v3375 = vpack.c.b16 %v2847, %v2839
  %v3376 = vpack.c.b16 %v2856, %v2848
  %v3377 = vpack.c.b16 %v2857, %v2849
  %v3378 = vpack.c.b16 %v2858, %v2850
  %v3379 = vpack.c.b16 %v2859, %v2851
  %v3380 = vpack.c.b16 %v2860, %v2852
  %v3381 = vpack.c.b16 %v2861, %v2853
  %v3382 = vpack.c.b16 %v2862, %v2854
  %v3383 = vpack.c.b16 %v2863, %v2855
  %v3384 = vpack.c.b16 %v2872, %v2864
  %v3385 = vpack.c.b16 %v2873, %v2865
  %v3386 = vpack.c.b16 %v2874, %v2866
  %v3387 = vpack.c.b16 %v2875, %v2867
  %v3388 = vpack.c.b16 %v2876, %v2868
  %v3389 = vpack.c.b16 %v2877, %v2869
  %v3390 = vpack.c.b16 %v2878, %v2870
  %v3391 = vpack.c.b16 %v2879, %v2871
  %3904 = vmatprep.subr.bf16.mxu0 %v2881
  %3905 = vmatpush1.bf16.msra.mxu0 %v2880
  %3906 = vmatprep.subr.bf16.mxu0 %v2889
  %3907 = vmatpush1.bf16.msra.mxu0 %v2888
  %3908 = vmatprep.subr.bf16.mxu0 %v2897
  %3909 = vmatpush1.bf16.msra.mxu0 %v2896
  %3910 = vmatprep.subr.bf16.mxu0 %v2905
  %3911 = vmatpush1.bf16.msra.mxu0 %v2904
  %3912 = vmatprep.subr.bf16.mxu0 %v2913
  %3913 = vmatpush1.bf16.msra.mxu0 %v2912
  %3914 = vmatprep.subr.bf16.mxu0 %v2921
  %3915 = vmatpush1.bf16.msra.mxu0 %v2920
  %3916 = vmatprep.subr.bf16.mxu0 %v2929
  %3917 = vmatpush1.bf16.msra.mxu0 %v2928
  %3918 = vmatprep.subr.bf16.mxu0 %v2937
  %3919 = vmatpush1.bf16.msra.mxu0 %v2936
  %3920 = vmatprep.subr.bf16.mxu0 %v2945
  %3921 = vmatpush1.bf16.msra.mxu0 %v2944
  %3922 = vmatprep.subr.bf16.mxu0 %v2953
  %3923 = vmatpush1.bf16.msra.mxu0 %v2952
  %3924 = vmatprep.subr.bf16.mxu0 %v2961
  %3925 = vmatpush1.bf16.msra.mxu0 %v2960
  %3926 = vmatprep.subr.bf16.mxu0 %v2969
  %3927 = vmatpush1.bf16.msra.mxu0 %v2968
  %3928 = vmatprep.subr.bf16.mxu0 %v2977
  %3929 = vmatpush1.bf16.msra.mxu0 %v2976
  %3930 = vmatprep.subr.bf16.mxu0 %v2985
  %3931 = vmatpush1.bf16.msra.mxu0 %v2984
  %3932 = vmatprep.subr.bf16.mxu0 %v2993
  %3933 = vmatpush1.bf16.msra.mxu0 %v2992
  %3934 = vmatprep.subr.bf16.mxu0 %v3001
  %3935 = vmatpush1.bf16.msra.mxu0 %v3000
  %3936 = vmatprep.mubr.bf16.mxu0 %v1089
  %3937 = vmatmul.mubr.bf16.gmra.mrb[0].mxu0 %v1088
  %v3938 = vpop.f32.mrb[0].mxu0
  %v3939 = vadd.f32 %v667, %v3938
  %v3940 = vpop.f32.mrb[0].mxu0
  %v3941 = vadd.f32 %v671, %v3940
  %v3942 = vpop.f32.mrb[0].mxu0
  %v3943 = vadd.f32 %v667, %v3942
  %v3944 = vpop.f32.mrb[0].mxu0
  %v3945 = vadd.f32 %v671, %v3944
  %3946 = vmatprep.mubr.bf16.mxu0 %v1097
  %3947 = vmatmul.mubr.bf16.gmra.mrb[0].mxu0 %v1096
  %v3948 = vpop.f32.mrb[0].mxu0
  %v3949 = vadd.f32 %v667, %v3948
  %v3950 = vpop.f32.mrb[0].mxu0
  %v3951 = vadd.f32 %v671, %v3950
  %v3952 = vpop.f32.mrb[0].mxu0
  %v3953 = vadd.f32 %v667, %v3952
  %v3954 = vpop.f32.mrb[0].mxu0
  %v3955 = vadd.f32 %v671, %v3954
  %3956 = vmatprep.mubr.bf16.mxu0 %v1105
  %3957 = vmatmul.mubr.bf16.gmra.mrb[0].mxu0 %v1104
  %v3958 = vpop.f32.mrb[0].mxu0
  %v3959 = vadd.f32 %v667, %v3958
  %v3960 = vpop.f32.mrb[0].mxu0
  %v3961 = vadd.f32 %v671, %v3960
  %v3962 = vpop.f32.mrb[0].mxu0
  %v3963 = vadd.f32 %v667, %v3962
  %v3964 = vpop.f32.mrb[0].mxu0
  %v3965 = vadd.f32 %v671, %v3964
  %3966 = vmatprep.mubr.bf16.mxu0 %v1113
  %3967 = vmatmul.mubr.bf16.gmra.mrb[0].mxu0 %v1112
  %v3968 = vpop.f32.mrb[0].mxu0
  %v3969 = vadd.f32 %v667, %v3968
  %v3970 = vpop.f32.mrb[0].mxu0
  %v3971 = vadd.f32 %v671, %v3970
  %v3972 = vpop.f32.mrb[0].mxu0
  %v3973 = vadd.f32 %v667, %v3972
  %v3974 = vpop.f32.mrb[0].mxu0
  %v3975 = vadd.f32 %v671, %v3974
  %3976 = vmatprep.mubr.bf16.mxu0 %v1121
  %3977 = vmatmul.mubr.bf16.gmra.mrb[0].mxu0 %v1120
  %v3978 = vpop.f32.mrb[0].mxu0
  %v3979 = vadd.f32 %v667, %v3978
  %v3980 = vpop.f32.mrb[0].mxu0
  %v3981 = vadd.f32 %v671, %v3980
  %v3982 = vpop.f32.mrb[0].mxu0
  %v3983 = vadd.f32 %v667, %v3982
  %v3984 = vpop.f32.mrb[0].mxu0
  %v3985 = vadd.f32 %v671, %v3984
  %3986 = vmatprep.mubr.bf16.mxu0 %v1129
  %3987 = vmatmul.mubr.bf16.gmra.mrb[0].mxu0 %v1128
  %v3988 = vpop.f32.mrb[0].mxu0
  %v3989 = vadd.f32 %v667, %v3988
  %v3990 = vpop.f32.mrb[0].mxu0
  %v3991 = vadd.f32 %v671, %v3990
  %v3992 = vpop.f32.mrb[0].mxu0
  %v3993 = vadd.f32 %v667, %v3992
  %v3994 = vpop.f32.mrb[0].mxu0
  %v3995 = vadd.f32 %v671, %v3994
  %3996 = vmatprep.mubr.bf16.mxu0 %v1137
  %3997 = vmatmul.mubr.bf16.gmra.mrb[0].mxu0 %v1136
  %v3998 = vpop.f32.mrb[0].mxu0
  %v3999 = vadd.f32 %v667, %v3998
  %v4000 = vpop.f32.mrb[0].mxu0
  %v4001 = vadd.f32 %v671, %v4000
  %v4002 = vpop.f32.mrb[0].mxu0
  %v4003 = vadd.f32 %v667, %v4002
  %v4004 = vpop.f32.mrb[0].mxu0
  %v4005 = vadd.f32 %v671, %v4004
  %4006 = vmatprep.mubr.bf16.mxu0 %v1145
  %4007 = vmatmul.mubr.bf16.gmra.mrb[0].mxu0 %v1144
  %v4008 = vpop.f32.mrb[0].mxu0
  %v4009 = vadd.f32 %v667, %v4008
  %v4010 = vpop.f32.mrb[0].mxu0
  %v4011 = vadd.f32 %v671, %v4010
  %v4012 = vpop.f32.mrb[0].mxu0
  %v4013 = vadd.f32 %v667, %v4012
  %v4014 = vpop.f32.mrb[0].mxu0
  %v4015 = vadd.f32 %v671, %v4014
  %4016 = vmatprep.mubr.bf16.mxu0 %v1153
  %4017 = vmatmul.mubr.bf16.gmra.mrb[0].mxu0 %v1152
  %v4018 = vpop.f32.mrb[0].mxu0
  %v4019 = vadd.f32 %v667, %v4018
  %v4020 = vpop.f32.mrb[0].mxu0
  %v4021 = vadd.f32 %v671, %v4020
  %v4022 = vpop.f32.mrb[0].mxu0
  %v4023 = vadd.f32 %v667, %v4022
  %v4024 = vpop.f32.mrb[0].mxu0
  %v4025 = vadd.f32 %v671, %v4024
  %4026 = vmatprep.mubr.bf16.mxu0 %v1161
  %4027 = vmatmul.mubr.bf16.gmra.mrb[0].mxu0 %v1160
  %v4028 = vpop.f32.mrb[0].mxu0
  %v4029 = vadd.f32 %v667, %v4028
  %v4030 = vpop.f32.mrb[0].mxu0
  %v4031 = vadd.f32 %v671, %v4030
  %v4032 = vpop.f32.mrb[0].mxu0
  %v4033 = vadd.f32 %v667, %v4032
  %v4034 = vpop.f32.mrb[0].mxu0
  %v4035 = vadd.f32 %v671, %v4034
  %4036 = vmatprep.mubr.bf16.mxu0 %v1169
  %4037 = vmatmul.mubr.bf16.gmra.mrb[0].mxu0 %v1168
  %v4038 = vpop.f32.mrb[0].mxu0
  %v4039 = vadd.f32 %v667, %v4038
  %v4040 = vpop.f32.mrb[0].mxu0
  %v4041 = vadd.f32 %v671, %v4040
  %v4042 = vpop.f32.mrb[0].mxu0
  %v4043 = vadd.f32 %v667, %v4042
  %v4044 = vpop.f32.mrb[0].mxu0
  %v4045 = vadd.f32 %v671, %v4044
  %4046 = vmatprep.mubr.bf16.mxu0 %v1177
  %4047 = vmatmul.mubr.bf16.gmra.mrb[0].mxu0 %v1176
  %v4048 = vpop.f32.mrb[0].mxu0
  %v4049 = vadd.f32 %v667, %v4048
  %v4050 = vpop.f32.mrb[0].mxu0
  %v4051 = vadd.f32 %v671, %v4050
  %v4052 = vpop.f32.mrb[0].mxu0
  %v4053 = vadd.f32 %v667, %v4052
  %v4054 = vpop.f32.mrb[0].mxu0
  %v4055 = vadd.f32 %v671, %v4054
  %4056 = vmatprep.mubr.bf16.mxu0 %v1185
  %4057 = vmatmul.mubr.bf16.gmra.mrb[0].mxu0 %v1184
  %v4058 = vpop.f32.mrb[0].mxu0
  %v4059 = vadd.f32 %v667, %v4058
  %v4060 = vpop.f32.mrb[0].mxu0
  %v4061 = vadd.f32 %v671, %v4060
  %v4062 = vpop.f32.mrb[0].mxu0
  %v4063 = vadd.f32 %v667, %v4062
  %v4064 = vpop.f32.mrb[0].mxu0
  %v4065 = vadd.f32 %v671, %v4064
  %4066 = vmatprep.mubr.bf16.mxu0 %v1193
  %4067 = vmatmul.mubr.bf16.gmra.mrb[0].mxu0 %v1192
  %v4068 = vpop.f32.mrb[0].mxu0
  %v4069 = vadd.f32 %v667, %v4068
  %v4070 = vpop.f32.mrb[0].mxu0
  %v4071 = vadd.f32 %v671, %v4070
  %v4072 = vpop.f32.mrb[0].mxu0
  %v4073 = vadd.f32 %v667, %v4072
  %v4074 = vpop.f32.mrb[0].mxu0
  %v4075 = vadd.f32 %v671, %v4074
  %4076 = vmatprep.mubr.bf16.mxu0 %v1201
  %4077 = vmatmul.mubr.bf16.gmra.mrb[0].mxu0 %v1200
  %v4078 = vpop.f32.mrb[0].mxu0
  %v4079 = vadd.f32 %v667, %v4078
  %v4080 = vpop.f32.mrb[0].mxu0
  %v4081 = vadd.f32 %v671, %v4080
  %v4082 = vpop.f32.mrb[0].mxu0
  %v4083 = vadd.f32 %v667, %v4082
  %v4084 = vpop.f32.mrb[0].mxu0
  %v4085 = vadd.f32 %v671, %v4084
  %4086 = vmatprep.mubr.bf16.mxu0 %v1209
  %4087 = vmatmul.mubr.bf16.gmra.mrb[0].mxu0 %v1208
  %v4088 = vpop.f32.mrb[0].mxu0
  %v4089 = vadd.f32 %v667, %v4088
  %v4090 = vpop.f32.mrb[0].mxu0
  %v4091 = vadd.f32 %v671, %v4090
  %v4092 = vpop.f32.mrb[0].mxu0
  %v4093 = vadd.f32 %v667, %v4092
  %v4094 = vpop.f32.mrb[0].mxu0
  %v4095 = vadd.f32 %v671, %v4094
  %4096 = vdwg.mxu0
  %4097 = vmatprep.subr.bf16.mxu0 %v3009
  %4098 = vmatpush1.bf16.msra.mxu0 %v3008
  %4099 = vmatprep.subr.bf16.mxu0 %v3017
  %4100 = vmatpush1.bf16.msra.mxu0 %v3016
  %4101 = vmatprep.subr.bf16.mxu0 %v3025
  %4102 = vmatpush1.bf16.msra.mxu0 %v3024
  %4103 = vmatprep.subr.bf16.mxu0 %v3033
  %4104 = vmatpush1.bf16.msra.mxu0 %v3032
  %4105 = vmatprep.subr.bf16.mxu0 %v3041
  %4106 = vmatpush1.bf16.msra.mxu0 %v3040
  %4107 = vmatprep.subr.bf16.mxu0 %v3049
  %4108 = vmatpush1.bf16.msra.mxu0 %v3048
  %4109 = vmatprep.subr.bf16.mxu0 %v3057
  %4110 = vmatpush1.bf16.msra.mxu0 %v3056
  %4111 = vmatprep.subr.bf16.mxu0 %v3065
  %4112 = vmatpush1.bf16.msra.mxu0 %v3064
  %4113 = vmatprep.subr.bf16.mxu0 %v3073
  %4114 = vmatpush1.bf16.msra.mxu0 %v3072
  %4115 = vmatprep.subr.bf16.mxu0 %v3081
  %4116 = vmatpush1.bf16.msra.mxu0 %v3080
  %4117 = vmatprep.subr.bf16.mxu0 %v3089
  %4118 = vmatpush1.bf16.msra.mxu0 %v3088
  %4119 = vmatprep.subr.bf16.mxu0 %v3097
  %4120 = vmatpush1.bf16.msra.mxu0 %v3096
  %4121 = vmatprep.subr.bf16.mxu0 %v3105
  %4122 = vmatpush1.bf16.msra.mxu0 %v3104
  %4123 = vmatprep.subr.bf16.mxu0 %v3113
  %4124 = vmatpush1.bf16.msra.mxu0 %v3112
  %4125 = vmatprep.subr.bf16.mxu0 %v3121
  %4126 = vmatpush1.bf16.msra.mxu0 %v3120
  %4127 = vmatprep.subr.bf16.mxu0 %v3129
  %4128 = vmatpush1.bf16.msra.mxu0 %v3128
  %4129 = vmatprep.mubr.bf16.mxu0 %v1091
  %4130 = vmatmul.mubr.bf16.gmra.mrb[0].mxu0 %v1090
  %v4131 = vpop.f32.mrb[0].mxu0
  %v4132 = vadd.f32 %v3939, %v4131
  %v4133 = vpop.f32.mrb[0].mxu0
  %v4134 = vadd.f32 %v3941, %v4133
  %v4135 = vpop.f32.mrb[0].mxu0
  %v4136 = vadd.f32 %v3943, %v4135
  %v4137 = vpop.f32.mrb[0].mxu0
  %v4138 = vadd.f32 %v3945, %v4137
  %4139 = vmatprep.mubr.bf16.mxu0 %v1099
  %4140 = vmatmul.mubr.bf16.gmra.mrb[0].mxu0 %v1098
  %v4141 = vpop.f32.mrb[0].mxu0
  %v4142 = vadd.f32 %v3949, %v4141
  %v4143 = vpop.f32.mrb[0].mxu0
  %v4144 = vadd.f32 %v3951, %v4143
  %v4145 = vpop.f32.mrb[0].mxu0
  %v4146 = vadd.f32 %v3953, %v4145
  %v4147 = vpop.f32.mrb[0].mxu0
  %v4148 = vadd.f32 %v3955, %v4147
  %4149 = vmatprep.mubr.bf16.mxu0 %v1107
  %4150 = vmatmul.mubr.bf16.gmra.mrb[0].mxu0 %v1106
  %v4151 = vpop.f32.mrb[0].mxu0
  %v4152 = vadd.f32 %v3959, %v4151
  %v4153 = vpop.f32.mrb[0].mxu0
  %v4154 = vadd.f32 %v3961, %v4153
  %v4155 = vpop.f32.mrb[0].mxu0
  %v4156 = vadd.f32 %v3963, %v4155
  %v4157 = vpop.f32.mrb[0].mxu0
  %v4158 = vadd.f32 %v3965, %v4157
  %4159 = vmatprep.mubr.bf16.mxu0 %v1115
  %4160 = vmatmul.mubr.bf16.gmra.mrb[0].mxu0 %v1114
  %v4161 = vpop.f32.mrb[0].mxu0
  %v4162 = vadd.f32 %v3969, %v4161
  %v4163 = vpop.f32.mrb[0].mxu0
  %v4164 = vadd.f32 %v3971, %v4163
  %v4165 = vpop.f32.mrb[0].mxu0
  %v4166 = vadd.f32 %v3973, %v4165
  %v4167 = vpop.f32.mrb[0].mxu0
  %v4168 = vadd.f32 %v3975, %v4167
  %4169 = vmatprep.mubr.bf16.mxu0 %v1123
  %4170 = vmatmul.mubr.bf16.gmra.mrb[0].mxu0 %v1122
  %v4171 = vpop.f32.mrb[0].mxu0
  %v4172 = vadd.f32 %v3979, %v4171
  %v4173 = vpop.f32.mrb[0].mxu0
  %v4174 = vadd.f32 %v3981, %v4173
  %v4175 = vpop.f32.mrb[0].mxu0
  %v4176 = vadd.f32 %v3983, %v4175
  %v4177 = vpop.f32.mrb[0].mxu0
  %v4178 = vadd.f32 %v3985, %v4177
  %4179 = vmatprep.mubr.bf16.mxu0 %v1131
  %4180 = vmatmul.mubr.bf16.gmra.mrb[0].mxu0 %v1130
  %v4181 = vpop.f32.mrb[0].mxu0
  %v4182 = vadd.f32 %v3989, %v4181
  %v4183 = vpop.f32.mrb[0].mxu0
  %v4184 = vadd.f32 %v3991, %v4183
  %v4185 = vpop.f32.mrb[0].mxu0
  %v4186 = vadd.f32 %v3993, %v4185
  %v4187 = vpop.f32.mrb[0].mxu0
  %v4188 = vadd.f32 %v3995, %v4187
  %4189 = vmatprep.mubr.bf16.mxu0 %v1139
  %4190 = vmatmul.mubr.bf16.gmra.mrb[0].mxu0 %v1138
  %v4191 = vpop.f32.mrb[0].mxu0
  %v4192 = vadd.f32 %v3999, %v4191
  %v4193 = vpop.f32.mrb[0].mxu0
  %v4194 = vadd.f32 %v4001, %v4193
  %v4195 = vpop.f32.mrb[0].mxu0
  %v4196 = vadd.f32 %v4003, %v4195
  %v4197 = vpop.f32.mrb[0].mxu0
  %v4198 = vadd.f32 %v4005, %v4197
  %4199 = vmatprep.mubr.bf16.mxu0 %v1147
  %4200 = vmatmul.mubr.bf16.gmra.mrb[0].mxu0 %v1146
  %v4201 = vpop.f32.mrb[0].mxu0
  %v4202 = vadd.f32 %v4009, %v4201
  %v4203 = vpop.f32.mrb[0].mxu0
  %v4204 = vadd.f32 %v4011, %v4203
  %v4205 = vpop.f32.mrb[0].mxu0
  %v4206 = vadd.f32 %v4013, %v4205
  %v4207 = vpop.f32.mrb[0].mxu0
  %v4208 = vadd.f32 %v4015, %v4207
  %4209 = vmatprep.mubr.bf16.mxu0 %v1155
  %4210 = vmatmul.mubr.bf16.gmra.mrb[0].mxu0 %v1154
  %v4211 = vpop.f32.mrb[0].mxu0
  %v4212 = vadd.f32 %v4019, %v4211
  %v4213 = vpop.f32.mrb[0].mxu0
  %v4214 = vadd.f32 %v4021, %v4213
  %v4215 = vpop.f32.mrb[0].mxu0
  %v4216 = vadd.f32 %v4023, %v4215
  %v4217 = vpop.f32.mrb[0].mxu0
  %v4218 = vadd.f32 %v4025, %v4217
  %4219 = vmatprep.mubr.bf16.mxu0 %v1163
  %4220 = vmatmul.mubr.bf16.gmra.mrb[0].mxu0 %v1162
  %v4221 = vpop.f32.mrb[0].mxu0
  %v4222 = vadd.f32 %v4029, %v4221
  %v4223 = vpop.f32.mrb[0].mxu0
  %v4224 = vadd.f32 %v4031, %v4223
  %v4225 = vpop.f32.mrb[0].mxu0
  %v4226 = vadd.f32 %v4033, %v4225
  %v4227 = vpop.f32.mrb[0].mxu0
  %v4228 = vadd.f32 %v4035, %v4227
  %4229 = vmatprep.mubr.bf16.mxu0 %v1171
  %4230 = vmatmul.mubr.bf16.gmra.mrb[0].mxu0 %v1170
  %v4231 = vpop.f32.mrb[0].mxu0
  %v4232 = vadd.f32 %v4039, %v4231
  %v4233 = vpop.f32.mrb[0].mxu0
  %v4234 = vadd.f32 %v4041, %v4233
  %v4235 = vpop.f32.mrb[0].mxu0
  %v4236 = vadd.f32 %v4043, %v4235
  %v4237 = vpop.f32.mrb[0].mxu0
  %v4238 = vadd.f32 %v4045, %v4237
  %4239 = vmatprep.mubr.bf16.mxu0 %v1179
  %4240 = vmatmul.mubr.bf16.gmra.mrb[0].mxu0 %v1178
  %v4241 = vpop.f32.mrb[0].mxu0
  %v4242 = vadd.f32 %v4049, %v4241
  %v4243 = vpop.f32.mrb[0].mxu0
  %v4244 = vadd.f32 %v4051, %v4243
  %v4245 = vpop.f32.mrb[0].mxu0
  %v4246 = vadd.f32 %v4053, %v4245
  %v4247 = vpop.f32.mrb[0].mxu0
  %v4248 = vadd.f32 %v4055, %v4247
  %4249 = vmatprep.mubr.bf16.mxu0 %v1187
  %4250 = vmatmul.mubr.bf16.gmra.mrb[0].mxu0 %v1186
  %v4251 = vpop.f32.mrb[0].mxu0
  %v4252 = vadd.f32 %v4059, %v4251
  %v4253 = vpop.f32.mrb[0].mxu0
  %v4254 = vadd.f32 %v4061, %v4253
  %v4255 = vpop.f32.mrb[0].mxu0
  %v4256 = vadd.f32 %v4063, %v4255
  %v4257 = vpop.f32.mrb[0].mxu0
  %v4258 = vadd.f32 %v4065, %v4257
  %4259 = vmatprep.mubr.bf16.mxu0 %v1195
  %4260 = vmatmul.mubr.bf16.gmra.mrb[0].mxu0 %v1194
  %v4261 = vpop.f32.mrb[0].mxu0
  %v4262 = vadd.f32 %v4069, %v4261
  %v4263 = vpop.f32.mrb[0].mxu0
  %v4264 = vadd.f32 %v4071, %v4263
  %v4265 = vpop.f32.mrb[0].mxu0
  %v4266 = vadd.f32 %v4073, %v4265
  %v4267 = vpop.f32.mrb[0].mxu0
  %v4268 = vadd.f32 %v4075, %v4267
  %4269 = vmatprep.mubr.bf16.mxu0 %v1203
  %4270 = vmatmul.mubr.bf16.gmra.mrb[0].mxu0 %v1202
  %v4271 = vpop.f32.mrb[0].mxu0
  %v4272 = vadd.f32 %v4079, %v4271
  %v4273 = vpop.f32.mrb[0].mxu0
  %v4274 = vadd.f32 %v4081, %v4273
  %v4275 = vpop.f32.mrb[0].mxu0
  %v4276 = vadd.f32 %v4083, %v4275
  %v4277 = vpop.f32.mrb[0].mxu0
  %v4278 = vadd.f32 %v4085, %v4277
  %4279 = vmatprep.mubr.bf16.mxu0 %v1211
  %4280 = vmatmul.mubr.bf16.gmra.mrb[0].mxu0 %v1210
  %v4281 = vpop.f32.mrb[0].mxu0
  %v4282 = vadd.f32 %v4089, %v4281
  %v4283 = vpop.f32.mrb[0].mxu0
  %v4284 = vadd.f32 %v4091, %v4283
  %v4285 = vpop.f32.mrb[0].mxu0
  %v4286 = vadd.f32 %v4093, %v4285
  %v4287 = vpop.f32.mrb[0].mxu0
  %v4288 = vadd.f32 %v4095, %v4287
  %4289 = vdwg.mxu0
  %4290 = vmatprep.subr.bf16.mxu0 %v3137
  %4291 = vmatpush1.bf16.msra.mxu0 %v3136
  %4292 = vmatprep.subr.bf16.mxu0 %v3145
  %4293 = vmatpush1.bf16.msra.mxu0 %v3144
  %4294 = vmatprep.subr.bf16.mxu0 %v3153
  %4295 = vmatpush1.bf16.msra.mxu0 %v3152
  %4296 = vmatprep.subr.bf16.mxu0 %v3161
  %4297 = vmatpush1.bf16.msra.mxu0 %v3160
  %4298 = vmatprep.subr.bf16.mxu0 %v3169
  %4299 = vmatpush1.bf16.msra.mxu0 %v3168
  %4300 = vmatprep.subr.bf16.mxu0 %v3177
  %4301 = vmatpush1.bf16.msra.mxu0 %v3176
  %4302 = vmatprep.subr.bf16.mxu0 %v3185
  %4303 = vmatpush1.bf16.msra.mxu0 %v3184
  %4304 = vmatprep.subr.bf16.mxu0 %v3193
  %4305 = vmatpush1.bf16.msra.mxu0 %v3192
  %4306 = vmatprep.subr.bf16.mxu0 %v3201
  %4307 = vmatpush1.bf16.msra.mxu0 %v3200
  %4308 = vmatprep.subr.bf16.mxu0 %v3209
  %4309 = vmatpush1.bf16.msra.mxu0 %v3208
  %4310 = vmatprep.subr.bf16.mxu0 %v3217
  %4311 = vmatpush1.bf16.msra.mxu0 %v3216
  %4312 = vmatprep.subr.bf16.mxu0 %v3225
  %4313 = vmatpush1.bf16.msra.mxu0 %v3224
  %4314 = vmatprep.subr.bf16.mxu0 %v3233
  %4315 = vmatpush1.bf16.msra.mxu0 %v3232
  %4316 = vmatprep.subr.bf16.mxu0 %v3241
  %4317 = vmatpush1.bf16.msra.mxu0 %v3240
  %4318 = vmatprep.subr.bf16.mxu0 %v3249
  %4319 = vmatpush1.bf16.msra.mxu0 %v3248
  %4320 = vmatprep.subr.bf16.mxu0 %v3257
  %4321 = vmatpush1.bf16.msra.mxu0 %v3256
  %4322 = vmatprep.mubr.bf16.mxu0 %v1093
  %4323 = vmatmul.mubr.bf16.gmra.mrb[0].mxu0 %v1092
  %v4324 = vpop.f32.mrb[0].mxu0
  %v4325 = vadd.f32 %v4132, %v4324
  %v4326 = vpop.f32.mrb[0].mxu0
  %v4327 = vadd.f32 %v4134, %v4326
  %v4328 = vpop.f32.mrb[0].mxu0
  %v4329 = vadd.f32 %v4136, %v4328
  %v4330 = vpop.f32.mrb[0].mxu0
  %v4331 = vadd.f32 %v4138, %v4330
  %4332 = vmatprep.mubr.bf16.mxu0 %v1101
  %4333 = vmatmul.mubr.bf16.gmra.mrb[0].mxu0 %v1100
  %v4334 = vpop.f32.mrb[0].mxu0
  %v4335 = vadd.f32 %v4142, %v4334
  %v4336 = vpop.f32.mrb[0].mxu0
  %v4337 = vadd.f32 %v4144, %v4336
  %v4338 = vpop.f32.mrb[0].mxu0
  %v4339 = vadd.f32 %v4146, %v4338
  %v4340 = vpop.f32.mrb[0].mxu0
  %v4341 = vadd.f32 %v4148, %v4340
  %4342 = vmatprep.mubr.bf16.mxu0 %v1109
  %4343 = vmatmul.mubr.bf16.gmra.mrb[0].mxu0 %v1108
  %v4344 = vpop.f32.mrb[0].mxu0
  %v4345 = vadd.f32 %v4152, %v4344
  %v4346 = vpop.f32.mrb[0].mxu0
  %v4347 = vadd.f32 %v4154, %v4346
  %v4348 = vpop.f32.mrb[0].mxu0
  %v4349 = vadd.f32 %v4156, %v4348
  %v4350 = vpop.f32.mrb[0].mxu0
  %v4351 = vadd.f32 %v4158, %v4350
  %4352 = vmatprep.mubr.bf16.mxu0 %v1117
  %4353 = vmatmul.mubr.bf16.gmra.mrb[0].mxu0 %v1116
  %v4354 = vpop.f32.mrb[0].mxu0
  %v4355 = vadd.f32 %v4162, %v4354
  %v4356 = vpop.f32.mrb[0].mxu0
  %v4357 = vadd.f32 %v4164, %v4356
  %v4358 = vpop.f32.mrb[0].mxu0
  %v4359 = vadd.f32 %v4166, %v4358
  %v4360 = vpop.f32.mrb[0].mxu0
  %v4361 = vadd.f32 %v4168, %v4360
  %4362 = vmatprep.mubr.bf16.mxu0 %v1125
  %4363 = vmatmul.mubr.bf16.gmra.mrb[0].mxu0 %v1124
  %v4364 = vpop.f32.mrb[0].mxu0
  %v4365 = vadd.f32 %v4172, %v4364
  %v4366 = vpop.f32.mrb[0].mxu0
  %v4367 = vadd.f32 %v4174, %v4366
  %v4368 = vpop.f32.mrb[0].mxu0
  %v4369 = vadd.f32 %v4176, %v4368
  %v4370 = vpop.f32.mrb[0].mxu0
  %v4371 = vadd.f32 %v4178, %v4370
  %4372 = vmatprep.mubr.bf16.mxu0 %v1133
  %4373 = vmatmul.mubr.bf16.gmra.mrb[0].mxu0 %v1132
  %v4374 = vpop.f32.mrb[0].mxu0
  %v4375 = vadd.f32 %v4182, %v4374
  %v4376 = vpop.f32.mrb[0].mxu0
  %v4377 = vadd.f32 %v4184, %v4376
  %v4378 = vpop.f32.mrb[0].mxu0
  %v4379 = vadd.f32 %v4186, %v4378
  %v4380 = vpop.f32.mrb[0].mxu0
  %v4381 = vadd.f32 %v4188, %v4380
  %4382 = vmatprep.mubr.bf16.mxu0 %v1141
  %4383 = vmatmul.mubr.bf16.gmra.mrb[0].mxu0 %v1140
  %v4384 = vpop.f32.mrb[0].mxu0
  %v4385 = vadd.f32 %v4192, %v4384
  %v4386 = vpop.f32.mrb[0].mxu0
  %v4387 = vadd.f32 %v4194, %v4386
  %v4388 = vpop.f32.mrb[0].mxu0
  %v4389 = vadd.f32 %v4196, %v4388
  %v4390 = vpop.f32.mrb[0].mxu0
  %v4391 = vadd.f32 %v4198, %v4390
  %4392 = vmatprep.mubr.bf16.mxu0 %v1149
  %4393 = vmatmul.mubr.bf16.gmra.mrb[0].mxu0 %v1148
  %v4394 = vpop.f32.mrb[0].mxu0
  %v4395 = vadd.f32 %v4202, %v4394
  %v4396 = vpop.f32.mrb[0].mxu0
  %v4397 = vadd.f32 %v4204, %v4396
  %v4398 = vpop.f32.mrb[0].mxu0
  %v4399 = vadd.f32 %v4206, %v4398
  %v4400 = vpop.f32.mrb[0].mxu0
  %v4401 = vadd.f32 %v4208, %v4400
  %4402 = vmatprep.mubr.bf16.mxu0 %v1157
  %4403 = vmatmul.mubr.bf16.gmra.mrb[0].mxu0 %v1156
  %v4404 = vpop.f32.mrb[0].mxu0
  %v4405 = vadd.f32 %v4212, %v4404
  %v4406 = vpop.f32.mrb[0].mxu0
  %v4407 = vadd.f32 %v4214, %v4406
  %v4408 = vpop.f32.mrb[0].mxu0
  %v4409 = vadd.f32 %v4216, %v4408
  %v4410 = vpop.f32.mrb[0].mxu0
  %v4411 = vadd.f32 %v4218, %v4410
  %4412 = vmatprep.mubr.bf16.mxu0 %v1165
  %4413 = vmatmul.mubr.bf16.gmra.mrb[0].mxu0 %v1164
  %v4414 = vpop.f32.mrb[0].mxu0
  %v4415 = vadd.f32 %v4222, %v4414
  %v4416 = vpop.f32.mrb[0].mxu0
  %v4417 = vadd.f32 %v4224, %v4416
  %v4418 = vpop.f32.mrb[0].mxu0
  %v4419 = vadd.f32 %v4226, %v4418
  %v4420 = vpop.f32.mrb[0].mxu0
  %v4421 = vadd.f32 %v4228, %v4420
  %4422 = vmatprep.mubr.bf16.mxu0 %v1173
  %4423 = vmatmul.mubr.bf16.gmra.mrb[0].mxu0 %v1172
  %v4424 = vpop.f32.mrb[0].mxu0
  %v4425 = vadd.f32 %v4232, %v4424
  %v4426 = vpop.f32.mrb[0].mxu0
  %v4427 = vadd.f32 %v4234, %v4426
  %v4428 = vpop.f32.mrb[0].mxu0
  %v4429 = vadd.f32 %v4236, %v4428
  %v4430 = vpop.f32.mrb[0].mxu0
  %v4431 = vadd.f32 %v4238, %v4430
  %4432 = vmatprep.mubr.bf16.mxu0 %v1181
  %4433 = vmatmul.mubr.bf16.gmra.mrb[0].mxu0 %v1180
  %v4434 = vpop.f32.mrb[0].mxu0
  %v4435 = vadd.f32 %v4242, %v4434
  %v4436 = vpop.f32.mrb[0].mxu0
  %v4437 = vadd.f32 %v4244, %v4436
  %v4438 = vpop.f32.mrb[0].mxu0
  %v4439 = vadd.f32 %v4246, %v4438
  %v4440 = vpop.f32.mrb[0].mxu0
  %v4441 = vadd.f32 %v4248, %v4440
  %4442 = vmatprep.mubr.bf16.mxu0 %v1189
  %4443 = vmatmul.mubr.bf16.gmra.mrb[0].mxu0 %v1188
  %v4444 = vpop.f32.mrb[0].mxu0
  %v4445 = vadd.f32 %v4252, %v4444
  %v4446 = vpop.f32.mrb[0].mxu0
  %v4447 = vadd.f32 %v4254, %v4446
  %v4448 = vpop.f32.mrb[0].mxu0
  %v4449 = vadd.f32 %v4256, %v4448
  %v4450 = vpop.f32.mrb[0].mxu0
  %v4451 = vadd.f32 %v4258, %v4450
  %4452 = vmatprep.mubr.bf16.mxu0 %v1197
  %4453 = vmatmul.mubr.bf16.gmra.mrb[0].mxu0 %v1196
  %v4454 = vpop.f32.mrb[0].mxu0
  %v4455 = vadd.f32 %v4262, %v4454
  %v4456 = vpop.f32.mrb[0].mxu0
  %v4457 = vadd.f32 %v4264, %v4456
  %v4458 = vpop.f32.mrb[0].mxu0
  %v4459 = vadd.f32 %v4266, %v4458
  %v4460 = vpop.f32.mrb[0].mxu0
  %v4461 = vadd.f32 %v4268, %v4460
  %4462 = vmatprep.mubr.bf16.mxu0 %v1205
  %4463 = vmatmul.mubr.bf16.gmra.mrb[0].mxu0 %v1204
  %v4464 = vpop.f32.mrb[0].mxu0
  %v4465 = vadd.f32 %v4272, %v4464
  %v4466 = vpop.f32.mrb[0].mxu0
  %v4467 = vadd.f32 %v4274, %v4466
  %v4468 = vpop.f32.mrb[0].mxu0
  %v4469 = vadd.f32 %v4276, %v4468
  %v4470 = vpop.f32.mrb[0].mxu0
  %v4471 = vadd.f32 %v4278, %v4470
  %4472 = vmatprep.mubr.bf16.mxu0 %v1213
  %4473 = vmatmul.mubr.bf16.gmra.mrb[0].mxu0 %v1212
  %v4474 = vpop.f32.mrb[0].mxu0
  %v4475 = vadd.f32 %v4282, %v4474
  %v4476 = vpop.f32.mrb[0].mxu0
  %v4477 = vadd.f32 %v4284, %v4476
  %v4478 = vpop.f32.mrb[0].mxu0
  %v4479 = vadd.f32 %v4286, %v4478
  %v4480 = vpop.f32.mrb[0].mxu0
  %v4481 = vadd.f32 %v4288, %v4480
  %4482 = vdwg.mxu0
  %4483 = vmatprep.subr.bf16.mxu0 %v3265
  %4484 = vmatpush1.bf16.msra.mxu0 %v3264
  %4485 = vmatprep.subr.bf16.mxu0 %v3273
  %4486 = vmatpush1.bf16.msra.mxu0 %v3272
  %4487 = vmatprep.subr.bf16.mxu0 %v3281
  %4488 = vmatpush1.bf16.msra.mxu0 %v3280
  %4489 = vmatprep.subr.bf16.mxu0 %v3289
  %4490 = vmatpush1.bf16.msra.mxu0 %v3288
  %4491 = vmatprep.subr.bf16.mxu0 %v3297
  %4492 = vmatpush1.bf16.msra.mxu0 %v3296
  %4493 = vmatprep.subr.bf16.mxu0 %v3305
  %4494 = vmatpush1.bf16.msra.mxu0 %v3304
  %4495 = vmatprep.subr.bf16.mxu0 %v3313
  %4496 = vmatpush1.bf16.msra.mxu0 %v3312
  %4497 = vmatprep.subr.bf16.mxu0 %v3321
  %4498 = vmatpush1.bf16.msra.mxu0 %v3320
  %4499 = vmatprep.subr.bf16.mxu0 %v3329
  %4500 = vmatpush1.bf16.msra.mxu0 %v3328
  %4501 = vmatprep.subr.bf16.mxu0 %v3337
  %4502 = vmatpush1.bf16.msra.mxu0 %v3336
  %4503 = vmatprep.subr.bf16.mxu0 %v3345
  %4504 = vmatpush1.bf16.msra.mxu0 %v3344
  %4505 = vmatprep.subr.bf16.mxu0 %v3353
  %4506 = vmatpush1.bf16.msra.mxu0 %v3352
  %4507 = vmatprep.subr.bf16.mxu0 %v3361
  %4508 = vmatpush1.bf16.msra.mxu0 %v3360
  %4509 = vmatprep.subr.bf16.mxu0 %v3369
  %4510 = vmatpush1.bf16.msra.mxu0 %v3368
  %4511 = vmatprep.subr.bf16.mxu0 %v3377
  %4512 = vmatpush1.bf16.msra.mxu0 %v3376
  %4513 = vmatprep.subr.bf16.mxu0 %v3385
  %4514 = vmatpush1.bf16.msra.mxu0 %v3384
  %4515 = vmatprep.mubr.bf16.mxu0 %v1095
  %4516 = vmatmul.mubr.bf16.gmra.mrb[0].mxu0 %v1094
  %v4517 = vpop.f32.mrb[0].mxu0
  %v4518 = vadd.f32 %v4325, %v4517
  %v4519 = vpop.f32.mrb[0].mxu0
  %v4520 = vadd.f32 %v4327, %v4519
  %v4521 = vpop.f32.mrb[0].mxu0
  %v4522 = vadd.f32 %v4329, %v4521
  %v4523 = vpop.f32.mrb[0].mxu0
  %v4524 = vadd.f32 %v4331, %v4523
  %4525 = vmatprep.mubr.bf16.mxu0 %v1103
  %4526 = vmatmul.mubr.bf16.gmra.mrb[0].mxu0 %v1102
  %v4527 = vpop.f32.mrb[0].mxu0
  %v4528 = vadd.f32 %v4335, %v4527
  %v4529 = vpop.f32.mrb[0].mxu0
  %v4530 = vadd.f32 %v4337, %v4529
  %v4531 = vpop.f32.mrb[0].mxu0
  %v4532 = vadd.f32 %v4339, %v4531
  %v4533 = vpop.f32.mrb[0].mxu0
  %v4534 = vadd.f32 %v4341, %v4533
  %4535 = vmatprep.mubr.bf16.mxu0 %v1111
  %4536 = vmatmul.mubr.bf16.gmra.mrb[0].mxu0 %v1110
  %v4537 = vpop.f32.mrb[0].mxu0
  %v4538 = vadd.f32 %v4345, %v4537
  %v4539 = vpop.f32.mrb[0].mxu0
  %v4540 = vadd.f32 %v4347, %v4539
  %v4541 = vpop.f32.mrb[0].mxu0
  %v4542 = vadd.f32 %v4349, %v4541
  %v4543 = vpop.f32.mrb[0].mxu0
  %v4544 = vadd.f32 %v4351, %v4543
  %4545 = vmatprep.mubr.bf16.mxu0 %v1119
  %4546 = vmatmul.mubr.bf16.gmra.mrb[0].mxu0 %v1118
  %v4547 = vpop.f32.mrb[0].mxu0
  %v4548 = vadd.f32 %v4355, %v4547
  %v4549 = vpop.f32.mrb[0].mxu0
  %v4550 = vadd.f32 %v4357, %v4549
  %v4551 = vpop.f32.mrb[0].mxu0
  %v4552 = vadd.f32 %v4359, %v4551
  %v4553 = vpop.f32.mrb[0].mxu0
  %v4554 = vadd.f32 %v4361, %v4553
  %4555 = vmatprep.mubr.bf16.mxu0 %v1127
  %4556 = vmatmul.mubr.bf16.gmra.mrb[0].mxu0 %v1126
  %v4557 = vpop.f32.mrb[0].mxu0
  %v4558 = vadd.f32 %v4365, %v4557
  %v4559 = vpop.f32.mrb[0].mxu0
  %v4560 = vadd.f32 %v4367, %v4559
  %v4561 = vpop.f32.mrb[0].mxu0
  %v4562 = vadd.f32 %v4369, %v4561
  %v4563 = vpop.f32.mrb[0].mxu0
  %v4564 = vadd.f32 %v4371, %v4563
  %4565 = vmatprep.mubr.bf16.mxu0 %v1135
  %4566 = vmatmul.mubr.bf16.gmra.mrb[0].mxu0 %v1134
  %v4567 = vpop.f32.mrb[0].mxu0
  %v4568 = vadd.f32 %v4375, %v4567
  %v4569 = vpop.f32.mrb[0].mxu0
  %v4570 = vadd.f32 %v4377, %v4569
  %v4571 = vpop.f32.mrb[0].mxu0
  %v4572 = vadd.f32 %v4379, %v4571
  %v4573 = vpop.f32.mrb[0].mxu0
  %v4574 = vadd.f32 %v4381, %v4573
  %4575 = vmatprep.mubr.bf16.mxu0 %v1143
  %4576 = vmatmul.mubr.bf16.gmra.mrb[0].mxu0 %v1142
  %v4577 = vpop.f32.mrb[0].mxu0
  %v4578 = vadd.f32 %v4385, %v4577
  %v4579 = vpop.f32.mrb[0].mxu0
  %v4580 = vadd.f32 %v4387, %v4579
  %v4581 = vpop.f32.mrb[0].mxu0
  %v4582 = vadd.f32 %v4389, %v4581
  %v4583 = vpop.f32.mrb[0].mxu0
  %v4584 = vadd.f32 %v4391, %v4583
  %4585 = vmatprep.mubr.bf16.mxu0 %v1151
  %4586 = vmatmul.mubr.bf16.gmra.mrb[0].mxu0 %v1150
  %v4587 = vpop.f32.mrb[0].mxu0
  %v4588 = vadd.f32 %v4395, %v4587
  %v4589 = vpop.f32.mrb[0].mxu0
  %v4590 = vadd.f32 %v4397, %v4589
  %v4591 = vpop.f32.mrb[0].mxu0
  %v4592 = vadd.f32 %v4399, %v4591
  %v4593 = vpop.f32.mrb[0].mxu0
  %v4594 = vadd.f32 %v4401, %v4593
  %4595 = vmatprep.mubr.bf16.mxu0 %v1159
  %4596 = vmatmul.mubr.bf16.gmra.mrb[0].mxu0 %v1158
  %v4597 = vpop.f32.mrb[0].mxu0
  %v4598 = vadd.f32 %v4405, %v4597
  %v4599 = vpop.f32.mrb[0].mxu0
  %v4600 = vadd.f32 %v4407, %v4599
  %v4601 = vpop.f32.mrb[0].mxu0
  %v4602 = vadd.f32 %v4409, %v4601
  %v4603 = vpop.f32.mrb[0].mxu0
  %v4604 = vadd.f32 %v4411, %v4603
  %4605 = vmatprep.mubr.bf16.mxu0 %v1167
  %4606 = vmatmul.mubr.bf16.gmra.mrb[0].mxu0 %v1166
  %v4607 = vpop.f32.mrb[0].mxu0
  %v4608 = vadd.f32 %v4415, %v4607
  %v4609 = vpop.f32.mrb[0].mxu0
  %v4610 = vadd.f32 %v4417, %v4609
  %v4611 = vpop.f32.mrb[0].mxu0
  %v4612 = vadd.f32 %v4419, %v4611
  %v4613 = vpop.f32.mrb[0].mxu0
  %v4614 = vadd.f32 %v4421, %v4613
  %4615 = vmatprep.mubr.bf16.mxu0 %v1175
  %4616 = vmatmul.mubr.bf16.gmra.mrb[0].mxu0 %v1174
  %v4617 = vpop.f32.mrb[0].mxu0
  %v4618 = vadd.f32 %v4425, %v4617
  %v4619 = vpop.f32.mrb[0].mxu0
  %v4620 = vadd.f32 %v4427, %v4619
  %v4621 = vpop.f32.mrb[0].mxu0
  %v4622 = vadd.f32 %v4429, %v4621
  %v4623 = vpop.f32.mrb[0].mxu0
  %v4624 = vadd.f32 %v4431, %v4623
  %4625 = vmatprep.mubr.bf16.mxu0 %v1183
  %4626 = vmatmul.mubr.bf16.gmra.mrb[0].mxu0 %v1182
  %v4627 = vpop.f32.mrb[0].mxu0
  %v4628 = vadd.f32 %v4435, %v4627
  %v4629 = vpop.f32.mrb[0].mxu0
  %v4630 = vadd.f32 %v4437, %v4629
  %v4631 = vpop.f32.mrb[0].mxu0
  %v4632 = vadd.f32 %v4439, %v4631
  %v4633 = vpop.f32.mrb[0].mxu0
  %v4634 = vadd.f32 %v4441, %v4633
  %4635 = vmatprep.mubr.bf16.mxu0 %v1191
  %4636 = vmatmul.mubr.bf16.gmra.mrb[0].mxu0 %v1190
  %v4637 = vpop.f32.mrb[0].mxu0
  %v4638 = vadd.f32 %v4445, %v4637
  %v4639 = vpop.f32.mrb[0].mxu0
  %v4640 = vadd.f32 %v4447, %v4639
  %v4641 = vpop.f32.mrb[0].mxu0
  %v4642 = vadd.f32 %v4449, %v4641
  %v4643 = vpop.f32.mrb[0].mxu0
  %v4644 = vadd.f32 %v4451, %v4643
  %4645 = vmatprep.mubr.bf16.mxu0 %v1199
  %4646 = vmatmul.mubr.bf16.gmra.mrb[0].mxu0 %v1198
  %v4647 = vpop.f32.mrb[0].mxu0
  %v4648 = vadd.f32 %v4455, %v4647
  %v4649 = vpop.f32.mrb[0].mxu0
  %v4650 = vadd.f32 %v4457, %v4649
  %v4651 = vpop.f32.mrb[0].mxu0
  %v4652 = vadd.f32 %v4459, %v4651
  %v4653 = vpop.f32.mrb[0].mxu0
  %v4654 = vadd.f32 %v4461, %v4653
  %4655 = vmatprep.mubr.bf16.mxu0 %v1207
  %4656 = vmatmul.mubr.bf16.gmra.mrb[0].mxu0 %v1206
  %v4657 = vpop.f32.mrb[0].mxu0
  %v4658 = vadd.f32 %v4465, %v4657
  %v4659 = vpop.f32.mrb[0].mxu0
  %v4660 = vadd.f32 %v4467, %v4659
  %v4661 = vpop.f32.mrb[0].mxu0
  %v4662 = vadd.f32 %v4469, %v4661
  %v4663 = vpop.f32.mrb[0].mxu0
  %v4664 = vadd.f32 %v4471, %v4663
  %4665 = vmatprep.mubr.bf16.mxu0 %v1215
  %4666 = vmatmul.mubr.bf16.gmra.mrb[0].mxu0 %v1214
  %v4667 = vpop.f32.mrb[0].mxu0
  %v4668 = vadd.f32 %v4475, %v4667
  %v4669 = vpop.f32.mrb[0].mxu0
  %v4670 = vadd.f32 %v4477, %v4669
  %v4671 = vpop.f32.mrb[0].mxu0
  %v4672 = vadd.f32 %v4479, %v4671
  %v4673 = vpop.f32.mrb[0].mxu0
  %v4674 = vadd.f32 %v4481, %v4673
  %4675 = vdwg.mxu0
  %4676 = vmatprep.subr.bf16.mxu0 %v2883
  %4677 = vmatpush1.bf16.msra.mxu0 %v2882
  %4678 = vmatprep.subr.bf16.mxu0 %v2891
  %4679 = vmatpush1.bf16.msra.mxu0 %v2890
  %4680 = vmatprep.subr.bf16.mxu0 %v2899
  %4681 = vmatpush1.bf16.msra.mxu0 %v2898
  %4682 = vmatprep.subr.bf16.mxu0 %v2907
  %4683 = vmatpush1.bf16.msra.mxu0 %v2906
  %4684 = vmatprep.subr.bf16.mxu0 %v2915
  %4685 = vmatpush1.bf16.msra.mxu0 %v2914
  %4686 = vmatprep.subr.bf16.mxu0 %v2923
  %4687 = vmatpush1.bf16.msra.mxu0 %v2922
  %4688 = vmatprep.subr.bf16.mxu0 %v2931
  %4689 = vmatpush1.bf16.msra.mxu0 %v2930
  %4690 = vmatprep.subr.bf16.mxu0 %v2939
  %4691 = vmatpush1.bf16.msra.mxu0 %v2938
  %4692 = vmatprep.subr.bf16.mxu0 %v2947
  %4693 = vmatpush1.bf16.msra.mxu0 %v2946
  %4694 = vmatprep.subr.bf16.mxu0 %v2955
  %4695 = vmatpush1.bf16.msra.mxu0 %v2954
  %4696 = vmatprep.subr.bf16.mxu0 %v2963
  %4697 = vmatpush1.bf16.msra.mxu0 %v2962
  %4698 = vmatprep.subr.bf16.mxu0 %v2971
  %4699 = vmatpush1.bf16.msra.mxu0 %v2970
  %4700 = vmatprep.subr.bf16.mxu0 %v2979
  %4701 = vmatpush1.bf16.msra.mxu0 %v2978
  %4702 = vmatprep.subr.bf16.mxu0 %v2987
  %4703 = vmatpush1.bf16.msra.mxu0 %v2986
  %4704 = vmatprep.subr.bf16.mxu0 %v2995
  %4705 = vmatpush1.bf16.msra.mxu0 %v2994
  %4706 = vmatprep.subr.bf16.mxu0 %v3003
  %4707 = vmatpush1.bf16.msra.mxu0 %v3002
  %4708 = vmatprep.mubr.bf16.mxu0 %v1089
  %4709 = vmatmul.mubr.bf16.gmra.mrb[0].mxu0 %v1088
  %v4710 = vpop.f32.mrb[0].mxu0
  %v4711 = vadd.f32 %v675, %v4710
  %v4712 = vpop.f32.mrb[0].mxu0
  %v4713 = vadd.f32 %v679, %v4712
  %v4714 = vpop.f32.mrb[0].mxu0
  %v4715 = vadd.f32 %v675, %v4714
  %v4716 = vpop.f32.mrb[0].mxu0
  %v4717 = vadd.f32 %v679, %v4716
  %4718 = vmatprep.mubr.bf16.mxu0 %v1097
  %4719 = vmatmul.mubr.bf16.gmra.mrb[0].mxu0 %v1096
  %v4720 = vpop.f32.mrb[0].mxu0
  %v4721 = vadd.f32 %v675, %v4720
  %v4722 = vpop.f32.mrb[0].mxu0
  %v4723 = vadd.f32 %v679, %v4722
  %v4724 = vpop.f32.mrb[0].mxu0
  %v4725 = vadd.f32 %v675, %v4724
  %v4726 = vpop.f32.mrb[0].mxu0
  %v4727 = vadd.f32 %v679, %v4726
  %4728 = vmatprep.mubr.bf16.mxu0 %v1105
  %4729 = vmatmul.mubr.bf16.gmra.mrb[0].mxu0 %v1104
  %v4730 = vpop.f32.mrb[0].mxu0
  %v4731 = vadd.f32 %v675, %v4730
  %v4732 = vpop.f32.mrb[0].mxu0
  %v4733 = vadd.f32 %v679, %v4732
  %v4734 = vpop.f32.mrb[0].mxu0
  %v4735 = vadd.f32 %v675, %v4734
  %v4736 = vpop.f32.mrb[0].mxu0
  %v4737 = vadd.f32 %v679, %v4736
  %4738 = vmatprep.mubr.bf16.mxu0 %v1113
  %4739 = vmatmul.mubr.bf16.gmra.mrb[0].mxu0 %v1112
  %v4740 = vpop.f32.mrb[0].mxu0
  %v4741 = vadd.f32 %v675, %v4740
  %v4742 = vpop.f32.mrb[0].mxu0
  %v4743 = vadd.f32 %v679, %v4742
  %v4744 = vpop.f32.mrb[0].mxu0
  %v4745 = vadd.f32 %v675, %v4744
  %v4746 = vpop.f32.mrb[0].mxu0
  %v4747 = vadd.f32 %v679, %v4746
  %4748 = vmatprep.mubr.bf16.mxu0 %v1121
  %4749 = vmatmul.mubr.bf16.gmra.mrb[0].mxu0 %v1120
  %v4750 = vpop.f32.mrb[0].mxu0
  %v4751 = vadd.f32 %v675, %v4750
  %v4752 = vpop.f32.mrb[0].mxu0
  %v4753 = vadd.f32 %v679, %v4752
  %v4754 = vpop.f32.mrb[0].mxu0
  %v4755 = vadd.f32 %v675, %v4754
  %v4756 = vpop.f32.mrb[0].mxu0
  %v4757 = vadd.f32 %v679, %v4756
  %4758 = vmatprep.mubr.bf16.mxu0 %v1129
  %4759 = vmatmul.mubr.bf16.gmra.mrb[0].mxu0 %v1128
  %v4760 = vpop.f32.mrb[0].mxu0
  %v4761 = vadd.f32 %v675, %v4760
  %v4762 = vpop.f32.mrb[0].mxu0
  %v4763 = vadd.f32 %v679, %v4762
  %v4764 = vpop.f32.mrb[0].mxu0
  %v4765 = vadd.f32 %v675, %v4764
  %v4766 = vpop.f32.mrb[0].mxu0
  %v4767 = vadd.f32 %v679, %v4766
  %4768 = vmatprep.mubr.bf16.mxu0 %v1137
  %4769 = vmatmul.mubr.bf16.gmra.mrb[0].mxu0 %v1136
  %v4770 = vpop.f32.mrb[0].mxu0
  %v4771 = vadd.f32 %v675, %v4770
  %v4772 = vpop.f32.mrb[0].mxu0
  %v4773 = vadd.f32 %v679, %v4772
  %v4774 = vpop.f32.mrb[0].mxu0
  %v4775 = vadd.f32 %v675, %v4774
  %v4776 = vpop.f32.mrb[0].mxu0
  %v4777 = vadd.f32 %v679, %v4776
  %4778 = vmatprep.mubr.bf16.mxu0 %v1145
  %4779 = vmatmul.mubr.bf16.gmra.mrb[0].mxu0 %v1144
  %v4780 = vpop.f32.mrb[0].mxu0
  %v4781 = vadd.f32 %v675, %v4780
  %v4782 = vpop.f32.mrb[0].mxu0
  %v4783 = vadd.f32 %v679, %v4782
  %v4784 = vpop.f32.mrb[0].mxu0
  %v4785 = vadd.f32 %v675, %v4784
  %v4786 = vpop.f32.mrb[0].mxu0
  %v4787 = vadd.f32 %v679, %v4786
  %4788 = vmatprep.mubr.bf16.mxu0 %v1153
  %4789 = vmatmul.mubr.bf16.gmra.mrb[0].mxu0 %v1152
  %v4790 = vpop.f32.mrb[0].mxu0
  %v4791 = vadd.f32 %v675, %v4790
  %v4792 = vpop.f32.mrb[0].mxu0
  %v4793 = vadd.f32 %v679, %v4792
  %v4794 = vpop.f32.mrb[0].mxu0
  %v4795 = vadd.f32 %v675, %v4794
  %v4796 = vpop.f32.mrb[0].mxu0
  %v4797 = vadd.f32 %v679, %v4796
  %4798 = vmatprep.mubr.bf16.mxu0 %v1161
  %4799 = vmatmul.mubr.bf16.gmra.mrb[0].mxu0 %v1160
  %v4800 = vpop.f32.mrb[0].mxu0
  %v4801 = vadd.f32 %v675, %v4800
  %v4802 = vpop.f32.mrb[0].mxu0
  %v4803 = vadd.f32 %v679, %v4802
  %v4804 = vpop.f32.mrb[0].mxu0
  %v4805 = vadd.f32 %v675, %v4804
  %v4806 = vpop.f32.mrb[0].mxu0
  %v4807 = vadd.f32 %v679, %v4806
  %4808 = vmatprep.mubr.bf16.mxu0 %v1169
  %4809 = vmatmul.mubr.bf16.gmra.mrb[0].mxu0 %v1168
  %v4810 = vpop.f32.mrb[0].mxu0
  %v4811 = vadd.f32 %v675, %v4810
  %v4812 = vpop.f32.mrb[0].mxu0
  %v4813 = vadd.f32 %v679, %v4812
  %v4814 = vpop.f32.mrb[0].mxu0
  %v4815 = vadd.f32 %v675, %v4814
  %v4816 = vpop.f32.mrb[0].mxu0
  %v4817 = vadd.f32 %v679, %v4816
  %4818 = vmatprep.mubr.bf16.mxu0 %v1177
  %4819 = vmatmul.mubr.bf16.gmra.mrb[0].mxu0 %v1176
  %v4820 = vpop.f32.mrb[0].mxu0
  %v4821 = vadd.f32 %v675, %v4820
  %v4822 = vpop.f32.mrb[0].mxu0
  %v4823 = vadd.f32 %v679, %v4822
  %v4824 = vpop.f32.mrb[0].mxu0
  %v4825 = vadd.f32 %v675, %v4824
  %v4826 = vpop.f32.mrb[0].mxu0
  %v4827 = vadd.f32 %v679, %v4826
  %4828 = vmatprep.mubr.bf16.mxu0 %v1185
  %4829 = vmatmul.mubr.bf16.gmra.mrb[0].mxu0 %v1184
  %v4830 = vpop.f32.mrb[0].mxu0
  %v4831 = vadd.f32 %v675, %v4830
  %v4832 = vpop.f32.mrb[0].mxu0
  %v4833 = vadd.f32 %v679, %v4832
  %v4834 = vpop.f32.mrb[0].mxu0
  %v4835 = vadd.f32 %v675, %v4834
  %v4836 = vpop.f32.mrb[0].mxu0
  %v4837 = vadd.f32 %v679, %v4836
  %4838 = vmatprep.mubr.bf16.mxu0 %v1193
  %4839 = vmatmul.mubr.bf16.gmra.mrb[0].mxu0 %v1192
  %v4840 = vpop.f32.mrb[0].mxu0
  %v4841 = vadd.f32 %v675, %v4840
  %v4842 = vpop.f32.mrb[0].mxu0
  %v4843 = vadd.f32 %v679, %v4842
  %v4844 = vpop.f32.mrb[0].mxu0
  %v4845 = vadd.f32 %v675, %v4844
  %v4846 = vpop.f32.mrb[0].mxu0
  %v4847 = vadd.f32 %v679, %v4846
  %4848 = vmatprep.mubr.bf16.mxu0 %v1201
  %4849 = vmatmul.mubr.bf16.gmra.mrb[0].mxu0 %v1200
  %v4850 = vpop.f32.mrb[0].mxu0
  %v4851 = vadd.f32 %v675, %v4850
  %v4852 = vpop.f32.mrb[0].mxu0
  %v4853 = vadd.f32 %v679, %v4852
  %v4854 = vpop.f32.mrb[0].mxu0
  %v4855 = vadd.f32 %v675, %v4854
  %v4856 = vpop.f32.mrb[0].mxu0
  %v4857 = vadd.f32 %v679, %v4856
  %4858 = vmatprep.mubr.bf16.mxu0 %v1209
  %4859 = vmatmul.mubr.bf16.gmra.mrb[0].mxu0 %v1208
  %v4860 = vpop.f32.mrb[0].mxu0
  %v4861 = vadd.f32 %v675, %v4860
  %v4862 = vpop.f32.mrb[0].mxu0
  %v4863 = vadd.f32 %v679, %v4862
  %v4864 = vpop.f32.mrb[0].mxu0
  %v4865 = vadd.f32 %v675, %v4864
  %v4866 = vpop.f32.mrb[0].mxu0
  %v4867 = vadd.f32 %v679, %v4866
  %4868 = vdwg.mxu0
  %4869 = vmatprep.subr.bf16.mxu0 %v3011
  %4870 = vmatpush1.bf16.msra.mxu0 %v3010
  %4871 = vmatprep.subr.bf16.mxu0 %v3019
  %4872 = vmatpush1.bf16.msra.mxu0 %v3018
  %4873 = vmatprep.subr.bf16.mxu0 %v3027
  %4874 = vmatpush1.bf16.msra.mxu0 %v3026
  %4875 = vmatprep.subr.bf16.mxu0 %v3035
  %4876 = vmatpush1.bf16.msra.mxu0 %v3034
  %4877 = vmatprep.subr.bf16.mxu0 %v3043
  %4878 = vmatpush1.bf16.msra.mxu0 %v3042
  %4879 = vmatprep.subr.bf16.mxu0 %v3051
  %4880 = vmatpush1.bf16.msra.mxu0 %v3050
  %4881 = vmatprep.subr.bf16.mxu0 %v3059
  %4882 = vmatpush1.bf16.msra.mxu0 %v3058
  %4883 = vmatprep.subr.bf16.mxu0 %v3067
  %4884 = vmatpush1.bf16.msra.mxu0 %v3066
  %4885 = vmatprep.subr.bf16.mxu0 %v3075
  %4886 = vmatpush1.bf16.msra.mxu0 %v3074
  %4887 = vmatprep.subr.bf16.mxu0 %v3083
  %4888 = vmatpush1.bf16.msra.mxu0 %v3082
  %4889 = vmatprep.subr.bf16.mxu0 %v3091
  %4890 = vmatpush1.bf16.msra.mxu0 %v3090
  %4891 = vmatprep.subr.bf16.mxu0 %v3099
  %4892 = vmatpush1.bf16.msra.mxu0 %v3098
  %4893 = vmatprep.subr.bf16.mxu0 %v3107
  %4894 = vmatpush1.bf16.msra.mxu0 %v3106
  %4895 = vmatprep.subr.bf16.mxu0 %v3115
  %4896 = vmatpush1.bf16.msra.mxu0 %v3114
  %4897 = vmatprep.subr.bf16.mxu0 %v3123
  %4898 = vmatpush1.bf16.msra.mxu0 %v3122
  %4899 = vmatprep.subr.bf16.mxu0 %v3131
  %4900 = vmatpush1.bf16.msra.mxu0 %v3130
  %4901 = vmatprep.mubr.bf16.mxu0 %v1091
  %4902 = vmatmul.mubr.bf16.gmra.mrb[0].mxu0 %v1090
  %v4903 = vpop.f32.mrb[0].mxu0
  %v4904 = vadd.f32 %v4711, %v4903
  %v4905 = vpop.f32.mrb[0].mxu0
  %v4906 = vadd.f32 %v4713, %v4905
  %v4907 = vpop.f32.mrb[0].mxu0
  %v4908 = vadd.f32 %v4715, %v4907
  %v4909 = vpop.f32.mrb[0].mxu0
  %v4910 = vadd.f32 %v4717, %v4909
  %4911 = vmatprep.mubr.bf16.mxu0 %v1099
  %4912 = vmatmul.mubr.bf16.gmra.mrb[0].mxu0 %v1098
  %v4913 = vpop.f32.mrb[0].mxu0
  %v4914 = vadd.f32 %v4721, %v4913
  %v4915 = vpop.f32.mrb[0].mxu0
  %v4916 = vadd.f32 %v4723, %v4915
  %v4917 = vpop.f32.mrb[0].mxu0
  %v4918 = vadd.f32 %v4725, %v4917
  %v4919 = vpop.f32.mrb[0].mxu0
  %v4920 = vadd.f32 %v4727, %v4919
  %4921 = vmatprep.mubr.bf16.mxu0 %v1107
  %4922 = vmatmul.mubr.bf16.gmra.mrb[0].mxu0 %v1106
  %v4923 = vpop.f32.mrb[0].mxu0
  %v4924 = vadd.f32 %v4731, %v4923
  %v4925 = vpop.f32.mrb[0].mxu0
  %v4926 = vadd.f32 %v4733, %v4925
  %v4927 = vpop.f32.mrb[0].mxu0
  %v4928 = vadd.f32 %v4735, %v4927
  %v4929 = vpop.f32.mrb[0].mxu0
  %v4930 = vadd.f32 %v4737, %v4929
  %4931 = vmatprep.mubr.bf16.mxu0 %v1115
  %4932 = vmatmul.mubr.bf16.gmra.mrb[0].mxu0 %v1114
  %v4933 = vpop.f32.mrb[0].mxu0
  %v4934 = vadd.f32 %v4741, %v4933
  %v4935 = vpop.f32.mrb[0].mxu0
  %v4936 = vadd.f32 %v4743, %v4935
  %v4937 = vpop.f32.mrb[0].mxu0
  %v4938 = vadd.f32 %v4745, %v4937
  %v4939 = vpop.f32.mrb[0].mxu0
  %v4940 = vadd.f32 %v4747, %v4939
  %4941 = vmatprep.mubr.bf16.mxu0 %v1123
  %4942 = vmatmul.mubr.bf16.gmra.mrb[0].mxu0 %v1122
  %v4943 = vpop.f32.mrb[0].mxu0
  %v4944 = vadd.f32 %v4751, %v4943
  %v4945 = vpop.f32.mrb[0].mxu0
  %v4946 = vadd.f32 %v4753, %v4945
  %v4947 = vpop.f32.mrb[0].mxu0
  %v4948 = vadd.f32 %v4755, %v4947
  %v4949 = vpop.f32.mrb[0].mxu0
  %v4950 = vadd.f32 %v4757, %v4949
  %4951 = vmatprep.mubr.bf16.mxu0 %v1131
  %4952 = vmatmul.mubr.bf16.gmra.mrb[0].mxu0 %v1130
  %v4953 = vpop.f32.mrb[0].mxu0
  %v4954 = vadd.f32 %v4761, %v4953
  %v4955 = vpop.f32.mrb[0].mxu0
  %v4956 = vadd.f32 %v4763, %v4955
  %v4957 = vpop.f32.mrb[0].mxu0
  %v4958 = vadd.f32 %v4765, %v4957
  %v4959 = vpop.f32.mrb[0].mxu0
  %v4960 = vadd.f32 %v4767, %v4959
  %4961 = vmatprep.mubr.bf16.mxu0 %v1139
  %4962 = vmatmul.mubr.bf16.gmra.mrb[0].mxu0 %v1138
  %v4963 = vpop.f32.mrb[0].mxu0
  %v4964 = vadd.f32 %v4771, %v4963
  %v4965 = vpop.f32.mrb[0].mxu0
  %v4966 = vadd.f32 %v4773, %v4965
  %v4967 = vpop.f32.mrb[0].mxu0
  %v4968 = vadd.f32 %v4775, %v4967
  %v4969 = vpop.f32.mrb[0].mxu0
  %v4970 = vadd.f32 %v4777, %v4969
  %4971 = vmatprep.mubr.bf16.mxu0 %v1147
  %4972 = vmatmul.mubr.bf16.gmra.mrb[0].mxu0 %v1146
  %v4973 = vpop.f32.mrb[0].mxu0
  %v4974 = vadd.f32 %v4781, %v4973
  %v4975 = vpop.f32.mrb[0].mxu0
  %v4976 = vadd.f32 %v4783, %v4975
  %v4977 = vpop.f32.mrb[0].mxu0
  %v4978 = vadd.f32 %v4785, %v4977
  %v4979 = vpop.f32.mrb[0].mxu0
  %v4980 = vadd.f32 %v4787, %v4979
  %4981 = vmatprep.mubr.bf16.mxu0 %v1155
  %4982 = vmatmul.mubr.bf16.gmra.mrb[0].mxu0 %v1154
  %v4983 = vpop.f32.mrb[0].mxu0
  %v4984 = vadd.f32 %v4791, %v4983
  %v4985 = vpop.f32.mrb[0].mxu0
  %v4986 = vadd.f32 %v4793, %v4985
  %v4987 = vpop.f32.mrb[0].mxu0
  %v4988 = vadd.f32 %v4795, %v4987
  %v4989 = vpop.f32.mrb[0].mxu0
  %v4990 = vadd.f32 %v4797, %v4989
  %4991 = vmatprep.mubr.bf16.mxu0 %v1163
  %4992 = vmatmul.mubr.bf16.gmra.mrb[0].mxu0 %v1162
  %v4993 = vpop.f32.mrb[0].mxu0
  %v4994 = vadd.f32 %v4801, %v4993
  %v4995 = vpop.f32.mrb[0].mxu0
  %v4996 = vadd.f32 %v4803, %v4995
  %v4997 = vpop.f32.mrb[0].mxu0
  %v4998 = vadd.f32 %v4805, %v4997
  %v4999 = vpop.f32.mrb[0].mxu0
  %v5000 = vadd.f32 %v4807, %v4999
  %5001 = vmatprep.mubr.bf16.mxu0 %v1171
  %5002 = vmatmul.mubr.bf16.gmra.mrb[0].mxu0 %v1170
  %v5003 = vpop.f32.mrb[0].mxu0
  %v5004 = vadd.f32 %v4811, %v5003
  %v5005 = vpop.f32.mrb[0].mxu0
  %v5006 = vadd.f32 %v4813, %v5005
  %v5007 = vpop.f32.mrb[0].mxu0
  %v5008 = vadd.f32 %v4815, %v5007
  %v5009 = vpop.f32.mrb[0].mxu0
  %v5010 = vadd.f32 %v4817, %v5009
  %5011 = vmatprep.mubr.bf16.mxu0 %v1179
  %5012 = vmatmul.mubr.bf16.gmra.mrb[0].mxu0 %v1178
  %v5013 = vpop.f32.mrb[0].mxu0
  %v5014 = vadd.f32 %v4821, %v5013
  %v5015 = vpop.f32.mrb[0].mxu0
  %v5016 = vadd.f32 %v4823, %v5015
  %v5017 = vpop.f32.mrb[0].mxu0
  %v5018 = vadd.f32 %v4825, %v5017
  %v5019 = vpop.f32.mrb[0].mxu0
  %v5020 = vadd.f32 %v4827, %v5019
  %5021 = vmatprep.mubr.bf16.mxu0 %v1187
  %5022 = vmatmul.mubr.bf16.gmra.mrb[0].mxu0 %v1186
  %v5023 = vpop.f32.mrb[0].mxu0
  %v5024 = vadd.f32 %v4831, %v5023
  %v5025 = vpop.f32.mrb[0].mxu0
  %v5026 = vadd.f32 %v4833, %v5025
  %v5027 = vpop.f32.mrb[0].mxu0
  %v5028 = vadd.f32 %v4835, %v5027
  %v5029 = vpop.f32.mrb[0].mxu0
  %v5030 = vadd.f32 %v4837, %v5029
  %5031 = vmatprep.mubr.bf16.mxu0 %v1195
  %5032 = vmatmul.mubr.bf16.gmra.mrb[0].mxu0 %v1194
  %v5033 = vpop.f32.mrb[0].mxu0
  %v5034 = vadd.f32 %v4841, %v5033
  %v5035 = vpop.f32.mrb[0].mxu0
  %v5036 = vadd.f32 %v4843, %v5035
  %v5037 = vpop.f32.mrb[0].mxu0
  %v5038 = vadd.f32 %v4845, %v5037
  %v5039 = vpop.f32.mrb[0].mxu0
  %v5040 = vadd.f32 %v4847, %v5039
  %5041 = vmatprep.mubr.bf16.mxu0 %v1203
  %5042 = vmatmul.mubr.bf16.gmra.mrb[0].mxu0 %v1202
  %v5043 = vpop.f32.mrb[0].mxu0
  %v5044 = vadd.f32 %v4851, %v5043
  %v5045 = vpop.f32.mrb[0].mxu0
  %v5046 = vadd.f32 %v4853, %v5045
  %v5047 = vpop.f32.mrb[0].mxu0
  %v5048 = vadd.f32 %v4855, %v5047
  %v5049 = vpop.f32.mrb[0].mxu0
  %v5050 = vadd.f32 %v4857, %v5049
  %5051 = vmatprep.mubr.bf16.mxu0 %v1211
  %5052 = vmatmul.mubr.bf16.gmra.mrb[0].mxu0 %v1210
  %v5053 = vpop.f32.mrb[0].mxu0
  %v5054 = vadd.f32 %v4861, %v5053
  %v5055 = vpop.f32.mrb[0].mxu0
  %v5056 = vadd.f32 %v4863, %v5055
  %v5057 = vpop.f32.mrb[0].mxu0
  %v5058 = vadd.f32 %v4865, %v5057
  %v5059 = vpop.f32.mrb[0].mxu0
  %v5060 = vadd.f32 %v4867, %v5059
  %5061 = vdwg.mxu0
  %5062 = vmatprep.subr.bf16.mxu0 %v3139
  %5063 = vmatpush1.bf16.msra.mxu0 %v3138
  %5064 = vmatprep.subr.bf16.mxu0 %v3147
  %5065 = vmatpush1.bf16.msra.mxu0 %v3146
  %5066 = vmatprep.subr.bf16.mxu0 %v3155
  %5067 = vmatpush1.bf16.msra.mxu0 %v3154
  %5068 = vmatprep.subr.bf16.mxu0 %v3163
  %5069 = vmatpush1.bf16.msra.mxu0 %v3162
  %5070 = vmatprep.subr.bf16.mxu0 %v3171
  %5071 = vmatpush1.bf16.msra.mxu0 %v3170
  %5072 = vmatprep.subr.bf16.mxu0 %v3179
  %5073 = vmatpush1.bf16.msra.mxu0 %v3178
  %5074 = vmatprep.subr.bf16.mxu0 %v3187
  %5075 = vmatpush1.bf16.msra.mxu0 %v3186
  %5076 = vmatprep.subr.bf16.mxu0 %v3195
  %5077 = vmatpush1.bf16.msra.mxu0 %v3194
  %5078 = vmatprep.subr.bf16.mxu0 %v3203
  %5079 = vmatpush1.bf16.msra.mxu0 %v3202
  %5080 = vmatprep.subr.bf16.mxu0 %v3211
  %5081 = vmatpush1.bf16.msra.mxu0 %v3210
  %5082 = vmatprep.subr.bf16.mxu0 %v3219
  %5083 = vmatpush1.bf16.msra.mxu0 %v3218
  %5084 = vmatprep.subr.bf16.mxu0 %v3227
  %5085 = vmatpush1.bf16.msra.mxu0 %v3226
  %5086 = vmatprep.subr.bf16.mxu0 %v3235
  %5087 = vmatpush1.bf16.msra.mxu0 %v3234
  %5088 = vmatprep.subr.bf16.mxu0 %v3243
  %5089 = vmatpush1.bf16.msra.mxu0 %v3242
  %5090 = vmatprep.subr.bf16.mxu0 %v3251
  %5091 = vmatpush1.bf16.msra.mxu0 %v3250
  %5092 = vmatprep.subr.bf16.mxu0 %v3259
  %5093 = vmatpush1.bf16.msra.mxu0 %v3258
  %5094 = vmatprep.mubr.bf16.mxu0 %v1093
  %5095 = vmatmul.mubr.bf16.gmra.mrb[0].mxu0 %v1092
  %v5096 = vpop.f32.mrb[0].mxu0
  %v5097 = vadd.f32 %v4904, %v5096
  %v5098 = vpop.f32.mrb[0].mxu0
  %v5099 = vadd.f32 %v4906, %v5098
  %v5100 = vpop.f32.mrb[0].mxu0
  %v5101 = vadd.f32 %v4908, %v5100
  %v5102 = vpop.f32.mrb[0].mxu0
  %v5103 = vadd.f32 %v4910, %v5102
  %5104 = vmatprep.mubr.bf16.mxu0 %v1101
  %5105 = vmatmul.mubr.bf16.gmra.mrb[0].mxu0 %v1100
  %v5106 = vpop.f32.mrb[0].mxu0
  %v5107 = vadd.f32 %v4914, %v5106
  %v5108 = vpop.f32.mrb[0].mxu0
  %v5109 = vadd.f32 %v4916, %v5108
  %v5110 = vpop.f32.mrb[0].mxu0
  %v5111 = vadd.f32 %v4918, %v5110
  %v5112 = vpop.f32.mrb[0].mxu0
  %v5113 = vadd.f32 %v4920, %v5112
  %5114 = vmatprep.mubr.bf16.mxu0 %v1109
  %5115 = vmatmul.mubr.bf16.gmra.mrb[0].mxu0 %v1108
  %v5116 = vpop.f32.mrb[0].mxu0
  %v5117 = vadd.f32 %v4924, %v5116
  %v5118 = vpop.f32.mrb[0].mxu0
  %v5119 = vadd.f32 %v4926, %v5118
  %v5120 = vpop.f32.mrb[0].mxu0
  %v5121 = vadd.f32 %v4928, %v5120
  %v5122 = vpop.f32.mrb[0].mxu0
  %v5123 = vadd.f32 %v4930, %v5122
  %5124 = vmatprep.mubr.bf16.mxu0 %v1117
  %5125 = vmatmul.mubr.bf16.gmra.mrb[0].mxu0 %v1116
  %v5126 = vpop.f32.mrb[0].mxu0
  %v5127 = vadd.f32 %v4934, %v5126
  %v5128 = vpop.f32.mrb[0].mxu0
  %v5129 = vadd.f32 %v4936, %v5128
  %v5130 = vpop.f32.mrb[0].mxu0
  %v5131 = vadd.f32 %v4938, %v5130
  %v5132 = vpop.f32.mrb[0].mxu0
  %v5133 = vadd.f32 %v4940, %v5132
  %5134 = vmatprep.mubr.bf16.mxu0 %v1125
  %5135 = vmatmul.mubr.bf16.gmra.mrb[0].mxu0 %v1124
  %v5136 = vpop.f32.mrb[0].mxu0
  %v5137 = vadd.f32 %v4944, %v5136
  %v5138 = vpop.f32.mrb[0].mxu0
  %v5139 = vadd.f32 %v4946, %v5138
  %v5140 = vpop.f32.mrb[0].mxu0
  %v5141 = vadd.f32 %v4948, %v5140
  %v5142 = vpop.f32.mrb[0].mxu0
  %v5143 = vadd.f32 %v4950, %v5142
  %5144 = vmatprep.mubr.bf16.mxu0 %v1133
  %5145 = vmatmul.mubr.bf16.gmra.mrb[0].mxu0 %v1132
  %v5146 = vpop.f32.mrb[0].mxu0
  %v5147 = vadd.f32 %v4954, %v5146
  %v5148 = vpop.f32.mrb[0].mxu0
  %v5149 = vadd.f32 %v4956, %v5148
  %v5150 = vpop.f32.mrb[0].mxu0
  %v5151 = vadd.f32 %v4958, %v5150
  %v5152 = vpop.f32.mrb[0].mxu0
  %v5153 = vadd.f32 %v4960, %v5152
  %5154 = vmatprep.mubr.bf16.mxu0 %v1141
  %5155 = vmatmul.mubr.bf16.gmra.mrb[0].mxu0 %v1140
  %v5156 = vpop.f32.mrb[0].mxu0
  %v5157 = vadd.f32 %v4964, %v5156
  %v5158 = vpop.f32.mrb[0].mxu0
  %v5159 = vadd.f32 %v4966, %v5158
  %v5160 = vpop.f32.mrb[0].mxu0
  %v5161 = vadd.f32 %v4968, %v5160
  %v5162 = vpop.f32.mrb[0].mxu0
  %v5163 = vadd.f32 %v4970, %v5162
  %5164 = vmatprep.mubr.bf16.mxu0 %v1149
  %5165 = vmatmul.mubr.bf16.gmra.mrb[0].mxu0 %v1148
  %v5166 = vpop.f32.mrb[0].mxu0
  %v5167 = vadd.f32 %v4974, %v5166
  %v5168 = vpop.f32.mrb[0].mxu0
  %v5169 = vadd.f32 %v4976, %v5168
  %v5170 = vpop.f32.mrb[0].mxu0
  %v5171 = vadd.f32 %v4978, %v5170
  %v5172 = vpop.f32.mrb[0].mxu0
  %v5173 = vadd.f32 %v4980, %v5172
  %5174 = vmatprep.mubr.bf16.mxu0 %v1157
  %5175 = vmatmul.mubr.bf16.gmra.mrb[0].mxu0 %v1156
  %v5176 = vpop.f32.mrb[0].mxu0
  %v5177 = vadd.f32 %v4984, %v5176
  %v5178 = vpop.f32.mrb[0].mxu0
  %v5179 = vadd.f32 %v4986, %v5178
  %v5180 = vpop.f32.mrb[0].mxu0
  %v5181 = vadd.f32 %v4988, %v5180
  %v5182 = vpop.f32.mrb[0].mxu0
  %v5183 = vadd.f32 %v4990, %v5182
  %5184 = vmatprep.mubr.bf16.mxu0 %v1165
  %5185 = vmatmul.mubr.bf16.gmra.mrb[0].mxu0 %v1164
  %v5186 = vpop.f32.mrb[0].mxu0
  %v5187 = vadd.f32 %v4994, %v5186
  %v5188 = vpop.f32.mrb[0].mxu0
  %v5189 = vadd.f32 %v4996, %v5188
  %v5190 = vpop.f32.mrb[0].mxu0
  %v5191 = vadd.f32 %v4998, %v5190
  %v5192 = vpop.f32.mrb[0].mxu0
  %v5193 = vadd.f32 %v5000, %v5192
  %5194 = vmatprep.mubr.bf16.mxu0 %v1173
  %5195 = vmatmul.mubr.bf16.gmra.mrb[0].mxu0 %v1172
  %v5196 = vpop.f32.mrb[0].mxu0
  %v5197 = vadd.f32 %v5004, %v5196
  %v5198 = vpop.f32.mrb[0].mxu0
  %v5199 = vadd.f32 %v5006, %v5198
  %v5200 = vpop.f32.mrb[0].mxu0
  %v5201 = vadd.f32 %v5008, %v5200
  %v5202 = vpop.f32.mrb[0].mxu0
  %v5203 = vadd.f32 %v5010, %v5202
  %5204 = vmatprep.mubr.bf16.mxu0 %v1181
  %5205 = vmatmul.mubr.bf16.gmra.mrb[0].mxu0 %v1180
  %v5206 = vpop.f32.mrb[0].mxu0
  %v5207 = vadd.f32 %v5014, %v5206
  %v5208 = vpop.f32.mrb[0].mxu0
  %v5209 = vadd.f32 %v5016, %v5208
  %v5210 = vpop.f32.mrb[0].mxu0
  %v5211 = vadd.f32 %v5018, %v5210
  %v5212 = vpop.f32.mrb[0].mxu0
  %v5213 = vadd.f32 %v5020, %v5212
  %5214 = vmatprep.mubr.bf16.mxu0 %v1189
  %5215 = vmatmul.mubr.bf16.gmra.mrb[0].mxu0 %v1188
  %v5216 = vpop.f32.mrb[0].mxu0
  %v5217 = vadd.f32 %v5024, %v5216
  %v5218 = vpop.f32.mrb[0].mxu0
  %v5219 = vadd.f32 %v5026, %v5218
  %v5220 = vpop.f32.mrb[0].mxu0
  %v5221 = vadd.f32 %v5028, %v5220
  %v5222 = vpop.f32.mrb[0].mxu0
  %v5223 = vadd.f32 %v5030, %v5222
  %5224 = vmatprep.mubr.bf16.mxu0 %v1197
  %5225 = vmatmul.mubr.bf16.gmra.mrb[0].mxu0 %v1196
  %v5226 = vpop.f32.mrb[0].mxu0
  %v5227 = vadd.f32 %v5034, %v5226
  %v5228 = vpop.f32.mrb[0].mxu0
  %v5229 = vadd.f32 %v5036, %v5228
  %v5230 = vpop.f32.mrb[0].mxu0
  %v5231 = vadd.f32 %v5038, %v5230
  %v5232 = vpop.f32.mrb[0].mxu0
  %v5233 = vadd.f32 %v5040, %v5232
  %5234 = vmatprep.mubr.bf16.mxu0 %v1205
  %5235 = vmatmul.mubr.bf16.gmra.mrb[0].mxu0 %v1204
  %v5236 = vpop.f32.mrb[0].mxu0
  %v5237 = vadd.f32 %v5044, %v5236
  %v5238 = vpop.f32.mrb[0].mxu0
  %v5239 = vadd.f32 %v5046, %v5238
  %v5240 = vpop.f32.mrb[0].mxu0
  %v5241 = vadd.f32 %v5048, %v5240
  %v5242 = vpop.f32.mrb[0].mxu0
  %v5243 = vadd.f32 %v5050, %v5242
  %5244 = vmatprep.mubr.bf16.mxu0 %v1213
  %5245 = vmatmul.mubr.bf16.gmra.mrb[0].mxu0 %v1212
  %v5246 = vpop.f32.mrb[0].mxu0
  %v5247 = vadd.f32 %v5054, %v5246
  %v5248 = vpop.f32.mrb[0].mxu0
  %v5249 = vadd.f32 %v5056, %v5248
  %v5250 = vpop.f32.mrb[0].mxu0
  %v5251 = vadd.f32 %v5058, %v5250
  %v5252 = vpop.f32.mrb[0].mxu0
  %v5253 = vadd.f32 %v5060, %v5252
  %5254 = vdwg.mxu0
  %5255 = vmatprep.subr.bf16.mxu0 %v3267
  %5256 = vmatpush1.bf16.msra.mxu0 %v3266
  %5257 = vmatprep.subr.bf16.mxu0 %v3275
  %5258 = vmatpush1.bf16.msra.mxu0 %v3274
  %5259 = vmatprep.subr.bf16.mxu0 %v3283
  %5260 = vmatpush1.bf16.msra.mxu0 %v3282
  %5261 = vmatprep.subr.bf16.mxu0 %v3291
  %5262 = vmatpush1.bf16.msra.mxu0 %v3290
  %5263 = vmatprep.subr.bf16.mxu0 %v3299
  %5264 = vmatpush1.bf16.msra.mxu0 %v3298
  %5265 = vmatprep.subr.bf16.mxu0 %v3307
  %5266 = vmatpush1.bf16.msra.mxu0 %v3306
  %5267 = vmatprep.subr.bf16.mxu0 %v3315
  %5268 = vmatpush1.bf16.msra.mxu0 %v3314
  %5269 = vmatprep.subr.bf16.mxu0 %v3323
  %5270 = vmatpush1.bf16.msra.mxu0 %v3322
  %5271 = vmatprep.subr.bf16.mxu0 %v3331
  %5272 = vmatpush1.bf16.msra.mxu0 %v3330
  %5273 = vmatprep.subr.bf16.mxu0 %v3339
  %5274 = vmatpush1.bf16.msra.mxu0 %v3338
  %5275 = vmatprep.subr.bf16.mxu0 %v3347
  %5276 = vmatpush1.bf16.msra.mxu0 %v3346
  %5277 = vmatprep.subr.bf16.mxu0 %v3355
  %5278 = vmatpush1.bf16.msra.mxu0 %v3354
  %5279 = vmatprep.subr.bf16.mxu0 %v3363
  %5280 = vmatpush1.bf16.msra.mxu0 %v3362
  %5281 = vmatprep.subr.bf16.mxu0 %v3371
  %5282 = vmatpush1.bf16.msra.mxu0 %v3370
  %5283 = vmatprep.subr.bf16.mxu0 %v3379
  %5284 = vmatpush1.bf16.msra.mxu0 %v3378
  %5285 = vmatprep.subr.bf16.mxu0 %v3387
  %5286 = vmatpush1.bf16.msra.mxu0 %v3386
  %5287 = vmatprep.mubr.bf16.mxu0 %v1095
  %5288 = vmatmul.mubr.bf16.gmra.mrb[0].mxu0 %v1094
  %v5289 = vpop.f32.mrb[0].mxu0
  %v5290 = vadd.f32 %v5097, %v5289
  %v5291 = vpop.f32.mrb[0].mxu0
  %v5292 = vadd.f32 %v5099, %v5291
  %v5293 = vpop.f32.mrb[0].mxu0
  %v5294 = vadd.f32 %v5101, %v5293
  %v5295 = vpop.f32.mrb[0].mxu0
  %v5296 = vadd.f32 %v5103, %v5295
  %5297 = vmatprep.mubr.bf16.mxu0 %v1103
  %5298 = vmatmul.mubr.bf16.gmra.mrb[0].mxu0 %v1102
  %v5299 = vpop.f32.mrb[0].mxu0
  %v5300 = vadd.f32 %v5107, %v5299
  %v5301 = vpop.f32.mrb[0].mxu0
  %v5302 = vadd.f32 %v5109, %v5301
  %v5303 = vpop.f32.mrb[0].mxu0
  %v5304 = vadd.f32 %v5111, %v5303
  %v5305 = vpop.f32.mrb[0].mxu0
  %v5306 = vadd.f32 %v5113, %v5305
  %5307 = vmatprep.mubr.bf16.mxu0 %v1111
  %5308 = vmatmul.mubr.bf16.gmra.mrb[0].mxu0 %v1110
  %v5309 = vpop.f32.mrb[0].mxu0
  %v5310 = vadd.f32 %v5117, %v5309
  %v5311 = vpop.f32.mrb[0].mxu0
  %v5312 = vadd.f32 %v5119, %v5311
  %v5313 = vpop.f32.mrb[0].mxu0
  %v5314 = vadd.f32 %v5121, %v5313
  %v5315 = vpop.f32.mrb[0].mxu0
  %v5316 = vadd.f32 %v5123, %v5315
  %5317 = vmatprep.mubr.bf16.mxu0 %v1119
  %5318 = vmatmul.mubr.bf16.gmra.mrb[0].mxu0 %v1118
  %v5319 = vpop.f32.mrb[0].mxu0
  %v5320 = vadd.f32 %v5127, %v5319
  %v5321 = vpop.f32.mrb[0].mxu0
  %v5322 = vadd.f32 %v5129, %v5321
  %v5323 = vpop.f32.mrb[0].mxu0
  %v5324 = vadd.f32 %v5131, %v5323
  %v5325 = vpop.f32.mrb[0].mxu0
  %v5326 = vadd.f32 %v5133, %v5325
  %5327 = vmatprep.mubr.bf16.mxu0 %v1127
  %5328 = vmatmul.mubr.bf16.gmra.mrb[0].mxu0 %v1126
  %v5329 = vpop.f32.mrb[0].mxu0
  %v5330 = vadd.f32 %v5137, %v5329
  %v5331 = vpop.f32.mrb[0].mxu0
  %v5332 = vadd.f32 %v5139, %v5331
  %v5333 = vpop.f32.mrb[0].mxu0
  %v5334 = vadd.f32 %v5141, %v5333
  %v5335 = vpop.f32.mrb[0].mxu0
  %v5336 = vadd.f32 %v5143, %v5335
  %5337 = vmatprep.mubr.bf16.mxu0 %v1135
  %5338 = vmatmul.mubr.bf16.gmra.mrb[0].mxu0 %v1134
  %v5339 = vpop.f32.mrb[0].mxu0
  %v5340 = vadd.f32 %v5147, %v5339
  %v5341 = vpop.f32.mrb[0].mxu0
  %v5342 = vadd.f32 %v5149, %v5341
  %v5343 = vpop.f32.mrb[0].mxu0
  %v5344 = vadd.f32 %v5151, %v5343
  %v5345 = vpop.f32.mrb[0].mxu0
  %v5346 = vadd.f32 %v5153, %v5345
  %5347 = vmatprep.mubr.bf16.mxu0 %v1143
  %5348 = vmatmul.mubr.bf16.gmra.mrb[0].mxu0 %v1142
  %v5349 = vpop.f32.mrb[0].mxu0
  %v5350 = vadd.f32 %v5157, %v5349
  %v5351 = vpop.f32.mrb[0].mxu0
  %v5352 = vadd.f32 %v5159, %v5351
  %v5353 = vpop.f32.mrb[0].mxu0
  %v5354 = vadd.f32 %v5161, %v5353
  %v5355 = vpop.f32.mrb[0].mxu0
  %v5356 = vadd.f32 %v5163, %v5355
  %5357 = vmatprep.mubr.bf16.mxu0 %v1151
  %5358 = vmatmul.mubr.bf16.gmra.mrb[0].mxu0 %v1150
  %v5359 = vpop.f32.mrb[0].mxu0
  %v5360 = vadd.f32 %v5167, %v5359
  %v5361 = vpop.f32.mrb[0].mxu0
  %v5362 = vadd.f32 %v5169, %v5361
  %v5363 = vpop.f32.mrb[0].mxu0
  %v5364 = vadd.f32 %v5171, %v5363
  %v5365 = vpop.f32.mrb[0].mxu0
  %v5366 = vadd.f32 %v5173, %v5365
  %5367 = vmatprep.mubr.bf16.mxu0 %v1159
  %5368 = vmatmul.mubr.bf16.gmra.mrb[0].mxu0 %v1158
  %v5369 = vpop.f32.mrb[0].mxu0
  %v5370 = vadd.f32 %v5177, %v5369
  %v5371 = vpop.f32.mrb[0].mxu0
  %v5372 = vadd.f32 %v5179, %v5371
  %v5373 = vpop.f32.mrb[0].mxu0
  %v5374 = vadd.f32 %v5181, %v5373
  %v5375 = vpop.f32.mrb[0].mxu0
  %v5376 = vadd.f32 %v5183, %v5375
  %5377 = vmatprep.mubr.bf16.mxu0 %v1167
  %5378 = vmatmul.mubr.bf16.gmra.mrb[0].mxu0 %v1166
  %v5379 = vpop.f32.mrb[0].mxu0
  %v5380 = vadd.f32 %v5187, %v5379
  %v5381 = vpop.f32.mrb[0].mxu0
  %v5382 = vadd.f32 %v5189, %v5381
  %v5383 = vpop.f32.mrb[0].mxu0
  %v5384 = vadd.f32 %v5191, %v5383
  %v5385 = vpop.f32.mrb[0].mxu0
  %v5386 = vadd.f32 %v5193, %v5385
  %5387 = vmatprep.mubr.bf16.mxu0 %v1175
  %5388 = vmatmul.mubr.bf16.gmra.mrb[0].mxu0 %v1174
  %v5389 = vpop.f32.mrb[0].mxu0
  %v5390 = vadd.f32 %v5197, %v5389
  %v5391 = vpop.f32.mrb[0].mxu0
  %v5392 = vadd.f32 %v5199, %v5391
  %v5393 = vpop.f32.mrb[0].mxu0
  %v5394 = vadd.f32 %v5201, %v5393
  %v5395 = vpop.f32.mrb[0].mxu0
  %v5396 = vadd.f32 %v5203, %v5395
  %5397 = vmatprep.mubr.bf16.mxu0 %v1183
  %5398 = vmatmul.mubr.bf16.gmra.mrb[0].mxu0 %v1182
  %v5399 = vpop.f32.mrb[0].mxu0
  %v5400 = vadd.f32 %v5207, %v5399
  %v5401 = vpop.f32.mrb[0].mxu0
  %v5402 = vadd.f32 %v5209, %v5401
  %v5403 = vpop.f32.mrb[0].mxu0
  %v5404 = vadd.f32 %v5211, %v5403
  %v5405 = vpop.f32.mrb[0].mxu0
  %v5406 = vadd.f32 %v5213, %v5405
  %5407 = vmatprep.mubr.bf16.mxu0 %v1191
  %5408 = vmatmul.mubr.bf16.gmra.mrb[0].mxu0 %v1190
  %v5409 = vpop.f32.mrb[0].mxu0
  %v5410 = vadd.f32 %v5217, %v5409
  %v5411 = vpop.f32.mrb[0].mxu0
  %v5412 = vadd.f32 %v5219, %v5411
  %v5413 = vpop.f32.mrb[0].mxu0
  %v5414 = vadd.f32 %v5221, %v5413
  %v5415 = vpop.f32.mrb[0].mxu0
  %v5416 = vadd.f32 %v5223, %v5415
  %5417 = vmatprep.mubr.bf16.mxu0 %v1199
  %5418 = vmatmul.mubr.bf16.gmra.mrb[0].mxu0 %v1198
  %v5419 = vpop.f32.mrb[0].mxu0
  %v5420 = vadd.f32 %v5227, %v5419
  %v5421 = vpop.f32.mrb[0].mxu0
  %v5422 = vadd.f32 %v5229, %v5421
  %v5423 = vpop.f32.mrb[0].mxu0
  %v5424 = vadd.f32 %v5231, %v5423
  %v5425 = vpop.f32.mrb[0].mxu0
  %v5426 = vadd.f32 %v5233, %v5425
  %5427 = vmatprep.mubr.bf16.mxu0 %v1207
  %5428 = vmatmul.mubr.bf16.gmra.mrb[0].mxu0 %v1206
  %v5429 = vpop.f32.mrb[0].mxu0
  %v5430 = vadd.f32 %v5237, %v5429
  %v5431 = vpop.f32.mrb[0].mxu0
  %v5432 = vadd.f32 %v5239, %v5431
  %v5433 = vpop.f32.mrb[0].mxu0
  %v5434 = vadd.f32 %v5241, %v5433
  %v5435 = vpop.f32.mrb[0].mxu0
  %v5436 = vadd.f32 %v5243, %v5435
  %5437 = vmatprep.mubr.bf16.mxu0 %v1215
  %5438 = vmatmul.mubr.bf16.gmra.mrb[0].mxu0 %v1214
  %v5439 = vpop.f32.mrb[0].mxu0
  %v5440 = vadd.f32 %v5247, %v5439
  %v5441 = vpop.f32.mrb[0].mxu0
  %v5442 = vadd.f32 %v5249, %v5441
  %v5443 = vpop.f32.mrb[0].mxu0
  %v5444 = vadd.f32 %v5251, %v5443
  %v5445 = vpop.f32.mrb[0].mxu0
  %v5446 = vadd.f32 %v5253, %v5445
  %5447 = vdwg.mxu0
  %5448 = vmatprep.subr.bf16.mxu0 %v2885
  %5449 = vmatpush1.bf16.msra.mxu0 %v2884
  %5450 = vmatprep.subr.bf16.mxu0 %v2893
  %5451 = vmatpush1.bf16.msra.mxu0 %v2892
  %5452 = vmatprep.subr.bf16.mxu0 %v2901
  %5453 = vmatpush1.bf16.msra.mxu0 %v2900
  %5454 = vmatprep.subr.bf16.mxu0 %v2909
  %5455 = vmatpush1.bf16.msra.mxu0 %v2908
  %5456 = vmatprep.subr.bf16.mxu0 %v2917
  %5457 = vmatpush1.bf16.msra.mxu0 %v2916
  %5458 = vmatprep.subr.bf16.mxu0 %v2925
  %5459 = vmatpush1.bf16.msra.mxu0 %v2924
  %5460 = vmatprep.subr.bf16.mxu0 %v2933
  %5461 = vmatpush1.bf16.msra.mxu0 %v2932
  %5462 = vmatprep.subr.bf16.mxu0 %v2941
  %5463 = vmatpush1.bf16.msra.mxu0 %v2940
  %5464 = vmatprep.subr.bf16.mxu0 %v2949
  %5465 = vmatpush1.bf16.msra.mxu0 %v2948
  %5466 = vmatprep.subr.bf16.mxu0 %v2957
  %5467 = vmatpush1.bf16.msra.mxu0 %v2956
  %5468 = vmatprep.subr.bf16.mxu0 %v2965
  %5469 = vmatpush1.bf16.msra.mxu0 %v2964
  %5470 = vmatprep.subr.bf16.mxu0 %v2973
  %5471 = vmatpush1.bf16.msra.mxu0 %v2972
  %5472 = vmatprep.subr.bf16.mxu0 %v2981
  %5473 = vmatpush1.bf16.msra.mxu0 %v2980
  %5474 = vmatprep.subr.bf16.mxu0 %v2989
  %5475 = vmatpush1.bf16.msra.mxu0 %v2988
  %5476 = vmatprep.subr.bf16.mxu0 %v2997
  %5477 = vmatpush1.bf16.msra.mxu0 %v2996
  %5478 = vmatprep.subr.bf16.mxu0 %v3005
  %5479 = vmatpush1.bf16.msra.mxu0 %v3004
  %5480 = vmatprep.mubr.bf16.mxu0 %v1089
  %5481 = vmatmul.mubr.bf16.gmra.mrb[0].mxu0 %v1088
  %v5482 = vpop.f32.mrb[0].mxu0
  %v5483 = vadd.f32 %v683, %v5482
  %v5484 = vpop.f32.mrb[0].mxu0
  %v5485 = vadd.f32 %v687, %v5484
  %v5486 = vpop.f32.mrb[0].mxu0
  %v5487 = vadd.f32 %v683, %v5486
  %v5488 = vpop.f32.mrb[0].mxu0
  %v5489 = vadd.f32 %v687, %v5488
  %5490 = vmatprep.mubr.bf16.mxu0 %v1097
  %5491 = vmatmul.mubr.bf16.gmra.mrb[0].mxu0 %v1096
  %v5492 = vpop.f32.mrb[0].mxu0
  %v5493 = vadd.f32 %v683, %v5492
  %v5494 = vpop.f32.mrb[0].mxu0
  %v5495 = vadd.f32 %v687, %v5494
  %v5496 = vpop.f32.mrb[0].mxu0
  %v5497 = vadd.f32 %v683, %v5496
  %v5498 = vpop.f32.mrb[0].mxu0
  %v5499 = vadd.f32 %v687, %v5498
  %5500 = vmatprep.mubr.bf16.mxu0 %v1105
  %5501 = vmatmul.mubr.bf16.gmra.mrb[0].mxu0 %v1104
  %v5502 = vpop.f32.mrb[0].mxu0
  %v5503 = vadd.f32 %v683, %v5502
  %v5504 = vpop.f32.mrb[0].mxu0
  %v5505 = vadd.f32 %v687, %v5504
  %v5506 = vpop.f32.mrb[0].mxu0
  %v5507 = vadd.f32 %v683, %v5506
  %v5508 = vpop.f32.mrb[0].mxu0
  %v5509 = vadd.f32 %v687, %v5508
  %5510 = vmatprep.mubr.bf16.mxu0 %v1113
  %5511 = vmatmul.mubr.bf16.gmra.mrb[0].mxu0 %v1112
  %v5512 = vpop.f32.mrb[0].mxu0
  %v5513 = vadd.f32 %v683, %v5512
  %v5514 = vpop.f32.mrb[0].mxu0
  %v5515 = vadd.f32 %v687, %v5514
  %v5516 = vpop.f32.mrb[0].mxu0
  %v5517 = vadd.f32 %v683, %v5516
  %v5518 = vpop.f32.mrb[0].mxu0
  %v5519 = vadd.f32 %v687, %v5518
  %5520 = vmatprep.mubr.bf16.mxu0 %v1121
  %5521 = vmatmul.mubr.bf16.gmra.mrb[0].mxu0 %v1120
  %v5522 = vpop.f32.mrb[0].mxu0
  %v5523 = vadd.f32 %v683, %v5522
  %v5524 = vpop.f32.mrb[0].mxu0
  %v5525 = vadd.f32 %v687, %v5524
  %v5526 = vpop.f32.mrb[0].mxu0
  %v5527 = vadd.f32 %v683, %v5526
  %v5528 = vpop.f32.mrb[0].mxu0
  %v5529 = vadd.f32 %v687, %v5528
  %5530 = vmatprep.mubr.bf16.mxu0 %v1129
  %5531 = vmatmul.mubr.bf16.gmra.mrb[0].mxu0 %v1128
  %v5532 = vpop.f32.mrb[0].mxu0
  %v5533 = vadd.f32 %v683, %v5532
  %v5534 = vpop.f32.mrb[0].mxu0
  %v5535 = vadd.f32 %v687, %v5534
  %v5536 = vpop.f32.mrb[0].mxu0
  %v5537 = vadd.f32 %v683, %v5536
  %v5538 = vpop.f32.mrb[0].mxu0
  %v5539 = vadd.f32 %v687, %v5538
  %5540 = vmatprep.mubr.bf16.mxu0 %v1137
  %5541 = vmatmul.mubr.bf16.gmra.mrb[0].mxu0 %v1136
  %v5542 = vpop.f32.mrb[0].mxu0
  %v5543 = vadd.f32 %v683, %v5542
  %v5544 = vpop.f32.mrb[0].mxu0
  %v5545 = vadd.f32 %v687, %v5544
  %v5546 = vpop.f32.mrb[0].mxu0
  %v5547 = vadd.f32 %v683, %v5546
  %v5548 = vpop.f32.mrb[0].mxu0
  %v5549 = vadd.f32 %v687, %v5548
  %5550 = vmatprep.mubr.bf16.mxu0 %v1145
  %5551 = vmatmul.mubr.bf16.gmra.mrb[0].mxu0 %v1144
  %v5552 = vpop.f32.mrb[0].mxu0
  %v5553 = vadd.f32 %v683, %v5552
  %v5554 = vpop.f32.mrb[0].mxu0
  %v5555 = vadd.f32 %v687, %v5554
  %v5556 = vpop.f32.mrb[0].mxu0
  %v5557 = vadd.f32 %v683, %v5556
  %v5558 = vpop.f32.mrb[0].mxu0
  %v5559 = vadd.f32 %v687, %v5558
  %5560 = vmatprep.mubr.bf16.mxu0 %v1153
  %5561 = vmatmul.mubr.bf16.gmra.mrb[0].mxu0 %v1152
  %v5562 = vpop.f32.mrb[0].mxu0
  %v5563 = vadd.f32 %v683, %v5562
  %v5564 = vpop.f32.mrb[0].mxu0
  %v5565 = vadd.f32 %v687, %v5564
  %v5566 = vpop.f32.mrb[0].mxu0
  %v5567 = vadd.f32 %v683, %v5566
  %v5568 = vpop.f32.mrb[0].mxu0
  %v5569 = vadd.f32 %v687, %v5568
  %5570 = vmatprep.mubr.bf16.mxu0 %v1161
  %5571 = vmatmul.mubr.bf16.gmra.mrb[0].mxu0 %v1160
  %v5572 = vpop.f32.mrb[0].mxu0
  %v5573 = vadd.f32 %v683, %v5572
  %v5574 = vpop.f32.mrb[0].mxu0
  %v5575 = vadd.f32 %v687, %v5574
  %v5576 = vpop.f32.mrb[0].mxu0
  %v5577 = vadd.f32 %v683, %v5576
  %v5578 = vpop.f32.mrb[0].mxu0
  %v5579 = vadd.f32 %v687, %v5578
  %5580 = vmatprep.mubr.bf16.mxu0 %v1169
  %5581 = vmatmul.mubr.bf16.gmra.mrb[0].mxu0 %v1168
  %v5582 = vpop.f32.mrb[0].mxu0
  %v5583 = vadd.f32 %v683, %v5582
  %v5584 = vpop.f32.mrb[0].mxu0
  %v5585 = vadd.f32 %v687, %v5584
  %v5586 = vpop.f32.mrb[0].mxu0
  %v5587 = vadd.f32 %v683, %v5586
  %v5588 = vpop.f32.mrb[0].mxu0
  %v5589 = vadd.f32 %v687, %v5588
  %5590 = vmatprep.mubr.bf16.mxu0 %v1177
  %5591 = vmatmul.mubr.bf16.gmra.mrb[0].mxu0 %v1176
  %v5592 = vpop.f32.mrb[0].mxu0
  %v5593 = vadd.f32 %v683, %v5592
  %v5594 = vpop.f32.mrb[0].mxu0
  %v5595 = vadd.f32 %v687, %v5594
  %v5596 = vpop.f32.mrb[0].mxu0
  %v5597 = vadd.f32 %v683, %v5596
  %v5598 = vpop.f32.mrb[0].mxu0
  %v5599 = vadd.f32 %v687, %v5598
  %5600 = vmatprep.mubr.bf16.mxu0 %v1185
  %5601 = vmatmul.mubr.bf16.gmra.mrb[0].mxu0 %v1184
  %v5602 = vpop.f32.mrb[0].mxu0
  %v5603 = vadd.f32 %v683, %v5602
  %v5604 = vpop.f32.mrb[0].mxu0
  %v5605 = vadd.f32 %v687, %v5604
  %v5606 = vpop.f32.mrb[0].mxu0
  %v5607 = vadd.f32 %v683, %v5606
  %v5608 = vpop.f32.mrb[0].mxu0
  %v5609 = vadd.f32 %v687, %v5608
  %5610 = vmatprep.mubr.bf16.mxu0 %v1193
  %5611 = vmatmul.mubr.bf16.gmra.mrb[0].mxu0 %v1192
  %v5612 = vpop.f32.mrb[0].mxu0
  %v5613 = vadd.f32 %v683, %v5612
  %v5614 = vpop.f32.mrb[0].mxu0
  %v5615 = vadd.f32 %v687, %v5614
  %v5616 = vpop.f32.mrb[0].mxu0
  %v5617 = vadd.f32 %v683, %v5616
  %v5618 = vpop.f32.mrb[0].mxu0
  %v5619 = vadd.f32 %v687, %v5618
  %5620 = vmatprep.mubr.bf16.mxu0 %v1201
  %5621 = vmatmul.mubr.bf16.gmra.mrb[0].mxu0 %v1200
  %v5622 = vpop.f32.mrb[0].mxu0
  %v5623 = vadd.f32 %v683, %v5622
  %v5624 = vpop.f32.mrb[0].mxu0
  %v5625 = vadd.f32 %v687, %v5624
  %v5626 = vpop.f32.mrb[0].mxu0
  %v5627 = vadd.f32 %v683, %v5626
  %v5628 = vpop.f32.mrb[0].mxu0
  %v5629 = vadd.f32 %v687, %v5628
  %5630 = vmatprep.mubr.bf16.mxu0 %v1209
  %5631 = vmatmul.mubr.bf16.gmra.mrb[0].mxu0 %v1208
  %v5632 = vpop.f32.mrb[0].mxu0
  %v5633 = vadd.f32 %v683, %v5632
  %v5634 = vpop.f32.mrb[0].mxu0
  %v5635 = vadd.f32 %v687, %v5634
  %v5636 = vpop.f32.mrb[0].mxu0
  %v5637 = vadd.f32 %v683, %v5636
  %v5638 = vpop.f32.mrb[0].mxu0
  %v5639 = vadd.f32 %v687, %v5638
  %5640 = vdwg.mxu0
  %5641 = vmatprep.subr.bf16.mxu0 %v3013
  %5642 = vmatpush1.bf16.msra.mxu0 %v3012
  %5643 = vmatprep.subr.bf16.mxu0 %v3021
  %5644 = vmatpush1.bf16.msra.mxu0 %v3020
  %5645 = vmatprep.subr.bf16.mxu0 %v3029
  %5646 = vmatpush1.bf16.msra.mxu0 %v3028
  %5647 = vmatprep.subr.bf16.mxu0 %v3037
  %5648 = vmatpush1.bf16.msra.mxu0 %v3036
  %5649 = vmatprep.subr.bf16.mxu0 %v3045
  %5650 = vmatpush1.bf16.msra.mxu0 %v3044
  %5651 = vmatprep.subr.bf16.mxu0 %v3053
  %5652 = vmatpush1.bf16.msra.mxu0 %v3052
  %5653 = vmatprep.subr.bf16.mxu0 %v3061
  %5654 = vmatpush1.bf16.msra.mxu0 %v3060
  %5655 = vmatprep.subr.bf16.mxu0 %v3069
  %5656 = vmatpush1.bf16.msra.mxu0 %v3068
  %5657 = vmatprep.subr.bf16.mxu0 %v3077
  %5658 = vmatpush1.bf16.msra.mxu0 %v3076
  %5659 = vmatprep.subr.bf16.mxu0 %v3085
  %5660 = vmatpush1.bf16.msra.mxu0 %v3084
  %5661 = vmatprep.subr.bf16.mxu0 %v3093
  %5662 = vmatpush1.bf16.msra.mxu0 %v3092
  %5663 = vmatprep.subr.bf16.mxu0 %v3101
  %5664 = vmatpush1.bf16.msra.mxu0 %v3100
  %5665 = vmatprep.subr.bf16.mxu0 %v3109
  %5666 = vmatpush1.bf16.msra.mxu0 %v3108
  %5667 = vmatprep.subr.bf16.mxu0 %v3117
  %5668 = vmatpush1.bf16.msra.mxu0 %v3116
  %5669 = vmatprep.subr.bf16.mxu0 %v3125
  %5670 = vmatpush1.bf16.msra.mxu0 %v3124
  %5671 = vmatprep.subr.bf16.mxu0 %v3133
  %5672 = vmatpush1.bf16.msra.mxu0 %v3132
  %5673 = vmatprep.mubr.bf16.mxu0 %v1091
  %5674 = vmatmul.mubr.bf16.gmra.mrb[0].mxu0 %v1090
  %v5675 = vpop.f32.mrb[0].mxu0
  %v5676 = vadd.f32 %v5483, %v5675
  %v5677 = vpop.f32.mrb[0].mxu0
  %v5678 = vadd.f32 %v5485, %v5677
  %v5679 = vpop.f32.mrb[0].mxu0
  %v5680 = vadd.f32 %v5487, %v5679
  %v5681 = vpop.f32.mrb[0].mxu0
  %v5682 = vadd.f32 %v5489, %v5681
  %5683 = vmatprep.mubr.bf16.mxu0 %v1099
  %5684 = vmatmul.mubr.bf16.gmra.mrb[0].mxu0 %v1098
  %v5685 = vpop.f32.mrb[0].mxu0
  %v5686 = vadd.f32 %v5493, %v5685
  %v5687 = vpop.f32.mrb[0].mxu0
  %v5688 = vadd.f32 %v5495, %v5687
  %v5689 = vpop.f32.mrb[0].mxu0
  %v5690 = vadd.f32 %v5497, %v5689
  %v5691 = vpop.f32.mrb[0].mxu0
  %v5692 = vadd.f32 %v5499, %v5691
  %5693 = vmatprep.mubr.bf16.mxu0 %v1107
  %5694 = vmatmul.mubr.bf16.gmra.mrb[0].mxu0 %v1106
  %v5695 = vpop.f32.mrb[0].mxu0
  %v5696 = vadd.f32 %v5503, %v5695
  %v5697 = vpop.f32.mrb[0].mxu0
  %v5698 = vadd.f32 %v5505, %v5697
  %v5699 = vpop.f32.mrb[0].mxu0
  %v5700 = vadd.f32 %v5507, %v5699
  %v5701 = vpop.f32.mrb[0].mxu0
  %v5702 = vadd.f32 %v5509, %v5701
  %5703 = vmatprep.mubr.bf16.mxu0 %v1115
  %5704 = vmatmul.mubr.bf16.gmra.mrb[0].mxu0 %v1114
  %v5705 = vpop.f32.mrb[0].mxu0
  %v5706 = vadd.f32 %v5513, %v5705
  %v5707 = vpop.f32.mrb[0].mxu0
  %v5708 = vadd.f32 %v5515, %v5707
  %v5709 = vpop.f32.mrb[0].mxu0
  %v5710 = vadd.f32 %v5517, %v5709
  %v5711 = vpop.f32.mrb[0].mxu0
  %v5712 = vadd.f32 %v5519, %v5711
  %5713 = vmatprep.mubr.bf16.mxu0 %v1123
  %5714 = vmatmul.mubr.bf16.gmra.mrb[0].mxu0 %v1122
  %v5715 = vpop.f32.mrb[0].mxu0
  %v5716 = vadd.f32 %v5523, %v5715
  %v5717 = vpop.f32.mrb[0].mxu0
  %v5718 = vadd.f32 %v5525, %v5717
  %v5719 = vpop.f32.mrb[0].mxu0
  %v5720 = vadd.f32 %v5527, %v5719
  %v5721 = vpop.f32.mrb[0].mxu0
  %v5722 = vadd.f32 %v5529, %v5721
  %5723 = vmatprep.mubr.bf16.mxu0 %v1131
  %5724 = vmatmul.mubr.bf16.gmra.mrb[0].mxu0 %v1130
  %v5725 = vpop.f32.mrb[0].mxu0
  %v5726 = vadd.f32 %v5533, %v5725
  %v5727 = vpop.f32.mrb[0].mxu0
  %v5728 = vadd.f32 %v5535, %v5727
  %v5729 = vpop.f32.mrb[0].mxu0
  %v5730 = vadd.f32 %v5537, %v5729
  %v5731 = vpop.f32.mrb[0].mxu0
  %v5732 = vadd.f32 %v5539, %v5731
  %5733 = vmatprep.mubr.bf16.mxu0 %v1139
  %5734 = vmatmul.mubr.bf16.gmra.mrb[0].mxu0 %v1138
  %v5735 = vpop.f32.mrb[0].mxu0
  %v5736 = vadd.f32 %v5543, %v5735
  %v5737 = vpop.f32.mrb[0].mxu0
  %v5738 = vadd.f32 %v5545, %v5737
  %v5739 = vpop.f32.mrb[0].mxu0
  %v5740 = vadd.f32 %v5547, %v5739
  %v5741 = vpop.f32.mrb[0].mxu0
  %v5742 = vadd.f32 %v5549, %v5741
  %5743 = vmatprep.mubr.bf16.mxu0 %v1147
  %5744 = vmatmul.mubr.bf16.gmra.mrb[0].mxu0 %v1146
  %v5745 = vpop.f32.mrb[0].mxu0
  %v5746 = vadd.f32 %v5553, %v5745
  %v5747 = vpop.f32.mrb[0].mxu0
  %v5748 = vadd.f32 %v5555, %v5747
  %v5749 = vpop.f32.mrb[0].mxu0
  %v5750 = vadd.f32 %v5557, %v5749
  %v5751 = vpop.f32.mrb[0].mxu0
  %v5752 = vadd.f32 %v5559, %v5751
  %5753 = vmatprep.mubr.bf16.mxu0 %v1155
  %5754 = vmatmul.mubr.bf16.gmra.mrb[0].mxu0 %v1154
  %v5755 = vpop.f32.mrb[0].mxu0
  %v5756 = vadd.f32 %v5563, %v5755
  %v5757 = vpop.f32.mrb[0].mxu0
  %v5758 = vadd.f32 %v5565, %v5757
  %v5759 = vpop.f32.mrb[0].mxu0
  %v5760 = vadd.f32 %v5567, %v5759
  %v5761 = vpop.f32.mrb[0].mxu0
  %v5762 = vadd.f32 %v5569, %v5761
  %5763 = vmatprep.mubr.bf16.mxu0 %v1163
  %5764 = vmatmul.mubr.bf16.gmra.mrb[0].mxu0 %v1162
  %v5765 = vpop.f32.mrb[0].mxu0
  %v5766 = vadd.f32 %v5573, %v5765
  %v5767 = vpop.f32.mrb[0].mxu0
  %v5768 = vadd.f32 %v5575, %v5767
  %v5769 = vpop.f32.mrb[0].mxu0
  %v5770 = vadd.f32 %v5577, %v5769
  %v5771 = vpop.f32.mrb[0].mxu0
  %v5772 = vadd.f32 %v5579, %v5771
  %5773 = vmatprep.mubr.bf16.mxu0 %v1171
  %5774 = vmatmul.mubr.bf16.gmra.mrb[0].mxu0 %v1170
  %v5775 = vpop.f32.mrb[0].mxu0
  %v5776 = vadd.f32 %v5583, %v5775
  %v5777 = vpop.f32.mrb[0].mxu0
  %v5778 = vadd.f32 %v5585, %v5777
  %v5779 = vpop.f32.mrb[0].mxu0
  %v5780 = vadd.f32 %v5587, %v5779
  %v5781 = vpop.f32.mrb[0].mxu0
  %v5782 = vadd.f32 %v5589, %v5781
  %5783 = vmatprep.mubr.bf16.mxu0 %v1179
  %5784 = vmatmul.mubr.bf16.gmra.mrb[0].mxu0 %v1178
  %v5785 = vpop.f32.mrb[0].mxu0
  %v5786 = vadd.f32 %v5593, %v5785
  %v5787 = vpop.f32.mrb[0].mxu0
  %v5788 = vadd.f32 %v5595, %v5787
  %v5789 = vpop.f32.mrb[0].mxu0
  %v5790 = vadd.f32 %v5597, %v5789
  %v5791 = vpop.f32.mrb[0].mxu0
  %v5792 = vadd.f32 %v5599, %v5791
  %5793 = vmatprep.mubr.bf16.mxu0 %v1187
  %5794 = vmatmul.mubr.bf16.gmra.mrb[0].mxu0 %v1186
  %v5795 = vpop.f32.mrb[0].mxu0
  %v5796 = vadd.f32 %v5603, %v5795
  %v5797 = vpop.f32.mrb[0].mxu0
  %v5798 = vadd.f32 %v5605, %v5797
  %v5799 = vpop.f32.mrb[0].mxu0
  %v5800 = vadd.f32 %v5607, %v5799
  %v5801 = vpop.f32.mrb[0].mxu0
  %v5802 = vadd.f32 %v5609, %v5801
  %5803 = vmatprep.mubr.bf16.mxu0 %v1195
  %5804 = vmatmul.mubr.bf16.gmra.mrb[0].mxu0 %v1194
  %v5805 = vpop.f32.mrb[0].mxu0
  %v5806 = vadd.f32 %v5613, %v5805
  %v5807 = vpop.f32.mrb[0].mxu0
  %v5808 = vadd.f32 %v5615, %v5807
  %v5809 = vpop.f32.mrb[0].mxu0
  %v5810 = vadd.f32 %v5617, %v5809
  %v5811 = vpop.f32.mrb[0].mxu0
  %v5812 = vadd.f32 %v5619, %v5811
  %5813 = vmatprep.mubr.bf16.mxu0 %v1203
  %5814 = vmatmul.mubr.bf16.gmra.mrb[0].mxu0 %v1202
  %v5815 = vpop.f32.mrb[0].mxu0
  %v5816 = vadd.f32 %v5623, %v5815
  %v5817 = vpop.f32.mrb[0].mxu0
  %v5818 = vadd.f32 %v5625, %v5817
  %v5819 = vpop.f32.mrb[0].mxu0
  %v5820 = vadd.f32 %v5627, %v5819
  %v5821 = vpop.f32.mrb[0].mxu0
  %v5822 = vadd.f32 %v5629, %v5821
  %5823 = vmatprep.mubr.bf16.mxu0 %v1211
  %5824 = vmatmul.mubr.bf16.gmra.mrb[0].mxu0 %v1210
  %v5825 = vpop.f32.mrb[0].mxu0
  %v5826 = vadd.f32 %v5633, %v5825
  %v5827 = vpop.f32.mrb[0].mxu0
  %v5828 = vadd.f32 %v5635, %v5827
  %v5829 = vpop.f32.mrb[0].mxu0
  %v5830 = vadd.f32 %v5637, %v5829
  %v5831 = vpop.f32.mrb[0].mxu0
  %v5832 = vadd.f32 %v5639, %v5831
  %5833 = vdwg.mxu0
  %5834 = vmatprep.subr.bf16.mxu0 %v3141
  %5835 = vmatpush1.bf16.msra.mxu0 %v3140
  %5836 = vmatprep.subr.bf16.mxu0 %v3149
  %5837 = vmatpush1.bf16.msra.mxu0 %v3148
  %5838 = vmatprep.subr.bf16.mxu0 %v3157
  %5839 = vmatpush1.bf16.msra.mxu0 %v3156
  %5840 = vmatprep.subr.bf16.mxu0 %v3165
  %5841 = vmatpush1.bf16.msra.mxu0 %v3164
  %5842 = vmatprep.subr.bf16.mxu0 %v3173
  %5843 = vmatpush1.bf16.msra.mxu0 %v3172
  %5844 = vmatprep.subr.bf16.mxu0 %v3181
  %5845 = vmatpush1.bf16.msra.mxu0 %v3180
  %5846 = vmatprep.subr.bf16.mxu0 %v3189
  %5847 = vmatpush1.bf16.msra.mxu0 %v3188
  %5848 = vmatprep.subr.bf16.mxu0 %v3197
  %5849 = vmatpush1.bf16.msra.mxu0 %v3196
  %5850 = vmatprep.subr.bf16.mxu0 %v3205
  %5851 = vmatpush1.bf16.msra.mxu0 %v3204
  %5852 = vmatprep.subr.bf16.mxu0 %v3213
  %5853 = vmatpush1.bf16.msra.mxu0 %v3212
  %5854 = vmatprep.subr.bf16.mxu0 %v3221
  %5855 = vmatpush1.bf16.msra.mxu0 %v3220
  %5856 = vmatprep.subr.bf16.mxu0 %v3229
  %5857 = vmatpush1.bf16.msra.mxu0 %v3228
  %5858 = vmatprep.subr.bf16.mxu0 %v3237
  %5859 = vmatpush1.bf16.msra.mxu0 %v3236
  %5860 = vmatprep.subr.bf16.mxu0 %v3245
  %5861 = vmatpush1.bf16.msra.mxu0 %v3244
  %5862 = vmatprep.subr.bf16.mxu0 %v3253
  %5863 = vmatpush1.bf16.msra.mxu0 %v3252
  %5864 = vmatprep.subr.bf16.mxu0 %v3261
  %5865 = vmatpush1.bf16.msra.mxu0 %v3260
  %5866 = vmatprep.mubr.bf16.mxu0 %v1093
  %5867 = vmatmul.mubr.bf16.gmra.mrb[0].mxu0 %v1092
  %v5868 = vpop.f32.mrb[0].mxu0
  %v5869 = vadd.f32 %v5676, %v5868
  %v5870 = vpop.f32.mrb[0].mxu0
  %v5871 = vadd.f32 %v5678, %v5870
  %v5872 = vpop.f32.mrb[0].mxu0
  %v5873 = vadd.f32 %v5680, %v5872
  %v5874 = vpop.f32.mrb[0].mxu0
  %v5875 = vadd.f32 %v5682, %v5874
  %5876 = vmatprep.mubr.bf16.mxu0 %v1101
  %5877 = vmatmul.mubr.bf16.gmra.mrb[0].mxu0 %v1100
  %v5878 = vpop.f32.mrb[0].mxu0
  %v5879 = vadd.f32 %v5686, %v5878
  %v5880 = vpop.f32.mrb[0].mxu0
  %v5881 = vadd.f32 %v5688, %v5880
  %v5882 = vpop.f32.mrb[0].mxu0
  %v5883 = vadd.f32 %v5690, %v5882
  %v5884 = vpop.f32.mrb[0].mxu0
  %v5885 = vadd.f32 %v5692, %v5884
  %5886 = vmatprep.mubr.bf16.mxu0 %v1109
  %5887 = vmatmul.mubr.bf16.gmra.mrb[0].mxu0 %v1108
  %v5888 = vpop.f32.mrb[0].mxu0
  %v5889 = vadd.f32 %v5696, %v5888
  %v5890 = vpop.f32.mrb[0].mxu0
  %v5891 = vadd.f32 %v5698, %v5890
  %v5892 = vpop.f32.mrb[0].mxu0
  %v5893 = vadd.f32 %v5700, %v5892
  %v5894 = vpop.f32.mrb[0].mxu0
  %v5895 = vadd.f32 %v5702, %v5894
  %5896 = vmatprep.mubr.bf16.mxu0 %v1117
  %5897 = vmatmul.mubr.bf16.gmra.mrb[0].mxu0 %v1116
  %v5898 = vpop.f32.mrb[0].mxu0
  %v5899 = vadd.f32 %v5706, %v5898
  %v5900 = vpop.f32.mrb[0].mxu0
  %v5901 = vadd.f32 %v5708, %v5900
  %v5902 = vpop.f32.mrb[0].mxu0
  %v5903 = vadd.f32 %v5710, %v5902
  %v5904 = vpop.f32.mrb[0].mxu0
  %v5905 = vadd.f32 %v5712, %v5904
  %5906 = vmatprep.mubr.bf16.mxu0 %v1125
  %5907 = vmatmul.mubr.bf16.gmra.mrb[0].mxu0 %v1124
  %v5908 = vpop.f32.mrb[0].mxu0
  %v5909 = vadd.f32 %v5716, %v5908
  %v5910 = vpop.f32.mrb[0].mxu0
  %v5911 = vadd.f32 %v5718, %v5910
  %v5912 = vpop.f32.mrb[0].mxu0
  %v5913 = vadd.f32 %v5720, %v5912
  %v5914 = vpop.f32.mrb[0].mxu0
  %v5915 = vadd.f32 %v5722, %v5914
  %5916 = vmatprep.mubr.bf16.mxu0 %v1133
  %5917 = vmatmul.mubr.bf16.gmra.mrb[0].mxu0 %v1132
  %v5918 = vpop.f32.mrb[0].mxu0
  %v5919 = vadd.f32 %v5726, %v5918
  %v5920 = vpop.f32.mrb[0].mxu0
  %v5921 = vadd.f32 %v5728, %v5920
  %v5922 = vpop.f32.mrb[0].mxu0
  %v5923 = vadd.f32 %v5730, %v5922
  %v5924 = vpop.f32.mrb[0].mxu0
  %v5925 = vadd.f32 %v5732, %v5924
  %5926 = vmatprep.mubr.bf16.mxu0 %v1141
  %5927 = vmatmul.mubr.bf16.gmra.mrb[0].mxu0 %v1140
  %v5928 = vpop.f32.mrb[0].mxu0
  %v5929 = vadd.f32 %v5736, %v5928
  %v5930 = vpop.f32.mrb[0].mxu0
  %v5931 = vadd.f32 %v5738, %v5930
  %v5932 = vpop.f32.mrb[0].mxu0
  %v5933 = vadd.f32 %v5740, %v5932
  %v5934 = vpop.f32.mrb[0].mxu0
  %v5935 = vadd.f32 %v5742, %v5934
  %5936 = vmatprep.mubr.bf16.mxu0 %v1149
  %5937 = vmatmul.mubr.bf16.gmra.mrb[0].mxu0 %v1148
  %v5938 = vpop.f32.mrb[0].mxu0
  %v5939 = vadd.f32 %v5746, %v5938
  %v5940 = vpop.f32.mrb[0].mxu0
  %v5941 = vadd.f32 %v5748, %v5940
  %v5942 = vpop.f32.mrb[0].mxu0
  %v5943 = vadd.f32 %v5750, %v5942
  %v5944 = vpop.f32.mrb[0].mxu0
  %v5945 = vadd.f32 %v5752, %v5944
  %5946 = vmatprep.mubr.bf16.mxu0 %v1157
  %5947 = vmatmul.mubr.bf16.gmra.mrb[0].mxu0 %v1156
  %v5948 = vpop.f32.mrb[0].mxu0
  %v5949 = vadd.f32 %v5756, %v5948
  %v5950 = vpop.f32.mrb[0].mxu0
  %v5951 = vadd.f32 %v5758, %v5950
  %v5952 = vpop.f32.mrb[0].mxu0
  %v5953 = vadd.f32 %v5760, %v5952
  %v5954 = vpop.f32.mrb[0].mxu0
  %v5955 = vadd.f32 %v5762, %v5954
  %5956 = vmatprep.mubr.bf16.mxu0 %v1165
  %5957 = vmatmul.mubr.bf16.gmra.mrb[0].mxu0 %v1164
  %v5958 = vpop.f32.mrb[0].mxu0
  %v5959 = vadd.f32 %v5766, %v5958
  %v5960 = vpop.f32.mrb[0].mxu0
  %v5961 = vadd.f32 %v5768, %v5960
  %v5962 = vpop.f32.mrb[0].mxu0
  %v5963 = vadd.f32 %v5770, %v5962
  %v5964 = vpop.f32.mrb[0].mxu0
  %v5965 = vadd.f32 %v5772, %v5964
  %5966 = vmatprep.mubr.bf16.mxu0 %v1173
  %5967 = vmatmul.mubr.bf16.gmra.mrb[0].mxu0 %v1172
  %v5968 = vpop.f32.mrb[0].mxu0
  %v5969 = vadd.f32 %v5776, %v5968
  %v5970 = vpop.f32.mrb[0].mxu0
  %v5971 = vadd.f32 %v5778, %v5970
  %v5972 = vpop.f32.mrb[0].mxu0
  %v5973 = vadd.f32 %v5780, %v5972
  %v5974 = vpop.f32.mrb[0].mxu0
  %v5975 = vadd.f32 %v5782, %v5974
  %5976 = vmatprep.mubr.bf16.mxu0 %v1181
  %5977 = vmatmul.mubr.bf16.gmra.mrb[0].mxu0 %v1180
  %v5978 = vpop.f32.mrb[0].mxu0
  %v5979 = vadd.f32 %v5786, %v5978
  %v5980 = vpop.f32.mrb[0].mxu0
  %v5981 = vadd.f32 %v5788, %v5980
  %v5982 = vpop.f32.mrb[0].mxu0
  %v5983 = vadd.f32 %v5790, %v5982
  %v5984 = vpop.f32.mrb[0].mxu0
  %v5985 = vadd.f32 %v5792, %v5984
  %5986 = vmatprep.mubr.bf16.mxu0 %v1189
  %5987 = vmatmul.mubr.bf16.gmra.mrb[0].mxu0 %v1188
  %v5988 = vpop.f32.mrb[0].mxu0
  %v5989 = vadd.f32 %v5796, %v5988
  %v5990 = vpop.f32.mrb[0].mxu0
  %v5991 = vadd.f32 %v5798, %v5990
  %v5992 = vpop.f32.mrb[0].mxu0
  %v5993 = vadd.f32 %v5800, %v5992
  %v5994 = vpop.f32.mrb[0].mxu0
  %v5995 = vadd.f32 %v5802, %v5994
  %5996 = vmatprep.mubr.bf16.mxu0 %v1197
  %5997 = vmatmul.mubr.bf16.gmra.mrb[0].mxu0 %v1196
  %v5998 = vpop.f32.mrb[0].mxu0
  %v5999 = vadd.f32 %v5806, %v5998
  %v6000 = vpop.f32.mrb[0].mxu0
  %v6001 = vadd.f32 %v5808, %v6000
  %v6002 = vpop.f32.mrb[0].mxu0
  %v6003 = vadd.f32 %v5810, %v6002
  %v6004 = vpop.f32.mrb[0].mxu0
  %v6005 = vadd.f32 %v5812, %v6004
  %6006 = vmatprep.mubr.bf16.mxu0 %v1205
  %6007 = vmatmul.mubr.bf16.gmra.mrb[0].mxu0 %v1204
  %v6008 = vpop.f32.mrb[0].mxu0
  %v6009 = vadd.f32 %v5816, %v6008
  %v6010 = vpop.f32.mrb[0].mxu0
  %v6011 = vadd.f32 %v5818, %v6010
  %v6012 = vpop.f32.mrb[0].mxu0
  %v6013 = vadd.f32 %v5820, %v6012
  %v6014 = vpop.f32.mrb[0].mxu0
  %v6015 = vadd.f32 %v5822, %v6014
  %6016 = vmatprep.mubr.bf16.mxu0 %v1213
  %6017 = vmatmul.mubr.bf16.gmra.mrb[0].mxu0 %v1212
  %v6018 = vpop.f32.mrb[0].mxu0
  %v6019 = vadd.f32 %v5826, %v6018
  %v6020 = vpop.f32.mrb[0].mxu0
  %v6021 = vadd.f32 %v5828, %v6020
  %v6022 = vpop.f32.mrb[0].mxu0
  %v6023 = vadd.f32 %v5830, %v6022
  %v6024 = vpop.f32.mrb[0].mxu0
  %v6025 = vadd.f32 %v5832, %v6024
  %6026 = vdwg.mxu0
  %6027 = vmatprep.subr.bf16.mxu0 %v3269
  %6028 = vmatpush1.bf16.msra.mxu0 %v3268
  %6029 = vmatprep.subr.bf16.mxu0 %v3277
  %6030 = vmatpush1.bf16.msra.mxu0 %v3276
  %6031 = vmatprep.subr.bf16.mxu0 %v3285
  %6032 = vmatpush1.bf16.msra.mxu0 %v3284
  %6033 = vmatprep.subr.bf16.mxu0 %v3293
  %6034 = vmatpush1.bf16.msra.mxu0 %v3292
  %6035 = vmatprep.subr.bf16.mxu0 %v3301
  %6036 = vmatpush1.bf16.msra.mxu0 %v3300
  %6037 = vmatprep.subr.bf16.mxu0 %v3309
  %6038 = vmatpush1.bf16.msra.mxu0 %v3308
  %6039 = vmatprep.subr.bf16.mxu0 %v3317
  %6040 = vmatpush1.bf16.msra.mxu0 %v3316
  %6041 = vmatprep.subr.bf16.mxu0 %v3325
  %6042 = vmatpush1.bf16.msra.mxu0 %v3324
  %6043 = vmatprep.subr.bf16.mxu0 %v3333
  %6044 = vmatpush1.bf16.msra.mxu0 %v3332
  %6045 = vmatprep.subr.bf16.mxu0 %v3341
  %6046 = vmatpush1.bf16.msra.mxu0 %v3340
  %6047 = vmatprep.subr.bf16.mxu0 %v3349
  %6048 = vmatpush1.bf16.msra.mxu0 %v3348
  %6049 = vmatprep.subr.bf16.mxu0 %v3357
  %6050 = vmatpush1.bf16.msra.mxu0 %v3356
  %6051 = vmatprep.subr.bf16.mxu0 %v3365
  %6052 = vmatpush1.bf16.msra.mxu0 %v3364
  %6053 = vmatprep.subr.bf16.mxu0 %v3373
  %6054 = vmatpush1.bf16.msra.mxu0 %v3372
  %6055 = vmatprep.subr.bf16.mxu0 %v3381
  %6056 = vmatpush1.bf16.msra.mxu0 %v3380
  %6057 = vmatprep.subr.bf16.mxu0 %v3389
  %6058 = vmatpush1.bf16.msra.mxu0 %v3388
  %6059 = vmatprep.mubr.bf16.mxu0 %v1095
  %6060 = vmatmul.mubr.bf16.gmra.mrb[0].mxu0 %v1094
  %v6061 = vpop.f32.mrb[0].mxu0
  %v6062 = vadd.f32 %v5869, %v6061
  %v6063 = vpop.f32.mrb[0].mxu0
  %v6064 = vadd.f32 %v5871, %v6063
  %v6065 = vpop.f32.mrb[0].mxu0
  %v6066 = vadd.f32 %v5873, %v6065
  %v6067 = vpop.f32.mrb[0].mxu0
  %v6068 = vadd.f32 %v5875, %v6067
  %6069 = vmatprep.mubr.bf16.mxu0 %v1103
  %6070 = vmatmul.mubr.bf16.gmra.mrb[0].mxu0 %v1102
  %v6071 = vpop.f32.mrb[0].mxu0
  %v6072 = vadd.f32 %v5879, %v6071
  %v6073 = vpop.f32.mrb[0].mxu0
  %v6074 = vadd.f32 %v5881, %v6073
  %v6075 = vpop.f32.mrb[0].mxu0
  %v6076 = vadd.f32 %v5883, %v6075
  %v6077 = vpop.f32.mrb[0].mxu0
  %v6078 = vadd.f32 %v5885, %v6077
  %6079 = vmatprep.mubr.bf16.mxu0 %v1111
  %6080 = vmatmul.mubr.bf16.gmra.mrb[0].mxu0 %v1110
  %v6081 = vpop.f32.mrb[0].mxu0
  %v6082 = vadd.f32 %v5889, %v6081
  %v6083 = vpop.f32.mrb[0].mxu0
  %v6084 = vadd.f32 %v5891, %v6083
  %v6085 = vpop.f32.mrb[0].mxu0
  %v6086 = vadd.f32 %v5893, %v6085
  %v6087 = vpop.f32.mrb[0].mxu0
  %v6088 = vadd.f32 %v5895, %v6087
  %6089 = vmatprep.mubr.bf16.mxu0 %v1119
  %6090 = vmatmul.mubr.bf16.gmra.mrb[0].mxu0 %v1118
  %v6091 = vpop.f32.mrb[0].mxu0
  %v6092 = vadd.f32 %v5899, %v6091
  %v6093 = vpop.f32.mrb[0].mxu0
  %v6094 = vadd.f32 %v5901, %v6093
  %v6095 = vpop.f32.mrb[0].mxu0
  %v6096 = vadd.f32 %v5903, %v6095
  %v6097 = vpop.f32.mrb[0].mxu0
  %v6098 = vadd.f32 %v5905, %v6097
  %6099 = vmatprep.mubr.bf16.mxu0 %v1127
  %6100 = vmatmul.mubr.bf16.gmra.mrb[0].mxu0 %v1126
  %v6101 = vpop.f32.mrb[0].mxu0
  %v6102 = vadd.f32 %v5909, %v6101
  %v6103 = vpop.f32.mrb[0].mxu0
  %v6104 = vadd.f32 %v5911, %v6103
  %v6105 = vpop.f32.mrb[0].mxu0
  %v6106 = vadd.f32 %v5913, %v6105
  %v6107 = vpop.f32.mrb[0].mxu0
  %v6108 = vadd.f32 %v5915, %v6107
  %6109 = vmatprep.mubr.bf16.mxu0 %v1135
  %6110 = vmatmul.mubr.bf16.gmra.mrb[0].mxu0 %v1134
  %v6111 = vpop.f32.mrb[0].mxu0
  %v6112 = vadd.f32 %v5919, %v6111
  %v6113 = vpop.f32.mrb[0].mxu0
  %v6114 = vadd.f32 %v5921, %v6113
  %v6115 = vpop.f32.mrb[0].mxu0
  %v6116 = vadd.f32 %v5923, %v6115
  %v6117 = vpop.f32.mrb[0].mxu0
  %v6118 = vadd.f32 %v5925, %v6117
  %6119 = vmatprep.mubr.bf16.mxu0 %v1143
  %6120 = vmatmul.mubr.bf16.gmra.mrb[0].mxu0 %v1142
  %v6121 = vpop.f32.mrb[0].mxu0
  %v6122 = vadd.f32 %v5929, %v6121
  %v6123 = vpop.f32.mrb[0].mxu0
  %v6124 = vadd.f32 %v5931, %v6123
  %v6125 = vpop.f32.mrb[0].mxu0
  %v6126 = vadd.f32 %v5933, %v6125
  %v6127 = vpop.f32.mrb[0].mxu0
  %v6128 = vadd.f32 %v5935, %v6127
  %6129 = vmatprep.mubr.bf16.mxu0 %v1151
  %6130 = vmatmul.mubr.bf16.gmra.mrb[0].mxu0 %v1150
  %v6131 = vpop.f32.mrb[0].mxu0
  %v6132 = vadd.f32 %v5939, %v6131
  %v6133 = vpop.f32.mrb[0].mxu0
  %v6134 = vadd.f32 %v5941, %v6133
  %v6135 = vpop.f32.mrb[0].mxu0
  %v6136 = vadd.f32 %v5943, %v6135
  %v6137 = vpop.f32.mrb[0].mxu0
  %v6138 = vadd.f32 %v5945, %v6137
  %6139 = vmatprep.mubr.bf16.mxu0 %v1159
  %6140 = vmatmul.mubr.bf16.gmra.mrb[0].mxu0 %v1158
  %v6141 = vpop.f32.mrb[0].mxu0
  %v6142 = vadd.f32 %v5949, %v6141
  %v6143 = vpop.f32.mrb[0].mxu0
  %v6144 = vadd.f32 %v5951, %v6143
  %v6145 = vpop.f32.mrb[0].mxu0
  %v6146 = vadd.f32 %v5953, %v6145
  %v6147 = vpop.f32.mrb[0].mxu0
  %v6148 = vadd.f32 %v5955, %v6147
  %6149 = vmatprep.mubr.bf16.mxu0 %v1167
  %6150 = vmatmul.mubr.bf16.gmra.mrb[0].mxu0 %v1166
  %v6151 = vpop.f32.mrb[0].mxu0
  %v6152 = vadd.f32 %v5959, %v6151
  %v6153 = vpop.f32.mrb[0].mxu0
  %v6154 = vadd.f32 %v5961, %v6153
  %v6155 = vpop.f32.mrb[0].mxu0
  %v6156 = vadd.f32 %v5963, %v6155
  %v6157 = vpop.f32.mrb[0].mxu0
  %v6158 = vadd.f32 %v5965, %v6157
  %6159 = vmatprep.mubr.bf16.mxu0 %v1175
  %6160 = vmatmul.mubr.bf16.gmra.mrb[0].mxu0 %v1174
  %v6161 = vpop.f32.mrb[0].mxu0
  %v6162 = vadd.f32 %v5969, %v6161
  %v6163 = vpop.f32.mrb[0].mxu0
  %v6164 = vadd.f32 %v5971, %v6163
  %v6165 = vpop.f32.mrb[0].mxu0
  %v6166 = vadd.f32 %v5973, %v6165
  %v6167 = vpop.f32.mrb[0].mxu0
  %v6168 = vadd.f32 %v5975, %v6167
  %6169 = vmatprep.mubr.bf16.mxu0 %v1183
  %6170 = vmatmul.mubr.bf16.gmra.mrb[0].mxu0 %v1182
  %v6171 = vpop.f32.mrb[0].mxu0
  %v6172 = vadd.f32 %v5979, %v6171
  %v6173 = vpop.f32.mrb[0].mxu0
  %v6174 = vadd.f32 %v5981, %v6173
  %v6175 = vpop.f32.mrb[0].mxu0
  %v6176 = vadd.f32 %v5983, %v6175
  %v6177 = vpop.f32.mrb[0].mxu0
  %v6178 = vadd.f32 %v5985, %v6177
  %6179 = vmatprep.mubr.bf16.mxu0 %v1191
  %6180 = vmatmul.mubr.bf16.gmra.mrb[0].mxu0 %v1190
  %v6181 = vpop.f32.mrb[0].mxu0
  %v6182 = vadd.f32 %v5989, %v6181
  %v6183 = vpop.f32.mrb[0].mxu0
  %v6184 = vadd.f32 %v5991, %v6183
  %v6185 = vpop.f32.mrb[0].mxu0
  %v6186 = vadd.f32 %v5993, %v6185
  %v6187 = vpop.f32.mrb[0].mxu0
  %v6188 = vadd.f32 %v5995, %v6187
  %6189 = vmatprep.mubr.bf16.mxu0 %v1199
  %6190 = vmatmul.mubr.bf16.gmra.mrb[0].mxu0 %v1198
  %v6191 = vpop.f32.mrb[0].mxu0
  %v6192 = vadd.f32 %v5999, %v6191
  %v6193 = vpop.f32.mrb[0].mxu0
  %v6194 = vadd.f32 %v6001, %v6193
  %v6195 = vpop.f32.mrb[0].mxu0
  %v6196 = vadd.f32 %v6003, %v6195
  %v6197 = vpop.f32.mrb[0].mxu0
  %v6198 = vadd.f32 %v6005, %v6197
  %6199 = vmatprep.mubr.bf16.mxu0 %v1207
  %6200 = vmatmul.mubr.bf16.gmra.mrb[0].mxu0 %v1206
  %v6201 = vpop.f32.mrb[0].mxu0
  %v6202 = vadd.f32 %v6009, %v6201
  %v6203 = vpop.f32.mrb[0].mxu0
  %v6204 = vadd.f32 %v6011, %v6203
  %v6205 = vpop.f32.mrb[0].mxu0
  %v6206 = vadd.f32 %v6013, %v6205
  %v6207 = vpop.f32.mrb[0].mxu0
  %v6208 = vadd.f32 %v6015, %v6207
  %6209 = vmatprep.mubr.bf16.mxu0 %v1215
  %6210 = vmatmul.mubr.bf16.gmra.mrb[0].mxu0 %v1214
  %v6211 = vpop.f32.mrb[0].mxu0
  %v6212 = vadd.f32 %v6019, %v6211
  %v6213 = vpop.f32.mrb[0].mxu0
  %v6214 = vadd.f32 %v6021, %v6213
  %v6215 = vpop.f32.mrb[0].mxu0
  %v6216 = vadd.f32 %v6023, %v6215
  %v6217 = vpop.f32.mrb[0].mxu0
  %v6218 = vadd.f32 %v6025, %v6217
  %6219 = vdwg.mxu0
  %6220 = vmatprep.subr.bf16.mxu0 %v2887
  %6221 = vmatpush1.bf16.msra.mxu0 %v2886
  %6222 = vmatprep.subr.bf16.mxu0 %v2895
  %6223 = vmatpush1.bf16.msra.mxu0 %v2894
  %6224 = vmatprep.subr.bf16.mxu0 %v2903
  %6225 = vmatpush1.bf16.msra.mxu0 %v2902
  %6226 = vmatprep.subr.bf16.mxu0 %v2911
  %6227 = vmatpush1.bf16.msra.mxu0 %v2910
  %6228 = vmatprep.subr.bf16.mxu0 %v2919
  %6229 = vmatpush1.bf16.msra.mxu0 %v2918
  %6230 = vmatprep.subr.bf16.mxu0 %v2927
  %6231 = vmatpush1.bf16.msra.mxu0 %v2926
  %6232 = vmatprep.subr.bf16.mxu0 %v2935
  %6233 = vmatpush1.bf16.msra.mxu0 %v2934
  %6234 = vmatprep.subr.bf16.mxu0 %v2943
  %6235 = vmatpush1.bf16.msra.mxu0 %v2942
  %6236 = vmatprep.subr.bf16.mxu0 %v2951
  %6237 = vmatpush1.bf16.msra.mxu0 %v2950
  %6238 = vmatprep.subr.bf16.mxu0 %v2959
  %6239 = vmatpush1.bf16.msra.mxu0 %v2958
  %6240 = vmatprep.subr.bf16.mxu0 %v2967
  %6241 = vmatpush1.bf16.msra.mxu0 %v2966
  %6242 = vmatprep.subr.bf16.mxu0 %v2975
  %6243 = vmatpush1.bf16.msra.mxu0 %v2974
  %6244 = vmatprep.subr.bf16.mxu0 %v2983
  %6245 = vmatpush1.bf16.msra.mxu0 %v2982
  %6246 = vmatprep.subr.bf16.mxu0 %v2991
  %6247 = vmatpush1.bf16.msra.mxu0 %v2990
  %6248 = vmatprep.subr.bf16.mxu0 %v2999
  %6249 = vmatpush1.bf16.msra.mxu0 %v2998
  %6250 = vmatprep.subr.bf16.mxu0 %v3007
  %6251 = vmatpush1.bf16.msra.mxu0 %v3006
  %6252 = vmatprep.mubr.bf16.mxu0 %v1089
  %6253 = vmatmul.mubr.bf16.gmra.mrb[0].mxu0 %v1088
  %v6254 = vpop.f32.mrb[0].mxu0
  %v6255 = vadd.f32 %v691, %v6254
  %v6256 = vpop.f32.mrb[0].mxu0
  %v6257 = vadd.f32 %v695, %v6256
  %v6258 = vpop.f32.mrb[0].mxu0
  %v6259 = vadd.f32 %v691, %v6258
  %v6260 = vpop.f32.mrb[0].mxu0
  %v6261 = vadd.f32 %v695, %v6260
  %6262 = vmatprep.mubr.bf16.mxu0 %v1097
  %6263 = vmatmul.mubr.bf16.gmra.mrb[0].mxu0 %v1096
  %v6264 = vpop.f32.mrb[0].mxu0
  %v6265 = vadd.f32 %v691, %v6264
  %v6266 = vpop.f32.mrb[0].mxu0
  %v6267 = vadd.f32 %v695, %v6266
  %v6268 = vpop.f32.mrb[0].mxu0
  %v6269 = vadd.f32 %v691, %v6268
  %v6270 = vpop.f32.mrb[0].mxu0
  %v6271 = vadd.f32 %v695, %v6270
  %6272 = vmatprep.mubr.bf16.mxu0 %v1105
  %6273 = vmatmul.mubr.bf16.gmra.mrb[0].mxu0 %v1104
  %v6274 = vpop.f32.mrb[0].mxu0
  %v6275 = vadd.f32 %v691, %v6274
  %v6276 = vpop.f32.mrb[0].mxu0
  %v6277 = vadd.f32 %v695, %v6276
  %v6278 = vpop.f32.mrb[0].mxu0
  %v6279 = vadd.f32 %v691, %v6278
  %v6280 = vpop.f32.mrb[0].mxu0
  %v6281 = vadd.f32 %v695, %v6280
  %6282 = vmatprep.mubr.bf16.mxu0 %v1113
  %6283 = vmatmul.mubr.bf16.gmra.mrb[0].mxu0 %v1112
  %v6284 = vpop.f32.mrb[0].mxu0
  %v6285 = vadd.f32 %v691, %v6284
  %v6286 = vpop.f32.mrb[0].mxu0
  %v6287 = vadd.f32 %v695, %v6286
  %v6288 = vpop.f32.mrb[0].mxu0
  %v6289 = vadd.f32 %v691, %v6288
  %v6290 = vpop.f32.mrb[0].mxu0
  %v6291 = vadd.f32 %v695, %v6290
  %6292 = vmatprep.mubr.bf16.mxu0 %v1121
  %6293 = vmatmul.mubr.bf16.gmra.mrb[0].mxu0 %v1120
  %v6294 = vpop.f32.mrb[0].mxu0
  %v6295 = vadd.f32 %v691, %v6294
  %v6296 = vpop.f32.mrb[0].mxu0
  %v6297 = vadd.f32 %v695, %v6296
  %v6298 = vpop.f32.mrb[0].mxu0
  %v6299 = vadd.f32 %v691, %v6298
  %v6300 = vpop.f32.mrb[0].mxu0
  %v6301 = vadd.f32 %v695, %v6300
  %6302 = vmatprep.mubr.bf16.mxu0 %v1129
  %6303 = vmatmul.mubr.bf16.gmra.mrb[0].mxu0 %v1128
  %v6304 = vpop.f32.mrb[0].mxu0
  %v6305 = vadd.f32 %v691, %v6304
  %v6306 = vpop.f32.mrb[0].mxu0
  %v6307 = vadd.f32 %v695, %v6306
  %v6308 = vpop.f32.mrb[0].mxu0
  %v6309 = vadd.f32 %v691, %v6308
  %v6310 = vpop.f32.mrb[0].mxu0
  %v6311 = vadd.f32 %v695, %v6310
  %6312 = vmatprep.mubr.bf16.mxu0 %v1137
  %6313 = vmatmul.mubr.bf16.gmra.mrb[0].mxu0 %v1136
  %v6314 = vpop.f32.mrb[0].mxu0
  %v6315 = vadd.f32 %v691, %v6314
  %v6316 = vpop.f32.mrb[0].mxu0
  %v6317 = vadd.f32 %v695, %v6316
  %v6318 = vpop.f32.mrb[0].mxu0
  %v6319 = vadd.f32 %v691, %v6318
  %v6320 = vpop.f32.mrb[0].mxu0
  %v6321 = vadd.f32 %v695, %v6320
  %6322 = vmatprep.mubr.bf16.mxu0 %v1145
  %6323 = vmatmul.mubr.bf16.gmra.mrb[0].mxu0 %v1144
  %v6324 = vpop.f32.mrb[0].mxu0
  %v6325 = vadd.f32 %v691, %v6324
  %v6326 = vpop.f32.mrb[0].mxu0
  %v6327 = vadd.f32 %v695, %v6326
  %v6328 = vpop.f32.mrb[0].mxu0
  %v6329 = vadd.f32 %v691, %v6328
  %v6330 = vpop.f32.mrb[0].mxu0
  %v6331 = vadd.f32 %v695, %v6330
  %6332 = vmatprep.mubr.bf16.mxu0 %v1153
  %6333 = vmatmul.mubr.bf16.gmra.mrb[0].mxu0 %v1152
  %v6334 = vpop.f32.mrb[0].mxu0
  %v6335 = vadd.f32 %v691, %v6334
  %v6336 = vpop.f32.mrb[0].mxu0
  %v6337 = vadd.f32 %v695, %v6336
  %v6338 = vpop.f32.mrb[0].mxu0
  %v6339 = vadd.f32 %v691, %v6338
  %v6340 = vpop.f32.mrb[0].mxu0
  %v6341 = vadd.f32 %v695, %v6340
  %6342 = vmatprep.mubr.bf16.mxu0 %v1161
  %6343 = vmatmul.mubr.bf16.gmra.mrb[0].mxu0 %v1160
  %v6344 = vpop.f32.mrb[0].mxu0
  %v6345 = vadd.f32 %v691, %v6344
  %v6346 = vpop.f32.mrb[0].mxu0
  %v6347 = vadd.f32 %v695, %v6346
  %v6348 = vpop.f32.mrb[0].mxu0
  %v6349 = vadd.f32 %v691, %v6348
  %v6350 = vpop.f32.mrb[0].mxu0
  %v6351 = vadd.f32 %v695, %v6350
  %6352 = vmatprep.mubr.bf16.mxu0 %v1169
  %6353 = vmatmul.mubr.bf16.gmra.mrb[0].mxu0 %v1168
  %v6354 = vpop.f32.mrb[0].mxu0
  %v6355 = vadd.f32 %v691, %v6354
  %v6356 = vpop.f32.mrb[0].mxu0
  %v6357 = vadd.f32 %v695, %v6356
  %v6358 = vpop.f32.mrb[0].mxu0
  %v6359 = vadd.f32 %v691, %v6358
  %v6360 = vpop.f32.mrb[0].mxu0
  %v6361 = vadd.f32 %v695, %v6360
  %6362 = vmatprep.mubr.bf16.mxu0 %v1177
  %6363 = vmatmul.mubr.bf16.gmra.mrb[0].mxu0 %v1176
  %v6364 = vpop.f32.mrb[0].mxu0
  %v6365 = vadd.f32 %v691, %v6364
  %v6366 = vpop.f32.mrb[0].mxu0
  %v6367 = vadd.f32 %v695, %v6366
  %v6368 = vpop.f32.mrb[0].mxu0
  %v6369 = vadd.f32 %v691, %v6368
  %v6370 = vpop.f32.mrb[0].mxu0
  %v6371 = vadd.f32 %v695, %v6370
  %6372 = vmatprep.mubr.bf16.mxu0 %v1185
  %6373 = vmatmul.mubr.bf16.gmra.mrb[0].mxu0 %v1184
  %v6374 = vpop.f32.mrb[0].mxu0
  %v6375 = vadd.f32 %v691, %v6374
  %v6376 = vpop.f32.mrb[0].mxu0
  %v6377 = vadd.f32 %v695, %v6376
  %v6378 = vpop.f32.mrb[0].mxu0
  %v6379 = vadd.f32 %v691, %v6378
  %v6380 = vpop.f32.mrb[0].mxu0
  %v6381 = vadd.f32 %v695, %v6380
  %6382 = vmatprep.mubr.bf16.mxu0 %v1193
  %6383 = vmatmul.mubr.bf16.gmra.mrb[0].mxu0 %v1192
  %v6384 = vpop.f32.mrb[0].mxu0
  %v6385 = vadd.f32 %v691, %v6384
  %v6386 = vpop.f32.mrb[0].mxu0
  %v6387 = vadd.f32 %v695, %v6386
  %v6388 = vpop.f32.mrb[0].mxu0
  %v6389 = vadd.f32 %v691, %v6388
  %v6390 = vpop.f32.mrb[0].mxu0
  %v6391 = vadd.f32 %v695, %v6390
  %6392 = vmatprep.mubr.bf16.mxu0 %v1201
  %6393 = vmatmul.mubr.bf16.gmra.mrb[0].mxu0 %v1200
  %v6394 = vpop.f32.mrb[0].mxu0
  %v6395 = vadd.f32 %v691, %v6394
  %v6396 = vpop.f32.mrb[0].mxu0
  %v6397 = vadd.f32 %v695, %v6396
  %v6398 = vpop.f32.mrb[0].mxu0
  %v6399 = vadd.f32 %v691, %v6398
  %v6400 = vpop.f32.mrb[0].mxu0
  %v6401 = vadd.f32 %v695, %v6400
  %6402 = vmatprep.mubr.bf16.mxu0 %v1209
  %6403 = vmatmul.mubr.bf16.gmra.mrb[0].mxu0 %v1208
  %v6404 = vpop.f32.mrb[0].mxu0
  %v6405 = vadd.f32 %v691, %v6404
  %v6406 = vpop.f32.mrb[0].mxu0
  %v6407 = vadd.f32 %v695, %v6406
  %v6408 = vpop.f32.mrb[0].mxu0
  %v6409 = vadd.f32 %v691, %v6408
  %v6410 = vpop.f32.mrb[0].mxu0
  %v6411 = vadd.f32 %v695, %v6410
  %6412 = vdwg.mxu0
  %6413 = vmatprep.subr.bf16.mxu0 %v3015
  %6414 = vmatpush1.bf16.msra.mxu0 %v3014
  %6415 = vmatprep.subr.bf16.mxu0 %v3023
  %6416 = vmatpush1.bf16.msra.mxu0 %v3022
  %6417 = vmatprep.subr.bf16.mxu0 %v3031
  %6418 = vmatpush1.bf16.msra.mxu0 %v3030
  %6419 = vmatprep.subr.bf16.mxu0 %v3039
  %6420 = vmatpush1.bf16.msra.mxu0 %v3038
  %6421 = vmatprep.subr.bf16.mxu0 %v3047
  %6422 = vmatpush1.bf16.msra.mxu0 %v3046
  %6423 = vmatprep.subr.bf16.mxu0 %v3055
  %6424 = vmatpush1.bf16.msra.mxu0 %v3054
  %6425 = vmatprep.subr.bf16.mxu0 %v3063
  %6426 = vmatpush1.bf16.msra.mxu0 %v3062
  %6427 = vmatprep.subr.bf16.mxu0 %v3071
  %6428 = vmatpush1.bf16.msra.mxu0 %v3070
  %6429 = vmatprep.subr.bf16.mxu0 %v3079
  %6430 = vmatpush1.bf16.msra.mxu0 %v3078
  %6431 = vmatprep.subr.bf16.mxu0 %v3087
  %6432 = vmatpush1.bf16.msra.mxu0 %v3086
  %6433 = vmatprep.subr.bf16.mxu0 %v3095
  %6434 = vmatpush1.bf16.msra.mxu0 %v3094
  %6435 = vmatprep.subr.bf16.mxu0 %v3103
  %6436 = vmatpush1.bf16.msra.mxu0 %v3102
  %6437 = vmatprep.subr.bf16.mxu0 %v3111
  %6438 = vmatpush1.bf16.msra.mxu0 %v3110
  %6439 = vmatprep.subr.bf16.mxu0 %v3119
  %6440 = vmatpush1.bf16.msra.mxu0 %v3118
  %6441 = vmatprep.subr.bf16.mxu0 %v3127
  %6442 = vmatpush1.bf16.msra.mxu0 %v3126
  %6443 = vmatprep.subr.bf16.mxu0 %v3135
  %6444 = vmatpush1.bf16.msra.mxu0 %v3134
  %6445 = vmatprep.mubr.bf16.mxu0 %v1091
  %6446 = vmatmul.mubr.bf16.gmra.mrb[0].mxu0 %v1090
  %v6447 = vpop.f32.mrb[0].mxu0
  %v6448 = vadd.f32 %v6255, %v6447
  %v6449 = vpop.f32.mrb[0].mxu0
  %v6450 = vadd.f32 %v6257, %v6449
  %v6451 = vpop.f32.mrb[0].mxu0
  %v6452 = vadd.f32 %v6259, %v6451
  %v6453 = vpop.f32.mrb[0].mxu0
  %v6454 = vadd.f32 %v6261, %v6453
  %6455 = vmatprep.mubr.bf16.mxu0 %v1099
  %6456 = vmatmul.mubr.bf16.gmra.mrb[0].mxu0 %v1098
  %v6457 = vpop.f32.mrb[0].mxu0
  %v6458 = vadd.f32 %v6265, %v6457
  %v6459 = vpop.f32.mrb[0].mxu0
  %v6460 = vadd.f32 %v6267, %v6459
  %v6461 = vpop.f32.mrb[0].mxu0
  %v6462 = vadd.f32 %v6269, %v6461
  %v6463 = vpop.f32.mrb[0].mxu0
  %v6464 = vadd.f32 %v6271, %v6463
  %6465 = vmatprep.mubr.bf16.mxu0 %v1107
  %6466 = vmatmul.mubr.bf16.gmra.mrb[0].mxu0 %v1106
  %v6467 = vpop.f32.mrb[0].mxu0
  %v6468 = vadd.f32 %v6275, %v6467
  %v6469 = vpop.f32.mrb[0].mxu0
  %v6470 = vadd.f32 %v6277, %v6469
  %v6471 = vpop.f32.mrb[0].mxu0
  %v6472 = vadd.f32 %v6279, %v6471
  %v6473 = vpop.f32.mrb[0].mxu0
  %v6474 = vadd.f32 %v6281, %v6473
  %6475 = vmatprep.mubr.bf16.mxu0 %v1115
  %6476 = vmatmul.mubr.bf16.gmra.mrb[0].mxu0 %v1114
  %v6477 = vpop.f32.mrb[0].mxu0
  %v6478 = vadd.f32 %v6285, %v6477
  %v6479 = vpop.f32.mrb[0].mxu0
  %v6480 = vadd.f32 %v6287, %v6479
  %v6481 = vpop.f32.mrb[0].mxu0
  %v6482 = vadd.f32 %v6289, %v6481
  %v6483 = vpop.f32.mrb[0].mxu0
  %v6484 = vadd.f32 %v6291, %v6483
  %6485 = vmatprep.mubr.bf16.mxu0 %v1123
  %6486 = vmatmul.mubr.bf16.gmra.mrb[0].mxu0 %v1122
  %v6487 = vpop.f32.mrb[0].mxu0
  %v6488 = vadd.f32 %v6295, %v6487
  %v6489 = vpop.f32.mrb[0].mxu0
  %v6490 = vadd.f32 %v6297, %v6489
  %v6491 = vpop.f32.mrb[0].mxu0
  %v6492 = vadd.f32 %v6299, %v6491
  %v6493 = vpop.f32.mrb[0].mxu0
  %v6494 = vadd.f32 %v6301, %v6493
  %6495 = vmatprep.mubr.bf16.mxu0 %v1131
  %6496 = vmatmul.mubr.bf16.gmra.mrb[0].mxu0 %v1130
  %v6497 = vpop.f32.mrb[0].mxu0
  %v6498 = vadd.f32 %v6305, %v6497
  %v6499 = vpop.f32.mrb[0].mxu0
  %v6500 = vadd.f32 %v6307, %v6499
  %v6501 = vpop.f32.mrb[0].mxu0
  %v6502 = vadd.f32 %v6309, %v6501
  %v6503 = vpop.f32.mrb[0].mxu0
  %v6504 = vadd.f32 %v6311, %v6503
  %6505 = vmatprep.mubr.bf16.mxu0 %v1139
  %6506 = vmatmul.mubr.bf16.gmra.mrb[0].mxu0 %v1138
  %v6507 = vpop.f32.mrb[0].mxu0
  %v6508 = vadd.f32 %v6315, %v6507
  %v6509 = vpop.f32.mrb[0].mxu0
  %v6510 = vadd.f32 %v6317, %v6509
  %v6511 = vpop.f32.mrb[0].mxu0
  %v6512 = vadd.f32 %v6319, %v6511
  %v6513 = vpop.f32.mrb[0].mxu0
  %v6514 = vadd.f32 %v6321, %v6513
  %6515 = vmatprep.mubr.bf16.mxu0 %v1147
  %6516 = vmatmul.mubr.bf16.gmra.mrb[0].mxu0 %v1146
  %v6517 = vpop.f32.mrb[0].mxu0
  %v6518 = vadd.f32 %v6325, %v6517
  %v6519 = vpop.f32.mrb[0].mxu0
  %v6520 = vadd.f32 %v6327, %v6519
  %v6521 = vpop.f32.mrb[0].mxu0
  %v6522 = vadd.f32 %v6329, %v6521
  %v6523 = vpop.f32.mrb[0].mxu0
  %v6524 = vadd.f32 %v6331, %v6523
  %6525 = vmatprep.mubr.bf16.mxu0 %v1155
  %6526 = vmatmul.mubr.bf16.gmra.mrb[0].mxu0 %v1154
  %v6527 = vpop.f32.mrb[0].mxu0
  %v6528 = vadd.f32 %v6335, %v6527
  %v6529 = vpop.f32.mrb[0].mxu0
  %v6530 = vadd.f32 %v6337, %v6529
  %v6531 = vpop.f32.mrb[0].mxu0
  %v6532 = vadd.f32 %v6339, %v6531
  %v6533 = vpop.f32.mrb[0].mxu0
  %v6534 = vadd.f32 %v6341, %v6533
  %6535 = vmatprep.mubr.bf16.mxu0 %v1163
  %6536 = vmatmul.mubr.bf16.gmra.mrb[0].mxu0 %v1162
  %v6537 = vpop.f32.mrb[0].mxu0
  %v6538 = vadd.f32 %v6345, %v6537
  %v6539 = vpop.f32.mrb[0].mxu0
  %v6540 = vadd.f32 %v6347, %v6539
  %v6541 = vpop.f32.mrb[0].mxu0
  %v6542 = vadd.f32 %v6349, %v6541
  %v6543 = vpop.f32.mrb[0].mxu0
  %v6544 = vadd.f32 %v6351, %v6543
  %6545 = vmatprep.mubr.bf16.mxu0 %v1171
  %6546 = vmatmul.mubr.bf16.gmra.mrb[0].mxu0 %v1170
  %v6547 = vpop.f32.mrb[0].mxu0
  %v6548 = vadd.f32 %v6355, %v6547
  %v6549 = vpop.f32.mrb[0].mxu0
  %v6550 = vadd.f32 %v6357, %v6549
  %v6551 = vpop.f32.mrb[0].mxu0
  %v6552 = vadd.f32 %v6359, %v6551
  %v6553 = vpop.f32.mrb[0].mxu0
  %v6554 = vadd.f32 %v6361, %v6553
  %6555 = vmatprep.mubr.bf16.mxu0 %v1179
  %6556 = vmatmul.mubr.bf16.gmra.mrb[0].mxu0 %v1178
  %v6557 = vpop.f32.mrb[0].mxu0
  %v6558 = vadd.f32 %v6365, %v6557
  %v6559 = vpop.f32.mrb[0].mxu0
  %v6560 = vadd.f32 %v6367, %v6559
  %v6561 = vpop.f32.mrb[0].mxu0
  %v6562 = vadd.f32 %v6369, %v6561
  %v6563 = vpop.f32.mrb[0].mxu0
  %v6564 = vadd.f32 %v6371, %v6563
  %6565 = vmatprep.mubr.bf16.mxu0 %v1187
  %6566 = vmatmul.mubr.bf16.gmra.mrb[0].mxu0 %v1186
  %v6567 = vpop.f32.mrb[0].mxu0
  %v6568 = vadd.f32 %v6375, %v6567
  %v6569 = vpop.f32.mrb[0].mxu0
  %v6570 = vadd.f32 %v6377, %v6569
  %v6571 = vpop.f32.mrb[0].mxu0
  %v6572 = vadd.f32 %v6379, %v6571
  %v6573 = vpop.f32.mrb[0].mxu0
  %v6574 = vadd.f32 %v6381, %v6573
  %6575 = vmatprep.mubr.bf16.mxu0 %v1195
  %6576 = vmatmul.mubr.bf16.gmra.mrb[0].mxu0 %v1194
  %v6577 = vpop.f32.mrb[0].mxu0
  %v6578 = vadd.f32 %v6385, %v6577
  %v6579 = vpop.f32.mrb[0].mxu0
  %v6580 = vadd.f32 %v6387, %v6579
  %v6581 = vpop.f32.mrb[0].mxu0
  %v6582 = vadd.f32 %v6389, %v6581
  %v6583 = vpop.f32.mrb[0].mxu0
  %v6584 = vadd.f32 %v6391, %v6583
  %6585 = vmatprep.mubr.bf16.mxu0 %v1203
  %6586 = vmatmul.mubr.bf16.gmra.mrb[0].mxu0 %v1202
  %v6587 = vpop.f32.mrb[0].mxu0
  %v6588 = vadd.f32 %v6395, %v6587
  %v6589 = vpop.f32.mrb[0].mxu0
  %v6590 = vadd.f32 %v6397, %v6589
  %v6591 = vpop.f32.mrb[0].mxu0
  %v6592 = vadd.f32 %v6399, %v6591
  %v6593 = vpop.f32.mrb[0].mxu0
  %v6594 = vadd.f32 %v6401, %v6593
  %6595 = vmatprep.mubr.bf16.mxu0 %v1211
  %6596 = vmatmul.mubr.bf16.gmra.mrb[0].mxu0 %v1210
  %v6597 = vpop.f32.mrb[0].mxu0
  %v6598 = vadd.f32 %v6405, %v6597
  %v6599 = vpop.f32.mrb[0].mxu0
  %v6600 = vadd.f32 %v6407, %v6599
  %v6601 = vpop.f32.mrb[0].mxu0
  %v6602 = vadd.f32 %v6409, %v6601
  %v6603 = vpop.f32.mrb[0].mxu0
  %v6604 = vadd.f32 %v6411, %v6603
  %6605 = vdwg.mxu0
  %6606 = vmatprep.subr.bf16.mxu0 %v3143
  %6607 = vmatpush1.bf16.msra.mxu0 %v3142
  %6608 = vmatprep.subr.bf16.mxu0 %v3151
  %6609 = vmatpush1.bf16.msra.mxu0 %v3150
  %6610 = vmatprep.subr.bf16.mxu0 %v3159
  %6611 = vmatpush1.bf16.msra.mxu0 %v3158
  %6612 = vmatprep.subr.bf16.mxu0 %v3167
  %6613 = vmatpush1.bf16.msra.mxu0 %v3166
  %6614 = vmatprep.subr.bf16.mxu0 %v3175
  %6615 = vmatpush1.bf16.msra.mxu0 %v3174
  %6616 = vmatprep.subr.bf16.mxu0 %v3183
  %6617 = vmatpush1.bf16.msra.mxu0 %v3182
  %6618 = vmatprep.subr.bf16.mxu0 %v3191
  %6619 = vmatpush1.bf16.msra.mxu0 %v3190
  %6620 = vmatprep.subr.bf16.mxu0 %v3199
  %6621 = vmatpush1.bf16.msra.mxu0 %v3198
  %6622 = vmatprep.subr.bf16.mxu0 %v3207
  %6623 = vmatpush1.bf16.msra.mxu0 %v3206
  %6624 = vmatprep.subr.bf16.mxu0 %v3215
  %6625 = vmatpush1.bf16.msra.mxu0 %v3214
  %6626 = vmatprep.subr.bf16.mxu0 %v3223
  %6627 = vmatpush1.bf16.msra.mxu0 %v3222
  %6628 = vmatprep.subr.bf16.mxu0 %v3231
  %6629 = vmatpush1.bf16.msra.mxu0 %v3230
  %6630 = vmatprep.subr.bf16.mxu0 %v3239
  %6631 = vmatpush1.bf16.msra.mxu0 %v3238
  %6632 = vmatprep.subr.bf16.mxu0 %v3247
  %6633 = vmatpush1.bf16.msra.mxu0 %v3246
  %6634 = vmatprep.subr.bf16.mxu0 %v3255
  %6635 = vmatpush1.bf16.msra.mxu0 %v3254
  %6636 = vmatprep.subr.bf16.mxu0 %v3263
  %6637 = vmatpush1.bf16.msra.mxu0 %v3262
  %6638 = vmatprep.mubr.bf16.mxu0 %v1093
  %6639 = vmatmul.mubr.bf16.gmra.mrb[0].mxu0 %v1092
  %v6640 = vpop.f32.mrb[0].mxu0
  %v6641 = vadd.f32 %v6448, %v6640
  %v6642 = vpop.f32.mrb[0].mxu0
  %v6643 = vadd.f32 %v6450, %v6642
  %v6644 = vpop.f32.mrb[0].mxu0
  %v6645 = vadd.f32 %v6452, %v6644
  %v6646 = vpop.f32.mrb[0].mxu0
  %v6647 = vadd.f32 %v6454, %v6646
  %6648 = vmatprep.mubr.bf16.mxu0 %v1101
  %6649 = vmatmul.mubr.bf16.gmra.mrb[0].mxu0 %v1100
  %v6650 = vpop.f32.mrb[0].mxu0
  %v6651 = vadd.f32 %v6458, %v6650
  %v6652 = vpop.f32.mrb[0].mxu0
  %v6653 = vadd.f32 %v6460, %v6652
  %v6654 = vpop.f32.mrb[0].mxu0
  %v6655 = vadd.f32 %v6462, %v6654
  %v6656 = vpop.f32.mrb[0].mxu0
  %v6657 = vadd.f32 %v6464, %v6656
  %6658 = vmatprep.mubr.bf16.mxu0 %v1109
  %6659 = vmatmul.mubr.bf16.gmra.mrb[0].mxu0 %v1108
  %v6660 = vpop.f32.mrb[0].mxu0
  %v6661 = vadd.f32 %v6468, %v6660
  %v6662 = vpop.f32.mrb[0].mxu0
  %v6663 = vadd.f32 %v6470, %v6662
  %v6664 = vpop.f32.mrb[0].mxu0
  %v6665 = vadd.f32 %v6472, %v6664
  %v6666 = vpop.f32.mrb[0].mxu0
  %v6667 = vadd.f32 %v6474, %v6666
  %6668 = vmatprep.mubr.bf16.mxu0 %v1117
  %6669 = vmatmul.mubr.bf16.gmra.mrb[0].mxu0 %v1116
  %v6670 = vpop.f32.mrb[0].mxu0
  %v6671 = vadd.f32 %v6478, %v6670
  %v6672 = vpop.f32.mrb[0].mxu0
  %v6673 = vadd.f32 %v6480, %v6672
  %v6674 = vpop.f32.mrb[0].mxu0
  %v6675 = vadd.f32 %v6482, %v6674
  %v6676 = vpop.f32.mrb[0].mxu0
  %v6677 = vadd.f32 %v6484, %v6676
  %6678 = vmatprep.mubr.bf16.mxu0 %v1125
  %6679 = vmatmul.mubr.bf16.gmra.mrb[0].mxu0 %v1124
  %v6680 = vpop.f32.mrb[0].mxu0
  %v6681 = vadd.f32 %v6488, %v6680
  %v6682 = vpop.f32.mrb[0].mxu0
  %v6683 = vadd.f32 %v6490, %v6682
  %v6684 = vpop.f32.mrb[0].mxu0
  %v6685 = vadd.f32 %v6492, %v6684
  %v6686 = vpop.f32.mrb[0].mxu0
  %v6687 = vadd.f32 %v6494, %v6686
  %6688 = vmatprep.mubr.bf16.mxu0 %v1133
  %6689 = vmatmul.mubr.bf16.gmra.mrb[0].mxu0 %v1132
  %v6690 = vpop.f32.mrb[0].mxu0
  %v6691 = vadd.f32 %v6498, %v6690
  %v6692 = vpop.f32.mrb[0].mxu0
  %v6693 = vadd.f32 %v6500, %v6692
  %v6694 = vpop.f32.mrb[0].mxu0
  %v6695 = vadd.f32 %v6502, %v6694
  %v6696 = vpop.f32.mrb[0].mxu0
  %v6697 = vadd.f32 %v6504, %v6696
  %6698 = vmatprep.mubr.bf16.mxu0 %v1141
  %6699 = vmatmul.mubr.bf16.gmra.mrb[0].mxu0 %v1140
  %v6700 = vpop.f32.mrb[0].mxu0
  %v6701 = vadd.f32 %v6508, %v6700
  %v6702 = vpop.f32.mrb[0].mxu0
  %v6703 = vadd.f32 %v6510, %v6702
  %v6704 = vpop.f32.mrb[0].mxu0
  %v6705 = vadd.f32 %v6512, %v6704
  %v6706 = vpop.f32.mrb[0].mxu0
  %v6707 = vadd.f32 %v6514, %v6706
  %6708 = vmatprep.mubr.bf16.mxu0 %v1149
  %6709 = vmatmul.mubr.bf16.gmra.mrb[0].mxu0 %v1148
  %v6710 = vpop.f32.mrb[0].mxu0
  %v6711 = vadd.f32 %v6518, %v6710
  %v6712 = vpop.f32.mrb[0].mxu0
  %v6713 = vadd.f32 %v6520, %v6712
  %v6714 = vpop.f32.mrb[0].mxu0
  %v6715 = vadd.f32 %v6522, %v6714
  %v6716 = vpop.f32.mrb[0].mxu0
  %v6717 = vadd.f32 %v6524, %v6716
  %6718 = vmatprep.mubr.bf16.mxu0 %v1157
  %6719 = vmatmul.mubr.bf16.gmra.mrb[0].mxu0 %v1156
  %v6720 = vpop.f32.mrb[0].mxu0
  %v6721 = vadd.f32 %v6528, %v6720
  %v6722 = vpop.f32.mrb[0].mxu0
  %v6723 = vadd.f32 %v6530, %v6722
  %v6724 = vpop.f32.mrb[0].mxu0
  %v6725 = vadd.f32 %v6532, %v6724
  %v6726 = vpop.f32.mrb[0].mxu0
  %v6727 = vadd.f32 %v6534, %v6726
  %6728 = vmatprep.mubr.bf16.mxu0 %v1165
  %6729 = vmatmul.mubr.bf16.gmra.mrb[0].mxu0 %v1164
  %v6730 = vpop.f32.mrb[0].mxu0
  %v6731 = vadd.f32 %v6538, %v6730
  %v6732 = vpop.f32.mrb[0].mxu0
  %v6733 = vadd.f32 %v6540, %v6732
  %v6734 = vpop.f32.mrb[0].mxu0
  %v6735 = vadd.f32 %v6542, %v6734
  %v6736 = vpop.f32.mrb[0].mxu0
  %v6737 = vadd.f32 %v6544, %v6736
  %6738 = vmatprep.mubr.bf16.mxu0 %v1173
  %6739 = vmatmul.mubr.bf16.gmra.mrb[0].mxu0 %v1172
  %v6740 = vpop.f32.mrb[0].mxu0
  %v6741 = vadd.f32 %v6548, %v6740
  %v6742 = vpop.f32.mrb[0].mxu0
  %v6743 = vadd.f32 %v6550, %v6742
  %v6744 = vpop.f32.mrb[0].mxu0
  %v6745 = vadd.f32 %v6552, %v6744
  %v6746 = vpop.f32.mrb[0].mxu0
  %v6747 = vadd.f32 %v6554, %v6746
  %6748 = vmatprep.mubr.bf16.mxu0 %v1181
  %6749 = vmatmul.mubr.bf16.gmra.mrb[0].mxu0 %v1180
  %v6750 = vpop.f32.mrb[0].mxu0
  %v6751 = vadd.f32 %v6558, %v6750
  %v6752 = vpop.f32.mrb[0].mxu0
  %v6753 = vadd.f32 %v6560, %v6752
  %v6754 = vpop.f32.mrb[0].mxu0
  %v6755 = vadd.f32 %v6562, %v6754
  %v6756 = vpop.f32.mrb[0].mxu0
  %v6757 = vadd.f32 %v6564, %v6756
  %6758 = vmatprep.mubr.bf16.mxu0 %v1189
  %6759 = vmatmul.mubr.bf16.gmra.mrb[0].mxu0 %v1188
  %v6760 = vpop.f32.mrb[0].mxu0
  %v6761 = vadd.f32 %v6568, %v6760
  %v6762 = vpop.f32.mrb[0].mxu0
  %v6763 = vadd.f32 %v6570, %v6762
  %v6764 = vpop.f32.mrb[0].mxu0
  %v6765 = vadd.f32 %v6572, %v6764
  %v6766 = vpop.f32.mrb[0].mxu0
  %v6767 = vadd.f32 %v6574, %v6766
  %6768 = vmatprep.mubr.bf16.mxu0 %v1197
  %6769 = vmatmul.mubr.bf16.gmra.mrb[0].mxu0 %v1196
  %v6770 = vpop.f32.mrb[0].mxu0
  %v6771 = vadd.f32 %v6578, %v6770
  %v6772 = vpop.f32.mrb[0].mxu0
  %v6773 = vadd.f32 %v6580, %v6772
  %v6774 = vpop.f32.mrb[0].mxu0
  %v6775 = vadd.f32 %v6582, %v6774
  %v6776 = vpop.f32.mrb[0].mxu0
  %v6777 = vadd.f32 %v6584, %v6776
  %6778 = vmatprep.mubr.bf16.mxu0 %v1205
  %6779 = vmatmul.mubr.bf16.gmra.mrb[0].mxu0 %v1204
  %v6780 = vpop.f32.mrb[0].mxu0
  %v6781 = vadd.f32 %v6588, %v6780
  %v6782 = vpop.f32.mrb[0].mxu0
  %v6783 = vadd.f32 %v6590, %v6782
  %v6784 = vpop.f32.mrb[0].mxu0
  %v6785 = vadd.f32 %v6592, %v6784
  %v6786 = vpop.f32.mrb[0].mxu0
  %v6787 = vadd.f32 %v6594, %v6786
  %6788 = vmatprep.mubr.bf16.mxu0 %v1213
  %6789 = vmatmul.mubr.bf16.gmra.mrb[0].mxu0 %v1212
  %v6790 = vpop.f32.mrb[0].mxu0
  %v6791 = vadd.f32 %v6598, %v6790
  %v6792 = vpop.f32.mrb[0].mxu0
  %v6793 = vadd.f32 %v6600, %v6792
  %v6794 = vpop.f32.mrb[0].mxu0
  %v6795 = vadd.f32 %v6602, %v6794
  %v6796 = vpop.f32.mrb[0].mxu0
  %v6797 = vadd.f32 %v6604, %v6796
  %6798 = vdwg.mxu0
  %6799 = vmatprep.subr.bf16.mxu0 %v3271
  %6800 = vmatpush1.bf16.msra.mxu0 %v3270
  %6801 = vmatprep.subr.bf16.mxu0 %v3279
  %6802 = vmatpush1.bf16.msra.mxu0 %v3278
  %6803 = vmatprep.subr.bf16.mxu0 %v3287
  %6804 = vmatpush1.bf16.msra.mxu0 %v3286
  %6805 = vmatprep.subr.bf16.mxu0 %v3295
  %6806 = vmatpush1.bf16.msra.mxu0 %v3294
  %6807 = vmatprep.subr.bf16.mxu0 %v3303
  %6808 = vmatpush1.bf16.msra.mxu0 %v3302
  %6809 = vmatprep.subr.bf16.mxu0 %v3311
  %6810 = vmatpush1.bf16.msra.mxu0 %v3310
  %6811 = vmatprep.subr.bf16.mxu0 %v3319
  %6812 = vmatpush1.bf16.msra.mxu0 %v3318
  %6813 = vmatprep.subr.bf16.mxu0 %v3327
  %6814 = vmatpush1.bf16.msra.mxu0 %v3326
  %6815 = vmatprep.subr.bf16.mxu0 %v3335
  %6816 = vmatpush1.bf16.msra.mxu0 %v3334
  %6817 = vmatprep.subr.bf16.mxu0 %v3343
  %6818 = vmatpush1.bf16.msra.mxu0 %v3342
  %6819 = vmatprep.subr.bf16.mxu0 %v3351
  %6820 = vmatpush1.bf16.msra.mxu0 %v3350
  %6821 = vmatprep.subr.bf16.mxu0 %v3359
  %6822 = vmatpush1.bf16.msra.mxu0 %v3358
  %6823 = vmatprep.subr.bf16.mxu0 %v3367
  %6824 = vmatpush1.bf16.msra.mxu0 %v3366
  %6825 = vmatprep.subr.bf16.mxu0 %v3375
  %6826 = vmatpush1.bf16.msra.mxu0 %v3374
  %6827 = vmatprep.subr.bf16.mxu0 %v3383
  %6828 = vmatpush1.bf16.msra.mxu0 %v3382
  %6829 = vmatprep.subr.bf16.mxu0 %v3391
  %6830 = vmatpush1.bf16.msra.mxu0 %v3390
  %6831 = vmatprep.mubr.bf16.mxu0 %v1095
  %6832 = vmatmul.mubr.bf16.gmra.mrb[0].mxu0 %v1094
  %v6833 = vpop.f32.mrb[0].mxu0
  %v6834 = vadd.f32 %v6641, %v6833
  %v6835 = vpop.f32.mrb[0].mxu0
  %v6836 = vadd.f32 %v6643, %v6835
  %v6837 = vpop.f32.mrb[0].mxu0
  %v6838 = vadd.f32 %v6645, %v6837
  %v6839 = vpop.f32.mrb[0].mxu0
  %v6840 = vadd.f32 %v6647, %v6839
  %6841 = vmatprep.mubr.bf16.mxu0 %v1103
  %6842 = vmatmul.mubr.bf16.gmra.mrb[0].mxu0 %v1102
  %v6843 = vpop.f32.mrb[0].mxu0
  %v6844 = vadd.f32 %v6651, %v6843
  %v6845 = vpop.f32.mrb[0].mxu0
  %v6846 = vadd.f32 %v6653, %v6845
  %v6847 = vpop.f32.mrb[0].mxu0
  %v6848 = vadd.f32 %v6655, %v6847
  %v6849 = vpop.f32.mrb[0].mxu0
  %v6850 = vadd.f32 %v6657, %v6849
  %6851 = vmatprep.mubr.bf16.mxu0 %v1111
  %6852 = vmatmul.mubr.bf16.gmra.mrb[0].mxu0 %v1110
  %v6853 = vpop.f32.mrb[0].mxu0
  %v6854 = vadd.f32 %v6661, %v6853
  %v6855 = vpop.f32.mrb[0].mxu0
  %v6856 = vadd.f32 %v6663, %v6855
  %v6857 = vpop.f32.mrb[0].mxu0
  %v6858 = vadd.f32 %v6665, %v6857
  %v6859 = vpop.f32.mrb[0].mxu0
  %v6860 = vadd.f32 %v6667, %v6859
  %6861 = vmatprep.mubr.bf16.mxu0 %v1119
  %6862 = vmatmul.mubr.bf16.gmra.mrb[0].mxu0 %v1118
  %v6863 = vpop.f32.mrb[0].mxu0
  %v6864 = vadd.f32 %v6671, %v6863
  %v6865 = vpop.f32.mrb[0].mxu0
  %v6866 = vadd.f32 %v6673, %v6865
  %v6867 = vpop.f32.mrb[0].mxu0
  %v6868 = vadd.f32 %v6675, %v6867
  %v6869 = vpop.f32.mrb[0].mxu0
  %v6870 = vadd.f32 %v6677, %v6869
  %6871 = vmatprep.mubr.bf16.mxu0 %v1127
  %6872 = vmatmul.mubr.bf16.gmra.mrb[0].mxu0 %v1126
  %v6873 = vpop.f32.mrb[0].mxu0
  %v6874 = vadd.f32 %v6681, %v6873
  %v6875 = vpop.f32.mrb[0].mxu0
  %v6876 = vadd.f32 %v6683, %v6875
  %v6877 = vpop.f32.mrb[0].mxu0
  %v6878 = vadd.f32 %v6685, %v6877
  %v6879 = vpop.f32.mrb[0].mxu0
  %v6880 = vadd.f32 %v6687, %v6879
  %6881 = vmatprep.mubr.bf16.mxu0 %v1135
  %6882 = vmatmul.mubr.bf16.gmra.mrb[0].mxu0 %v1134
  %v6883 = vpop.f32.mrb[0].mxu0
  %v6884 = vadd.f32 %v6691, %v6883
  %v6885 = vpop.f32.mrb[0].mxu0
  %v6886 = vadd.f32 %v6693, %v6885
  %v6887 = vpop.f32.mrb[0].mxu0
  %v6888 = vadd.f32 %v6695, %v6887
  %v6889 = vpop.f32.mrb[0].mxu0
  %v6890 = vadd.f32 %v6697, %v6889
  %6891 = vmatprep.mubr.bf16.mxu0 %v1143
  %6892 = vmatmul.mubr.bf16.gmra.mrb[0].mxu0 %v1142
  %v6893 = vpop.f32.mrb[0].mxu0
  %v6894 = vadd.f32 %v6701, %v6893
  %v6895 = vpop.f32.mrb[0].mxu0
  %v6896 = vadd.f32 %v6703, %v6895
  %v6897 = vpop.f32.mrb[0].mxu0
  %v6898 = vadd.f32 %v6705, %v6897
  %v6899 = vpop.f32.mrb[0].mxu0
  %v6900 = vadd.f32 %v6707, %v6899
  %6901 = vmatprep.mubr.bf16.mxu0 %v1151
  %6902 = vmatmul.mubr.bf16.gmra.mrb[0].mxu0 %v1150
  %v6903 = vpop.f32.mrb[0].mxu0
  %v6904 = vadd.f32 %v6711, %v6903
  %v6905 = vpop.f32.mrb[0].mxu0
  %v6906 = vadd.f32 %v6713, %v6905
  %v6907 = vpop.f32.mrb[0].mxu0
  %v6908 = vadd.f32 %v6715, %v6907
  %v6909 = vpop.f32.mrb[0].mxu0
  %v6910 = vadd.f32 %v6717, %v6909
  %6911 = vmatprep.mubr.bf16.mxu0 %v1159
  %6912 = vmatmul.mubr.bf16.gmra.mrb[0].mxu0 %v1158
  %v6913 = vpop.f32.mrb[0].mxu0
  %v6914 = vadd.f32 %v6721, %v6913
  %v6915 = vpop.f32.mrb[0].mxu0
  %v6916 = vadd.f32 %v6723, %v6915
  %v6917 = vpop.f32.mrb[0].mxu0
  %v6918 = vadd.f32 %v6725, %v6917
  %v6919 = vpop.f32.mrb[0].mxu0
  %v6920 = vadd.f32 %v6727, %v6919
  %6921 = vmatprep.mubr.bf16.mxu0 %v1167
  %6922 = vmatmul.mubr.bf16.gmra.mrb[0].mxu0 %v1166
  %v6923 = vpop.f32.mrb[0].mxu0
  %v6924 = vadd.f32 %v6731, %v6923
  %v6925 = vpop.f32.mrb[0].mxu0
  %v6926 = vadd.f32 %v6733, %v6925
  %v6927 = vpop.f32.mrb[0].mxu0
  %v6928 = vadd.f32 %v6735, %v6927
  %v6929 = vpop.f32.mrb[0].mxu0
  %v6930 = vadd.f32 %v6737, %v6929
  %6931 = vmatprep.mubr.bf16.mxu0 %v1175
  %6932 = vmatmul.mubr.bf16.gmra.mrb[0].mxu0 %v1174
  %v6933 = vpop.f32.mrb[0].mxu0
  %v6934 = vadd.f32 %v6741, %v6933
  %v6935 = vpop.f32.mrb[0].mxu0
  %v6936 = vadd.f32 %v6743, %v6935
  %v6937 = vpop.f32.mrb[0].mxu0
  %v6938 = vadd.f32 %v6745, %v6937
  %v6939 = vpop.f32.mrb[0].mxu0
  %v6940 = vadd.f32 %v6747, %v6939
  %6941 = vmatprep.mubr.bf16.mxu0 %v1183
  %6942 = vmatmul.mubr.bf16.gmra.mrb[0].mxu0 %v1182
  %v6943 = vpop.f32.mrb[0].mxu0
  %v6944 = vadd.f32 %v6751, %v6943
  %v6945 = vpop.f32.mrb[0].mxu0
  %v6946 = vadd.f32 %v6753, %v6945
  %v6947 = vpop.f32.mrb[0].mxu0
  %v6948 = vadd.f32 %v6755, %v6947
  %v6949 = vpop.f32.mrb[0].mxu0
  %v6950 = vadd.f32 %v6757, %v6949
  %6951 = vmatprep.mubr.bf16.mxu0 %v1191
  %6952 = vmatmul.mubr.bf16.gmra.mrb[0].mxu0 %v1190
  %v6953 = vpop.f32.mrb[0].mxu0
  %v6954 = vadd.f32 %v6761, %v6953
  %v6955 = vpop.f32.mrb[0].mxu0
  %v6956 = vadd.f32 %v6763, %v6955
  %v6957 = vpop.f32.mrb[0].mxu0
  %v6958 = vadd.f32 %v6765, %v6957
  %v6959 = vpop.f32.mrb[0].mxu0
  %v6960 = vadd.f32 %v6767, %v6959
  %6961 = vmatprep.mubr.bf16.mxu0 %v1199
  %6962 = vmatmul.mubr.bf16.gmra.mrb[0].mxu0 %v1198
  %v6963 = vpop.f32.mrb[0].mxu0
  %v6964 = vadd.f32 %v6771, %v6963
  %v6965 = vpop.f32.mrb[0].mxu0
  %v6966 = vadd.f32 %v6773, %v6965
  %v6967 = vpop.f32.mrb[0].mxu0
  %v6968 = vadd.f32 %v6775, %v6967
  %v6969 = vpop.f32.mrb[0].mxu0
  %v6970 = vadd.f32 %v6777, %v6969
  %6971 = vmatprep.mubr.bf16.mxu0 %v1207
  %6972 = vmatmul.mubr.bf16.gmra.mrb[0].mxu0 %v1206
  %v6973 = vpop.f32.mrb[0].mxu0
  %v6974 = vadd.f32 %v6781, %v6973
  %v6975 = vpop.f32.mrb[0].mxu0
  %v6976 = vadd.f32 %v6783, %v6975
  %v6977 = vpop.f32.mrb[0].mxu0
  %v6978 = vadd.f32 %v6785, %v6977
  %v6979 = vpop.f32.mrb[0].mxu0
  %v6980 = vadd.f32 %v6787, %v6979
  %6981 = vmatprep.mubr.bf16.mxu0 %v1215
  %6982 = vmatmul.mubr.bf16.gmra.mrb[0].mxu0 %v1214
  %v6983 = vpop.f32.mrb[0].mxu0
  %v6984 = vadd.f32 %v6791, %v6983
  %v6985 = vpop.f32.mrb[0].mxu0
  %v6986 = vadd.f32 %v6793, %v6985
  %v6987 = vpop.f32.mrb[0].mxu0
  %v6988 = vadd.f32 %v6795, %v6987
  %v6989 = vpop.f32.mrb[0].mxu0
  %v6990 = vadd.f32 %v6797, %v6989
  %6991 = vdwg.mxu0
  %v6992 = vmax.f32 %v4518, 0.0
  %v6993 = vmax.f32 %v4520, 0.0
  %v6994 = vmax.f32 %v5290, 0.0
  %v6995 = vmax.f32 %v5292, 0.0
  %v6996 = vmax.f32 %v6062, 0.0
  %v6997 = vmax.f32 %v6064, 0.0
  %v6998 = vmax.f32 %v6834, 0.0
  %v6999 = vmax.f32 %v6836, 0.0
  %v7000 = vmax.f32 %v4522, 0.0
  %v7001 = vmax.f32 %v4524, 0.0
  %v7002 = vmax.f32 %v5294, 0.0
  %v7003 = vmax.f32 %v5296, 0.0
  %v7004 = vmax.f32 %v6066, 0.0
  %v7005 = vmax.f32 %v6068, 0.0
  %v7006 = vmax.f32 %v6838, 0.0
  %v7007 = vmax.f32 %v6840, 0.0
  %v7008 = vmax.f32 %v4528, 0.0
  %v7009 = vmax.f32 %v4530, 0.0
  %v7010 = vmax.f32 %v5300, 0.0
  %v7011 = vmax.f32 %v5302, 0.0
  %v7012 = vmax.f32 %v6072, 0.0
  %v7013 = vmax.f32 %v6074, 0.0
  %v7014 = vmax.f32 %v6844, 0.0
  %v7015 = vmax.f32 %v6846, 0.0
  %v7016 = vmax.f32 %v4532, 0.0
  %v7017 = vmax.f32 %v4534, 0.0
  %v7018 = vmax.f32 %v5304, 0.0
  %v7019 = vmax.f32 %v5306, 0.0
  %v7020 = vmax.f32 %v6076, 0.0
  %v7021 = vmax.f32 %v6078, 0.0
  %v7022 = vmax.f32 %v6848, 0.0
  %v7023 = vmax.f32 %v6850, 0.0
  %v7024 = vmax.f32 %v4538, 0.0
  %v7025 = vmax.f32 %v4540, 0.0
  %v7026 = vmax.f32 %v5310, 0.0
  %v7027 = vmax.f32 %v5312, 0.0
  %v7028 = vmax.f32 %v6082, 0.0
  %v7029 = vmax.f32 %v6084, 0.0
  %v7030 = vmax.f32 %v6854, 0.0
  %v7031 = vmax.f32 %v6856, 0.0
  %v7032 = vmax.f32 %v4542, 0.0
  %v7033 = vmax.f32 %v4544, 0.0
  %v7034 = vmax.f32 %v5314, 0.0
  %v7035 = vmax.f32 %v5316, 0.0
  %v7036 = vmax.f32 %v6086, 0.0
  %v7037 = vmax.f32 %v6088, 0.0
  %v7038 = vmax.f32 %v6858, 0.0
  %v7039 = vmax.f32 %v6860, 0.0
  %v7040 = vmax.f32 %v4548, 0.0
  %v7041 = vmax.f32 %v4550, 0.0
  %v7042 = vmax.f32 %v5320, 0.0
  %v7043 = vmax.f32 %v5322, 0.0
  %v7044 = vmax.f32 %v6092, 0.0
  %v7045 = vmax.f32 %v6094, 0.0
  %v7046 = vmax.f32 %v6864, 0.0
  %v7047 = vmax.f32 %v6866, 0.0
  %v7048 = vmax.f32 %v4552, 0.0
  %v7049 = vmax.f32 %v4554, 0.0
  %v7050 = vmax.f32 %v5324, 0.0
  %v7051 = vmax.f32 %v5326, 0.0
  %v7052 = vmax.f32 %v6096, 0.0
  %v7053 = vmax.f32 %v6098, 0.0
  %v7054 = vmax.f32 %v6868, 0.0
  %v7055 = vmax.f32 %v6870, 0.0
  %v7056 = vmax.f32 %v4558, 0.0
  %v7057 = vmax.f32 %v4560, 0.0
  %v7058 = vmax.f32 %v5330, 0.0
  %v7059 = vmax.f32 %v5332, 0.0
  %v7060 = vmax.f32 %v6102, 0.0
  %v7061 = vmax.f32 %v6104, 0.0
  %v7062 = vmax.f32 %v6874, 0.0
  %v7063 = vmax.f32 %v6876, 0.0
  %v7064 = vmax.f32 %v4562, 0.0
  %v7065 = vmax.f32 %v4564, 0.0
  %v7066 = vmax.f32 %v5334, 0.0
  %v7067 = vmax.f32 %v5336, 0.0
  %v7068 = vmax.f32 %v6106, 0.0
  %v7069 = vmax.f32 %v6108, 0.0
  %v7070 = vmax.f32 %v6878, 0.0
  %v7071 = vmax.f32 %v6880, 0.0
  %v7072 = vmax.f32 %v4568, 0.0
  %v7073 = vmax.f32 %v4570, 0.0
  %v7074 = vmax.f32 %v5340, 0.0
  %v7075 = vmax.f32 %v5342, 0.0
  %v7076 = vmax.f32 %v6112, 0.0
  %v7077 = vmax.f32 %v6114, 0.0
  %v7078 = vmax.f32 %v6884, 0.0
  %v7079 = vmax.f32 %v6886, 0.0
  %v7080 = vmax.f32 %v4572, 0.0
  %v7081 = vmax.f32 %v4574, 0.0
  %v7082 = vmax.f32 %v5344, 0.0
  %v7083 = vmax.f32 %v5346, 0.0
  %v7084 = vmax.f32 %v6116, 0.0
  %v7085 = vmax.f32 %v6118, 0.0
  %v7086 = vmax.f32 %v6888, 0.0
  %v7087 = vmax.f32 %v6890, 0.0
  %v7088 = vmax.f32 %v4578, 0.0
  %v7089 = vmax.f32 %v4580, 0.0
  %v7090 = vmax.f32 %v5350, 0.0
  %v7091 = vmax.f32 %v5352, 0.0
  %v7092 = vmax.f32 %v6122, 0.0
  %v7093 = vmax.f32 %v6124, 0.0
  %v7094 = vmax.f32 %v6894, 0.0
  %v7095 = vmax.f32 %v6896, 0.0
  %v7096 = vmax.f32 %v4582, 0.0
  %v7097 = vmax.f32 %v4584, 0.0
  %v7098 = vmax.f32 %v5354, 0.0
  %v7099 = vmax.f32 %v5356, 0.0
  %v7100 = vmax.f32 %v6126, 0.0
  %v7101 = vmax.f32 %v6128, 0.0
  %v7102 = vmax.f32 %v6898, 0.0
  %v7103 = vmax.f32 %v6900, 0.0
  %v7104 = vmax.f32 %v4588, 0.0
  %v7105 = vmax.f32 %v4590, 0.0
  %v7106 = vmax.f32 %v5360, 0.0
  %v7107 = vmax.f32 %v5362, 0.0
  %v7108 = vmax.f32 %v6132, 0.0
  %v7109 = vmax.f32 %v6134, 0.0
  %v7110 = vmax.f32 %v6904, 0.0
  %v7111 = vmax.f32 %v6906, 0.0
  %v7112 = vmax.f32 %v4592, 0.0
  %v7113 = vmax.f32 %v4594, 0.0
  %v7114 = vmax.f32 %v5364, 0.0
  %v7115 = vmax.f32 %v5366, 0.0
  %v7116 = vmax.f32 %v6136, 0.0
  %v7117 = vmax.f32 %v6138, 0.0
  %v7118 = vmax.f32 %v6908, 0.0
  %v7119 = vmax.f32 %v6910, 0.0
  %v7120 = vmax.f32 %v4598, 0.0
  %v7121 = vmax.f32 %v4600, 0.0
  %v7122 = vmax.f32 %v5370, 0.0
  %v7123 = vmax.f32 %v5372, 0.0
  %v7124 = vmax.f32 %v6142, 0.0
  %v7125 = vmax.f32 %v6144, 0.0
  %v7126 = vmax.f32 %v6914, 0.0
  %v7127 = vmax.f32 %v6916, 0.0
  %v7128 = vmax.f32 %v4602, 0.0
  %v7129 = vmax.f32 %v4604, 0.0
  %v7130 = vmax.f32 %v5374, 0.0
  %v7131 = vmax.f32 %v5376, 0.0
  %v7132 = vmax.f32 %v6146, 0.0
  %v7133 = vmax.f32 %v6148, 0.0
  %v7134 = vmax.f32 %v6918, 0.0
  %v7135 = vmax.f32 %v6920, 0.0
  %v7136 = vmax.f32 %v4608, 0.0
  %v7137 = vmax.f32 %v4610, 0.0
  %v7138 = vmax.f32 %v5380, 0.0
  %v7139 = vmax.f32 %v5382, 0.0
  %v7140 = vmax.f32 %v6152, 0.0
  %v7141 = vmax.f32 %v6154, 0.0
  %v7142 = vmax.f32 %v6924, 0.0
  %v7143 = vmax.f32 %v6926, 0.0
  %v7144 = vmax.f32 %v4612, 0.0
  %v7145 = vmax.f32 %v4614, 0.0
  %v7146 = vmax.f32 %v5384, 0.0
  %v7147 = vmax.f32 %v5386, 0.0
  %v7148 = vmax.f32 %v6156, 0.0
  %v7149 = vmax.f32 %v6158, 0.0
  %v7150 = vmax.f32 %v6928, 0.0
  %v7151 = vmax.f32 %v6930, 0.0
  %v7152 = vmax.f32 %v4618, 0.0
  %v7153 = vmax.f32 %v4620, 0.0
  %v7154 = vmax.f32 %v5390, 0.0
  %v7155 = vmax.f32 %v5392, 0.0
  %v7156 = vmax.f32 %v6162, 0.0
  %v7157 = vmax.f32 %v6164, 0.0
  %v7158 = vmax.f32 %v6934, 0.0
  %v7159 = vmax.f32 %v6936, 0.0
  %v7160 = vmax.f32 %v4622, 0.0
  %v7161 = vmax.f32 %v4624, 0.0
  %v7162 = vmax.f32 %v5394, 0.0
  %v7163 = vmax.f32 %v5396, 0.0
  %v7164 = vmax.f32 %v6166, 0.0
  %v7165 = vmax.f32 %v6168, 0.0
  %v7166 = vmax.f32 %v6938, 0.0
  %v7167 = vmax.f32 %v6940, 0.0
  %v7168 = vmax.f32 %v4628, 0.0
  %v7169 = vmax.f32 %v4630, 0.0
  %v7170 = vmax.f32 %v5400, 0.0
  %v7171 = vmax.f32 %v5402, 0.0
  %v7172 = vmax.f32 %v6172, 0.0
  %v7173 = vmax.f32 %v6174, 0.0
  %v7174 = vmax.f32 %v6944, 0.0
  %v7175 = vmax.f32 %v6946, 0.0
  %v7176 = vmax.f32 %v4632, 0.0
  %v7177 = vmax.f32 %v4634, 0.0
  %v7178 = vmax.f32 %v5404, 0.0
  %v7179 = vmax.f32 %v5406, 0.0
  %v7180 = vmax.f32 %v6176, 0.0
  %v7181 = vmax.f32 %v6178, 0.0
  %v7182 = vmax.f32 %v6948, 0.0
  %v7183 = vmax.f32 %v6950, 0.0
  %v7184 = vmax.f32 %v4638, 0.0
  %v7185 = vmax.f32 %v4640, 0.0
  %v7186 = vmax.f32 %v5410, 0.0
  %v7187 = vmax.f32 %v5412, 0.0
  %v7188 = vmax.f32 %v6182, 0.0
  %v7189 = vmax.f32 %v6184, 0.0
  %v7190 = vmax.f32 %v6954, 0.0
  %v7191 = vmax.f32 %v6956, 0.0
  %v7192 = vmax.f32 %v4642, 0.0
  %v7193 = vmax.f32 %v4644, 0.0
  %v7194 = vmax.f32 %v5414, 0.0
  %v7195 = vmax.f32 %v5416, 0.0
  %v7196 = vmax.f32 %v6186, 0.0
  %v7197 = vmax.f32 %v6188, 0.0
  %v7198 = vmax.f32 %v6958, 0.0
  %v7199 = vmax.f32 %v6960, 0.0
  %v7200 = vmax.f32 %v4648, 0.0
  %v7201 = vmax.f32 %v4650, 0.0
  %v7202 = vmax.f32 %v5420, 0.0
  %v7203 = vmax.f32 %v5422, 0.0
  %v7204 = vmax.f32 %v6192, 0.0
  %v7205 = vmax.f32 %v6194, 0.0
  %v7206 = vmax.f32 %v6964, 0.0
  %v7207 = vmax.f32 %v6966, 0.0
  %v7208 = vmax.f32 %v4652, 0.0
  %v7209 = vmax.f32 %v4654, 0.0
  %v7210 = vmax.f32 %v5424, 0.0
  %v7211 = vmax.f32 %v5426, 0.0
  %v7212 = vmax.f32 %v6196, 0.0
  %v7213 = vmax.f32 %v6198, 0.0
  %v7214 = vmax.f32 %v6968, 0.0
  %v7215 = vmax.f32 %v6970, 0.0
  %v7216 = vmax.f32 %v4658, 0.0
  %v7217 = vmax.f32 %v4660, 0.0
  %v7218 = vmax.f32 %v5430, 0.0
  %v7219 = vmax.f32 %v5432, 0.0
  %v7220 = vmax.f32 %v6202, 0.0
  %v7221 = vmax.f32 %v6204, 0.0
  %v7222 = vmax.f32 %v6974, 0.0
  %v7223 = vmax.f32 %v6976, 0.0
  %v7224 = vmax.f32 %v4662, 0.0
  %v7225 = vmax.f32 %v4664, 0.0
  %v7226 = vmax.f32 %v5434, 0.0
  %v7227 = vmax.f32 %v5436, 0.0
  %v7228 = vmax.f32 %v6206, 0.0
  %v7229 = vmax.f32 %v6208, 0.0
  %v7230 = vmax.f32 %v6978, 0.0
  %v7231 = vmax.f32 %v6980, 0.0
  %v7232 = vmax.f32 %v4668, 0.0
  %v7233 = vmax.f32 %v4670, 0.0
  %v7234 = vmax.f32 %v5440, 0.0
  %v7235 = vmax.f32 %v5442, 0.0
  %v7236 = vmax.f32 %v6212, 0.0
  %v7237 = vmax.f32 %v6214, 0.0
  %v7238 = vmax.f32 %v6984, 0.0
  %v7239 = vmax.f32 %v6986, 0.0
  %v7240 = vmax.f32 %v4672, 0.0
  %v7241 = vmax.f32 %v4674, 0.0
  %v7242 = vmax.f32 %v5444, 0.0
  %v7243 = vmax.f32 %v5446, 0.0
  %v7244 = vmax.f32 %v6216, 0.0
  %v7245 = vmax.f32 %v6218, 0.0
  %v7246 = vmax.f32 %v6988, 0.0
  %v7247 = vmax.f32 %v6990, 0.0
  %v7248 = vld [vmem:[%s3] sm:$0xff]
  %v7250 = vlaneseq
  %v7251 = vshrl.u32 %v7250, 7
  %v7252 = vsub.s32 0, %v7251
  %v7253 = vrot.slane %v7248, %v7252
  %v7254 = vlaneseq
  %v7255 = vshrl.u32 %v7254, 7
  %v7256 = vsub.s32 1, %v7255
  %v7257 = vrot.slane %v7248, %v7256
  %v7258 = vlaneseq
  %v7259 = vshrl.u32 %v7258, 7
  %v7260 = vsub.s32 2, %v7259
  %v7261 = vrot.slane %v7248, %v7260
  %v7262 = vlaneseq
  %v7263 = vshrl.u32 %v7262, 7
  %v7264 = vsub.s32 3, %v7263
  %v7265 = vrot.slane %v7248, %v7264
  %v7266 = vlaneseq
  %v7267 = vshrl.u32 %v7266, 7
  %v7268 = vsub.s32 4, %v7267
  %v7269 = vrot.slane %v7248, %v7268
  %v7270 = vlaneseq
  %v7271 = vshrl.u32 %v7270, 7
  %v7272 = vsub.s32 5, %v7271
  %v7273 = vrot.slane %v7248, %v7272
  %v7274 = vlaneseq
  %v7275 = vshrl.u32 %v7274, 7
  %v7276 = vsub.s32 6, %v7275
  %v7277 = vrot.slane %v7248, %v7276
  %v7278 = vlaneseq
  %v7279 = vshrl.u32 %v7278, 7
  %v7280 = vsub.s32 7, %v7279
  %v7281 = vrot.slane %v7248, %v7280
  %v7290 = vmul.f32 %v6992, %v7253
  %v7291 = vmul.f32 %v6993, %v7257
  %v7292 = vmul.f32 %v6994, %v7261
  %v7293 = vmul.f32 %v6995, %v7265
  %v7294 = vmul.f32 %v6996, %v7269
  %v7295 = vmul.f32 %v6997, %v7273
  %v7296 = vmul.f32 %v6998, %v7277
  %v7297 = vmul.f32 %v6999, %v7281
  %v7298 = vmul.f32 %v7000, %v7253
  %v7299 = vmul.f32 %v7001, %v7257
  %v7300 = vmul.f32 %v7002, %v7261
  %v7301 = vmul.f32 %v7003, %v7265
  %v7302 = vmul.f32 %v7004, %v7269
  %v7303 = vmul.f32 %v7005, %v7273
  %v7304 = vmul.f32 %v7006, %v7277
  %v7305 = vmul.f32 %v7007, %v7281
  %v7306 = vmul.f32 %v7008, %v7253
  %v7307 = vmul.f32 %v7009, %v7257
  %v7308 = vmul.f32 %v7010, %v7261
  %v7309 = vmul.f32 %v7011, %v7265
  %v7310 = vmul.f32 %v7012, %v7269
  %v7311 = vmul.f32 %v7013, %v7273
  %v7312 = vmul.f32 %v7014, %v7277
  %v7313 = vmul.f32 %v7015, %v7281
  %v7314 = vmul.f32 %v7016, %v7253
  %v7315 = vmul.f32 %v7017, %v7257
  %v7316 = vmul.f32 %v7018, %v7261
  %v7317 = vmul.f32 %v7019, %v7265
  %v7318 = vmul.f32 %v7020, %v7269
  %v7319 = vmul.f32 %v7021, %v7273
  %v7320 = vmul.f32 %v7022, %v7277
  %v7321 = vmul.f32 %v7023, %v7281
  %v7322 = vmul.f32 %v7024, %v7253
  %v7323 = vmul.f32 %v7025, %v7257
  %v7324 = vmul.f32 %v7026, %v7261
  %v7325 = vmul.f32 %v7027, %v7265
  %v7326 = vmul.f32 %v7028, %v7269
  %v7327 = vmul.f32 %v7029, %v7273
  %v7328 = vmul.f32 %v7030, %v7277
  %v7329 = vmul.f32 %v7031, %v7281
  %v7330 = vmul.f32 %v7032, %v7253
  %v7331 = vmul.f32 %v7033, %v7257
  %v7332 = vmul.f32 %v7034, %v7261
  %v7333 = vmul.f32 %v7035, %v7265
  %v7334 = vmul.f32 %v7036, %v7269
  %v7335 = vmul.f32 %v7037, %v7273
  %v7336 = vmul.f32 %v7038, %v7277
  %v7337 = vmul.f32 %v7039, %v7281
  %v7338 = vmul.f32 %v7040, %v7253
  %v7339 = vmul.f32 %v7041, %v7257
  %v7340 = vmul.f32 %v7042, %v7261
  %v7341 = vmul.f32 %v7043, %v7265
  %v7342 = vmul.f32 %v7044, %v7269
  %v7343 = vmul.f32 %v7045, %v7273
  %v7344 = vmul.f32 %v7046, %v7277
  %v7345 = vmul.f32 %v7047, %v7281
  %v7346 = vmul.f32 %v7048, %v7253
  %v7347 = vmul.f32 %v7049, %v7257
  %v7348 = vmul.f32 %v7050, %v7261
  %v7349 = vmul.f32 %v7051, %v7265
  %v7350 = vmul.f32 %v7052, %v7269
  %v7351 = vmul.f32 %v7053, %v7273
  %v7352 = vmul.f32 %v7054, %v7277
  %v7353 = vmul.f32 %v7055, %v7281
  %v7354 = vmul.f32 %v7056, %v7253
  %v7355 = vmul.f32 %v7057, %v7257
  %v7356 = vmul.f32 %v7058, %v7261
  %v7357 = vmul.f32 %v7059, %v7265
  %v7358 = vmul.f32 %v7060, %v7269
  %v7359 = vmul.f32 %v7061, %v7273
  %v7360 = vmul.f32 %v7062, %v7277
  %v7361 = vmul.f32 %v7063, %v7281
  %v7362 = vmul.f32 %v7064, %v7253
  %v7363 = vmul.f32 %v7065, %v7257
  %v7364 = vmul.f32 %v7066, %v7261
  %v7365 = vmul.f32 %v7067, %v7265
  %v7366 = vmul.f32 %v7068, %v7269
  %v7367 = vmul.f32 %v7069, %v7273
  %v7368 = vmul.f32 %v7070, %v7277
  %v7369 = vmul.f32 %v7071, %v7281
  %v7370 = vmul.f32 %v7072, %v7253
  %v7371 = vmul.f32 %v7073, %v7257
  %v7372 = vmul.f32 %v7074, %v7261
  %v7373 = vmul.f32 %v7075, %v7265
  %v7374 = vmul.f32 %v7076, %v7269
  %v7375 = vmul.f32 %v7077, %v7273
  %v7376 = vmul.f32 %v7078, %v7277
  %v7377 = vmul.f32 %v7079, %v7281
  %v7378 = vmul.f32 %v7080, %v7253
  %v7379 = vmul.f32 %v7081, %v7257
  %v7380 = vmul.f32 %v7082, %v7261
  %v7381 = vmul.f32 %v7083, %v7265
  %v7382 = vmul.f32 %v7084, %v7269
  %v7383 = vmul.f32 %v7085, %v7273
  %v7384 = vmul.f32 %v7086, %v7277
  %v7385 = vmul.f32 %v7087, %v7281
  %v7386 = vmul.f32 %v7088, %v7253
  %v7387 = vmul.f32 %v7089, %v7257
  %v7388 = vmul.f32 %v7090, %v7261
  %v7389 = vmul.f32 %v7091, %v7265
  %v7390 = vmul.f32 %v7092, %v7269
  %v7391 = vmul.f32 %v7093, %v7273
  %v7392 = vmul.f32 %v7094, %v7277
  %v7393 = vmul.f32 %v7095, %v7281
  %v7394 = vmul.f32 %v7096, %v7253
  %v7395 = vmul.f32 %v7097, %v7257
  %v7396 = vmul.f32 %v7098, %v7261
  %v7397 = vmul.f32 %v7099, %v7265
  %v7398 = vmul.f32 %v7100, %v7269
  %v7399 = vmul.f32 %v7101, %v7273
  %v7400 = vmul.f32 %v7102, %v7277
  %v7401 = vmul.f32 %v7103, %v7281
  %v7402 = vmul.f32 %v7104, %v7253
  %v7403 = vmul.f32 %v7105, %v7257
  %v7404 = vmul.f32 %v7106, %v7261
  %v7405 = vmul.f32 %v7107, %v7265
  %v7406 = vmul.f32 %v7108, %v7269
  %v7407 = vmul.f32 %v7109, %v7273
  %v7408 = vmul.f32 %v7110, %v7277
  %v7409 = vmul.f32 %v7111, %v7281
  %v7410 = vmul.f32 %v7112, %v7253
  %v7411 = vmul.f32 %v7113, %v7257
  %v7412 = vmul.f32 %v7114, %v7261
  %v7413 = vmul.f32 %v7115, %v7265
  %v7414 = vmul.f32 %v7116, %v7269
  %v7415 = vmul.f32 %v7117, %v7273
  %v7416 = vmul.f32 %v7118, %v7277
  %v7417 = vmul.f32 %v7119, %v7281
  %v7418 = vmul.f32 %v7120, %v7253
  %v7419 = vmul.f32 %v7121, %v7257
  %v7420 = vmul.f32 %v7122, %v7261
  %v7421 = vmul.f32 %v7123, %v7265
  %v7422 = vmul.f32 %v7124, %v7269
  %v7423 = vmul.f32 %v7125, %v7273
  %v7424 = vmul.f32 %v7126, %v7277
  %v7425 = vmul.f32 %v7127, %v7281
  %v7426 = vmul.f32 %v7128, %v7253
  %v7427 = vmul.f32 %v7129, %v7257
  %v7428 = vmul.f32 %v7130, %v7261
  %v7429 = vmul.f32 %v7131, %v7265
  %v7430 = vmul.f32 %v7132, %v7269
  %v7431 = vmul.f32 %v7133, %v7273
  %v7432 = vmul.f32 %v7134, %v7277
  %v7433 = vmul.f32 %v7135, %v7281
  %v7434 = vmul.f32 %v7136, %v7253
  %v7435 = vmul.f32 %v7137, %v7257
  %v7436 = vmul.f32 %v7138, %v7261
  %v7437 = vmul.f32 %v7139, %v7265
  %v7438 = vmul.f32 %v7140, %v7269
  %v7439 = vmul.f32 %v7141, %v7273
  %v7440 = vmul.f32 %v7142, %v7277
  %v7441 = vmul.f32 %v7143, %v7281
  %v7442 = vmul.f32 %v7144, %v7253
  %v7443 = vmul.f32 %v7145, %v7257
  %v7444 = vmul.f32 %v7146, %v7261
  %v7445 = vmul.f32 %v7147, %v7265
  %v7446 = vmul.f32 %v7148, %v7269
  %v7447 = vmul.f32 %v7149, %v7273
  %v7448 = vmul.f32 %v7150, %v7277
  %v7449 = vmul.f32 %v7151, %v7281
  %v7450 = vmul.f32 %v7152, %v7253
  %v7451 = vmul.f32 %v7153, %v7257
  %v7452 = vmul.f32 %v7154, %v7261
  %v7453 = vmul.f32 %v7155, %v7265
  %v7454 = vmul.f32 %v7156, %v7269
  %v7455 = vmul.f32 %v7157, %v7273
  %v7456 = vmul.f32 %v7158, %v7277
  %v7457 = vmul.f32 %v7159, %v7281
  %v7458 = vmul.f32 %v7160, %v7253
  %v7459 = vmul.f32 %v7161, %v7257
  %v7460 = vmul.f32 %v7162, %v7261
  %v7461 = vmul.f32 %v7163, %v7265
  %v7462 = vmul.f32 %v7164, %v7269
  %v7463 = vmul.f32 %v7165, %v7273
  %v7464 = vmul.f32 %v7166, %v7277
  %v7465 = vmul.f32 %v7167, %v7281
  %v7466 = vmul.f32 %v7168, %v7253
  %v7467 = vmul.f32 %v7169, %v7257
  %v7468 = vmul.f32 %v7170, %v7261
  %v7469 = vmul.f32 %v7171, %v7265
  %v7470 = vmul.f32 %v7172, %v7269
  %v7471 = vmul.f32 %v7173, %v7273
  %v7472 = vmul.f32 %v7174, %v7277
  %v7473 = vmul.f32 %v7175, %v7281
  %v7474 = vmul.f32 %v7176, %v7253
  %v7475 = vmul.f32 %v7177, %v7257
  %v7476 = vmul.f32 %v7178, %v7261
  %v7477 = vmul.f32 %v7179, %v7265
  %v7478 = vmul.f32 %v7180, %v7269
  %v7479 = vmul.f32 %v7181, %v7273
  %v7480 = vmul.f32 %v7182, %v7277
  %v7481 = vmul.f32 %v7183, %v7281
  %v7482 = vmul.f32 %v7184, %v7253
  %v7483 = vmul.f32 %v7185, %v7257
  %v7484 = vmul.f32 %v7186, %v7261
  %v7485 = vmul.f32 %v7187, %v7265
  %v7486 = vmul.f32 %v7188, %v7269
  %v7487 = vmul.f32 %v7189, %v7273
  %v7488 = vmul.f32 %v7190, %v7277
  %v7489 = vmul.f32 %v7191, %v7281
  %v7490 = vmul.f32 %v7192, %v7253
  %v7491 = vmul.f32 %v7193, %v7257
  %v7492 = vmul.f32 %v7194, %v7261
  %v7493 = vmul.f32 %v7195, %v7265
  %v7494 = vmul.f32 %v7196, %v7269
  %v7495 = vmul.f32 %v7197, %v7273
  %v7496 = vmul.f32 %v7198, %v7277
  %v7497 = vmul.f32 %v7199, %v7281
  %v7498 = vmul.f32 %v7200, %v7253
  %v7499 = vmul.f32 %v7201, %v7257
  %v7500 = vmul.f32 %v7202, %v7261
  %v7501 = vmul.f32 %v7203, %v7265
  %v7502 = vmul.f32 %v7204, %v7269
  %v7503 = vmul.f32 %v7205, %v7273
  %v7504 = vmul.f32 %v7206, %v7277
  %v7505 = vmul.f32 %v7207, %v7281
  %v7506 = vmul.f32 %v7208, %v7253
  %v7507 = vmul.f32 %v7209, %v7257
  %v7508 = vmul.f32 %v7210, %v7261
  %v7509 = vmul.f32 %v7211, %v7265
  %v7510 = vmul.f32 %v7212, %v7269
  %v7511 = vmul.f32 %v7213, %v7273
  %v7512 = vmul.f32 %v7214, %v7277
  %v7513 = vmul.f32 %v7215, %v7281
  %v7514 = vmul.f32 %v7216, %v7253
  %v7515 = vmul.f32 %v7217, %v7257
  %v7516 = vmul.f32 %v7218, %v7261
  %v7517 = vmul.f32 %v7219, %v7265
  %v7518 = vmul.f32 %v7220, %v7269
  %v7519 = vmul.f32 %v7221, %v7273
  %v7520 = vmul.f32 %v7222, %v7277
  %v7521 = vmul.f32 %v7223, %v7281
  %v7522 = vmul.f32 %v7224, %v7253
  %v7523 = vmul.f32 %v7225, %v7257
  %v7524 = vmul.f32 %v7226, %v7261
  %v7525 = vmul.f32 %v7227, %v7265
  %v7526 = vmul.f32 %v7228, %v7269
  %v7527 = vmul.f32 %v7229, %v7273
  %v7528 = vmul.f32 %v7230, %v7277
  %v7529 = vmul.f32 %v7231, %v7281
  %v7530 = vmul.f32 %v7232, %v7253
  %v7531 = vmul.f32 %v7233, %v7257
  %v7532 = vmul.f32 %v7234, %v7261
  %v7533 = vmul.f32 %v7235, %v7265
  %v7534 = vmul.f32 %v7236, %v7269
  %v7535 = vmul.f32 %v7237, %v7273
  %v7536 = vmul.f32 %v7238, %v7277
  %v7537 = vmul.f32 %v7239, %v7281
  %v7538 = vmul.f32 %v7240, %v7253
  %v7539 = vmul.f32 %v7241, %v7257
  %v7540 = vmul.f32 %v7242, %v7261
  %v7541 = vmul.f32 %v7243, %v7265
  %v7542 = vmul.f32 %v7244, %v7269
  %v7543 = vmul.f32 %v7245, %v7273
  %v7544 = vmul.f32 %v7246, %v7277
  %v7545 = vmul.f32 %v7247, %v7281
  %v7546 = vadd.f32 %v7290, %v7291
  %v7547 = vadd.f32 %v7546, %v7292
  %v7548 = vadd.f32 %v7547, %v7293
  %v7549 = vadd.f32 %v7548, %v7294
  %v7550 = vadd.f32 %v7549, %v7295
  %v7551 = vadd.f32 %v7550, %v7296
  %v7552 = vadd.f32 %v7551, %v7297
  %7553 = vadd.xlane.f32.xlu0 %v7552
  %v7554 = vpop.xlane.xlu0 %7553
  %v7555 = vadd.f32 %v7298, %v7299
  %v7556 = vadd.f32 %v7555, %v7300
  %v7557 = vadd.f32 %v7556, %v7301
  %v7558 = vadd.f32 %v7557, %v7302
  %v7559 = vadd.f32 %v7558, %v7303
  %v7560 = vadd.f32 %v7559, %v7304
  %v7561 = vadd.f32 %v7560, %v7305
  %7562 = vadd.xlane.f32.xlu0 %v7561
  %v7563 = vpop.xlane.xlu0 %7562
  %v7564 = vadd.f32 %v7306, %v7307
  %v7565 = vadd.f32 %v7564, %v7308
  %v7566 = vadd.f32 %v7565, %v7309
  %v7567 = vadd.f32 %v7566, %v7310
  %v7568 = vadd.f32 %v7567, %v7311
  %v7569 = vadd.f32 %v7568, %v7312
  %v7570 = vadd.f32 %v7569, %v7313
  %7571 = vadd.xlane.f32.xlu0 %v7570
  %v7572 = vpop.xlane.xlu0 %7571
  %v7573 = vadd.f32 %v7314, %v7315
  %v7574 = vadd.f32 %v7573, %v7316
  %v7575 = vadd.f32 %v7574, %v7317
  %v7576 = vadd.f32 %v7575, %v7318
  %v7577 = vadd.f32 %v7576, %v7319
  %v7578 = vadd.f32 %v7577, %v7320
  %v7579 = vadd.f32 %v7578, %v7321
  %7580 = vadd.xlane.f32.xlu0 %v7579
  %v7581 = vpop.xlane.xlu0 %7580
  %v7582 = vadd.f32 %v7322, %v7323
  %v7583 = vadd.f32 %v7582, %v7324
  %v7584 = vadd.f32 %v7583, %v7325
  %v7585 = vadd.f32 %v7584, %v7326
  %v7586 = vadd.f32 %v7585, %v7327
  %v7587 = vadd.f32 %v7586, %v7328
  %v7588 = vadd.f32 %v7587, %v7329
  %7589 = vadd.xlane.f32.xlu0 %v7588
  %v7590 = vpop.xlane.xlu0 %7589
  %v7591 = vadd.f32 %v7330, %v7331
  %v7592 = vadd.f32 %v7591, %v7332
  %v7593 = vadd.f32 %v7592, %v7333
  %v7594 = vadd.f32 %v7593, %v7334
  %v7595 = vadd.f32 %v7594, %v7335
  %v7596 = vadd.f32 %v7595, %v7336
  %v7597 = vadd.f32 %v7596, %v7337
  %7598 = vadd.xlane.f32.xlu0 %v7597
  %v7599 = vpop.xlane.xlu0 %7598
  %v7600 = vadd.f32 %v7338, %v7339
  %v7601 = vadd.f32 %v7600, %v7340
  %v7602 = vadd.f32 %v7601, %v7341
  %v7603 = vadd.f32 %v7602, %v7342
  %v7604 = vadd.f32 %v7603, %v7343
  %v7605 = vadd.f32 %v7604, %v7344
  %v7606 = vadd.f32 %v7605, %v7345
  %7607 = vadd.xlane.f32.xlu0 %v7606
  %v7608 = vpop.xlane.xlu0 %7607
  %v7609 = vadd.f32 %v7346, %v7347
  %v7610 = vadd.f32 %v7609, %v7348
  %v7611 = vadd.f32 %v7610, %v7349
  %v7612 = vadd.f32 %v7611, %v7350
  %v7613 = vadd.f32 %v7612, %v7351
  %v7614 = vadd.f32 %v7613, %v7352
  %v7615 = vadd.f32 %v7614, %v7353
  %7616 = vadd.xlane.f32.xlu0 %v7615
  %v7617 = vpop.xlane.xlu0 %7616
  %v7618 = vadd.f32 %v7354, %v7355
  %v7619 = vadd.f32 %v7618, %v7356
  %v7620 = vadd.f32 %v7619, %v7357
  %v7621 = vadd.f32 %v7620, %v7358
  %v7622 = vadd.f32 %v7621, %v7359
  %v7623 = vadd.f32 %v7622, %v7360
  %v7624 = vadd.f32 %v7623, %v7361
  %7625 = vadd.xlane.f32.xlu0 %v7624
  %v7626 = vpop.xlane.xlu0 %7625
  %v7627 = vadd.f32 %v7362, %v7363
  %v7628 = vadd.f32 %v7627, %v7364
  %v7629 = vadd.f32 %v7628, %v7365
  %v7630 = vadd.f32 %v7629, %v7366
  %v7631 = vadd.f32 %v7630, %v7367
  %v7632 = vadd.f32 %v7631, %v7368
  %v7633 = vadd.f32 %v7632, %v7369
  %7634 = vadd.xlane.f32.xlu0 %v7633
  %v7635 = vpop.xlane.xlu0 %7634
  %v7636 = vadd.f32 %v7370, %v7371
  %v7637 = vadd.f32 %v7636, %v7372
  %v7638 = vadd.f32 %v7637, %v7373
  %v7639 = vadd.f32 %v7638, %v7374
  %v7640 = vadd.f32 %v7639, %v7375
  %v7641 = vadd.f32 %v7640, %v7376
  %v7642 = vadd.f32 %v7641, %v7377
  %7643 = vadd.xlane.f32.xlu0 %v7642
  %v7644 = vpop.xlane.xlu0 %7643
  %v7645 = vadd.f32 %v7378, %v7379
  %v7646 = vadd.f32 %v7645, %v7380
  %v7647 = vadd.f32 %v7646, %v7381
  %v7648 = vadd.f32 %v7647, %v7382
  %v7649 = vadd.f32 %v7648, %v7383
  %v7650 = vadd.f32 %v7649, %v7384
  %v7651 = vadd.f32 %v7650, %v7385
  %7652 = vadd.xlane.f32.xlu0 %v7651
  %v7653 = vpop.xlane.xlu0 %7652
  %v7654 = vadd.f32 %v7386, %v7387
  %v7655 = vadd.f32 %v7654, %v7388
  %v7656 = vadd.f32 %v7655, %v7389
  %v7657 = vadd.f32 %v7656, %v7390
  %v7658 = vadd.f32 %v7657, %v7391
  %v7659 = vadd.f32 %v7658, %v7392
  %v7660 = vadd.f32 %v7659, %v7393
  %7661 = vadd.xlane.f32.xlu0 %v7660
  %v7662 = vpop.xlane.xlu0 %7661
  %v7663 = vadd.f32 %v7394, %v7395
  %v7664 = vadd.f32 %v7663, %v7396
  %v7665 = vadd.f32 %v7664, %v7397
  %v7666 = vadd.f32 %v7665, %v7398
  %v7667 = vadd.f32 %v7666, %v7399
  %v7668 = vadd.f32 %v7667, %v7400
  %v7669 = vadd.f32 %v7668, %v7401
  %7670 = vadd.xlane.f32.xlu0 %v7669
  %v7671 = vpop.xlane.xlu0 %7670
  %v7672 = vadd.f32 %v7402, %v7403
  %v7673 = vadd.f32 %v7672, %v7404
  %v7674 = vadd.f32 %v7673, %v7405
  %v7675 = vadd.f32 %v7674, %v7406
  %v7676 = vadd.f32 %v7675, %v7407
  %v7677 = vadd.f32 %v7676, %v7408
  %v7678 = vadd.f32 %v7677, %v7409
  %7679 = vadd.xlane.f32.xlu0 %v7678
  %v7680 = vpop.xlane.xlu0 %7679
  %v7681 = vadd.f32 %v7410, %v7411
  %v7682 = vadd.f32 %v7681, %v7412
  %v7683 = vadd.f32 %v7682, %v7413
  %v7684 = vadd.f32 %v7683, %v7414
  %v7685 = vadd.f32 %v7684, %v7415
  %v7686 = vadd.f32 %v7685, %v7416
  %v7687 = vadd.f32 %v7686, %v7417
  %7688 = vadd.xlane.f32.xlu0 %v7687
  %v7689 = vpop.xlane.xlu0 %7688
  %v7690 = vadd.f32 %v7418, %v7419
  %v7691 = vadd.f32 %v7690, %v7420
  %v7692 = vadd.f32 %v7691, %v7421
  %v7693 = vadd.f32 %v7692, %v7422
  %v7694 = vadd.f32 %v7693, %v7423
  %v7695 = vadd.f32 %v7694, %v7424
  %v7696 = vadd.f32 %v7695, %v7425
  %7697 = vadd.xlane.f32.xlu0 %v7696
  %v7698 = vpop.xlane.xlu0 %7697
  %v7699 = vadd.f32 %v7426, %v7427
  %v7700 = vadd.f32 %v7699, %v7428
  %v7701 = vadd.f32 %v7700, %v7429
  %v7702 = vadd.f32 %v7701, %v7430
  %v7703 = vadd.f32 %v7702, %v7431
  %v7704 = vadd.f32 %v7703, %v7432
  %v7705 = vadd.f32 %v7704, %v7433
  %7706 = vadd.xlane.f32.xlu0 %v7705
  %v7707 = vpop.xlane.xlu0 %7706
  %v7708 = vadd.f32 %v7434, %v7435
  %v7709 = vadd.f32 %v7708, %v7436
  %v7710 = vadd.f32 %v7709, %v7437
  %v7711 = vadd.f32 %v7710, %v7438
  %v7712 = vadd.f32 %v7711, %v7439
  %v7713 = vadd.f32 %v7712, %v7440
  %v7714 = vadd.f32 %v7713, %v7441
  %7715 = vadd.xlane.f32.xlu0 %v7714
  %v7716 = vpop.xlane.xlu0 %7715
  %v7717 = vadd.f32 %v7442, %v7443
  %v7718 = vadd.f32 %v7717, %v7444
  %v7719 = vadd.f32 %v7718, %v7445
  %v7720 = vadd.f32 %v7719, %v7446
  %v7721 = vadd.f32 %v7720, %v7447
  %v7722 = vadd.f32 %v7721, %v7448
  %v7723 = vadd.f32 %v7722, %v7449
  %7724 = vadd.xlane.f32.xlu0 %v7723
  %v7725 = vpop.xlane.xlu0 %7724
  %v7726 = vadd.f32 %v7450, %v7451
  %v7727 = vadd.f32 %v7726, %v7452
  %v7728 = vadd.f32 %v7727, %v7453
  %v7729 = vadd.f32 %v7728, %v7454
  %v7730 = vadd.f32 %v7729, %v7455
  %v7731 = vadd.f32 %v7730, %v7456
  %v7732 = vadd.f32 %v7731, %v7457
  %7733 = vadd.xlane.f32.xlu0 %v7732
  %v7734 = vpop.xlane.xlu0 %7733
  %v7735 = vadd.f32 %v7458, %v7459
  %v7736 = vadd.f32 %v7735, %v7460
  %v7737 = vadd.f32 %v7736, %v7461
  %v7738 = vadd.f32 %v7737, %v7462
  %v7739 = vadd.f32 %v7738, %v7463
  %v7740 = vadd.f32 %v7739, %v7464
  %v7741 = vadd.f32 %v7740, %v7465
  %7742 = vadd.xlane.f32.xlu0 %v7741
  %v7743 = vpop.xlane.xlu0 %7742
  %v7744 = vadd.f32 %v7466, %v7467
  %v7745 = vadd.f32 %v7744, %v7468
  %v7746 = vadd.f32 %v7745, %v7469
  %v7747 = vadd.f32 %v7746, %v7470
  %v7748 = vadd.f32 %v7747, %v7471
  %v7749 = vadd.f32 %v7748, %v7472
  %v7750 = vadd.f32 %v7749, %v7473
  %7751 = vadd.xlane.f32.xlu0 %v7750
  %v7752 = vpop.xlane.xlu0 %7751
  %v7753 = vadd.f32 %v7474, %v7475
  %v7754 = vadd.f32 %v7753, %v7476
  %v7755 = vadd.f32 %v7754, %v7477
  %v7756 = vadd.f32 %v7755, %v7478
  %v7757 = vadd.f32 %v7756, %v7479
  %v7758 = vadd.f32 %v7757, %v7480
  %v7759 = vadd.f32 %v7758, %v7481
  %7760 = vadd.xlane.f32.xlu0 %v7759
  %v7761 = vpop.xlane.xlu0 %7760
  %v7762 = vadd.f32 %v7482, %v7483
  %v7763 = vadd.f32 %v7762, %v7484
  %v7764 = vadd.f32 %v7763, %v7485
  %v7765 = vadd.f32 %v7764, %v7486
  %v7766 = vadd.f32 %v7765, %v7487
  %v7767 = vadd.f32 %v7766, %v7488
  %v7768 = vadd.f32 %v7767, %v7489
  %7769 = vadd.xlane.f32.xlu0 %v7768
  %v7770 = vpop.xlane.xlu0 %7769
  %v7771 = vadd.f32 %v7490, %v7491
  %v7772 = vadd.f32 %v7771, %v7492
  %v7773 = vadd.f32 %v7772, %v7493
  %v7774 = vadd.f32 %v7773, %v7494
  %v7775 = vadd.f32 %v7774, %v7495
  %v7776 = vadd.f32 %v7775, %v7496
  %v7777 = vadd.f32 %v7776, %v7497
  %7778 = vadd.xlane.f32.xlu0 %v7777
  %v7779 = vpop.xlane.xlu0 %7778
  %v7780 = vadd.f32 %v7498, %v7499
  %v7781 = vadd.f32 %v7780, %v7500
  %v7782 = vadd.f32 %v7781, %v7501
  %v7783 = vadd.f32 %v7782, %v7502
  %v7784 = vadd.f32 %v7783, %v7503
  %v7785 = vadd.f32 %v7784, %v7504
  %v7786 = vadd.f32 %v7785, %v7505
  %7787 = vadd.xlane.f32.xlu0 %v7786
  %v7788 = vpop.xlane.xlu0 %7787
  %v7789 = vadd.f32 %v7506, %v7507
  %v7790 = vadd.f32 %v7789, %v7508
  %v7791 = vadd.f32 %v7790, %v7509
  %v7792 = vadd.f32 %v7791, %v7510
  %v7793 = vadd.f32 %v7792, %v7511
  %v7794 = vadd.f32 %v7793, %v7512
  %v7795 = vadd.f32 %v7794, %v7513
  %7796 = vadd.xlane.f32.xlu0 %v7795
  %v7797 = vpop.xlane.xlu0 %7796
  %v7798 = vadd.f32 %v7514, %v7515
  %v7799 = vadd.f32 %v7798, %v7516
  %v7800 = vadd.f32 %v7799, %v7517
  %v7801 = vadd.f32 %v7800, %v7518
  %v7802 = vadd.f32 %v7801, %v7519
  %v7803 = vadd.f32 %v7802, %v7520
  %v7804 = vadd.f32 %v7803, %v7521
  %7805 = vadd.xlane.f32.xlu0 %v7804
  %v7806 = vpop.xlane.xlu0 %7805
  %v7807 = vadd.f32 %v7522, %v7523
  %v7808 = vadd.f32 %v7807, %v7524
  %v7809 = vadd.f32 %v7808, %v7525
  %v7810 = vadd.f32 %v7809, %v7526
  %v7811 = vadd.f32 %v7810, %v7527
  %v7812 = vadd.f32 %v7811, %v7528
  %v7813 = vadd.f32 %v7812, %v7529
  %7814 = vadd.xlane.f32.xlu0 %v7813
  %v7815 = vpop.xlane.xlu0 %7814
  %v7816 = vadd.f32 %v7530, %v7531
  %v7817 = vadd.f32 %v7816, %v7532
  %v7818 = vadd.f32 %v7817, %v7533
  %v7819 = vadd.f32 %v7818, %v7534
  %v7820 = vadd.f32 %v7819, %v7535
  %v7821 = vadd.f32 %v7820, %v7536
  %v7822 = vadd.f32 %v7821, %v7537
  %7823 = vadd.xlane.f32.xlu0 %v7822
  %v7824 = vpop.xlane.xlu0 %7823
  %v7825 = vadd.f32 %v7538, %v7539
  %v7826 = vadd.f32 %v7825, %v7540
  %v7827 = vadd.f32 %v7826, %v7541
  %v7828 = vadd.f32 %v7827, %v7542
  %v7829 = vadd.f32 %v7828, %v7543
  %v7830 = vadd.f32 %v7829, %v7544
  %v7831 = vadd.f32 %v7830, %v7545
  %7832 = vadd.xlane.f32.xlu0 %v7831
  %v7833 = vpop.xlane.xlu0 %7832
  %v7834 = vld [vmem:[#allocation2] sm:$0x1]
  %v7836 = vlaneseq
  %v7837 = vshrl.u32 %v7836, 7
  %v7838 = vsub.s32 0, %v7837
  %v7839 = vrot.slane %v7834, %v7838
  %v7841 = vadd.f32 %v7554, %v7839
  %v7842 = vadd.f32 %v7563, %v7839
  %v7843 = vadd.f32 %v7572, %v7839
  %v7844 = vadd.f32 %v7581, %v7839
  %v7845 = vadd.f32 %v7590, %v7839
  %v7846 = vadd.f32 %v7599, %v7839
  %v7847 = vadd.f32 %v7608, %v7839
  %v7848 = vadd.f32 %v7617, %v7839
  %v7849 = vadd.f32 %v7626, %v7839
  %v7850 = vadd.f32 %v7635, %v7839
  %v7851 = vadd.f32 %v7644, %v7839
  %v7852 = vadd.f32 %v7653, %v7839
  %v7853 = vadd.f32 %v7662, %v7839
  %v7854 = vadd.f32 %v7671, %v7839
  %v7855 = vadd.f32 %v7680, %v7839
  %v7856 = vadd.f32 %v7689, %v7839
  %v7857 = vadd.f32 %v7698, %v7839
  %v7858 = vadd.f32 %v7707, %v7839
  %v7859 = vadd.f32 %v7716, %v7839
  %v7860 = vadd.f32 %v7725, %v7839
  %v7861 = vadd.f32 %v7734, %v7839
  %v7862 = vadd.f32 %v7743, %v7839
  %v7863 = vadd.f32 %v7752, %v7839
  %v7864 = vadd.f32 %v7761, %v7839
  %v7865 = vadd.f32 %v7770, %v7839
  %v7866 = vadd.f32 %v7779, %v7839
  %v7867 = vadd.f32 %v7788, %v7839
  %v7868 = vadd.f32 %v7797, %v7839
  %v7869 = vadd.f32 %v7806, %v7839
  %v7870 = vadd.f32 %v7815, %v7839
  %v7871 = vadd.f32 %v7824, %v7839
  %v7872 = vadd.f32 %v7833, %v7839
  %v7873 = vxor.u32 %v7841, 2147483648
  %v7874 = vxor.u32 %v7842, 2147483648
  %v7875 = vxor.u32 %v7843, 2147483648
  %v7876 = vxor.u32 %v7844, 2147483648
  %v7877 = vxor.u32 %v7845, 2147483648
  %v7878 = vxor.u32 %v7846, 2147483648
  %v7879 = vxor.u32 %v7847, 2147483648
  %v7880 = vxor.u32 %v7848, 2147483648
  %v7881 = vxor.u32 %v7849, 2147483648
  %v7882 = vxor.u32 %v7850, 2147483648
  %v7883 = vxor.u32 %v7851, 2147483648
  %v7884 = vxor.u32 %v7852, 2147483648
  %v7885 = vxor.u32 %v7853, 2147483648
  %v7886 = vxor.u32 %v7854, 2147483648
  %v7887 = vxor.u32 %v7855, 2147483648
  %v7888 = vxor.u32 %v7856, 2147483648
  %v7889 = vxor.u32 %v7857, 2147483648
  %v7890 = vxor.u32 %v7858, 2147483648
  %v7891 = vxor.u32 %v7859, 2147483648
  %v7892 = vxor.u32 %v7860, 2147483648
  %v7893 = vxor.u32 %v7861, 2147483648
  %v7894 = vxor.u32 %v7862, 2147483648
  %v7895 = vxor.u32 %v7863, 2147483648
  %v7896 = vxor.u32 %v7864, 2147483648
  %v7897 = vxor.u32 %v7865, 2147483648
  %v7898 = vxor.u32 %v7866, 2147483648
  %v7899 = vxor.u32 %v7867, 2147483648
  %v7900 = vxor.u32 %v7868, 2147483648
  %v7901 = vxor.u32 %v7869, 2147483648
  %v7902 = vxor.u32 %v7870, 2147483648
  %v7903 = vxor.u32 %v7871, 2147483648
  %v7904 = vxor.u32 %v7872, 2147483648
  %v7905 = vmul.f32 %v7873, 1.442695
  %v7906 = vpow.pop %v7905
  %v7907 = vmul.f32 %v7874, 1.442695
  %v7908 = vpow.pop %v7907
  %v7909 = vmul.f32 %v7875, 1.442695
  %v7910 = vpow.pop %v7909
  %v7911 = vmul.f32 %v7876, 1.442695
  %v7912 = vpow.pop %v7911
  %v7913 = vmul.f32 %v7877, 1.442695
  %v7914 = vpow.pop %v7913
  %v7915 = vmul.f32 %v7878, 1.442695
  %v7916 = vpow.pop %v7915
  %v7917 = vmul.f32 %v7879, 1.442695
  %v7918 = vpow.pop %v7917
  %v7919 = vmul.f32 %v7880, 1.442695
  %v7920 = vpow.pop %v7919
  %v7921 = vmul.f32 %v7881, 1.442695
  %v7922 = vpow.pop %v7921
  %v7923 = vmul.f32 %v7882, 1.442695
  %v7924 = vpow.pop %v7923
  %v7925 = vmul.f32 %v7883, 1.442695
  %v7926 = vpow.pop %v7925
  %v7927 = vmul.f32 %v7884, 1.442695
  %v7928 = vpow.pop %v7927
  %v7929 = vmul.f32 %v7885, 1.442695
  %v7930 = vpow.pop %v7929
  %v7931 = vmul.f32 %v7886, 1.442695
  %v7932 = vpow.pop %v7931
  %v7933 = vmul.f32 %v7887, 1.442695
  %v7934 = vpow.pop %v7933
  %v7935 = vmul.f32 %v7888, 1.442695
  %v7936 = vpow.pop %v7935
  %v7937 = vmul.f32 %v7889, 1.442695
  %v7938 = vpow.pop %v7937
  %v7939 = vmul.f32 %v7890, 1.442695
  %v7940 = vpow.pop %v7939
  %v7941 = vmul.f32 %v7891, 1.442695
  %v7942 = vpow.pop %v7941
  %v7943 = vmul.f32 %v7892, 1.442695
  %v7944 = vpow.pop %v7943
  %v7945 = vmul.f32 %v7893, 1.442695
  %v7946 = vpow.pop %v7945
  %v7947 = vmul.f32 %v7894, 1.442695
  %v7948 = vpow.pop %v7947
  %v7949 = vmul.f32 %v7895, 1.442695
  %v7950 = vpow.pop %v7949
  %v7951 = vmul.f32 %v7896, 1.442695
  %v7952 = vpow.pop %v7951
  %v7953 = vmul.f32 %v7897, 1.442695
  %v7954 = vpow.pop %v7953
  %v7955 = vmul.f32 %v7898, 1.442695
  %v7956 = vpow.pop %v7955
  %v7957 = vmul.f32 %v7899, 1.442695
  %v7958 = vpow.pop %v7957
  %v7959 = vmul.f32 %v7900, 1.442695
  %v7960 = vpow.pop %v7959
  %v7961 = vmul.f32 %v7901, 1.442695
  %v7962 = vpow.pop %v7961
  %v7963 = vmul.f32 %v7902, 1.442695
  %v7964 = vpow.pop %v7963
  %v7965 = vmul.f32 %v7903, 1.442695
  %v7966 = vpow.pop %v7965
  %v7967 = vmul.f32 %v7904, 1.442695
  %v7968 = vpow.pop %v7967
  %v7969 = vadd.f32 %v7906, 1.0
  %v7970 = vadd.f32 %v7908, 1.0
  %v7971 = vadd.f32 %v7910, 1.0
  %v7972 = vadd.f32 %v7912, 1.0
  %v7973 = vadd.f32 %v7914, 1.0
  %v7974 = vadd.f32 %v7916, 1.0
  %v7975 = vadd.f32 %v7918, 1.0
  %v7976 = vadd.f32 %v7920, 1.0
  %v7977 = vadd.f32 %v7922, 1.0
  %v7978 = vadd.f32 %v7924, 1.0
  %v7979 = vadd.f32 %v7926, 1.0
  %v7980 = vadd.f32 %v7928, 1.0
  %v7981 = vadd.f32 %v7930, 1.0
  %v7982 = vadd.f32 %v7932, 1.0
  %v7983 = vadd.f32 %v7934, 1.0
  %v7984 = vadd.f32 %v7936, 1.0
  %v7985 = vadd.f32 %v7938, 1.0
  %v7986 = vadd.f32 %v7940, 1.0
  %v7987 = vadd.f32 %v7942, 1.0
  %v7988 = vadd.f32 %v7944, 1.0
  %v7989 = vadd.f32 %v7946, 1.0
  %v7990 = vadd.f32 %v7948, 1.0
  %v7991 = vadd.f32 %v7950, 1.0
  %v7992 = vadd.f32 %v7952, 1.0
  %v7993 = vadd.f32 %v7954, 1.0
  %v7994 = vadd.f32 %v7956, 1.0
  %v7995 = vadd.f32 %v7958, 1.0
  %v7996 = vadd.f32 %v7960, 1.0
  %v7997 = vadd.f32 %v7962, 1.0
  %v7998 = vadd.f32 %v7964, 1.0
  %v7999 = vadd.f32 %v7966, 1.0
  %v8000 = vadd.f32 %v7968, 1.0
  %v8001 = vrcp.pop %v7969
  %v8002 = vmul.f32 1.0, %v8001
  %v8003 = vrcp.pop %v7970
  %v8004 = vmul.f32 1.0, %v8003
  %v8005 = vrcp.pop %v7971
  %v8006 = vmul.f32 1.0, %v8005
  %v8007 = vrcp.pop %v7972
  %v8008 = vmul.f32 1.0, %v8007
  %v8009 = vrcp.pop %v7973
  %v8010 = vmul.f32 1.0, %v8009
  %v8011 = vrcp.pop %v7974
  %v8012 = vmul.f32 1.0, %v8011
  %v8013 = vrcp.pop %v7975
  %v8014 = vmul.f32 1.0, %v8013
  %v8015 = vrcp.pop %v7976
  %v8016 = vmul.f32 1.0, %v8015
  %v8017 = vrcp.pop %v7977
  %v8018 = vmul.f32 1.0, %v8017
  %v8019 = vrcp.pop %v7978
  %v8020 = vmul.f32 1.0, %v8019
  %v8021 = vrcp.pop %v7979
  %v8022 = vmul.f32 1.0, %v8021
  %v8023 = vrcp.pop %v7980
  %v8024 = vmul.f32 1.0, %v8023
  %v8025 = vrcp.pop %v7981
  %v8026 = vmul.f32 1.0, %v8025
  %v8027 = vrcp.pop %v7982
  %v8028 = vmul.f32 1.0, %v8027
  %v8029 = vrcp.pop %v7983
  %v8030 = vmul.f32 1.0, %v8029
  %v8031 = vrcp.pop %v7984
  %v8032 = vmul.f32 1.0, %v8031
  %v8033 = vrcp.pop %v7985
  %v8034 = vmul.f32 1.0, %v8033
  %v8035 = vrcp.pop %v7986
  %v8036 = vmul.f32 1.0, %v8035
  %v8037 = vrcp.pop %v7987
  %v8038 = vmul.f32 1.0, %v8037
  %v8039 = vrcp.pop %v7988
  %v8040 = vmul.f32 1.0, %v8039
  %v8041 = vrcp.pop %v7989
  %v8042 = vmul.f32 1.0, %v8041
  %v8043 = vrcp.pop %v7990
  %v8044 = vmul.f32 1.0, %v8043
  %v8045 = vrcp.pop %v7991
  %v8046 = vmul.f32 1.0, %v8045
  %v8047 = vrcp.pop %v7992
  %v8048 = vmul.f32 1.0, %v8047
  %v8049 = vrcp.pop %v7993
  %v8050 = vmul.f32 1.0, %v8049
  %v8051 = vrcp.pop %v7994
  %v8052 = vmul.f32 1.0, %v8051
  %v8053 = vrcp.pop %v7995
  %v8054 = vmul.f32 1.0, %v8053
  %v8055 = vrcp.pop %v7996
  %v8056 = vmul.f32 1.0, %v8055
  %v8057 = vrcp.pop %v7997
  %v8058 = vmul.f32 1.0, %v8057
  %v8059 = vrcp.pop %v7998
  %v8060 = vmul.f32 1.0, %v8059
  %v8061 = vrcp.pop %v7999
  %v8062 = vmul.f32 1.0, %v8061
  %v8063 = vrcp.pop %v8000
  %v8064 = vmul.f32 1.0, %v8063
  %vm8065 = vcmask 7168
  %8066 = vst.msk [vmem:[%s5] sm:$0xff] %vm8065, %v8002
  %8067 = vst.msk [vmem:[%s5 + $0x8] sm:$0xff] %vm8065, %v8004
  %8068 = vst.msk [vmem:[%s5 + $0x10] sm:$0xff] %vm8065, %v8006
  %8069 = vst.msk [vmem:[%s5 + $0x18] sm:$0xff] %vm8065, %v8008
  %8070 = vst.msk [vmem:[%s5 + $0x20] sm:$0xff] %vm8065, %v8010
  %8071 = vst.msk [vmem:[%s5 + $0x28] sm:$0xff] %vm8065, %v8012
  %8072 = vst.msk [vmem:[%s5 + $0x30] sm:$0xff] %vm8065, %v8014
  %8073 = vst.msk [vmem:[%s5 + $0x38] sm:$0xff] %vm8065, %v8016
  %8074 = vst.msk [vmem:[%s5 + $0x40] sm:$0xff] %vm8065, %v8018
  %8075 = vst.msk [vmem:[%s5 + $0x48] sm:$0xff] %vm8065, %v8020
  %8076 = vst.msk [vmem:[%s5 + $0x50] sm:$0xff] %vm8065, %v8022
  %8077 = vst.msk [vmem:[%s5 + $0x58] sm:$0xff] %vm8065, %v8024
  %8078 = vst.msk [vmem:[%s5 + $0x60] sm:$0xff] %vm8065, %v8026
  %8079 = vst.msk [vmem:[%s5 + $0x68] sm:$0xff] %vm8065, %v8028
  %8080 = vst.msk [vmem:[%s5 + $0x70] sm:$0xff] %vm8065, %v8030
  %8081 = vst.msk [vmem:[%s5 + $0x78] sm:$0xff] %vm8065, %v8032
  %8082 = vst.msk [vmem:[%s5 + $0x80] sm:$0xff] %vm8065, %v8034
  %8083 = vst.msk [vmem:[%s5 + $0x88] sm:$0xff] %vm8065, %v8036
  %8084 = vst.msk [vmem:[%s5 + $0x90] sm:$0xff] %vm8065, %v8038
  %8085 = vst.msk [vmem:[%s5 + $0x98] sm:$0xff] %vm8065, %v8040
  %8086 = vst.msk [vmem:[%s5 + $0xa0] sm:$0xff] %vm8065, %v8042
  %8087 = vst.msk [vmem:[%s5 + $0xa8] sm:$0xff] %vm8065, %v8044
  %8088 = vst.msk [vmem:[%s5 + $0xb0] sm:$0xff] %vm8065, %v8046
  %8089 = vst.msk [vmem:[%s5 + $0xb8] sm:$0xff] %vm8065, %v8048
  %8090 = vst.msk [vmem:[%s5 + $0xc0] sm:$0xff] %vm8065, %v8050
  %8091 = vst.msk [vmem:[%s5 + $0xc8] sm:$0xff] %vm8065, %v8052
  %8092 = vst.msk [vmem:[%s5 + $0xd0] sm:$0xff] %vm8065, %v8054
  %8093 = vst.msk [vmem:[%s5 + $0xd8] sm:$0xff] %vm8065, %v8056
  %8094 = vst.msk [vmem:[%s5 + $0xe0] sm:$0xff] %vm8065, %v8058
  %8095 = vst.msk [vmem:[%s5 + $0xe8] sm:$0xff] %vm8065, %v8060
  %8096 = vst.msk [vmem:[%s5 + $0xf0] sm:$0xff] %vm8065, %v8062
  %8097 = vst.msk [vmem:[%s5 + $0xf8] sm:$0xff] %vm8065, %v8064
  // Predicated region
  $region22: #{domain_classifier_forward.1} parent=0 // pred_check
    _
  $region23: #{domain_classifier_forward.1} parent=0 // pred_check_branch
    %8099 = sbr.rel (0) target = $region25
  $region24: #{domain_classifier_forward.1} parent=0 // pred_region
    _
  $region25: #{domain_classifier_forward.1} parent=0 // pred_fallthru
    _
  // Predicated region
  $region26: #{domain_classifier_forward.1} parent=0 // pred_check
    _
  $region27: #{domain_classifier_forward.1} parent=0 // pred_check_branch
    %8101 = sbr.rel (0) target = $region29
  $region28: #{domain_classifier_forward.1} parent=0 // pred_region
    _
  $region29: #{domain_classifier_forward.1} parent=0 // pred_fallthru
    _

</llo_original>
